<compile_context>
chip_gen: v6e
topology: v6e:2x2x1
jax: 0.10.0
libtpu: 0.0.40
codegen_flags: <defaults>
</compile_context>

<pallas_src>
import math

import jax
import jax.numpy as jnp
from jax.experimental import pallas as pl
from jax.experimental.pallas import tpu as pltpu


# ---------------------------------------------------------------------------
# Host-side helpers
# ---------------------------------------------------------------------------
def _round_up(x, m):
    return ((x + m - 1) // m) * m


def _pick_tn(cout):
    """Cout tile width: match the MXU N dim per generation (256 on v6e, else 128)."""
    kind = ""
    try:
        kind = jax.devices()[0].device_kind.lower()
    except Exception:
        pass
    if "v6" in kind and cout % 256 == 0:
        return 256
    if cout % 128 == 0:
        return 128
    return cout  # lane-sparse fallback for odd channel counts


def _conv_strip_rows(h, w, tn):
    """Rows per in-kernel conv strip: a multiple of W that divides H*W and keeps
    the f32 accumulator at <= ~64 KiB (~16 vregs) so it never spills."""
    budget = max(1, (64 * 1024) // (tn * 4))
    g = max(1, min(h, budget // max(w, 1)))
    while h % g:
        g -= 1
    return w * g


def _group_avg_matrix(c, groups=32):
    """(C, C) block-diagonal group-averaging matrix (per-channel stats -> group stats)."""
    cpg = c // groups
    return jnp.kron(jnp.eye(groups, dtype=jnp.float32),
                    jnp.full((cpg, cpg), 1.0 / cpg, jnp.float32))


def _conv3x3_weight_to_w9(w):
    # torch (Cout, Cin, 3, 3) -> (3, 3, Cin, Cout) -> (9, Cin, Cout), bf16
    cout, cin = w.shape[0], w.shape[1]
    return jnp.transpose(w, (2, 3, 1, 0)).reshape(9, cin, cout).astype(jnp.bfloat16)


def _conv_params(key, cin, cout, ksize):
    kw, kb = jax.random.split(key)
    fan_in = cin * ksize * ksize
    bound = 1.0 / math.sqrt(fan_in)  # torch Conv2d default init bound
    w = jax.random.uniform(kw, (cout, cin, ksize, ksize), jnp.float32, -bound, bound)
    b = jax.random.uniform(kb, (cout,), jnp.float32, -bound, bound)
    return w, b


# ---------------------------------------------------------------------------
# Fused GroupNorm(32)+SiLU -> 3x3 conv (pad=1) [+1x1 skip conv] [+residual]
# ---------------------------------------------------------------------------
def _make_fused_conv_kernel(H, W, cin, tn, sm, p0, has_gn, has_skip, has_res):
    hw = H * W
    n_strips = hw // sm

    def kernel(*refs):
        it = iter(refs)
        x_ref = next(it)
        if has_gn:
            g_ref = next(it)
            b0_ref = next(it)
            gmat_ref = next(it)
        w_ref = next(it)
        bias_ref = next(it)
        if has_skip:
            sx_ref = next(it)
            sw_ref = next(it)
            sb_ref = next(it)
        if has_res:
            res_ref = next(it)
        o_ref = next(it)
        pad_ref = next(it)  # VMEM scratch: (hw + 2*p0, cin) bf16, flattened halo slab

        # -- 1. zero the halo rows of the padded slab (taps read into them) ----
        zeros = jnp.zeros((p0, cin), jnp.bfloat16)
        pad_ref[pl.ds(0, p0), :] = zeros
        pad_ref[pl.ds(p0 + hw, p0), :] = zeros

        # -- 2. GroupNorm(32)+SiLU streamed into the slab interior (bf16) ------
        if has_gn:
            s1 = jnp.zeros((1, cin), jnp.float32)
            s2 = jnp.zeros((1, cin), jnp.float32)
            for s in range(n_strips):
                xv = x_ref[0, pl.ds(s * sm, sm), :].astype(jnp.float32)
                s1 = s1 + jnp.sum(xv, axis=0, keepdims=True)
                s2 = s2 + jnp.sum(xv * xv, axis=0, keepdims=True)
            inv_hw = 1.0 / hw
            mean_c = s1 * inv_hw
            ex2_c = s2 * inv_hw
            # per-group stats via the tiny block-diagonal averaging matmul
            gmean = jnp.dot(mean_c, gmat_ref[...], preferred_element_type=jnp.float32)
            gex2 = jnp.dot(ex2_c, gmat_ref[...], preferred_element_type=jnp.float32)
            var = jnp.maximum(gex2 - gmean * gmean, 0.0)
            inv = jax.lax.rsqrt(var + 1e-5)            # torch GroupNorm eps
            scale = inv * g_ref[...]
            shift = b0_ref[...] - gmean * scale
            for s in range(n_strips):
                xv = x_ref[0, pl.ds(s * sm, sm), :].astype(jnp.float32)
                y = xv * scale + shift
                pad_ref[pl.ds(p0 + s * sm, sm), :] = (y * jax.nn.sigmoid(y)).astype(jnp.bfloat16)
        else:
            for s in range(n_strips):
                pad_ref[pl.ds(p0 + s * sm, sm), :] = (
                    x_ref[0, pl.ds(s * sm, sm), :].astype(jnp.bfloat16))

        # -- 3. column masks that kill horizontally wrapped rows ---------------
        col = jax.lax.broadcasted_iota(jnp.int32, (sm, 1), 0) % W
        mask_l = (col > 0).astype(jnp.bfloat16)        # for dw = -1 taps
        mask_r = (col < W - 1).astype(jnp.bfloat16)    # for dw = +1 taps

        # -- 4. conv strips: 9 contiguous flattened taps, bounded f32 vreg acc -
        for s in range(n_strips):
            r0 = s * sm
            acc = jnp.zeros((sm, tn), jnp.float32)
            for kh in range(3):
                for kw in range(3):
                    start = p0 + r0 + (kh - 1) * W + (kw - 1)
                    tap = pad_ref[pl.ds(start, sm), :]          # one contiguous slice
                    if kw == 0:
                        tap = tap * mask_l
                    elif kw == 2:
                        tap = tap * mask_r
                    acc = acc + jnp.dot(tap, w_ref[3 * kh + kw],
                                        preferred_element_type=jnp.float32)
            acc = acc + bias_ref[...]
            if has_skip:                                        # fused 1x1 skip conv
                sx = sx_ref[0, pl.ds(r0, sm), :].astype(jnp.bfloat16)
                acc = acc + jnp.dot(sx, sw_ref[...], preferred_element_type=jnp.float32)
                acc = acc + sb_ref[...]
            if has_res:                                         # fused residual add
                acc = acc + res_ref[0, pl.ds(r0, sm), :].astype(jnp.float32)
            o_ref[0, pl.ds(r0, sm), :] = acc.astype(o_ref.dtype)

    return kernel


def fused_gn_silu_conv3x3(x_flat, H, W, w9, bias, *, gn=None, skip=None,
                          residual=None, out_dtype=jnp.float32):
    """x_flat: (N, H*W, Cin).  Optional GN+SiLU prologue, 3x3 conv (pad=1),
    optional fused 1x1-conv skip `skip=(xs, wT, b)` and fused residual add."""
    N, HW, Cin = x_flat.shape
    assert HW == H * W
    Cout = w9.shape[-1]
    tn = _pick_tn(Cout)
    sm = _conv_strip_rows(H, W, tn)
    p0 = _round_up(W + 1, 8)           # halo rows on each side of the flat slab

    has_gn = gn is not None
    has_skip = skip is not None
    has_res = residual is not None
    kernel = _make_fused_conv_kernel(H, W, Cin, tn, sm, p0, has_gn, has_skip, has_res)

    in_specs = [pl.BlockSpec((1, HW, Cin), lambda n, j: (n, 0, 0))]
    args = [x_flat]
    if has_gn:
        gamma, beta, gmat = gn
        in_specs += [pl.BlockSpec((1, Cin), lambda n, j: (0, 0)),
                     pl.BlockSpec((1, Cin), lambda n, j: (0, 0)),
                     pl.BlockSpec((Cin, Cin), lambda n, j: (0, 0))]
        args += [gamma, beta, gmat]
    in_specs += [pl.BlockSpec((9, Cin, tn), lambda n, j: (0, 0, j)),
                 pl.BlockSpec((1, tn), lambda n, j: (0, j))]
    args += [w9, bias]
    if has_skip:
        sx, sw, sb = skip
        Cs = sx.shape[-1]
        in_specs += [pl.BlockSpec((1, HW, Cs), lambda n, j: (n, 0, 0)),
                     pl.BlockSpec((Cs, tn), lambda n, j: (0, j)),
                     pl.BlockSpec((1, tn), lambda n, j: (0, j))]
        args += [sx, sw, sb]
    if has_res:
        in_specs += [pl.BlockSpec((1, HW, tn), lambda n, j: (n, 0, j))]
        args += [residual]

    return pl.pallas_call(
        kernel,
        out_shape=jax.ShapeDtypeStruct((N, HW, Cout), out_dtype),
        grid=(N, Cout // tn),
        in_specs=in_specs,
        out_specs=pl.BlockSpec((1, HW, tn), lambda n, j: (n, 0, j)),
        scratch_shapes=[pltpu.VMEM((HW + 2 * p0, Cin), jnp.bfloat16)],
        compiler_params=pltpu.CompilerParams(
            dimension_semantics=("parallel", "parallel")),
    )(*args)


# ---------------------------------------------------------------------------
# ResBlock (forward / eval semantics of the PyTorch module)
# ---------------------------------------------------------------------------
class ResBlock:
    def __init__(self, channels, dropout, out_channels=None, use_conv=False,
                 use_scale_shift_norm=False, dims=2, use_checkpoint=False,
                 up=False, down=False, key=None):
        assert dims == 2, "only dims=2 implemented here"
        # TODO(synk): up/down resampling variants (Upsample/Downsample inner ops).
        assert not (up or down), "up/down ResBlock variants not implemented"
        self.channels = channels
        self.out_channels = out_channels or channels
        self.use_conv = use_conv
        self.dropout = dropout
        self.use_scale_shift_norm = use_scale_shift_norm
        self.use_checkpoint = use_checkpoint        # forward-pass no-op
        assert channels % 32 == 0 and self.out_channels % 32 == 0

        if key is None:
            key = jax.random.PRNGKey(0)
        k1, k2 = jax.random.split(key)
        co = self.out_channels

        # in_layers: GroupNorm32(32, C) -> SiLU -> Conv(C -> Cout, 3, pad=1)
        self.gn1_w = jnp.ones((1, channels), jnp.float32)
        self.gn1_b = jnp.zeros((1, channels), jnp.float32)
        self.gmat1 = _group_avg_matrix(channels, 32)
        w1, b1 = _conv_params(k1, channels, co, 3)
        self.conv1_w9 = _conv3x3_weight_to_w9(w1)                 # cached bf16 pack
        self.conv1_b = b1.reshape(1, co).astype(jnp.float32)

        # out_layers: GroupNorm32 -> SiLU -> Dropout -> zero_module(Conv)
        self.gn2_w = jnp.ones((1, co), jnp.float32)
        self.gn2_b = jnp.zeros((1, co), jnp.float32)
        self.gmat2 = _group_avg_matrix(co, 32)
        self.conv2_w9 = jnp.zeros((9, co, co), jnp.bfloat16)      # zero_module
        self.conv2_b = jnp.zeros((1, co), jnp.float32)

        # skip connection
        if co == channels:
            self.skip_kind = "identity"
        elif use_conv:
            self.skip_kind = "conv3x3"
            w, b = _conv_params(k2, channels, co, 3)
            self.skip_w_raw, self.skip_b_raw = w, b
            self.skip_w9 = _conv3x3_weight_to_w9(w)
            self.skip_b = b.reshape(1, co).astype(jnp.float32)
        else:
            self.skip_kind = "conv1x1"
            w, b = _conv_params(k2, channels, co, 1)
            self.skip_w_raw, self.skip_b_raw = w, b
            self.skip_wT = w.reshape(co, channels).T.astype(jnp.bfloat16)
            self.skip_b = b.reshape(1, co).astype(jnp.float32)

    def __call__(self, x_nchw):
        assert x_nchw.shape[1] == self.channels
        N, C, H, W = x_nchw.shape
        co = self.out_channels
        # single layout change in / out; everything internal is NHWC (flattened)
        x = jnp.transpose(x_nchw, (0, 2, 3, 1)).astype(jnp.float32)
        x_flat = x.reshape(N, H * W, C)

        # in_layers fused; bf16 intermediate halves HBM for the next stage
        h = fused_gn_silu_conv3x3(
            x_flat, H, W, self.conv1_w9, self.conv1_b,
            gn=(self.gn1_w, self.gn1_b, self.gmat1), out_dtype=jnp.bfloat16)

        # TODO(synk): training-mode dropout (pltpu.prng_random_bits mask); eval
        # dropout is the identity, which is what is applied here.
        gn2 = (self.gn2_w, self.gn2_b, self.gmat2)
        if self.skip_kind == "identity":
            out = fused_gn_silu_conv3x3(
                h, H, W, self.conv2_w9, self.conv2_b, gn=gn2,
                residual=x_flat, out_dtype=jnp.float32)
        elif self.skip_kind == "conv1x1":
            out = fused_gn_silu_conv3x3(
                h, H, W, self.conv2_w9, self.conv2_b, gn=gn2,
                skip=(x_flat, self.skip_wT, self.skip_b), out_dtype=jnp.float32)
        else:  # use_conv=True: 3x3 skip conv on raw x, residual h fused into it
            h2 = fused_gn_silu_conv3x3(
                h, H, W, self.conv2_w9, self.conv2_b, gn=gn2, out_dtype=jnp.float32)
            out = fused_gn_silu_conv3x3(
                x_flat, H, W, self.skip_w9, self.skip_b, gn=None,
                residual=h2, out_dtype=jnp.float32)

        return jnp.transpose(out.reshape(N, H, W, co), (0, 3, 1, 2))


# ---------------------------------------------------------------------------
# Pure-JAX reference for the fused kernel (used only for the self-check)
# ---------------------------------------------------------------------------
def _ref_gn_silu_conv3x3(x_nhwc, gamma, beta, w, b, groups=32):
    N, H, W, C = x_nhwc.shape
    cpg = C // groups
    xg = x_nhwc.reshape(N, H, W, groups, cpg)
    mean = jnp.mean(xg, axis=(1, 2, 4), keepdims=True)
    var = jnp.mean((xg - mean) ** 2, axis=(1, 2, 4), keepdims=True)
    xn = ((xg - mean) * jax.lax.rsqrt(var + 1e-5)).reshape(N, H, W, C)
    xn = xn * gamma + beta
    a = xn * jax.nn.sigmoid(xn)
    y = jax.lax.conv_general_dilated(
        a, jnp.transpose(w, (2, 3, 1, 0)), window_strides=(1, 1),
        padding=((1, 1), (1, 1)), dimension_numbers=("NHWC", "HWIO", "NHWC"))
    return y + b


# ---------------------------------------------------------------------------
if __name__ == "__main__":
    key = jax.random.PRNGKey(0)
    kx, k1, k2, k3 = jax.random.split(key, 4)

    N, C, H, W = 2, 64, 16, 16
    COUT = 128
    x = jax.random.normal(kx, (N, C, H, W), dtype=jnp.float32)

    # channel-changing block -> fused GN+conv and fused 1x1-conv skip path
    block1 = ResBlock(channels=C, dropout=0.0, out_channels=COUT, key=k1)
    y1 = block1(x)
    # channel-preserving block -> fused identity-residual path
    block2 = ResBlock(channels=COUT, dropout=0.1, key=k2)
    y2 = block2(y1)
    jax.block_until_ready((y1, y2))

    assert y1.shape == (N, COUT, H, W), y1.shape
    assert y2.shape == (N, COUT, H, W), y2.shape
    assert bool(jnp.all(jnp.isfinite(y1))) and bool(jnp.all(jnp.isfinite(y2)))

    # --- correctness self-checks (loose tolerances: bf16 MXU operands) -------
    # (a) out_layers conv is zero-initialized, so block1's output is exactly its
    #     1x1-conv skip and block2's output equals its input.
    w2d = block1.skip_w_raw[:, :, 0, 0]
    ref1 = jnp.einsum("nchw,oc->nohw", x, w2d) + block1.skip_b_raw[None, :, None, None]
    assert float(jnp.max(jnp.abs(y1 - ref1))) < 5e-2
    assert float(jnp.max(jnp.abs(y2 - y1))) < 1e-5

    # (b) standalone fused GroupNorm+SiLU+conv3x3 kernel vs pure-JAX reference
    kcw, kcx, kcg = jax.random.split(k3, 3)
    wt, bt = _conv_params(kcw, C, COUT, 3)
    xt = jax.random.normal(kcx, (1, H, W, C), jnp.float32)
    gamma_t = 1.0 + 0.1 * jax.random.normal(kcg, (C,), jnp.float32)
    beta_t = 0.1 * jnp.ones((C,), jnp.float32)
    got = fused_gn_silu_conv3x3(
        xt.reshape(1, H * W, C), H, W, _conv3x3_weight_to_w9(wt),
        bt.reshape(1, COUT).astype(jnp.float32),
        gn=(gamma_t.reshape(1, C), beta_t.reshape(1, C), _group_avg_matrix(C, 32)),
        out_dtype=jnp.float32).reshape(1, H, W, COUT)
    ref = _ref_gn_silu_conv3x3(xt, gamma_t, beta_t, wt, bt)
    assert float(jnp.max(jnp.abs(got - ref))) < 5e-2

    print("KERNEL_OK")
</pallas_src>

<mosaic_0001>
module attributes {stable_mosaic.version = 11 : i64} {
  func.func @kernel(%arg0: i32, %arg1: i32, %arg2: memref<1x256x64xf32, #tpu.memory_space<vmem>>, %arg3: memref<1x64xf32, #tpu.memory_space<vmem>>, %arg4: memref<1x64xf32, #tpu.memory_space<vmem>>, %arg5: memref<64x64xf32, #tpu.memory_space<vmem>>, %arg6: memref<9x64x128xbf16, #tpu.memory_space<vmem>>, %arg7: memref<1x128xf32, #tpu.memory_space<vmem>>, %arg8: memref<1x256x128xbf16, #tpu.memory_space<vmem>>, %arg9: memref<304x64xbf16, #tpu.memory_space<vmem>>) attributes {dimension_semantics = [#tpu.dimension_semantics<parallel>, #tpu.dimension_semantics<parallel>], iteration_bounds = array<i64: 2, 1>, scalar_prefetch = 0 : i64, scratch_operands = 1 : i64, tpu.core_type = #tpu.core_type<tc>, window_params = [{transform_indices = @transform_0, window_bounds = array<i64: 1, 256, 64>}, {pipeline_mode = #tpu.pipeline_mode<synchronous>, transform_indices = @transform_1, window_bounds = array<i64: 1, 64>}, {pipeline_mode = #tpu.pipeline_mode<synchronous>, transform_indices = @transform_2, window_bounds = array<i64: 1, 64>}, {pipeline_mode = #tpu.pipeline_mode<synchronous>, transform_indices = @transform_3, window_bounds = array<i64: 64, 64>}, {transform_indices = @transform_4, window_bounds = array<i64: 9, 64, 128>}, {transform_indices = @transform_5, window_bounds = array<i64: 1, 128>}, {transform_indices = @transform_6, window_bounds = array<i64: 1, 256, 128>}]} {
    %cst = arith.constant 0.000000e+00 : bf16
    %0 = vector.broadcast %cst : bf16 to vector<24x64xbf16>
    %c0 = arith.constant 0 : index
    %c0_0 = arith.constant 0 : index
    %1 = vector.load %arg9[%c0, %c0_0] : memref<304x64xbf16, #tpu.memory_space<vmem>>, vector<24x64xbf16>
    tpu.vector_store %arg9[%c0, %c0_0], %0 {strides = array<i32>} : memref<304x64xbf16, #tpu.memory_space<vmem>>, vector<24x64xbf16>,
    %c280 = arith.constant 280 : index
    %c0_1 = arith.constant 0 : index
    %2 = vector.load %arg9[%c280, %c0_1] : memref<304x64xbf16, #tpu.memory_space<vmem>>, vector<24x64xbf16>
    tpu.vector_store %arg9[%c280, %c0_1], %0 {strides = array<i32>} : memref<304x64xbf16, #tpu.memory_space<vmem>>, vector<24x64xbf16>,
    %cst_2 = arith.constant 0.000000e+00 : f32
    %3 = vector.broadcast %cst_2 : f32 to vector<1x64xf32>
    %cst_3 = arith.constant 0.000000e+00 : f32
    %4 = vector.broadcast %cst_3 : f32 to vector<1x64xf32>
    %c0_4 = arith.constant 0 : index
    %c0_5 = arith.constant 0 : index
    %c0_6 = arith.constant 0 : index
    %5 = vector.load %arg2[%c0_4, %c0_5, %c0_6] : memref<1x256x64xf32, #tpu.memory_space<vmem>>, vector<1x128x64xf32>
    %6 = vector.shape_cast %5 : vector<1x128x64xf32> to vector<128x64xf32>
    %cst_7 = arith.constant dense<0.000000e+00> : vector<64xf32>
    %7 = vector.multi_reduction <add>, %6, %cst_7 [0] : vector<128x64xf32> to vector<64xf32>
    %8 = vector.shape_cast %7 : vector<64xf32> to vector<1x64xf32>
    %9 = arith.addf %3, %8 : vector<1x64xf32>
    %10 = arith.mulf %6, %6 : vector<128x64xf32>
    %cst_8 = arith.constant dense<0.000000e+00> : vector<64xf32>
    %11 = vector.multi_reduction <add>, %10, %cst_8 [0] : vector<128x64xf32> to vector<64xf32>
    %12 = vector.shape_cast %11 : vector<64xf32> to vector<1x64xf32>
    %13 = arith.addf %4, %12 : vector<1x64xf32>
    %c0_9 = arith.constant 0 : index
    %c128 = arith.constant 128 : index
    %c0_10 = arith.constant 0 : index
    %14 = vector.load %arg2[%c0_9, %c128, %c0_10] : memref<1x256x64xf32, #tpu.memory_space<vmem>>, vector<1x128x64xf32>
    %15 = vector.shape_cast %14 : vector<1x128x64xf32> to vector<128x64xf32>
    %cst_11 = arith.constant dense<0.000000e+00> : vector<64xf32>
    %16 = vector.multi_reduction <add>, %15, %cst_11 [0] : vector<128x64xf32> to vector<64xf32>
    %17 = vector.shape_cast %16 : vector<64xf32> to vector<1x64xf32>
    %18 = arith.addf %9, %17 : vector<1x64xf32>
    %19 = arith.mulf %15, %15 : vector<128x64xf32>
    %cst_12 = arith.constant dense<0.000000e+00> : vector<64xf32>
    %20 = vector.multi_reduction <add>, %19, %cst_12 [0] : vector<128x64xf32> to vector<64xf32>
    %21 = vector.shape_cast %20 : vector<64xf32> to vector<1x64xf32>
    %22 = arith.addf %13, %21 : vector<1x64xf32>
    %cst_13 = arith.constant 3.906250e-03 : f32
    %23 = vector.broadcast %cst_13 : f32 to vector<1x64xf32>
    %24 = arith.mulf %18, %23 : vector<1x64xf32>
    %cst_14 = arith.constant 3.906250e-03 : f32
    %25 = vector.broadcast %cst_14 : f32 to vector<1x64xf32>
    %26 = arith.mulf %22, %25 : vector<1x64xf32>
    %c0_15 = arith.constant 0 : index
    %c0_16 = arith.constant 0 : index
    %27 = vector.load %arg5[%c0_15, %c0_16] : memref<64x64xf32, #tpu.memory_space<vmem>>, vector<64x64xf32>
    %cst_17 = arith.constant dense<0.000000e+00> : vector<1x64xf32>
    %28 = tpu.matmul %24, %27, %cst_17 {dimension_numbers = #tpu.dot_dimension_numbers<[1], [0], [0], [1], [0, 0, 1, 1], [], []>} : vector<1x64xf32>, vector<64x64xf32>, vector<1x64xf32> -> vector<1x64xf32>
    %c0_18 = arith.constant 0 : index
    %c0_19 = arith.constant 0 : index
    %29 = vector.load %arg5[%c0_18, %c0_19] : memref<64x64xf32, #tpu.memory_space<vmem>>, vector<64x64xf32>
    %cst_20 = arith.constant dense<0.000000e+00> : vector<1x64xf32>
    %30 = tpu.matmul %26, %29, %cst_20 {dimension_numbers = #tpu.dot_dimension_numbers<[1], [0], [0], [1], [0, 0, 1, 1], [], []>} : vector<1x64xf32>, vector<64x64xf32>, vector<1x64xf32> -> vector<1x64xf32>
    %31 = arith.mulf %28, %28 : vector<1x64xf32>
    %32 = arith.subf %30, %31 : vector<1x64xf32>
    %cst_21 = arith.constant 0.000000e+00 : f32
    %33 = vector.broadcast %cst_21 : f32 to vector<1x64xf32>
    %34 = arith.maximumf %32, %33 : vector<1x64xf32>
    %cst_22 = arith.constant 9.99999974E-6 : f32
    %35 = vector.broadcast %cst_22 : f32 to vector<1x64xf32>
    %36 = arith.addf %34, %35 : vector<1x64xf32>
    %37 = math.rsqrt %36 : vector<1x64xf32>
    %c0_23 = arith.constant 0 : index
    %c0_24 = arith.constant 0 : index
    %38 = vector.load %arg3[%c0_23, %c0_24] : memref<1x64xf32, #tpu.memory_space<vmem>>, vector<1x64xf32>
    %39 = arith.mulf %37, %38 : vector<1x64xf32>
    %c0_25 = arith.constant 0 : index
    %c0_26 = arith.constant 0 : index
    %40 = vector.load %arg4[%c0_25, %c0_26] : memref<1x64xf32, #tpu.memory_space<vmem>>, vector<1x64xf32>
    %41 = arith.mulf %28, %39 : vector<1x64xf32>
    %42 = arith.subf %40, %41 : vector<1x64xf32>
    %c0_27 = arith.constant 0 : index
    %c0_28 = arith.constant 0 : index
    %c0_29 = arith.constant 0 : index
    %43 = vector.load %arg2[%c0_27, %c0_28, %c0_29] : memref<1x256x64xf32, #tpu.memory_space<vmem>>, vector<1x128x64xf32>
    %44 = vector.shape_cast %43 : vector<1x128x64xf32> to vector<128x64xf32>
    %45 = vector.broadcast %39 : vector<1x64xf32> to vector<128x64xf32>
    %46 = arith.mulf %44, %45 : vector<128x64xf32>
    %47 = vector.broadcast %42 : vector<1x64xf32> to vector<128x64xf32>
    %48 = arith.addf %46, %47 : vector<128x64xf32>
    %49 = arith.negf %48 : vector<128x64xf32>
    %50 = math.exp %49 : vector<128x64xf32>
    %cst_30 = arith.constant 1.000000e+00 : f32
    %51 = vector.broadcast %cst_30 : f32 to vector<128x64xf32>
    %52 = arith.addf %51, %50 : vector<128x64xf32>
    %53 = arith.divf %51, %52 : vector<128x64xf32>
    %54 = arith.mulf %48, %53 : vector<128x64xf32>
    %55 = arith.truncf %54 : vector<128x64xf32> to vector<128x64xbf16>
    %c24 = arith.constant 24 : index
    %c0_31 = arith.constant 0 : index
    %56 = vector.load %arg9[%c24, %c0_31] : memref<304x64xbf16, #tpu.memory_space<vmem>>, vector<128x64xbf16>
    tpu.vector_store %arg9[%c24, %c0_31], %55 {strides = array<i32>} : memref<304x64xbf16, #tpu.memory_space<vmem>>, vector<128x64xbf16>,
    %c0_32 = arith.constant 0 : index
    %c128_33 = arith.constant 128 : index
    %c0_34 = arith.constant 0 : index
    %57 = vector.load %arg2[%c0_32, %c128_33, %c0_34] : memref<1x256x64xf32, #tpu.memory_space<vmem>>, vector<1x128x64xf32>
    %58 = vector.shape_cast %57 : vector<1x128x64xf32> to vector<128x64xf32>
    %59 = vector.broadcast %39 : vector<1x64xf32> to vector<128x64xf32>
    %60 = arith.mulf %58, %59 : vector<128x64xf32>
    %61 = vector.broadcast %42 : vector<1x64xf32> to vector<128x64xf32>
    %62 = arith.addf %60, %61 : vector<128x64xf32>
    %63 = arith.negf %62 : vector<128x64xf32>
    %64 = math.exp %63 : vector<128x64xf32>
    %cst_35 = arith.constant 1.000000e+00 : f32
    %65 = vector.broadcast %cst_35 : f32 to vector<128x64xf32>
    %66 = arith.addf %65, %64 : vector<128x64xf32>
    %67 = arith.divf %65, %66 : vector<128x64xf32>
    %68 = arith.mulf %62, %67 : vector<128x64xf32>
    %69 = arith.truncf %68 : vector<128x64xf32> to vector<128x64xbf16>
    %c152 = arith.constant 152 : index
    %c0_36 = arith.constant 0 : index
    %70 = vector.load %arg9[%c152, %c0_36] : memref<304x64xbf16, #tpu.memory_space<vmem>>, vector<128x64xbf16>
    tpu.vector_store %arg9[%c152, %c0_36], %69 {strides = array<i32>} : memref<304x64xbf16, #tpu.memory_space<vmem>>, vector<128x64xbf16>,
    %71 = tpu.iota {dimensions = array<i32: 0>} : vector<128x1xi32>
    %c16_i32 = arith.constant 16 : i32
    %c0_i32 = arith.constant 0 : i32
    %72 = arith.cmpi eq, %c16_i32, %c0_i32 : i32
    %c1_i32 = arith.constant 1 : i32
    %73 = arith.select %72, %c1_i32, %c16_i32 : i32
    %74 = vector.broadcast %73 : i32 to vector<128x1xi32>
    %75 = arith.remsi %71, %74 : vector<128x1xi32>
    %c0_i32_37 = arith.constant 0 : i32
    %76 = vector.broadcast %c0_i32_37 : i32 to vector<128x1xi32>
    %77 = arith.cmpi ne, %75, %76 : vector<128x1xi32>
    %c0_i32_38 = arith.constant 0 : i32
    %78 = vector.broadcast %c0_i32_38 : i32 to vector<128x1xi32>
    %79 = arith.cmpi slt, %75, %78 : vector<128x1xi32>
    %c0_i32_39 = arith.constant 0 : i32
    %80 = arith.cmpi slt, %73, %c0_i32_39 : i32
    %81 = vector.broadcast %80 : i1 to vector<128x1xi1>
    %82 = vector.broadcast %81 : vector<128x1xi1> to vector<128x1xi1>
    %83 = arith.xori %79, %82 : vector<128x1xi1>
    %84 = arith.andi %83, %77 : vector<128x1xi1>
    %85 = vector.broadcast %73 : i32 to vector<128x1xi32>
    %86 = arith.addi %75, %85 : vector<128x1xi32>
    %87 = arith.select %84, %86, %75 : vector<128x1xi1>, vector<128x1xi32>
    %c0_i32_40 = arith.constant 0 : i32
    %88 = vector.broadcast %c0_i32_40 : i32 to vector<128x1xi32>
    %89 = arith.cmpi sgt, %87, %88 : vector<128x1xi32>
    %90 = arith.extui %89 : vector<128x1xi1> to vector<128x1xi32>
    %91 = arith.sitofp %90 : vector<128x1xi32> to vector<128x1xf32>
    %92 = arith.truncf %91 : vector<128x1xf32> to vector<128x1xbf16>
    %c15_i32 = arith.constant 15 : i32
    %93 = vector.broadcast %c15_i32 : i32 to vector<128x1xi32>
    %94 = arith.cmpi slt, %87, %93 : vector<128x1xi32>
    %95 = arith.extui %94 : vector<128x1xi1> to vector<128x1xi32>
    %96 = arith.sitofp %95 : vector<128x1xi32> to vector<128x1xf32>
    %97 = arith.truncf %96 : vector<128x1xf32> to vector<128x1xbf16>
    %cst_41 = arith.constant 0.000000e+00 : f32
    %98 = vector.broadcast %cst_41 : f32 to vector<128x128xf32>
    %c7 = arith.constant 7 : index
    %c0_42 = arith.constant 0 : index
    %99 = vector.load %arg9[%c7, %c0_42] : memref<304x64xbf16, #tpu.memory_space<vmem>>, vector<128x64xbf16>
    %100 = vector.broadcast %92 : vector<128x1xbf16> to vector<128x64xbf16>
    %101 = arith.mulf %99, %100 : vector<128x64xbf16>
    %c0_43 = arith.constant 0 : index
    %c0_44 = arith.constant 0 : index
    %c0_45 = arith.constant 0 : index
    %102 = vector.load %arg6[%c0_43, %c0_44, %c0_45] : memref<9x64x128xbf16, #tpu.memory_space<vmem>>, vector<1x64x128xbf16>
    %103 = vector.shape_cast %102 : vector<1x64x128xbf16> to vector<64x128xbf16>
    %cst_46 = arith.constant dense<0.000000e+00> : vector<128x128xf32>
    %104 = tpu.matmul %101, %103, %cst_46 {dimension_numbers = #tpu.dot_dimension_numbers<[1], [0], [0], [1], [0, 0, 1, 1], [], []>} : vector<128x64xbf16>, vector<64x128xbf16>, vector<128x128xf32> -> vector<128x128xf32>
    %105 = arith.addf %98, %104 : vector<128x128xf32>
    %c8 = arith.constant 8 : index
    %c0_47 = arith.constant 0 : index
    %106 = vector.load %arg9[%c8, %c0_47] : memref<304x64xbf16, #tpu.memory_space<vmem>>, vector<128x64xbf16>
    %c1 = arith.constant 1 : index
    %c0_48 = arith.constant 0 : index
    %c0_49 = arith.constant 0 : index
    %107 = vector.load %arg6[%c1, %c0_48, %c0_49] : memref<9x64x128xbf16, #tpu.memory_space<vmem>>, vector<1x64x128xbf16>
    %108 = vector.shape_cast %107 : vector<1x64x128xbf16> to vector<64x128xbf16>
    %cst_50 = arith.constant dense<0.000000e+00> : vector<128x128xf32>
    %109 = tpu.matmul %106, %108, %cst_50 {dimension_numbers = #tpu.dot_dimension_numbers<[1], [0], [0], [1], [0, 0, 1, 1], [], []>} : vector<128x64xbf16>, vector<64x128xbf16>, vector<128x128xf32> -> vector<128x128xf32>
    %110 = arith.addf %105, %109 : vector<128x128xf32>
    %c9 = arith.constant 9 : index
    %c0_51 = arith.constant 0 : index
    %111 = vector.load %arg9[%c9, %c0_51] : memref<304x64xbf16, #tpu.memory_space<vmem>>, vector<128x64xbf16>
    %112 = vector.broadcast %97 : vector<128x1xbf16> to vector<128x64xbf16>
    %113 = arith.mulf %111, %112 : vector<128x64xbf16>
    %c2 = arith.constant 2 : index
    %c0_52 = arith.constant 0 : index
    %c0_53 = arith.constant 0 : index
    %114 = vector.load %arg6[%c2, %c0_52, %c0_53] : memref<9x64x128xbf16, #tpu.memory_space<vmem>>, vector<1x64x128xbf16>
    %115 = vector.shape_cast %114 : vector<1x64x128xbf16> to vector<64x128xbf16>
    %cst_54 = arith.constant dense<0.000000e+00> : vector<128x128xf32>
    %116 = tpu.matmul %113, %115, %cst_54 {dimension_numbers = #tpu.dot_dimension_numbers<[1], [0], [0], [1], [0, 0, 1, 1], [], []>} : vector<128x64xbf16>, vector<64x128xbf16>, vector<128x128xf32> -> vector<128x128xf32>
    %117 = arith.addf %110, %116 : vector<128x128xf32>
    %c23 = arith.constant 23 : index
    %c0_55 = arith.constant 0 : index
    %118 = vector.load %arg9[%c23, %c0_55] : memref<304x64xbf16, #tpu.memory_space<vmem>>, vector<128x64xbf16>
    %119 = vector.broadcast %92 : vector<128x1xbf16> to vector<128x64xbf16>
    %120 = arith.mulf %118, %119 : vector<128x64xbf16>
    %c3 = arith.constant 3 : index
    %c0_56 = arith.constant 0 : index
    %c0_57 = arith.constant 0 : index
    %121 = vector.load %arg6[%c3, %c0_56, %c0_57] : memref<9x64x128xbf16, #tpu.memory_space<vmem>>, vector<1x64x128xbf16>
    %122 = vector.shape_cast %121 : vector<1x64x128xbf16> to vector<64x128xbf16>
    %cst_58 = arith.constant dense<0.000000e+00> : vector<128x128xf32>
    %123 = tpu.matmul %120, %122, %cst_58 {dimension_numbers = #tpu.dot_dimension_numbers<[1], [0], [0], [1], [0, 0, 1, 1], [], []>} : vector<128x64xbf16>, vector<64x128xbf16>, vector<128x128xf32> -> vector<128x128xf32>
    %124 = arith.addf %117, %123 : vector<128x128xf32>
    %c24_59 = arith.constant 24 : index
    %c0_60 = arith.constant 0 : index
    %125 = vector.load %arg9[%c24_59, %c0_60] : memref<304x64xbf16, #tpu.memory_space<vmem>>, vector<128x64xbf16>
    %c4 = arith.constant 4 : index
    %c0_61 = arith.constant 0 : index
    %c0_62 = arith.constant 0 : index
    %126 = vector.load %arg6[%c4, %c0_61, %c0_62] : memref<9x64x128xbf16, #tpu.memory_space<vmem>>, vector<1x64x128xbf16>
    %127 = vector.shape_cast %126 : vector<1x64x128xbf16> to vector<64x128xbf16>
    %cst_63 = arith.constant dense<0.000000e+00> : vector<128x128xf32>
    %128 = tpu.matmul %125, %127, %cst_63 {dimension_numbers = #tpu.dot_dimension_numbers<[1], [0], [0], [1], [0, 0, 1, 1], [], []>} : vector<128x64xbf16>, vector<64x128xbf16>, vector<128x128xf32> -> vector<128x128xf32>
    %129 = arith.addf %124, %128 : vector<128x128xf32>
    %c25 = arith.constant 25 : index
    %c0_64 = arith.constant 0 : index
    %130 = vector.load %arg9[%c25, %c0_64] : memref<304x64xbf16, #tpu.memory_space<vmem>>, vector<128x64xbf16>
    %131 = vector.broadcast %97 : vector<128x1xbf16> to vector<128x64xbf16>
    %132 = arith.mulf %130, %131 : vector<128x64xbf16>
    %c5 = arith.constant 5 : index
    %c0_65 = arith.constant 0 : index
    %c0_66 = arith.constant 0 : index
    %133 = vector.load %arg6[%c5, %c0_65, %c0_66] : memref<9x64x128xbf16, #tpu.memory_space<vmem>>, vector<1x64x128xbf16>
    %134 = vector.shape_cast %133 : vector<1x64x128xbf16> to vector<64x128xbf16>
    %cst_67 = arith.constant dense<0.000000e+00> : vector<128x128xf32>
    %135 = tpu.matmul %132, %134, %cst_67 {dimension_numbers = #tpu.dot_dimension_numbers<[1], [0], [0], [1], [0, 0, 1, 1], [], []>} : vector<128x64xbf16>, vector<64x128xbf16>, vector<128x128xf32> -> vector<128x128xf32>
    %136 = arith.addf %129, %135 : vector<128x128xf32>
    %c39 = arith.constant 39 : index
    %c0_68 = arith.constant 0 : index
    %137 = vector.load %arg9[%c39, %c0_68] : memref<304x64xbf16, #tpu.memory_space<vmem>>, vector<128x64xbf16>
    %138 = vector.broadcast %92 : vector<128x1xbf16> to vector<128x64xbf16>
    %139 = arith.mulf %137, %138 : vector<128x64xbf16>
    %c6 = arith.constant 6 : index
    %c0_69 = arith.constant 0 : index
    %c0_70 = arith.constant 0 : index
    %140 = vector.load %arg6[%c6, %c0_69, %c0_70] : memref<9x64x128xbf16, #tpu.memory_space<vmem>>, vector<1x64x128xbf16>
    %141 = vector.shape_cast %140 : vector<1x64x128xbf16> to vector<64x128xbf16>
    %cst_71 = arith.constant dense<0.000000e+00> : vector<128x128xf32>
    %142 = tpu.matmul %139, %141, %cst_71 {dimension_numbers = #tpu.dot_dimension_numbers<[1], [0], [0], [1], [0, 0, 1, 1], [], []>} : vector<128x64xbf16>, vector<64x128xbf16>, vector<128x128xf32> -> vector<128x128xf32>
    %143 = arith.addf %136, %142 : vector<128x128xf32>
    %c40 = arith.constant 40 : index
    %c0_72 = arith.constant 0 : index
    %144 = vector.load %arg9[%c40, %c0_72] : memref<304x64xbf16, #tpu.memory_space<vmem>>, vector<128x64xbf16>
    %c7_73 = arith.constant 7 : index
    %c0_74 = arith.constant 0 : index
    %c0_75 = arith.constant 0 : index
    %145 = vector.load %arg6[%c7_73, %c0_74, %c0_75] : memref<9x64x128xbf16, #tpu.memory_space<vmem>>, vector<1x64x128xbf16>
    %146 = vector.shape_cast %145 : vector<1x64x128xbf16> to vector<64x128xbf16>
    %cst_76 = arith.constant dense<0.000000e+00> : vector<128x128xf32>
    %147 = tpu.matmul %144, %146, %cst_76 {dimension_numbers = #tpu.dot_dimension_numbers<[1], [0], [0], [1], [0, 0, 1, 1], [], []>} : vector<128x64xbf16>, vector<64x128xbf16>, vector<128x128xf32> -> vector<128x128xf32>
    %148 = arith.addf %143, %147 : vector<128x128xf32>
    %c41 = arith.constant 41 : index
    %c0_77 = arith.constant 0 : index
    %149 = vector.load %arg9[%c41, %c0_77] : memref<304x64xbf16, #tpu.memory_space<vmem>>, vector<128x64xbf16>
    %150 = vector.broadcast %97 : vector<128x1xbf16> to vector<128x64xbf16>
    %151 = arith.mulf %149, %150 : vector<128x64xbf16>
    %c8_78 = arith.constant 8 : index
    %c0_79 = arith.constant 0 : index
    %c0_80 = arith.constant 0 : index
    %152 = vector.load %arg6[%c8_78, %c0_79, %c0_80] : memref<9x64x128xbf16, #tpu.memory_space<vmem>>, vector<1x64x128xbf16>
    %153 = vector.shape_cast %152 : vector<1x64x128xbf16> to vector<64x128xbf16>
    %cst_81 = arith.constant dense<0.000000e+00> : vector<128x128xf32>
    %154 = tpu.matmul %151, %153, %cst_81 {dimension_numbers = #tpu.dot_dimension_numbers<[1], [0], [0], [1], [0, 0, 1, 1], [], []>} : vector<128x64xbf16>, vector<64x128xbf16>, vector<128x128xf32> -> vector<128x128xf32>
    %155 = arith.addf %148, %154 : vector<128x128xf32>
    %c0_82 = arith.constant 0 : index
    %c0_83 = arith.constant 0 : index
    %156 = vector.load %arg7[%c0_82, %c0_83] : memref<1x128xf32, #tpu.memory_space<vmem>>, vector<1x128xf32>
    %157 = vector.broadcast %156 : vector<1x128xf32> to vector<128x128xf32>
    %158 = arith.addf %155, %157 : vector<128x128xf32>
    %159 = arith.truncf %158 : vector<128x128xf32> to vector<128x128xbf16>
    %c0_84 = arith.constant 0 : index
    %c0_85 = arith.constant 0 : index
    %c0_86 = arith.constant 0 : index
    %160 = vector.load %arg8[%c0_84, %c0_85, %c0_86] : memref<1x256x128xbf16, #tpu.memory_space<vmem>>, vector<1x128x128xbf16>
    %161 = vector.shape_cast %160 : vector<1x128x128xbf16> to vector<128x128xbf16>
    %162 = vector.shape_cast %159 : vector<128x128xbf16> to vector<1x128x128xbf16>
    tpu.vector_store %arg8[%c0_84, %c0_85, %c0_86], %162 {strides = array<i32>} : memref<1x256x128xbf16, #tpu.memory_space<vmem>>, vector<1x128x128xbf16>,
    %cst_87 = arith.constant 0.000000e+00 : f32
    %163 = vector.broadcast %cst_87 : f32 to vector<128x128xf32>
    %c135 = arith.constant 135 : index
    %c0_88 = arith.constant 0 : index
    %164 = vector.load %arg9[%c135, %c0_88] : memref<304x64xbf16, #tpu.memory_space<vmem>>, vector<128x64xbf16>
    %165 = vector.broadcast %92 : vector<128x1xbf16> to vector<128x64xbf16>
    %166 = arith.mulf %164, %165 : vector<128x64xbf16>
    %c0_89 = arith.constant 0 : index
    %c0_90 = arith.constant 0 : index
    %c0_91 = arith.constant 0 : index
    %167 = vector.load %arg6[%c0_89, %c0_90, %c0_91] : memref<9x64x128xbf16, #tpu.memory_space<vmem>>, vector<1x64x128xbf16>
    %168 = vector.shape_cast %167 : vector<1x64x128xbf16> to vector<64x128xbf16>
    %cst_92 = arith.constant dense<0.000000e+00> : vector<128x128xf32>
    %169 = tpu.matmul %166, %168, %cst_92 {dimension_numbers = #tpu.dot_dimension_numbers<[1], [0], [0], [1], [0, 0, 1, 1], [], []>} : vector<128x64xbf16>, vector<64x128xbf16>, vector<128x128xf32> -> vector<128x128xf32>
    %170 = arith.addf %163, %169 : vector<128x128xf32>
    %c136 = arith.constant 136 : index
    %c0_93 = arith.constant 0 : index
    %171 = vector.load %arg9[%c136, %c0_93] : memref<304x64xbf16, #tpu.memory_space<vmem>>, vector<128x64xbf16>
    %c1_94 = arith.constant 1 : index
    %c0_95 = arith.constant 0 : index
    %c0_96 = arith.constant 0 : index
    %172 = vector.load %arg6[%c1_94, %c0_95, %c0_96] : memref<9x64x128xbf16, #tpu.memory_space<vmem>>, vector<1x64x128xbf16>
    %173 = vector.shape_cast %172 : vector<1x64x128xbf16> to vector<64x128xbf16>
    %cst_97 = arith.constant dense<0.000000e+00> : vector<128x128xf32>
    %174 = tpu.matmul %171, %173, %cst_97 {dimension_numbers = #tpu.dot_dimension_numbers<[1], [0], [0], [1], [0, 0, 1, 1], [], []>} : vector<128x64xbf16>, vector<64x128xbf16>, vector<128x128xf32> -> vector<128x128xf32>
    %175 = arith.addf %170, %174 : vector<128x128xf32>
    %c137 = arith.constant 137 : index
    %c0_98 = arith.constant 0 : index
    %176 = vector.load %arg9[%c137, %c0_98] : memref<304x64xbf16, #tpu.memory_space<vmem>>, vector<128x64xbf16>
    %177 = vector.broadcast %97 : vector<128x1xbf16> to vector<128x64xbf16>
    %178 = arith.mulf %176, %177 : vector<128x64xbf16>
    %c2_99 = arith.constant 2 : index
    %c0_100 = arith.constant 0 : index
    %c0_101 = arith.constant 0 : index
    %179 = vector.load %arg6[%c2_99, %c0_100, %c0_101] : memref<9x64x128xbf16, #tpu.memory_space<vmem>>, vector<1x64x128xbf16>
    %180 = vector.shape_cast %179 : vector<1x64x128xbf16> to vector<64x128xbf16>
    %cst_102 = arith.constant dense<0.000000e+00> : vector<128x128xf32>
    %181 = tpu.matmul %178, %180, %cst_102 {dimension_numbers = #tpu.dot_dimension_numbers<[1], [0], [0], [1], [0, 0, 1, 1], [], []>} : vector<128x64xbf16>, vector<64x128xbf16>, vector<128x128xf32> -> vector<128x128xf32>
    %182 = arith.addf %175, %181 : vector<128x128xf32>
    %c151 = arith.constant 151 : index
    %c0_103 = arith.constant 0 : index
    %183 = vector.load %arg9[%c151, %c0_103] : memref<304x64xbf16, #tpu.memory_space<vmem>>, vector<128x64xbf16>
    %184 = vector.broadcast %92 : vector<128x1xbf16> to vector<128x64xbf16>
    %185 = arith.mulf %183, %184 : vector<128x64xbf16>
    %c3_104 = arith.constant 3 : index
    %c0_105 = arith.constant 0 : index
    %c0_106 = arith.constant 0 : index
    %186 = vector.load %arg6[%c3_104, %c0_105, %c0_106] : memref<9x64x128xbf16, #tpu.memory_space<vmem>>, vector<1x64x128xbf16>
    %187 = vector.shape_cast %186 : vector<1x64x128xbf16> to vector<64x128xbf16>
    %cst_107 = arith.constant dense<0.000000e+00> : vector<128x128xf32>
    %188 = tpu.matmul %185, %187, %cst_107 {dimension_numbers = #tpu.dot_dimension_numbers<[1], [0], [0], [1], [0, 0, 1, 1], [], []>} : vector<128x64xbf16>, vector<64x128xbf16>, vector<128x128xf32> -> vector<128x128xf32>
    %189 = arith.addf %182, %188 : vector<128x128xf32>
    %c152_108 = arith.constant 152 : index
    %c0_109 = arith.constant 0 : index
    %190 = vector.load %arg9[%c152_108, %c0_109] : memref<304x64xbf16, #tpu.memory_space<vmem>>, vector<128x64xbf16>
    %c4_110 = arith.constant 4 : index
    %c0_111 = arith.constant 0 : index
    %c0_112 = arith.constant 0 : index
    %191 = vector.load %arg6[%c4_110, %c0_111, %c0_112] : memref<9x64x128xbf16, #tpu.memory_space<vmem>>, vector<1x64x128xbf16>
    %192 = vector.shape_cast %191 : vector<1x64x128xbf16> to vector<64x128xbf16>
    %cst_113 = arith.constant dense<0.000000e+00> : vector<128x128xf32>
    %193 = tpu.matmul %190, %192, %cst_113 {dimension_numbers = #tpu.dot_dimension_numbers<[1], [0], [0], [1], [0, 0, 1, 1], [], []>} : vector<128x64xbf16>, vector<64x128xbf16>, vector<128x128xf32> -> vector<128x128xf32>
    %194 = arith.addf %189, %193 : vector<128x128xf32>
    %c153 = arith.constant 153 : index
    %c0_114 = arith.constant 0 : index
    %195 = vector.load %arg9[%c153, %c0_114] : memref<304x64xbf16, #tpu.memory_space<vmem>>, vector<128x64xbf16>
    %196 = vector.broadcast %97 : vector<128x1xbf16> to vector<128x64xbf16>
    %197 = arith.mulf %195, %196 : vector<128x64xbf16>
    %c5_115 = arith.constant 5 : index
    %c0_116 = arith.constant 0 : index
    %c0_117 = arith.constant 0 : index
    %198 = vector.load %arg6[%c5_115, %c0_116, %c0_117] : memref<9x64x128xbf16, #tpu.memory_space<vmem>>, vector<1x64x128xbf16>
    %199 = vector.shape_cast %198 : vector<1x64x128xbf16> to vector<64x128xbf16>
    %cst_118 = arith.constant dense<0.000000e+00> : vector<128x128xf32>
    %200 = tpu.matmul %197, %199, %cst_118 {dimension_numbers = #tpu.dot_dimension_numbers<[1], [0], [0], [1], [0, 0, 1, 1], [], []>} : vector<128x64xbf16>, vector<64x128xbf16>, vector<128x128xf32> -> vector<128x128xf32>
    %201 = arith.addf %194, %200 : vector<128x128xf32>
    %c167 = arith.constant 167 : index
    %c0_119 = arith.constant 0 : index
    %202 = vector.load %arg9[%c167, %c0_119] : memref<304x64xbf16, #tpu.memory_space<vmem>>, vector<128x64xbf16>
    %203 = vector.broadcast %92 : vector<128x1xbf16> to vector<128x64xbf16>
    %204 = arith.mulf %202, %203 : vector<128x64xbf16>
    %c6_120 = arith.constant 6 : index
    %c0_121 = arith.constant 0 : index
    %c0_122 = arith.constant 0 : index
    %205 = vector.load %arg6[%c6_120, %c0_121, %c0_122] : memref<9x64x128xbf16, #tpu.memory_space<vmem>>, vector<1x64x128xbf16>
    %206 = vector.shape_cast %205 : vector<1x64x128xbf16> to vector<64x128xbf16>
    %cst_123 = arith.constant dense<0.000000e+00> : vector<128x128xf32>
    %207 = tpu.matmul %204, %206, %cst_123 {dimension_numbers = #tpu.dot_dimension_numbers<[1], [0], [0], [1], [0, 0, 1, 1], [], []>} : vector<128x64xbf16>, vector<64x128xbf16>, vector<128x128xf32> -> vector<128x128xf32>
    %208 = arith.addf %201, %207 : vector<128x128xf32>
    %c168 = arith.constant 168 : index
    %c0_124 = arith.constant 0 : index
    %209 = vector.load %arg9[%c168, %c0_124] : memref<304x64xbf16, #tpu.memory_space<vmem>>, vector<128x64xbf16>
    %c7_125 = arith.constant 7 : index
    %c0_126 = arith.constant 0 : index
    %c0_127 = arith.constant 0 : index
    %210 = vector.load %arg6[%c7_125, %c0_126, %c0_127] : memref<9x64x128xbf16, #tpu.memory_space<vmem>>, vector<1x64x128xbf16>
    %211 = vector.shape_cast %210 : vector<1x64x128xbf16> to vector<64x128xbf16>
    %cst_128 = arith.constant dense<0.000000e+00> : vector<128x128xf32>
    %212 = tpu.matmul %209, %211, %cst_128 {dimension_numbers = #tpu.dot_dimension_numbers<[1], [0], [0], [1], [0, 0, 1, 1], [], []>} : vector<128x64xbf16>, vector<64x128xbf16>, vector<128x128xf32> -> vector<128x128xf32>
    %213 = arith.addf %208, %212 : vector<128x128xf32>
    %c169 = arith.constant 169 : index
    %c0_129 = arith.constant 0 : index
    %214 = vector.load %arg9[%c169, %c0_129] : memref<304x64xbf16, #tpu.memory_space<vmem>>, vector<128x64xbf16>
    %215 = vector.broadcast %97 : vector<128x1xbf16> to vector<128x64xbf16>
    %216 = arith.mulf %214, %215 : vector<128x64xbf16>
    %c8_130 = arith.constant 8 : index
    %c0_131 = arith.constant 0 : index
    %c0_132 = arith.constant 0 : index
    %217 = vector.load %arg6[%c8_130, %c0_131, %c0_132] : memref<9x64x128xbf16, #tpu.memory_space<vmem>>, vector<1x64x128xbf16>
    %218 = vector.shape_cast %217 : vector<1x64x128xbf16> to vector<64x128xbf16>
    %cst_133 = arith.constant dense<0.000000e+00> : vector<128x128xf32>
    %219 = tpu.matmul %216, %218, %cst_133 {dimension_numbers = #tpu.dot_dimension_numbers<[1], [0], [0], [1], [0, 0, 1, 1], [], []>} : vector<128x64xbf16>, vector<64x128xbf16>, vector<128x128xf32> -> vector<128x128xf32>
    %220 = arith.addf %213, %219 : vector<128x128xf32>
    %c0_134 = arith.constant 0 : index
    %c0_135 = arith.constant 0 : index
    %221 = vector.load %arg7[%c0_134, %c0_135] : memref<1x128xf32, #tpu.memory_space<vmem>>, vector<1x128xf32>
    %222 = vector.broadcast %221 : vector<1x128xf32> to vector<128x128xf32>
    %223 = arith.addf %220, %222 : vector<128x128xf32>
    %224 = arith.truncf %223 : vector<128x128xf32> to vector<128x128xbf16>
    %c0_136 = arith.constant 0 : index
    %c128_137 = arith.constant 128 : index
    %c0_138 = arith.constant 0 : index
    %225 = vector.load %arg8[%c0_136, %c128_137, %c0_138] : memref<1x256x128xbf16, #tpu.memory_space<vmem>>, vector<1x128x128xbf16>
    %226 = vector.shape_cast %225 : vector<1x128x128xbf16> to vector<128x128xbf16>
    %227 = vector.shape_cast %224 : vector<128x128xbf16> to vector<1x128x128xbf16>
    tpu.vector_store %arg8[%c0_136, %c128_137, %c0_138], %227 {strides = array<i32>} : memref<1x256x128xbf16, #tpu.memory_space<vmem>>, vector<1x128x128xbf16>,
    return
  }
  func.func @transform_0(%arg0: i32, %arg1: i32) -> (i32, i32, i32) {
    %c0_i32 = arith.constant 0 : i32
    %c0_i32_0 = arith.constant 0 : i32
    %c0_i32_1 = arith.constant 0 : i32
    return %arg0, %c0_i32, %c0_i32_0 : i32, i32, i32
  }
  func.func @transform_1(%arg0: i32, %arg1: i32) -> (i32, i32) {
    %c0_i32 = arith.constant 0 : i32
    %c0_i32_0 = arith.constant 0 : i32
    %c0_i32_1 = arith.constant 0 : i32
    return %c0_i32, %c0_i32_0 : i32, i32
  }
  func.func @transform_2(%arg0: i32, %arg1: i32) -> (i32, i32) {
    %c0_i32 = arith.constant 0 : i32
    %c0_i32_0 = arith.constant 0 : i32
    %c0_i32_1 = arith.constant 0 : i32
    return %c0_i32, %c0_i32_0 : i32, i32
  }
  func.func @transform_3(%arg0: i32, %arg1: i32) -> (i32, i32) {
    %c0_i32 = arith.constant 0 : i32
    %c0_i32_0 = arith.constant 0 : i32
    %c0_i32_1 = arith.constant 0 : i32
    return %c0_i32, %c0_i32_0 : i32, i32
  }
  func.func @transform_4(%arg0: i32, %arg1: i32) -> (i32, i32, i32) {
    %c0_i32 = arith.constant 0 : i32
    %c0_i32_0 = arith.constant 0 : i32
    %c0_i32_1 = arith.constant 0 : i32
    return %c0_i32, %c0_i32_0, %arg1 : i32, i32, i32
  }
  func.func @transform_5(%arg0: i32, %arg1: i32) -> (i32, i32) {
    %c0_i32 = arith.constant 0 : i32
    %c0_i32_0 = arith.constant 0 : i32
    return %c0_i32, %arg1 : i32, i32
  }
  func.func @transform_6(%arg0: i32, %arg1: i32) -> (i32, i32, i32) {
    %c0_i32 = arith.constant 0 : i32
    %c0_i32_0 = arith.constant 0 : i32
    return %arg0, %c0_i32, %arg1 : i32, i32, i32
  }
}

</mosaic_0001>

<llo_original>
// kernel: tpu_custom_call.1
$region0: #{tpu_custom_call.1}
  #allocation0 [shape = 'u32[]', space=smem, size = 0x4, offset = 0x4, fixed_abs, tag = 'smem constant byte address 0x4 - core index']
  #allocation1 [shape = 'u32[144,128]{1,0:T(1,128)}', space=vmem, size = 0x12000, scoped, tag = 'internal scratch']
  #allocation2 [shape = 'bf16[304,64]{1,0:T(8,128)(2,1)}', space=vmem, size = 0x13000, scoped, tag = 'scratch operand']
  %s0 = inlined_call_operand.vmem [shape: f32[2,256,64], index: 0, kind: input, shape index: {}]
  %s1 = inlined_call_operand.vmem [shape: f32[1,64], index: 1, kind: input, shape index: {}]
  %s2 = inlined_call_operand.vmem [shape: f32[1,64], index: 2, kind: input, shape index: {}]
  %s3 = inlined_call_operand.vmem [shape: f32[64,64], index: 3, kind: input, shape index: {}]
  %s4 = inlined_call_operand.vmem [shape: bf16[9,64,128], index: 4, kind: input, shape index: {}]
  %s5 = inlined_call_operand.vmem [shape: f32[1,128], index: 5, kind: input, shape index: {}]
  %s6 = inlined_call_operand.hbm [shape: bf16[2,256,128], index: 6, kind: output, shape index: {}]
  %s7 = sld [smem:[#allocation0]]
  $region57: #{tpu_custom_call.1} parent=0
    _
  %s9 = ssub.s32 1, %s7
  %s10 = scalar_select 0, %s9, %s7
  $region1: #{tpu_custom_call.1} parent=0
    #allocation3 [shape = 'u8[131072]{0}', space=vmem, size = 0x20000, scoped, tag = 'output window, operand 0']
    #allocation4 [shape = 's32[2]{0}', space=sflag, size = 0x8, scoped, tag = 'scoped memory for tpu_custom_call.1']
    %11 = vsyncpa [#allocation4], 0
    %s12 = scalar_lea.sflag [#allocation4], 1
    %13 = vsyncpa %s12, 0
    loop: start=0, step=1, limit=4
    $region2: #{tpu_custom_call.1} parent=1 // loop_pre_header
      _
    $region3: #{tpu_custom_call.1} parent=1 // loop_header
      %s15 = sphi 0, %s19
      %p16 = scmp.ge.s32.totalorder %s15, 4
      %s22 = sphi 0, %s34
      %s23 = sphi 0, %s30
      %s24 = sphi 0, %s22
      %s25 = sphi 0, %s23
      %s26 = sphi 0, %s24
      %s27 = sphi 0, %s25
      %s37 = sphi 0, %s39
      %s40 = sphi 0, %s37
      %s41 = sphi 0, %s40
      %s57 = sphi 0, %s41
      %s61 = sphi 0, %s61
      %s63 = sphi 0, %s61
      %s64 = sphi 0, %s63
      %s78 = sphi 0, %s64
      %s82 = sphi 0, %s82
      %s84 = sphi 0, %s82
      %s85 = sphi 0, %s84
      %s99 = sphi 0, %s85
      %s103 = sphi 0, %s103
      %s105 = sphi 0, %s103
      %s106 = sphi 0, %s105
      %s120 = sphi 0, %s106
      %s126 = sphi 0, %s128
      %s129 = sphi 0, %s126
      %s130 = sphi 0, %s129
      %s146 = sphi 0, %s130
      %s152 = sphi 0, %s154
      %s155 = sphi 0, %s152
      %s156 = sphi 0, %s155
      %s172 = sphi 0, %s156
      %s180 = sphi 0, %s182
      %s183 = sphi 0, %s180
      %s184 = sphi 0, %s183
      %s200 = sphi 0, %s184
    $region4: #{tpu_custom_call.1} parent=1 // loop_header_branch
      %18 = sbr.rel (%p16) target = $region8
    $region5: #{tpu_custom_call.1} parent=1 // loop_body
      %s20 = ssub.s32 %s15, 1
      %s21 = ssub.s32 %s15, 2
      %s28 = sadd.s32 1, %s23
      %p29 = scmp.ge.s32.totalorder %s28, 1
      %s30 = scalar_select %p29, 0, %s28
      %s31 = sadd.s32 1, %s22
      %s32 = scalar_select %p29, %s31, %s22
      %p33 = scmp.ge.s32.totalorder %s32, 2
      %s34 = scalar_select %p33, 0, %s32
      %s35 = ssub.s32 %s22, %s34
      %p36 = scmp.eq.s32.totalorder %s35, 0
      %s38 = sadd.s32 %s37, 1
      %s39 = scalar_select %p36, %s37, %s38
      %p42 = pneg %p36
      %p43 = scmp.eq.s32.totalorder %s15, 1
      %p44 = por %p42, %p43
      %p45 = scmp.ne.s32.totalorder %s37, %s40
      %p46 = scmp.eq.s32.totalorder %s15, 0
      %p47 = por %p45, %p46
      %p48 = scmp.ne.s32.totalorder %s37, %s40
      %p49 = scmp.eq.s32.totalorder %s20, 1
      %p50 = por %p48, %p49
      %p51 = scmp.ne.s32.totalorder %s40, %s41
      %p52 = scmp.eq.s32.totalorder %s20, 0
      %p53 = por %p51, %p52
      %p54 = scmp.ne.s32.totalorder %s40, %s41
      %p55 = scmp.eq.s32.totalorder %s21, 1
      %p56 = por %p54, %p55
      %p58 = scmp.ne.s32.totalorder %s41, %s57
      %p59 = scmp.eq.s32.totalorder %s21, 0
      %p60 = por %p58, %p59
      %s62 = sadd.s32 %s61, 1
      %p65 = scmp.eq.s32.totalorder %s15, 1
      %p66 = scmp.ne.s32.totalorder %s61, %s63
      %p67 = scmp.eq.s32.totalorder %s15, 0
      %p68 = por %p66, %p67
      %p69 = scmp.ne.s32.totalorder %s61, %s63
      %p70 = scmp.eq.s32.totalorder %s20, 1
      %p71 = por %p69, %p70
      %p72 = scmp.ne.s32.totalorder %s63, %s64
      %p73 = scmp.eq.s32.totalorder %s20, 0
      %p74 = por %p72, %p73
      %p75 = scmp.ne.s32.totalorder %s63, %s64
      %p76 = scmp.eq.s32.totalorder %s21, 1
      %p77 = por %p75, %p76
      %p79 = scmp.ne.s32.totalorder %s64, %s78
      %p80 = scmp.eq.s32.totalorder %s21, 0
      %p81 = por %p79, %p80
      %s83 = sadd.s32 %s82, 1
      %p86 = scmp.eq.s32.totalorder %s15, 1
      %p87 = scmp.ne.s32.totalorder %s82, %s84
      %p88 = scmp.eq.s32.totalorder %s15, 0
      %p89 = por %p87, %p88
      %p90 = scmp.ne.s32.totalorder %s82, %s84
      %p91 = scmp.eq.s32.totalorder %s20, 1
      %p92 = por %p90, %p91
      %p93 = scmp.ne.s32.totalorder %s84, %s85
      %p94 = scmp.eq.s32.totalorder %s20, 0
      %p95 = por %p93, %p94
      %p96 = scmp.ne.s32.totalorder %s84, %s85
      %p97 = scmp.eq.s32.totalorder %s21, 1
      %p98 = por %p96, %p97
      %p100 = scmp.ne.s32.totalorder %s85, %s99
      %p101 = scmp.eq.s32.totalorder %s21, 0
      %p102 = por %p100, %p101
      %s104 = sadd.s32 %s103, 1
      %p107 = scmp.eq.s32.totalorder %s15, 1
      %p108 = scmp.ne.s32.totalorder %s103, %s105
      %p109 = scmp.eq.s32.totalorder %s15, 0
      %p110 = por %p108, %p109
      %p111 = scmp.ne.s32.totalorder %s103, %s105
      %p112 = scmp.eq.s32.totalorder %s20, 1
      %p113 = por %p111, %p112
      %p114 = scmp.ne.s32.totalorder %s105, %s106
      %p115 = scmp.eq.s32.totalorder %s20, 0
      %p116 = por %p114, %p115
      %p117 = scmp.ne.s32.totalorder %s105, %s106
      %p118 = scmp.eq.s32.totalorder %s21, 1
      %p119 = por %p117, %p118
      %p121 = scmp.ne.s32.totalorder %s106, %s120
      %p122 = scmp.eq.s32.totalorder %s21, 0
      %p123 = por %p121, %p122
      %s124 = ssub.s32 %s23, %s30
      %p125 = scmp.eq.s32.totalorder %s124, 0
      %s127 = sadd.s32 %s126, 1
      %s128 = scalar_select %p125, %s126, %s127
      %p131 = pneg %p125
      %p132 = scmp.eq.s32.totalorder %s15, 1
      %p133 = por %p131, %p132
      %p134 = scmp.ne.s32.totalorder %s126, %s129
      %p135 = scmp.eq.s32.totalorder %s15, 0
      %p136 = por %p134, %p135
      %p137 = scmp.ne.s32.totalorder %s126, %s129
      %p138 = scmp.eq.s32.totalorder %s20, 1
      %p139 = por %p137, %p138
      %p140 = scmp.ne.s32.totalorder %s129, %s130
      %p141 = scmp.eq.s32.totalorder %s20, 0
      %p142 = por %p140, %p141
      %p143 = scmp.ne.s32.totalorder %s129, %s130
      %p144 = scmp.eq.s32.totalorder %s21, 1
      %p145 = por %p143, %p144
      %p147 = scmp.ne.s32.totalorder %s130, %s146
      %p148 = scmp.eq.s32.totalorder %s21, 0
      %p149 = por %p147, %p148
      %s150 = ssub.s32 %s23, %s30
      %p151 = scmp.eq.s32.totalorder %s150, 0
      %s153 = sadd.s32 %s152, 1
      %s154 = scalar_select %p151, %s152, %s153
      %p157 = pneg %p151
      %p158 = scmp.eq.s32.totalorder %s15, 1
      %p159 = por %p157, %p158
      %p160 = scmp.ne.s32.totalorder %s152, %s155
      %p161 = scmp.eq.s32.totalorder %s15, 0
      %p162 = por %p160, %p161
      %p163 = scmp.ne.s32.totalorder %s152, %s155
      %p164 = scmp.eq.s32.totalorder %s20, 1
      %p165 = por %p163, %p164
      %p166 = scmp.ne.s32.totalorder %s155, %s156
      %p167 = scmp.eq.s32.totalorder %s20, 0
      %p168 = por %p166, %p167
      %p169 = scmp.ne.s32.totalorder %s155, %s156
      %p170 = scmp.eq.s32.totalorder %s21, 1
      %p171 = por %p169, %p170
      %p173 = scmp.ne.s32.totalorder %s156, %s172
      %p174 = scmp.eq.s32.totalorder %s21, 0
      %p175 = por %p173, %p174
      %s176 = ssub.s32 %s22, %s34
      %s177 = ssub.s32 %s23, %s30
      %s178 = sor.u32 %s176, %s177
      %p179 = scmp.eq.s32.totalorder %s178, 0
      %s181 = sadd.s32 %s180, 1
      %s182 = scalar_select %p179, %s180, %s181
      %p185 = pneg %p179
      %p186 = scmp.eq.s32.totalorder %s15, 1
      %p187 = por %p185, %p186
      %p188 = scmp.ne.s32.totalorder %s180, %s183
      %p189 = scmp.eq.s32.totalorder %s15, 0
      %p190 = por %p188, %p189
      %p191 = scmp.ne.s32.totalorder %s180, %s183
      %p192 = scmp.eq.s32.totalorder %s20, 1
      %p193 = por %p191, %p192
      %p194 = scmp.ne.s32.totalorder %s183, %s184
      %p195 = scmp.eq.s32.totalorder %s20, 0
      %p196 = por %p194, %p195
      %p197 = scmp.ne.s32.totalorder %s183, %s184
      %p198 = scmp.eq.s32.totalorder %s21, 1
      %p199 = por %p197, %p198
      %p201 = scmp.ne.s32.totalorder %s184, %s200
      %p202 = scmp.eq.s32.totalorder %s21, 0
      %p203 = por %p201, %p202
      %p204 = scmp.le.s32.totalorder 1, %s15
      %p205 = scmp.lt.s32.totalorder %s15, 3
      %p206 = pnand %p204, %p205
      %p207 = pneg %p206
      // Predicated region
      $region9: #{tpu_custom_call.1} parent=5 // pred_check
        _
      $region10: #{tpu_custom_call.1} parent=5 // pred_check_branch
        %209 = sbr.rel (%p206) target = $region12
      $region11: #{tpu_custom_call.1} parent=5 // pred_region
        %s210 = ssub.s32 %s15, 1
        // Predicated region
        $region13: #{tpu_custom_call.1} parent=11 // pred_check
          %p211 = pneg %p74
        $region14: #{tpu_custom_call.1} parent=11 // pred_check_branch
          %213 = sbr.rel (%p211) target = $region16
        $region15: #{tpu_custom_call.1} parent=11 // pred_region
          _
        $region16: #{tpu_custom_call.1} parent=11 // pred_fallthru
          _
        // Predicated region
        $region17: #{tpu_custom_call.1} parent=11 // pred_check
          %p214 = pneg %p95
        $region18: #{tpu_custom_call.1} parent=11 // pred_check_branch
          %216 = sbr.rel (%p214) target = $region20
        $region19: #{tpu_custom_call.1} parent=11 // pred_region
          _
        $region20: #{tpu_custom_call.1} parent=11 // pred_fallthru
          _
        // Predicated region
        $region21: #{tpu_custom_call.1} parent=11 // pred_check
          %p217 = pneg %p116
        $region22: #{tpu_custom_call.1} parent=11 // pred_check_branch
          %219 = sbr.rel (%p217) target = $region24
        $region23: #{tpu_custom_call.1} parent=11 // pred_region
          _
        $region24: #{tpu_custom_call.1} parent=11 // pred_fallthru
          _
        // Predicated region
        $region25: #{tpu_custom_call.1} parent=11 // pred_check
          %p220 = pneg %p142
        $region26: #{tpu_custom_call.1} parent=11 // pred_check_branch
          %222 = sbr.rel (%p220) target = $region28
        $region27: #{tpu_custom_call.1} parent=11 // pred_region
          %p223 = scmp.lt.s32.totalorder %s25, 0
          %s224 = scalar_select %p223, %s25, 0
          %s225 = smul.addr %s224, 4
          %s226 = scalar_lea.vmem %s4, %s225
        $region28: #{tpu_custom_call.1} parent=11 // pred_fallthru
          _
        // Predicated region
        $region29: #{tpu_custom_call.1} parent=11 // pred_check
          %p227 = pneg %p168
        $region30: #{tpu_custom_call.1} parent=11 // pred_check_branch
          %229 = sbr.rel (%p227) target = $region32
        $region31: #{tpu_custom_call.1} parent=11 // pred_region
          %p230 = scmp.lt.s32.totalorder %s25, 0
          %s231 = scalar_select %p230, %s25, 0
          %s232 = scalar_lea.vmem %s5, %s231
        $region32: #{tpu_custom_call.1} parent=11 // pred_fallthru
          _
      $region12: #{tpu_custom_call.1} parent=5 // pred_fallthru
        _
      %p233 = scmp.lt.s32.totalorder %s15, 2
      // Predicated region
      $region33: #{tpu_custom_call.1} parent=5 // pred_check
        %p234 = pneg %p233
      $region34: #{tpu_custom_call.1} parent=5 // pred_check_branch
        %236 = sbr.rel (%p234) target = $region36
      $region35: #{tpu_custom_call.1} parent=5 // pred_region
        // Predicated region
        $region37: #{tpu_custom_call.1} parent=35 // pred_check
          %p237 = pneg %p47
        $region38: #{tpu_custom_call.1} parent=35 // pred_check_branch
          %239 = sbr.rel (%p237) target = $region40
        $region39: #{tpu_custom_call.1} parent=35 // pred_region
          %p240 = scmp.lt.s32.totalorder %s22, 1
          %s241 = scalar_select %p240, %s22, 1
          %s242 = smul.addr %s241, 32
          %s243 = smul.addr %s242, 8
          %s244 = scalar_lea.vmem %s0, %s243
        $region40: #{tpu_custom_call.1} parent=35 // pred_fallthru
          _
      $region36: #{tpu_custom_call.1} parent=5 // pred_fallthru
        _
      %p245 = scmp.le.s32.totalorder 1, %s15
      %p246 = scmp.lt.s32.totalorder %s15, 3
      %p247 = pnand %p245, %p246
      %p248 = pneg %p247
      // Predicated region
      $region41: #{tpu_custom_call.1} parent=5 // pred_check
        _
      $region42: #{tpu_custom_call.1} parent=5 // pred_check_branch
        %250 = sbr.rel (%p247) target = $region44
      $region43: #{tpu_custom_call.1} parent=5 // pred_region
        %s251 = ssub.s32 %s15, 1
        %p252 = scmp.lt.s32.totalorder %s24, 1
        %s253 = scalar_select %p252, %s24, 1
        %s254 = smul.addr %s253, 32
        %s255 = smul.addr %s254, 8
        %s256 = scalar_lea.vmem %s0, %s255
        %p257 = pneg %p53
        %p258 = pneg %p50
        %p259 = pneg %p74
        %p260 = pneg %p71
        %p261 = pneg %p95
        %p262 = pneg %p92
        %p263 = pneg %p116
        %p264 = pneg %p113
        %p265 = scmp.lt.s32.totalorder %s25, 0
        %s266 = scalar_select %p265, %s25, 0
        %s267 = smul.addr %s266, 4
        %s268 = scalar_lea.vmem %s4, %s267
        %p269 = pneg %p142
        %p270 = pneg %p139
        %p271 = scmp.lt.s32.totalorder %s25, 0
        %s272 = scalar_select %p271, %s25, 0
        %s273 = scalar_lea.vmem %s5, %s272
        %p274 = pneg %p168
        %p275 = pneg %p165
        %p276 = pneg %p196
        %p277 = pneg %p193
        %s278 = sand.u32 %s183, 1
        %s279 = scalar_lea.sflag [#allocation4], %s278
        %s280 = sand.u32 %s183, 1
        %s281 = smul.addr %s280, 128
        %s282 = scalar_lea.vmem [#allocation3], %s281
        %p283 = scmp.lt.s32.totalorder %s24, 1
        %s284 = scalar_select %p283, %s24, 1
        %s285 = smul.addr %s284, 32
        %s286 = smul.addr %s285, 8
        %s287 = scalar_lea.vmem %s0, %s286
        %p288 = scmp.lt.s32.totalorder %s25, 0
        %s289 = scalar_select %p288, %s25, 0
        %s290 = smul.addr %s289, 4
        %s291 = scalar_lea.vmem %s4, %s290
        %p292 = scmp.lt.s32.totalorder %s25, 0
        %s293 = scalar_select %p292, %s25, 0
        %s294 = scalar_lea.vmem %s5, %s293
        %vm296 = vcmask 519168
        %297 = vst.msk [vmem:[#allocation2] sm:$0xf] %vm296, 0
        %298 = vst.msk [vmem:[#allocation2 + $0x4] sm:$0xf] %vm296, 0
        %299 = vst.msk [vmem:[#allocation2 + $0x8] sm:$0xf] %vm296, 0
        %300 = vst.msk [vmem:[#allocation2 + $0x8c] sm:$0xf] %vm296, 0
        %301 = vst.msk [vmem:[#allocation2 + $0x90] sm:$0xf] %vm296, 0
        %302 = vst.msk [vmem:[#allocation2 + $0x94] sm:$0xf] %vm296, 0
        %v303 = vld [vmem:[%s287] sm:$0xff]
        %v304 = vld [vmem:[%s287 + $0x8] sm:$0xff]
        %v305 = vld [vmem:[%s287 + $0x10] sm:$0xff]
        %v306 = vld [vmem:[%s287 + $0x18] sm:$0xff]
        %v307 = vld [vmem:[%s287 + $0x20] sm:$0xff]
        %v308 = vld [vmem:[%s287 + $0x28] sm:$0xff]
        %v309 = vld [vmem:[%s287 + $0x30] sm:$0xff]
        %v310 = vld [vmem:[%s287 + $0x38] sm:$0xff]
        %v311 = vld [vmem:[%s287 + $0x40] sm:$0xff]
        %v312 = vld [vmem:[%s287 + $0x48] sm:$0xff]
        %v313 = vld [vmem:[%s287 + $0x50] sm:$0xff]
        %v314 = vld [vmem:[%s287 + $0x58] sm:$0xff]
        %v315 = vld [vmem:[%s287 + $0x60] sm:$0xff]
        %v316 = vld [vmem:[%s287 + $0x68] sm:$0xff]
        %v317 = vld [vmem:[%s287 + $0x70] sm:$0xff]
        %v318 = vld [vmem:[%s287 + $0x78] sm:$0xff]
        %vm319 = vcmask 523264
        %v320 = vsel %vm319, %v303, 0.0
        %v321 = vsel %vm319, %v304, 0.0
        %v322 = vadd.f32 %v320, %v321
        %v323 = vsel %vm319, %v305, 0.0
        %v324 = vadd.f32 %v322, %v323
        %v325 = vsel %vm319, %v306, 0.0
        %v326 = vadd.f32 %v324, %v325
        %v327 = vsel %vm319, %v307, 0.0
        %v328 = vadd.f32 %v326, %v327
        %v329 = vsel %vm319, %v308, 0.0
        %v330 = vadd.f32 %v328, %v329
        %v331 = vsel %vm319, %v309, 0.0
        %v332 = vadd.f32 %v330, %v331
        %v333 = vsel %vm319, %v310, 0.0
        %v334 = vadd.f32 %v332, %v333
        %v335 = vsel %vm319, %v311, 0.0
        %v336 = vadd.f32 %v334, %v335
        %v337 = vsel %vm319, %v312, 0.0
        %v338 = vadd.f32 %v336, %v337
        %v339 = vsel %vm319, %v313, 0.0
        %v340 = vadd.f32 %v338, %v339
        %v341 = vsel %vm319, %v314, 0.0
        %v342 = vadd.f32 %v340, %v341
        %v343 = vsel %vm319, %v315, 0.0
        %v344 = vadd.f32 %v342, %v343
        %v345 = vsel %vm319, %v316, 0.0
        %v346 = vadd.f32 %v344, %v345
        %v347 = vsel %vm319, %v317, 0.0
        %v348 = vadd.f32 %v346, %v347
        %v349 = vsel %vm319, %v318, 0.0
        %v350 = vadd.f32 %v348, %v349
        %v351 = vrot.slane %v350, 4
        %v352 = vadd.f32 %v350, %v351
        %v353 = vrot.slane %v352, 2
        %v354 = vadd.f32 %v352, %v353
        %v355 = vrot.slane %v354, 1
        %v356 = vadd.f32 %v354, %v355
        %v357 = vadd.f32 %v356, 0.0
        %v358 = vmul.f32 %v303, %v303
        %v359 = vmul.f32 %v304, %v304
        %v360 = vmul.f32 %v305, %v305
        %v361 = vmul.f32 %v306, %v306
        %v362 = vmul.f32 %v307, %v307
        %v363 = vmul.f32 %v308, %v308
        %v364 = vmul.f32 %v309, %v309
        %v365 = vmul.f32 %v310, %v310
        %v366 = vmul.f32 %v311, %v311
        %v367 = vmul.f32 %v312, %v312
        %v368 = vmul.f32 %v313, %v313
        %v369 = vmul.f32 %v314, %v314
        %v370 = vmul.f32 %v315, %v315
        %v371 = vmul.f32 %v316, %v316
        %v372 = vmul.f32 %v317, %v317
        %v373 = vmul.f32 %v318, %v318
        %v374 = vsel %vm319, %v358, 0.0
        %v375 = vsel %vm319, %v359, 0.0
        %v376 = vadd.f32 %v374, %v375
        %v377 = vsel %vm319, %v360, 0.0
        %v378 = vadd.f32 %v376, %v377
        %v379 = vsel %vm319, %v361, 0.0
        %v380 = vadd.f32 %v378, %v379
        %v381 = vsel %vm319, %v362, 0.0
        %v382 = vadd.f32 %v380, %v381
        %v383 = vsel %vm319, %v363, 0.0
        %v384 = vadd.f32 %v382, %v383
        %v385 = vsel %vm319, %v364, 0.0
        %v386 = vadd.f32 %v384, %v385
        %v387 = vsel %vm319, %v365, 0.0
        %v388 = vadd.f32 %v386, %v387
        %v389 = vsel %vm319, %v366, 0.0
        %v390 = vadd.f32 %v388, %v389
        %v391 = vsel %vm319, %v367, 0.0
        %v392 = vadd.f32 %v390, %v391
        %v393 = vsel %vm319, %v368, 0.0
        %v394 = vadd.f32 %v392, %v393
        %v395 = vsel %vm319, %v369, 0.0
        %v396 = vadd.f32 %v394, %v395
        %v397 = vsel %vm319, %v370, 0.0
        %v398 = vadd.f32 %v396, %v397
        %v399 = vsel %vm319, %v371, 0.0
        %v400 = vadd.f32 %v398, %v399
        %v401 = vsel %vm319, %v372, 0.0
        %v402 = vadd.f32 %v400, %v401
        %v403 = vsel %vm319, %v373, 0.0
        %v404 = vadd.f32 %v402, %v403
        %v405 = vrot.slane %v404, 4
        %v406 = vadd.f32 %v404, %v405
        %v407 = vrot.slane %v406, 2
        %v408 = vadd.f32 %v406, %v407
        %v409 = vrot.slane %v408, 1
        %v410 = vadd.f32 %v408, %v409
        %v411 = vadd.f32 %v410, 0.0
        %v412 = vld [vmem:[%s287 + $0x80] sm:$0xff]
        %v413 = vld [vmem:[%s287 + $0x88] sm:$0xff]
        %v414 = vld [vmem:[%s287 + $0x90] sm:$0xff]
        %v415 = vld [vmem:[%s287 + $0x98] sm:$0xff]
        %v416 = vld [vmem:[%s287 + $0xa0] sm:$0xff]
        %v417 = vld [vmem:[%s287 + $0xa8] sm:$0xff]
        %v418 = vld [vmem:[%s287 + $0xb0] sm:$0xff]
        %v419 = vld [vmem:[%s287 + $0xb8] sm:$0xff]
        %v420 = vld [vmem:[%s287 + $0xc0] sm:$0xff]
        %v421 = vld [vmem:[%s287 + $0xc8] sm:$0xff]
        %v422 = vld [vmem:[%s287 + $0xd0] sm:$0xff]
        %v423 = vld [vmem:[%s287 + $0xd8] sm:$0xff]
        %v424 = vld [vmem:[%s287 + $0xe0] sm:$0xff]
        %v425 = vld [vmem:[%s287 + $0xe8] sm:$0xff]
        %v426 = vld [vmem:[%s287 + $0xf0] sm:$0xff]
        %v427 = vld [vmem:[%s287 + $0xf8] sm:$0xff]
        %v428 = vsel %vm319, %v412, 0.0
        %v429 = vsel %vm319, %v413, 0.0
        %v430 = vadd.f32 %v428, %v429
        %v431 = vsel %vm319, %v414, 0.0
        %v432 = vadd.f32 %v430, %v431
        %v433 = vsel %vm319, %v415, 0.0
        %v434 = vadd.f32 %v432, %v433
        %v435 = vsel %vm319, %v416, 0.0
        %v436 = vadd.f32 %v434, %v435
        %v437 = vsel %vm319, %v417, 0.0
        %v438 = vadd.f32 %v436, %v437
        %v439 = vsel %vm319, %v418, 0.0
        %v440 = vadd.f32 %v438, %v439
        %v441 = vsel %vm319, %v419, 0.0
        %v442 = vadd.f32 %v440, %v441
        %v443 = vsel %vm319, %v420, 0.0
        %v444 = vadd.f32 %v442, %v443
        %v445 = vsel %vm319, %v421, 0.0
        %v446 = vadd.f32 %v444, %v445
        %v447 = vsel %vm319, %v422, 0.0
        %v448 = vadd.f32 %v446, %v447
        %v449 = vsel %vm319, %v423, 0.0
        %v450 = vadd.f32 %v448, %v449
        %v451 = vsel %vm319, %v424, 0.0
        %v452 = vadd.f32 %v450, %v451
        %v453 = vsel %vm319, %v425, 0.0
        %v454 = vadd.f32 %v452, %v453
        %v455 = vsel %vm319, %v426, 0.0
        %v456 = vadd.f32 %v454, %v455
        %v457 = vsel %vm319, %v427, 0.0
        %v458 = vadd.f32 %v456, %v457
        %v459 = vrot.slane %v458, 4
        %v460 = vadd.f32 %v458, %v459
        %v461 = vrot.slane %v460, 2
        %v462 = vadd.f32 %v460, %v461
        %v463 = vrot.slane %v462, 1
        %v464 = vadd.f32 %v462, %v463
        %v465 = vadd.f32 %v357, %v464
        %v466 = vmul.f32 %v412, %v412
        %v467 = vmul.f32 %v413, %v413
        %v468 = vmul.f32 %v414, %v414
        %v469 = vmul.f32 %v415, %v415
        %v470 = vmul.f32 %v416, %v416
        %v471 = vmul.f32 %v417, %v417
        %v472 = vmul.f32 %v418, %v418
        %v473 = vmul.f32 %v419, %v419
        %v474 = vmul.f32 %v420, %v420
        %v475 = vmul.f32 %v421, %v421
        %v476 = vmul.f32 %v422, %v422
        %v477 = vmul.f32 %v423, %v423
        %v478 = vmul.f32 %v424, %v424
        %v479 = vmul.f32 %v425, %v425
        %v480 = vmul.f32 %v426, %v426
        %v481 = vmul.f32 %v427, %v427
        %v482 = vsel %vm319, %v466, 0.0
        %v483 = vsel %vm319, %v467, 0.0
        %v484 = vadd.f32 %v482, %v483
        %v485 = vsel %vm319, %v468, 0.0
        %v486 = vadd.f32 %v484, %v485
        %v487 = vsel %vm319, %v469, 0.0
        %v488 = vadd.f32 %v486, %v487
        %v489 = vsel %vm319, %v470, 0.0
        %v490 = vadd.f32 %v488, %v489
        %v491 = vsel %vm319, %v471, 0.0
        %v492 = vadd.f32 %v490, %v491
        %v493 = vsel %vm319, %v472, 0.0
        %v494 = vadd.f32 %v492, %v493
        %v495 = vsel %vm319, %v473, 0.0
        %v496 = vadd.f32 %v494, %v495
        %v497 = vsel %vm319, %v474, 0.0
        %v498 = vadd.f32 %v496, %v497
        %v499 = vsel %vm319, %v475, 0.0
        %v500 = vadd.f32 %v498, %v499
        %v501 = vsel %vm319, %v476, 0.0
        %v502 = vadd.f32 %v500, %v501
        %v503 = vsel %vm319, %v477, 0.0
        %v504 = vadd.f32 %v502, %v503
        %v505 = vsel %vm319, %v478, 0.0
        %v506 = vadd.f32 %v504, %v505
        %v507 = vsel %vm319, %v479, 0.0
        %v508 = vadd.f32 %v506, %v507
        %v509 = vsel %vm319, %v480, 0.0
        %v510 = vadd.f32 %v508, %v509
        %v511 = vsel %vm319, %v481, 0.0
        %v512 = vadd.f32 %v510, %v511
        %v513 = vrot.slane %v512, 4
        %v514 = vadd.f32 %v512, %v513
        %v515 = vrot.slane %v514, 2
        %v516 = vadd.f32 %v514, %v515
        %v517 = vrot.slane %v516, 1
        %v518 = vadd.f32 %v516, %v517
        %v519 = vadd.f32 %v411, %v518
        %v520 = vmul.f32 %v465, 0.00390625
        %v521 = vmul.f32 %v519, 0.00390625
        %v522 = vld [vmem:[%s3] sm:$0xff]
        %v523 = vld [vmem:[%s3 + $0x8] sm:$0xff]
        %v524 = vld [vmem:[%s3 + $0x10] sm:$0xff]
        %v525 = vld [vmem:[%s3 + $0x18] sm:$0xff]
        %v526 = vld [vmem:[%s3 + $0x20] sm:$0xff]
        %v527 = vld [vmem:[%s3 + $0x28] sm:$0xff]
        %v528 = vld [vmem:[%s3 + $0x30] sm:$0xff]
        %v529 = vld [vmem:[%s3 + $0x38] sm:$0xff]
        %v531 = vsel %vm319, %v520, 0
        %533 = vmatprep.subr.mxu0 0.0
        %534 = vmatpush1.msra.mxu0 0.0
        %535 = vmatprep.subr.mxu0 0.0
        %536 = vmatpush1.msra.mxu0 0.0
        %537 = vmatprep.subr.mxu0 0.0
        %538 = vmatpush1.msra.mxu0 0.0
        %539 = vmatprep.subr.mxu0 0.0
        %540 = vmatpush1.msra.mxu0 0.0
        %541 = vmatprep.subr.mxu0 0.0
        %542 = vmatpush1.msra.mxu0 0.0
        %543 = vmatprep.subr.mxu0 0.0
        %544 = vmatpush1.msra.mxu0 0.0
        %545 = vmatprep.subr.mxu0 0.0
        %546 = vmatpush1.msra.mxu0 0.0
        %547 = vmatprep.subr.mxu0 0.0
        %548 = vmatpush1.msra.mxu0 0.0
        %549 = vmatprep.subr.mxu0 0.0
        %550 = vmatpush1.msra.mxu0 %v529
        %551 = vmatprep.subr.mxu0 0.0
        %552 = vmatpush1.msra.mxu0 %v528
        %553 = vmatprep.subr.mxu0 0.0
        %554 = vmatpush1.msra.mxu0 %v527
        %555 = vmatprep.subr.mxu0 0.0
        %556 = vmatpush1.msra.mxu0 %v526
        %557 = vmatprep.subr.mxu0 0.0
        %558 = vmatpush1.msra.mxu0 %v525
        %559 = vmatprep.subr.mxu0 0.0
        %560 = vmatpush1.msra.mxu0 %v524
        %561 = vmatprep.subr.mxu0 0.0
        %562 = vmatpush1.msra.mxu0 %v523
        %563 = vmatprep.subr.mxu0 0.0
        %564 = vmatpush1.msra.mxu0 %v522
        %565 = vmatprep.subr.mxu0 0.0
        %566 = vmatpush2.msra.mxu0 0.0
        %567 = vmatprep.subr.mxu0 0.0
        %568 = vmatpush2.msra.mxu0 0.0
        %569 = vmatprep.subr.mxu0 0.0
        %570 = vmatpush2.msra.mxu0 0.0
        %571 = vmatprep.subr.mxu0 0.0
        %572 = vmatpush2.msra.mxu0 0.0
        %573 = vmatprep.subr.mxu0 0.0
        %574 = vmatpush2.msra.mxu0 0.0
        %575 = vmatprep.subr.mxu0 0.0
        %576 = vmatpush2.msra.mxu0 0.0
        %577 = vmatprep.subr.mxu0 0.0
        %578 = vmatpush2.msra.mxu0 0.0
        %579 = vmatprep.subr.mxu0 0.0
        %580 = vmatpush2.msra.mxu0 0.0
        %581 = vmatprep.subr.mxu0 0.0
        %582 = vmatpush2.msra.mxu0 0.0
        %583 = vmatprep.subr.mxu0 0.0
        %584 = vmatpush2.msra.mxu0 0.0
        %585 = vmatprep.subr.mxu0 0.0
        %586 = vmatpush2.msra.mxu0 0.0
        %587 = vmatprep.subr.mxu0 0.0
        %588 = vmatpush2.msra.mxu0 0.0
        %589 = vmatprep.subr.mxu0 0.0
        %590 = vmatpush2.msra.mxu0 0.0
        %591 = vmatprep.subr.mxu0 0.0
        %592 = vmatpush2.msra.mxu0 0.0
        %593 = vmatprep.subr.mxu0 0.0
        %594 = vmatpush2.msra.mxu0 0.0
        %595 = vmatprep.subr.mxu0 0.0
        %596 = vmatpush2.msra.mxu0 0.0
        %597 = vmatprep.mubr.f32.mxu0 0.0
        %598 = vmatmul.mubr.f32.gmra.mxu0 %v531
        %v599 = vpop.f32.mrf.mxu0
        %v600 = vadd.f32 0.0, %v599
        %v601 = vpop.f32.mrf.mxu0
        %602 = vdwg.mxu0
        %v604 = vsel %vm319, %v521, 0
        %606 = vmatprep.subr.mxu0 0.0
        %607 = vmatpush1.msra.mxu0 0.0
        %608 = vmatprep.subr.mxu0 0.0
        %609 = vmatpush1.msra.mxu0 0.0
        %610 = vmatprep.subr.mxu0 0.0
        %611 = vmatpush1.msra.mxu0 0.0
        %612 = vmatprep.subr.mxu0 0.0
        %613 = vmatpush1.msra.mxu0 0.0
        %614 = vmatprep.subr.mxu0 0.0
        %615 = vmatpush1.msra.mxu0 0.0
        %616 = vmatprep.subr.mxu0 0.0
        %617 = vmatpush1.msra.mxu0 0.0
        %618 = vmatprep.subr.mxu0 0.0
        %619 = vmatpush1.msra.mxu0 0.0
        %620 = vmatprep.subr.mxu0 0.0
        %621 = vmatpush1.msra.mxu0 0.0
        %622 = vmatprep.subr.mxu0 0.0
        %623 = vmatpush1.msra.mxu0 %v529
        %624 = vmatprep.subr.mxu0 0.0
        %625 = vmatpush1.msra.mxu0 %v528
        %626 = vmatprep.subr.mxu0 0.0
        %627 = vmatpush1.msra.mxu0 %v527
        %628 = vmatprep.subr.mxu0 0.0
        %629 = vmatpush1.msra.mxu0 %v526
        %630 = vmatprep.subr.mxu0 0.0
        %631 = vmatpush1.msra.mxu0 %v525
        %632 = vmatprep.subr.mxu0 0.0
        %633 = vmatpush1.msra.mxu0 %v524
        %634 = vmatprep.subr.mxu0 0.0
        %635 = vmatpush1.msra.mxu0 %v523
        %636 = vmatprep.subr.mxu0 0.0
        %637 = vmatpush1.msra.mxu0 %v522
        %638 = vmatprep.subr.mxu0 0.0
        %639 = vmatpush2.msra.mxu0 0.0
        %640 = vmatprep.subr.mxu0 0.0
        %641 = vmatpush2.msra.mxu0 0.0
        %642 = vmatprep.subr.mxu0 0.0
        %643 = vmatpush2.msra.mxu0 0.0
        %644 = vmatprep.subr.mxu0 0.0
        %645 = vmatpush2.msra.mxu0 0.0
        %646 = vmatprep.subr.mxu0 0.0
        %647 = vmatpush2.msra.mxu0 0.0
        %648 = vmatprep.subr.mxu0 0.0
        %649 = vmatpush2.msra.mxu0 0.0
        %650 = vmatprep.subr.mxu0 0.0
        %651 = vmatpush2.msra.mxu0 0.0
        %652 = vmatprep.subr.mxu0 0.0
        %653 = vmatpush2.msra.mxu0 0.0
        %654 = vmatprep.subr.mxu0 0.0
        %655 = vmatpush2.msra.mxu0 0.0
        %656 = vmatprep.subr.mxu0 0.0
        %657 = vmatpush2.msra.mxu0 0.0
        %658 = vmatprep.subr.mxu0 0.0
        %659 = vmatpush2.msra.mxu0 0.0
        %660 = vmatprep.subr.mxu0 0.0
        %661 = vmatpush2.msra.mxu0 0.0
        %662 = vmatprep.subr.mxu0 0.0
        %663 = vmatpush2.msra.mxu0 0.0
        %664 = vmatprep.subr.mxu0 0.0
        %665 = vmatpush2.msra.mxu0 0.0
        %666 = vmatprep.subr.mxu0 0.0
        %667 = vmatpush2.msra.mxu0 0.0
        %668 = vmatprep.subr.mxu0 0.0
        %669 = vmatpush2.msra.mxu0 0.0
        %670 = vmatprep.mubr.f32.mxu0 0.0
        %671 = vmatmul.mubr.f32.gmra.mxu0 %v604
        %v672 = vpop.f32.mrf.mxu0
        %v673 = vadd.f32 0.0, %v672
        %v674 = vpop.f32.mrf.mxu0
        %675 = vdwg.mxu0
        %v676 = vmul.f32 %v600, %v600
        %v677 = vsub.f32 %v673, %v676
        %v678 = vmax.f32 %v677, 0.0
        %v679 = vadd.f32 %v678, 1e-05
        %v680 = vrsqrt.pop %v679
        %v681 = vld [vmem:[%s1] sm:$0x1]
        %v682 = vmul.f32 %v680, %v681
        %v683 = vld [vmem:[%s2] sm:$0x1]
        %v684 = vmul.f32 %v600, %v682
        %v685 = vsub.f32 %v683, %v684
        %v686 = vlaneseq
        %v687 = vshrl.u32 %v686, 7
        %v688 = vsub.s32 0, %v687
        %v689 = vrot.slane %v682, %v688
        %v690 = vmul.f32 %v303, %v689
        %v691 = vmul.f32 %v304, %v689
        %v692 = vmul.f32 %v305, %v689
        %v693 = vmul.f32 %v306, %v689
        %v694 = vmul.f32 %v307, %v689
        %v695 = vmul.f32 %v308, %v689
        %v696 = vmul.f32 %v309, %v689
        %v697 = vmul.f32 %v310, %v689
        %v698 = vmul.f32 %v311, %v689
        %v699 = vmul.f32 %v312, %v689
        %v700 = vmul.f32 %v313, %v689
        %v701 = vmul.f32 %v314, %v689
        %v702 = vmul.f32 %v315, %v689
        %v703 = vmul.f32 %v316, %v689
        %v704 = vmul.f32 %v317, %v689
        %v705 = vmul.f32 %v318, %v689
        %v707 = vlaneseq
        %v708 = vshrl.u32 %v707, 7
        %v709 = vsub.s32 0, %v708
        %v710 = vrot.slane %v685, %v709
        %v712 = vadd.f32 %v690, %v710
        %v713 = vadd.f32 %v691, %v710
        %v714 = vadd.f32 %v692, %v710
        %v715 = vadd.f32 %v693, %v710
        %v716 = vadd.f32 %v694, %v710
        %v717 = vadd.f32 %v695, %v710
        %v718 = vadd.f32 %v696, %v710
        %v719 = vadd.f32 %v697, %v710
        %v720 = vadd.f32 %v698, %v710
        %v721 = vadd.f32 %v699, %v710
        %v722 = vadd.f32 %v700, %v710
        %v723 = vadd.f32 %v701, %v710
        %v724 = vadd.f32 %v702, %v710
        %v725 = vadd.f32 %v703, %v710
        %v726 = vadd.f32 %v704, %v710
        %v727 = vadd.f32 %v705, %v710
        %v728 = vxor.u32 %v712, 2147483648
        %v729 = vxor.u32 %v713, 2147483648
        %v730 = vxor.u32 %v714, 2147483648
        %v731 = vxor.u32 %v715, 2147483648
        %v732 = vxor.u32 %v716, 2147483648
        %v733 = vxor.u32 %v717, 2147483648
        %v734 = vxor.u32 %v718, 2147483648
        %v735 = vxor.u32 %v719, 2147483648
        %v736 = vxor.u32 %v720, 2147483648
        %v737 = vxor.u32 %v721, 2147483648
        %v738 = vxor.u32 %v722, 2147483648
        %v739 = vxor.u32 %v723, 2147483648
        %v740 = vxor.u32 %v724, 2147483648
        %v741 = vxor.u32 %v725, 2147483648
        %v742 = vxor.u32 %v726, 2147483648
        %v743 = vxor.u32 %v727, 2147483648
        %v744 = vmul.f32 %v728, 1.442695
        %v745 = vpow.pop %v744
        %v746 = vmul.f32 %v729, 1.442695
        %v747 = vpow.pop %v746
        %v748 = vmul.f32 %v730, 1.442695
        %v749 = vpow.pop %v748
        %v750 = vmul.f32 %v731, 1.442695
        %v751 = vpow.pop %v750
        %v752 = vmul.f32 %v732, 1.442695
        %v753 = vpow.pop %v752
        %v754 = vmul.f32 %v733, 1.442695
        %v755 = vpow.pop %v754
        %v756 = vmul.f32 %v734, 1.442695
        %v757 = vpow.pop %v756
        %v758 = vmul.f32 %v735, 1.442695
        %v759 = vpow.pop %v758
        %v760 = vmul.f32 %v736, 1.442695
        %v761 = vpow.pop %v760
        %v762 = vmul.f32 %v737, 1.442695
        %v763 = vpow.pop %v762
        %v764 = vmul.f32 %v738, 1.442695
        %v765 = vpow.pop %v764
        %v766 = vmul.f32 %v739, 1.442695
        %v767 = vpow.pop %v766
        %v768 = vmul.f32 %v740, 1.442695
        %v769 = vpow.pop %v768
        %v770 = vmul.f32 %v741, 1.442695
        %v771 = vpow.pop %v770
        %v772 = vmul.f32 %v742, 1.442695
        %v773 = vpow.pop %v772
        %v774 = vmul.f32 %v743, 1.442695
        %v775 = vpow.pop %v774
        %v776 = vadd.f32 %v745, 1.0
        %v777 = vadd.f32 %v747, 1.0
        %v778 = vadd.f32 %v749, 1.0
        %v779 = vadd.f32 %v751, 1.0
        %v780 = vadd.f32 %v753, 1.0
        %v781 = vadd.f32 %v755, 1.0
        %v782 = vadd.f32 %v757, 1.0
        %v783 = vadd.f32 %v759, 1.0
        %v784 = vadd.f32 %v761, 1.0
        %v785 = vadd.f32 %v763, 1.0
        %v786 = vadd.f32 %v765, 1.0
        %v787 = vadd.f32 %v767, 1.0
        %v788 = vadd.f32 %v769, 1.0
        %v789 = vadd.f32 %v771, 1.0
        %v790 = vadd.f32 %v773, 1.0
        %v791 = vadd.f32 %v775, 1.0
        %v792 = vrcp.pop %v776
        %v793 = vmul.f32 1.0, %v792
        %v794 = vrcp.pop %v777
        %v795 = vmul.f32 1.0, %v794
        %v796 = vrcp.pop %v778
        %v797 = vmul.f32 1.0, %v796
        %v798 = vrcp.pop %v779
        %v799 = vmul.f32 1.0, %v798
        %v800 = vrcp.pop %v780
        %v801 = vmul.f32 1.0, %v800
        %v802 = vrcp.pop %v781
        %v803 = vmul.f32 1.0, %v802
        %v804 = vrcp.pop %v782
        %v805 = vmul.f32 1.0, %v804
        %v806 = vrcp.pop %v783
        %v807 = vmul.f32 1.0, %v806
        %v808 = vrcp.pop %v784
        %v809 = vmul.f32 1.0, %v808
        %v810 = vrcp.pop %v785
        %v811 = vmul.f32 1.0, %v810
        %v812 = vrcp.pop %v786
        %v813 = vmul.f32 1.0, %v812
        %v814 = vrcp.pop %v787
        %v815 = vmul.f32 1.0, %v814
        %v816 = vrcp.pop %v788
        %v817 = vmul.f32 1.0, %v816
        %v818 = vrcp.pop %v789
        %v819 = vmul.f32 1.0, %v818
        %v820 = vrcp.pop %v790
        %v821 = vmul.f32 1.0, %v820
        %v822 = vrcp.pop %v791
        %v823 = vmul.f32 1.0, %v822
        %v824 = vmul.f32 %v712, %v793
        %v825 = vmul.f32 %v713, %v795
        %v826 = vmul.f32 %v714, %v797
        %v827 = vmul.f32 %v715, %v799
        %v828 = vmul.f32 %v716, %v801
        %v829 = vmul.f32 %v717, %v803
        %v830 = vmul.f32 %v718, %v805
        %v831 = vmul.f32 %v719, %v807
        %v832 = vmul.f32 %v720, %v809
        %v833 = vmul.f32 %v721, %v811
        %v834 = vmul.f32 %v722, %v813
        %v835 = vmul.f32 %v723, %v815
        %v836 = vmul.f32 %v724, %v817
        %v837 = vmul.f32 %v725, %v819
        %v838 = vmul.f32 %v726, %v821
        %v839 = vmul.f32 %v727, %v823
        %v840 = vpack.c.bf16 %v825, %v824
        %v841 = vpack.c.bf16 %v827, %v826
        %v842 = vpack.c.bf16 %v829, %v828
        %v843 = vpack.c.bf16 %v831, %v830
        %v844 = vpack.c.bf16 %v833, %v832
        %v845 = vpack.c.bf16 %v835, %v834
        %v846 = vpack.c.bf16 %v837, %v836
        %v847 = vpack.c.bf16 %v839, %v838
        %v856 = vunpack.c.l.b16 %v840
        %v857 = vunpack.c.h.b16 %v840
        %v858 = vunpack.c.l.b16 %v841
        %v859 = vunpack.c.h.b16 %v841
        %v860 = vunpack.c.l.b16 %v842
        %v861 = vunpack.c.h.b16 %v842
        %v862 = vunpack.c.l.b16 %v843
        %v863 = vunpack.c.h.b16 %v843
        %v864 = vunpack.c.l.b16 %v844
        %v865 = vunpack.c.h.b16 %v844
        %v866 = vunpack.c.l.b16 %v845
        %v867 = vunpack.c.h.b16 %v845
        %v868 = vunpack.c.l.b16 %v846
        %v869 = vunpack.c.h.b16 %v846
        %v870 = vunpack.c.l.b16 %v847
        %v871 = vunpack.c.h.b16 %v847
        %v872 = vpack.c.b16 %v856, %v856
        %v873 = vpack.c.b16 %v857, %v857
        %v874 = vpack.c.b16 %v858, %v858
        %v875 = vpack.c.b16 %v859, %v859
        %v876 = vpack.c.b16 %v860, %v860
        %v877 = vpack.c.b16 %v861, %v861
        %v878 = vpack.c.b16 %v862, %v862
        %v879 = vpack.c.b16 %v863, %v863
        %v880 = vpack.c.b16 %v864, %v864
        %v881 = vpack.c.b16 %v865, %v865
        %v882 = vpack.c.b16 %v866, %v866
        %v883 = vpack.c.b16 %v867, %v867
        %v884 = vpack.c.b16 %v868, %v868
        %v885 = vpack.c.b16 %v869, %v869
        %v886 = vpack.c.b16 %v870, %v870
        %v887 = vpack.c.b16 %v871, %v871
        %904 = vst.msk [vmem:[#allocation2 + $0xc] sm:$0xf] %vm296, %v872
        %905 = vst.msk [vmem:[#allocation2 + $0x10] sm:$0xf] %vm296, %v873
        %906 = vst.msk [vmem:[#allocation2 + $0x14] sm:$0xf] %vm296, %v874
        %907 = vst.msk [vmem:[#allocation2 + $0x18] sm:$0xf] %vm296, %v875
        %908 = vst.msk [vmem:[#allocation2 + $0x1c] sm:$0xf] %vm296, %v876
        %909 = vst.msk [vmem:[#allocation2 + $0x20] sm:$0xf] %vm296, %v877
        %910 = vst.msk [vmem:[#allocation2 + $0x24] sm:$0xf] %vm296, %v878
        %911 = vst.msk [vmem:[#allocation2 + $0x28] sm:$0xf] %vm296, %v879
        %912 = vst.msk [vmem:[#allocation2 + $0x2c] sm:$0xf] %vm296, %v880
        %913 = vst.msk [vmem:[#allocation2 + $0x30] sm:$0xf] %vm296, %v881
        %914 = vst.msk [vmem:[#allocation2 + $0x34] sm:$0xf] %vm296, %v882
        %915 = vst.msk [vmem:[#allocation2 + $0x38] sm:$0xf] %vm296, %v883
        %916 = vst.msk [vmem:[#allocation2 + $0x3c] sm:$0xf] %vm296, %v884
        %917 = vst.msk [vmem:[#allocation2 + $0x40] sm:$0xf] %vm296, %v885
        %918 = vst.msk [vmem:[#allocation2 + $0x44] sm:$0xf] %vm296, %v886
        %919 = vst.msk [vmem:[#allocation2 + $0x48] sm:$0xf] %vm296, %v887
        %v920 = vld [vmem:[%s287 + $0x80] sm:$0xff]
        %v921 = vld [vmem:[%s287 + $0x88] sm:$0xff]
        %v922 = vld [vmem:[%s287 + $0x90] sm:$0xff]
        %v923 = vld [vmem:[%s287 + $0x98] sm:$0xff]
        %v924 = vld [vmem:[%s287 + $0xa0] sm:$0xff]
        %v925 = vld [vmem:[%s287 + $0xa8] sm:$0xff]
        %v926 = vld [vmem:[%s287 + $0xb0] sm:$0xff]
        %v927 = vld [vmem:[%s287 + $0xb8] sm:$0xff]
        %v928 = vld [vmem:[%s287 + $0xc0] sm:$0xff]
        %v929 = vld [vmem:[%s287 + $0xc8] sm:$0xff]
        %v930 = vld [vmem:[%s287 + $0xd0] sm:$0xff]
        %v931 = vld [vmem:[%s287 + $0xd8] sm:$0xff]
        %v932 = vld [vmem:[%s287 + $0xe0] sm:$0xff]
        %v933 = vld [vmem:[%s287 + $0xe8] sm:$0xff]
        %v934 = vld [vmem:[%s287 + $0xf0] sm:$0xff]
        %v935 = vld [vmem:[%s287 + $0xf8] sm:$0xff]
        %v936 = vmul.f32 %v920, %v689
        %v937 = vmul.f32 %v921, %v689
        %v938 = vmul.f32 %v922, %v689
        %v939 = vmul.f32 %v923, %v689
        %v940 = vmul.f32 %v924, %v689
        %v941 = vmul.f32 %v925, %v689
        %v942 = vmul.f32 %v926, %v689
        %v943 = vmul.f32 %v927, %v689
        %v944 = vmul.f32 %v928, %v689
        %v945 = vmul.f32 %v929, %v689
        %v946 = vmul.f32 %v930, %v689
        %v947 = vmul.f32 %v931, %v689
        %v948 = vmul.f32 %v932, %v689
        %v949 = vmul.f32 %v933, %v689
        %v950 = vmul.f32 %v934, %v689
        %v951 = vmul.f32 %v935, %v689
        %v952 = vadd.f32 %v936, %v710
        %v953 = vadd.f32 %v937, %v710
        %v954 = vadd.f32 %v938, %v710
        %v955 = vadd.f32 %v939, %v710
        %v956 = vadd.f32 %v940, %v710
        %v957 = vadd.f32 %v941, %v710
        %v958 = vadd.f32 %v942, %v710
        %v959 = vadd.f32 %v943, %v710
        %v960 = vadd.f32 %v944, %v710
        %v961 = vadd.f32 %v945, %v710
        %v962 = vadd.f32 %v946, %v710
        %v963 = vadd.f32 %v947, %v710
        %v964 = vadd.f32 %v948, %v710
        %v965 = vadd.f32 %v949, %v710
        %v966 = vadd.f32 %v950, %v710
        %v967 = vadd.f32 %v951, %v710
        %v968 = vxor.u32 %v952, 2147483648
        %v969 = vxor.u32 %v953, 2147483648
        %v970 = vxor.u32 %v954, 2147483648
        %v971 = vxor.u32 %v955, 2147483648
        %v972 = vxor.u32 %v956, 2147483648
        %v973 = vxor.u32 %v957, 2147483648
        %v974 = vxor.u32 %v958, 2147483648
        %v975 = vxor.u32 %v959, 2147483648
        %v976 = vxor.u32 %v960, 2147483648
        %v977 = vxor.u32 %v961, 2147483648
        %v978 = vxor.u32 %v962, 2147483648
        %v979 = vxor.u32 %v963, 2147483648
        %v980 = vxor.u32 %v964, 2147483648
        %v981 = vxor.u32 %v965, 2147483648
        %v982 = vxor.u32 %v966, 2147483648
        %v983 = vxor.u32 %v967, 2147483648
        %v984 = vmul.f32 %v968, 1.442695
        %v985 = vpow.pop %v984
        %v986 = vmul.f32 %v969, 1.442695
        %v987 = vpow.pop %v986
        %v988 = vmul.f32 %v970, 1.442695
        %v989 = vpow.pop %v988
        %v990 = vmul.f32 %v971, 1.442695
        %v991 = vpow.pop %v990
        %v992 = vmul.f32 %v972, 1.442695
        %v993 = vpow.pop %v992
        %v994 = vmul.f32 %v973, 1.442695
        %v995 = vpow.pop %v994
        %v996 = vmul.f32 %v974, 1.442695
        %v997 = vpow.pop %v996
        %v998 = vmul.f32 %v975, 1.442695
        %v999 = vpow.pop %v998
        %v1000 = vmul.f32 %v976, 1.442695
        %v1001 = vpow.pop %v1000
        %v1002 = vmul.f32 %v977, 1.442695
        %v1003 = vpow.pop %v1002
        %v1004 = vmul.f32 %v978, 1.442695
        %v1005 = vpow.pop %v1004
        %v1006 = vmul.f32 %v979, 1.442695
        %v1007 = vpow.pop %v1006
        %v1008 = vmul.f32 %v980, 1.442695
        %v1009 = vpow.pop %v1008
        %v1010 = vmul.f32 %v981, 1.442695
        %v1011 = vpow.pop %v1010
        %v1012 = vmul.f32 %v982, 1.442695
        %v1013 = vpow.pop %v1012
        %v1014 = vmul.f32 %v983, 1.442695
        %v1015 = vpow.pop %v1014
        %v1016 = vadd.f32 %v985, 1.0
        %v1017 = vadd.f32 %v987, 1.0
        %v1018 = vadd.f32 %v989, 1.0
        %v1019 = vadd.f32 %v991, 1.0
        %v1020 = vadd.f32 %v993, 1.0
        %v1021 = vadd.f32 %v995, 1.0
        %v1022 = vadd.f32 %v997, 1.0
        %v1023 = vadd.f32 %v999, 1.0
        %v1024 = vadd.f32 %v1001, 1.0
        %v1025 = vadd.f32 %v1003, 1.0
        %v1026 = vadd.f32 %v1005, 1.0
        %v1027 = vadd.f32 %v1007, 1.0
        %v1028 = vadd.f32 %v1009, 1.0
        %v1029 = vadd.f32 %v1011, 1.0
        %v1030 = vadd.f32 %v1013, 1.0
        %v1031 = vadd.f32 %v1015, 1.0
        %v1032 = vrcp.pop %v1016
        %v1033 = vmul.f32 1.0, %v1032
        %v1034 = vrcp.pop %v1017
        %v1035 = vmul.f32 1.0, %v1034
        %v1036 = vrcp.pop %v1018
        %v1037 = vmul.f32 1.0, %v1036
        %v1038 = vrcp.pop %v1019
        %v1039 = vmul.f32 1.0, %v1038
        %v1040 = vrcp.pop %v1020
        %v1041 = vmul.f32 1.0, %v1040
        %v1042 = vrcp.pop %v1021
        %v1043 = vmul.f32 1.0, %v1042
        %v1044 = vrcp.pop %v1022
        %v1045 = vmul.f32 1.0, %v1044
        %v1046 = vrcp.pop %v1023
        %v1047 = vmul.f32 1.0, %v1046
        %v1048 = vrcp.pop %v1024
        %v1049 = vmul.f32 1.0, %v1048
        %v1050 = vrcp.pop %v1025
        %v1051 = vmul.f32 1.0, %v1050
        %v1052 = vrcp.pop %v1026
        %v1053 = vmul.f32 1.0, %v1052
        %v1054 = vrcp.pop %v1027
        %v1055 = vmul.f32 1.0, %v1054
        %v1056 = vrcp.pop %v1028
        %v1057 = vmul.f32 1.0, %v1056
        %v1058 = vrcp.pop %v1029
        %v1059 = vmul.f32 1.0, %v1058
        %v1060 = vrcp.pop %v1030
        %v1061 = vmul.f32 1.0, %v1060
        %v1062 = vrcp.pop %v1031
        %v1063 = vmul.f32 1.0, %v1062
        %v1064 = vmul.f32 %v952, %v1033
        %v1065 = vmul.f32 %v953, %v1035
        %v1066 = vmul.f32 %v954, %v1037
        %v1067 = vmul.f32 %v955, %v1039
        %v1068 = vmul.f32 %v956, %v1041
        %v1069 = vmul.f32 %v957, %v1043
        %v1070 = vmul.f32 %v958, %v1045
        %v1071 = vmul.f32 %v959, %v1047
        %v1072 = vmul.f32 %v960, %v1049
        %v1073 = vmul.f32 %v961, %v1051
        %v1074 = vmul.f32 %v962, %v1053
        %v1075 = vmul.f32 %v963, %v1055
        %v1076 = vmul.f32 %v964, %v1057
        %v1077 = vmul.f32 %v965, %v1059
        %v1078 = vmul.f32 %v966, %v1061
        %v1079 = vmul.f32 %v967, %v1063
        %v1080 = vpack.c.bf16 %v1065, %v1064
        %v1081 = vpack.c.bf16 %v1067, %v1066
        %v1082 = vpack.c.bf16 %v1069, %v1068
        %v1083 = vpack.c.bf16 %v1071, %v1070
        %v1084 = vpack.c.bf16 %v1073, %v1072
        %v1085 = vpack.c.bf16 %v1075, %v1074
        %v1086 = vpack.c.bf16 %v1077, %v1076
        %v1087 = vpack.c.bf16 %v1079, %v1078
        %v1096 = vunpack.c.l.b16 %v1080
        %v1097 = vunpack.c.h.b16 %v1080
        %v1098 = vunpack.c.l.b16 %v1081
        %v1099 = vunpack.c.h.b16 %v1081
        %v1100 = vunpack.c.l.b16 %v1082
        %v1101 = vunpack.c.h.b16 %v1082
        %v1102 = vunpack.c.l.b16 %v1083
        %v1103 = vunpack.c.h.b16 %v1083
        %v1104 = vunpack.c.l.b16 %v1084
        %v1105 = vunpack.c.h.b16 %v1084
        %v1106 = vunpack.c.l.b16 %v1085
        %v1107 = vunpack.c.h.b16 %v1085
        %v1108 = vunpack.c.l.b16 %v1086
        %v1109 = vunpack.c.h.b16 %v1086
        %v1110 = vunpack.c.l.b16 %v1087
        %v1111 = vunpack.c.h.b16 %v1087
        %v1112 = vpack.c.b16 %v1096, %v1096
        %v1113 = vpack.c.b16 %v1097, %v1097
        %v1114 = vpack.c.b16 %v1098, %v1098
        %v1115 = vpack.c.b16 %v1099, %v1099
        %v1116 = vpack.c.b16 %v1100, %v1100
        %v1117 = vpack.c.b16 %v1101, %v1101
        %v1118 = vpack.c.b16 %v1102, %v1102
        %v1119 = vpack.c.b16 %v1103, %v1103
        %v1120 = vpack.c.b16 %v1104, %v1104
        %v1121 = vpack.c.b16 %v1105, %v1105
        %v1122 = vpack.c.b16 %v1106, %v1106
        %v1123 = vpack.c.b16 %v1107, %v1107
        %v1124 = vpack.c.b16 %v1108, %v1108
        %v1125 = vpack.c.b16 %v1109, %v1109
        %v1126 = vpack.c.b16 %v1110, %v1110
        %v1127 = vpack.c.b16 %v1111, %v1111
        %1144 = vst.msk [vmem:[#allocation2 + $0x4c] sm:$0xf] %vm296, %v1112
        %1145 = vst.msk [vmem:[#allocation2 + $0x50] sm:$0xf] %vm296, %v1113
        %1146 = vst.msk [vmem:[#allocation2 + $0x54] sm:$0xf] %vm296, %v1114
        %1147 = vst.msk [vmem:[#allocation2 + $0x58] sm:$0xf] %vm296, %v1115
        %1148 = vst.msk [vmem:[#allocation2 + $0x5c] sm:$0xf] %vm296, %v1116
        %1149 = vst.msk [vmem:[#allocation2 + $0x60] sm:$0xf] %vm296, %v1117
        %1150 = vst.msk [vmem:[#allocation2 + $0x64] sm:$0xf] %vm296, %v1118
        %1151 = vst.msk [vmem:[#allocation2 + $0x68] sm:$0xf] %vm296, %v1119
        %1152 = vst.msk [vmem:[#allocation2 + $0x6c] sm:$0xf] %vm296, %v1120
        %1153 = vst.msk [vmem:[#allocation2 + $0x70] sm:$0xf] %vm296, %v1121
        %1154 = vst.msk [vmem:[#allocation2 + $0x74] sm:$0xf] %vm296, %v1122
        %1155 = vst.msk [vmem:[#allocation2 + $0x78] sm:$0xf] %vm296, %v1123
        %1156 = vst.msk [vmem:[#allocation2 + $0x7c] sm:$0xf] %vm296, %v1124
        %1157 = vst.msk [vmem:[#allocation2 + $0x80] sm:$0xf] %vm296, %v1125
        %1158 = vst.msk [vmem:[#allocation2 + $0x84] sm:$0xf] %vm296, %v1126
        %1159 = vst.msk [vmem:[#allocation2 + $0x88] sm:$0xf] %vm296, %v1127
        %v1160 = vlaneseq
        %v1161 = vshrl.u32 %v1160, 7
        %v1162 = vadd.s32 %v1161, 8
        %v1163 = vadd.s32 %v1161, 16
        %v1164 = vadd.s32 %v1161, 24
        %v1165 = vadd.s32 %v1161, 32
        %v1166 = vadd.s32 %v1161, 40
        %v1167 = vadd.s32 %v1161, 48
        %v1168 = vadd.s32 %v1161, 56
        %v1169 = vadd.s32 %v1161, 64
        %v1170 = vadd.s32 %v1161, 72
        %v1171 = vadd.s32 %v1161, 80
        %v1172 = vadd.s32 %v1161, 88
        %v1173 = vadd.s32 %v1161, 96
        %v1174 = vadd.s32 %v1161, 104
        %v1175 = vadd.s32 %v1161, 112
        %v1176 = vadd.s32 %v1161, 120
        %vm1177 = vcmp.lt.s32.totalorder %v1161, 0
        %v1178 = vsub.s32 0, %v1161
        %v1179 = vsel %vm1177, %v1178, %v1161
        %v1180 = vshrl.u32 %v1179, 4
        %v1181 = vand.u32 %v1179, 15
        %v1182 = vsub.s32 0, %v1181
        %v1183 = vsel %vm1177, %v1182, %v1181
        %vm1184 = vcmp.lt.s32.totalorder %v1162, 0
        %v1185 = vsub.s32 0, %v1162
        %v1186 = vsel %vm1184, %v1185, %v1162
        %v1187 = vshrl.u32 %v1186, 4
        %v1188 = vand.u32 %v1186, 15
        %v1189 = vsub.s32 0, %v1188
        %v1190 = vsel %vm1184, %v1189, %v1188
        %vm1191 = vcmp.lt.s32.totalorder %v1163, 0
        %v1192 = vsub.s32 0, %v1163
        %v1193 = vsel %vm1191, %v1192, %v1163
        %v1194 = vshrl.u32 %v1193, 4
        %v1195 = vand.u32 %v1193, 15
        %v1196 = vsub.s32 0, %v1195
        %v1197 = vsel %vm1191, %v1196, %v1195
        %vm1198 = vcmp.lt.s32.totalorder %v1164, 0
        %v1199 = vsub.s32 0, %v1164
        %v1200 = vsel %vm1198, %v1199, %v1164
        %v1201 = vshrl.u32 %v1200, 4
        %v1202 = vand.u32 %v1200, 15
        %v1203 = vsub.s32 0, %v1202
        %v1204 = vsel %vm1198, %v1203, %v1202
        %vm1205 = vcmp.lt.s32.totalorder %v1165, 0
        %v1206 = vsub.s32 0, %v1165
        %v1207 = vsel %vm1205, %v1206, %v1165
        %v1208 = vshrl.u32 %v1207, 4
        %v1209 = vand.u32 %v1207, 15
        %v1210 = vsub.s32 0, %v1209
        %v1211 = vsel %vm1205, %v1210, %v1209
        %vm1212 = vcmp.lt.s32.totalorder %v1166, 0
        %v1213 = vsub.s32 0, %v1166
        %v1214 = vsel %vm1212, %v1213, %v1166
        %v1215 = vshrl.u32 %v1214, 4
        %v1216 = vand.u32 %v1214, 15
        %v1217 = vsub.s32 0, %v1216
        %v1218 = vsel %vm1212, %v1217, %v1216
        %vm1219 = vcmp.lt.s32.totalorder %v1167, 0
        %v1220 = vsub.s32 0, %v1167
        %v1221 = vsel %vm1219, %v1220, %v1167
        %v1222 = vshrl.u32 %v1221, 4
        %v1223 = vand.u32 %v1221, 15
        %v1224 = vsub.s32 0, %v1223
        %v1225 = vsel %vm1219, %v1224, %v1223
        %vm1226 = vcmp.lt.s32.totalorder %v1168, 0
        %v1227 = vsub.s32 0, %v1168
        %v1228 = vsel %vm1226, %v1227, %v1168
        %v1229 = vshrl.u32 %v1228, 4
        %v1230 = vand.u32 %v1228, 15
        %v1231 = vsub.s32 0, %v1230
        %v1232 = vsel %vm1226, %v1231, %v1230
        %vm1233 = vcmp.lt.s32.totalorder %v1169, 0
        %v1234 = vsub.s32 0, %v1169
        %v1235 = vsel %vm1233, %v1234, %v1169
        %v1236 = vshrl.u32 %v1235, 4
        %v1237 = vand.u32 %v1235, 15
        %v1238 = vsub.s32 0, %v1237
        %v1239 = vsel %vm1233, %v1238, %v1237
        %vm1240 = vcmp.lt.s32.totalorder %v1170, 0
        %v1241 = vsub.s32 0, %v1170
        %v1242 = vsel %vm1240, %v1241, %v1170
        %v1243 = vshrl.u32 %v1242, 4
        %v1244 = vand.u32 %v1242, 15
        %v1245 = vsub.s32 0, %v1244
        %v1246 = vsel %vm1240, %v1245, %v1244
        %vm1247 = vcmp.lt.s32.totalorder %v1171, 0
        %v1248 = vsub.s32 0, %v1171
        %v1249 = vsel %vm1247, %v1248, %v1171
        %v1250 = vshrl.u32 %v1249, 4
        %v1251 = vand.u32 %v1249, 15
        %v1252 = vsub.s32 0, %v1251
        %v1253 = vsel %vm1247, %v1252, %v1251
        %vm1254 = vcmp.lt.s32.totalorder %v1172, 0
        %v1255 = vsub.s32 0, %v1172
        %v1256 = vsel %vm1254, %v1255, %v1172
        %v1257 = vshrl.u32 %v1256, 4
        %v1258 = vand.u32 %v1256, 15
        %v1259 = vsub.s32 0, %v1258
        %v1260 = vsel %vm1254, %v1259, %v1258
        %vm1261 = vcmp.lt.s32.totalorder %v1173, 0
        %v1262 = vsub.s32 0, %v1173
        %v1263 = vsel %vm1261, %v1262, %v1173
        %v1264 = vshrl.u32 %v1263, 4
        %v1265 = vand.u32 %v1263, 15
        %v1266 = vsub.s32 0, %v1265
        %v1267 = vsel %vm1261, %v1266, %v1265
        %vm1268 = vcmp.lt.s32.totalorder %v1174, 0
        %v1269 = vsub.s32 0, %v1174
        %v1270 = vsel %vm1268, %v1269, %v1174
        %v1271 = vshrl.u32 %v1270, 4
        %v1272 = vand.u32 %v1270, 15
        %v1273 = vsub.s32 0, %v1272
        %v1274 = vsel %vm1268, %v1273, %v1272
        %vm1275 = vcmp.lt.s32.totalorder %v1175, 0
        %v1276 = vsub.s32 0, %v1175
        %v1277 = vsel %vm1275, %v1276, %v1175
        %v1278 = vshrl.u32 %v1277, 4
        %v1279 = vand.u32 %v1277, 15
        %v1280 = vsub.s32 0, %v1279
        %v1281 = vsel %vm1275, %v1280, %v1279
        %vm1282 = vcmp.lt.s32.totalorder %v1176, 0
        %v1283 = vsub.s32 0, %v1176
        %v1284 = vsel %vm1282, %v1283, %v1176
        %v1285 = vshrl.u32 %v1284, 4
        %v1286 = vand.u32 %v1284, 15
        %v1287 = vsub.s32 0, %v1286
        %v1288 = vsel %vm1282, %v1287, %v1286
        %vm1289 = vcmp.ne.s32.totalorder %v1183, 0
        %vm1290 = vcmp.ne.s32.totalorder %v1190, 0
        %vm1291 = vcmp.ne.s32.totalorder %v1197, 0
        %vm1292 = vcmp.ne.s32.totalorder %v1204, 0
        %vm1293 = vcmp.ne.s32.totalorder %v1211, 0
        %vm1294 = vcmp.ne.s32.totalorder %v1218, 0
        %vm1295 = vcmp.ne.s32.totalorder %v1225, 0
        %vm1296 = vcmp.ne.s32.totalorder %v1232, 0
        %vm1297 = vcmp.ne.s32.totalorder %v1239, 0
        %vm1298 = vcmp.ne.s32.totalorder %v1246, 0
        %vm1299 = vcmp.ne.s32.totalorder %v1253, 0
        %vm1300 = vcmp.ne.s32.totalorder %v1260, 0
        %vm1301 = vcmp.ne.s32.totalorder %v1267, 0
        %vm1302 = vcmp.ne.s32.totalorder %v1274, 0
        %vm1303 = vcmp.ne.s32.totalorder %v1281, 0
        %vm1304 = vcmp.ne.s32.totalorder %v1288, 0
        %vm1305 = vcmp.lt.s32.totalorder %v1183, 0
        %vm1306 = vcmp.lt.s32.totalorder %v1190, 0
        %vm1307 = vcmp.lt.s32.totalorder %v1197, 0
        %vm1308 = vcmp.lt.s32.totalorder %v1204, 0
        %vm1309 = vcmp.lt.s32.totalorder %v1211, 0
        %vm1310 = vcmp.lt.s32.totalorder %v1218, 0
        %vm1311 = vcmp.lt.s32.totalorder %v1225, 0
        %vm1312 = vcmp.lt.s32.totalorder %v1232, 0
        %vm1313 = vcmp.lt.s32.totalorder %v1239, 0
        %vm1314 = vcmp.lt.s32.totalorder %v1246, 0
        %vm1315 = vcmp.lt.s32.totalorder %v1253, 0
        %vm1316 = vcmp.lt.s32.totalorder %v1260, 0
        %vm1317 = vcmp.lt.s32.totalorder %v1267, 0
        %vm1318 = vcmp.lt.s32.totalorder %v1274, 0
        %vm1319 = vcmp.lt.s32.totalorder %v1281, 0
        %vm1320 = vcmp.lt.s32.totalorder %v1288, 0
        %vm1321 = vmand %vm1305, %vm1289
        %vm1322 = vmand %vm1306, %vm1290
        %vm1323 = vmand %vm1307, %vm1291
        %vm1324 = vmand %vm1308, %vm1292
        %vm1325 = vmand %vm1309, %vm1293
        %vm1326 = vmand %vm1310, %vm1294
        %vm1327 = vmand %vm1311, %vm1295
        %vm1328 = vmand %vm1312, %vm1296
        %vm1329 = vmand %vm1313, %vm1297
        %vm1330 = vmand %vm1314, %vm1298
        %vm1331 = vmand %vm1315, %vm1299
        %vm1332 = vmand %vm1316, %vm1300
        %vm1333 = vmand %vm1317, %vm1301
        %vm1334 = vmand %vm1318, %vm1302
        %vm1335 = vmand %vm1319, %vm1303
        %vm1336 = vmand %vm1320, %vm1304
        %v1337 = vadd.s32 %v1183, 16
        %v1338 = vadd.s32 %v1190, 16
        %v1339 = vadd.s32 %v1197, 16
        %v1340 = vadd.s32 %v1204, 16
        %v1341 = vadd.s32 %v1211, 16
        %v1342 = vadd.s32 %v1218, 16
        %v1343 = vadd.s32 %v1225, 16
        %v1344 = vadd.s32 %v1232, 16
        %v1345 = vadd.s32 %v1239, 16
        %v1346 = vadd.s32 %v1246, 16
        %v1347 = vadd.s32 %v1253, 16
        %v1348 = vadd.s32 %v1260, 16
        %v1349 = vadd.s32 %v1267, 16
        %v1350 = vadd.s32 %v1274, 16
        %v1351 = vadd.s32 %v1281, 16
        %v1352 = vadd.s32 %v1288, 16
        %v1353 = vsel %vm1321, %v1337, %v1183
        %v1354 = vsel %vm1322, %v1338, %v1190
        %v1355 = vsel %vm1323, %v1339, %v1197
        %v1356 = vsel %vm1324, %v1340, %v1204
        %v1357 = vsel %vm1325, %v1341, %v1211
        %v1358 = vsel %vm1326, %v1342, %v1218
        %v1359 = vsel %vm1327, %v1343, %v1225
        %v1360 = vsel %vm1328, %v1344, %v1232
        %v1361 = vsel %vm1329, %v1345, %v1239
        %v1362 = vsel %vm1330, %v1346, %v1246
        %v1363 = vsel %vm1331, %v1347, %v1253
        %v1364 = vsel %vm1332, %v1348, %v1260
        %v1365 = vsel %vm1333, %v1349, %v1267
        %v1366 = vsel %vm1334, %v1350, %v1274
        %v1367 = vsel %vm1335, %v1351, %v1281
        %v1368 = vsel %vm1336, %v1352, %v1288
        %vm1369 = vcmp.gt.s32.totalorder %v1353, 0
        %vm1370 = vcmp.gt.s32.totalorder %v1354, 0
        %vm1371 = vcmp.gt.s32.totalorder %v1355, 0
        %vm1372 = vcmp.gt.s32.totalorder %v1356, 0
        %vm1373 = vcmp.gt.s32.totalorder %v1357, 0
        %vm1374 = vcmp.gt.s32.totalorder %v1358, 0
        %vm1375 = vcmp.gt.s32.totalorder %v1359, 0
        %vm1376 = vcmp.gt.s32.totalorder %v1360, 0
        %vm1377 = vcmp.gt.s32.totalorder %v1361, 0
        %vm1378 = vcmp.gt.s32.totalorder %v1362, 0
        %vm1379 = vcmp.gt.s32.totalorder %v1363, 0
        %vm1380 = vcmp.gt.s32.totalorder %v1364, 0
        %vm1381 = vcmp.gt.s32.totalorder %v1365, 0
        %vm1382 = vcmp.gt.s32.totalorder %v1366, 0
        %vm1383 = vcmp.gt.s32.totalorder %v1367, 0
        %vm1384 = vcmp.gt.s32.totalorder %v1368, 0
        %v1385 = vsel %vm1369, 1, 0
        %v1386 = vsel %vm1370, 1, 0
        %v1387 = vsel %vm1371, 1, 0
        %v1388 = vsel %vm1372, 1, 0
        %v1389 = vsel %vm1373, 1, 0
        %v1390 = vsel %vm1374, 1, 0
        %v1391 = vsel %vm1375, 1, 0
        %v1392 = vsel %vm1376, 1, 0
        %v1393 = vsel %vm1377, 1, 0
        %v1394 = vsel %vm1378, 1, 0
        %v1395 = vsel %vm1379, 1, 0
        %v1396 = vsel %vm1380, 1, 0
        %v1397 = vsel %vm1381, 1, 0
        %v1398 = vsel %vm1382, 1, 0
        %v1399 = vsel %vm1383, 1, 0
        %v1400 = vsel %vm1384, 1, 0
        %v1401 = vcvt.s32.f32 %v1385
        %v1402 = vcvt.s32.f32 %v1386
        %v1403 = vcvt.s32.f32 %v1387
        %v1404 = vcvt.s32.f32 %v1388
        %v1405 = vcvt.s32.f32 %v1389
        %v1406 = vcvt.s32.f32 %v1390
        %v1407 = vcvt.s32.f32 %v1391
        %v1408 = vcvt.s32.f32 %v1392
        %v1409 = vcvt.s32.f32 %v1393
        %v1410 = vcvt.s32.f32 %v1394
        %v1411 = vcvt.s32.f32 %v1395
        %v1412 = vcvt.s32.f32 %v1396
        %v1413 = vcvt.s32.f32 %v1397
        %v1414 = vcvt.s32.f32 %v1398
        %v1415 = vcvt.s32.f32 %v1399
        %v1416 = vcvt.s32.f32 %v1400
        %v1417 = vpack.c.bf16 %v1402, %v1401
        %v1418 = vpack.c.bf16 %v1404, %v1403
        %v1419 = vpack.c.bf16 %v1406, %v1405
        %v1420 = vpack.c.bf16 %v1408, %v1407
        %v1421 = vpack.c.bf16 %v1410, %v1409
        %v1422 = vpack.c.bf16 %v1412, %v1411
        %v1423 = vpack.c.bf16 %v1414, %v1413
        %v1424 = vpack.c.bf16 %v1416, %v1415
        %vm1425 = vcmp.lt.s32.totalorder %v1353, 15
        %vm1426 = vcmp.lt.s32.totalorder %v1354, 15
        %vm1427 = vcmp.lt.s32.totalorder %v1355, 15
        %vm1428 = vcmp.lt.s32.totalorder %v1356, 15
        %vm1429 = vcmp.lt.s32.totalorder %v1357, 15
        %vm1430 = vcmp.lt.s32.totalorder %v1358, 15
        %vm1431 = vcmp.lt.s32.totalorder %v1359, 15
        %vm1432 = vcmp.lt.s32.totalorder %v1360, 15
        %vm1433 = vcmp.lt.s32.totalorder %v1361, 15
        %vm1434 = vcmp.lt.s32.totalorder %v1362, 15
        %vm1435 = vcmp.lt.s32.totalorder %v1363, 15
        %vm1436 = vcmp.lt.s32.totalorder %v1364, 15
        %vm1437 = vcmp.lt.s32.totalorder %v1365, 15
        %vm1438 = vcmp.lt.s32.totalorder %v1366, 15
        %vm1439 = vcmp.lt.s32.totalorder %v1367, 15
        %vm1440 = vcmp.lt.s32.totalorder %v1368, 15
        %v1441 = vsel %vm1425, 1, 0
        %v1442 = vsel %vm1426, 1, 0
        %v1443 = vsel %vm1427, 1, 0
        %v1444 = vsel %vm1428, 1, 0
        %v1445 = vsel %vm1429, 1, 0
        %v1446 = vsel %vm1430, 1, 0
        %v1447 = vsel %vm1431, 1, 0
        %v1448 = vsel %vm1432, 1, 0
        %v1449 = vsel %vm1433, 1, 0
        %v1450 = vsel %vm1434, 1, 0
        %v1451 = vsel %vm1435, 1, 0
        %v1452 = vsel %vm1436, 1, 0
        %v1453 = vsel %vm1437, 1, 0
        %v1454 = vsel %vm1438, 1, 0
        %v1455 = vsel %vm1439, 1, 0
        %v1456 = vsel %vm1440, 1, 0
        %v1457 = vcvt.s32.f32 %v1441
        %v1458 = vcvt.s32.f32 %v1442
        %v1459 = vcvt.s32.f32 %v1443
        %v1460 = vcvt.s32.f32 %v1444
        %v1461 = vcvt.s32.f32 %v1445
        %v1462 = vcvt.s32.f32 %v1446
        %v1463 = vcvt.s32.f32 %v1447
        %v1464 = vcvt.s32.f32 %v1448
        %v1465 = vcvt.s32.f32 %v1449
        %v1466 = vcvt.s32.f32 %v1450
        %v1467 = vcvt.s32.f32 %v1451
        %v1468 = vcvt.s32.f32 %v1452
        %v1469 = vcvt.s32.f32 %v1453
        %v1470 = vcvt.s32.f32 %v1454
        %v1471 = vcvt.s32.f32 %v1455
        %v1472 = vcvt.s32.f32 %v1456
        %v1473 = vpack.c.bf16 %v1458, %v1457
        %v1474 = vpack.c.bf16 %v1460, %v1459
        %v1475 = vpack.c.bf16 %v1462, %v1461
        %v1476 = vpack.c.bf16 %v1464, %v1463
        %v1477 = vpack.c.bf16 %v1466, %v1465
        %v1478 = vpack.c.bf16 %v1468, %v1467
        %v1479 = vpack.c.bf16 %v1470, %v1469
        %v1480 = vpack.c.bf16 %v1472, %v1471
        %v1481 = vld [vmem:[#allocation2] sm:$0x8]
        %v1482 = vld [vmem:[#allocation2 + $0x4] sm:$0xf]
        %v1483 = vld [vmem:[#allocation2 + $0x8] sm:$0xf]
        %v1484 = vld [vmem:[#allocation2 + $0xc] sm:$0xf]
        %v1485 = vld [vmem:[#allocation2 + $0x10] sm:$0xf]
        %v1486 = vld [vmem:[#allocation2 + $0x14] sm:$0xf]
        %v1487 = vld [vmem:[#allocation2 + $0x18] sm:$0xf]
        %v1488 = vld [vmem:[#allocation2 + $0x1c] sm:$0xf]
        %v1489 = vld [vmem:[#allocation2 + $0x20] sm:$0xf]
        %v1490 = vld [vmem:[#allocation2 + $0x24] sm:$0xf]
        %v1491 = vld [vmem:[#allocation2 + $0x28] sm:$0xf]
        %v1492 = vld [vmem:[#allocation2 + $0x2c] sm:$0xf]
        %v1493 = vld [vmem:[#allocation2 + $0x30] sm:$0xf]
        %v1494 = vld [vmem:[#allocation2 + $0x34] sm:$0xf]
        %v1495 = vld [vmem:[#allocation2 + $0x38] sm:$0xf]
        %v1496 = vld [vmem:[#allocation2 + $0x3c] sm:$0xf]
        %v1497 = vld [vmem:[#allocation2 + $0x40] sm:$0xf]
        %v1507 = vunpack.c.l.s4 839922192
        %v1508 = vunpack.c.0.s8 %v1507
        %v1509 = vlaneseq
        %v1510 = vshrl.u32 %v1509, 7
        %v1511 = vsub.s32 %v1508, %v1510
        %v1512 = vrot.slane %v1417, %v1511
        %v1514 = vunpack.c.l.s4 1985246804
        %v1515 = vunpack.c.0.s8 %v1514
        %v1516 = vlaneseq
        %v1517 = vshrl.u32 %v1516, 7
        %v1518 = vsub.s32 %v1515, %v1517
        %v1519 = vrot.slane %v1417, %v1518
        %v1521 = vunpack.c.l.s4 839922192
        %v1522 = vunpack.c.0.s8 %v1521
        %v1523 = vlaneseq
        %v1524 = vshrl.u32 %v1523, 7
        %v1525 = vsub.s32 %v1522, %v1524
        %v1526 = vrot.slane %v1418, %v1525
        %v1528 = vunpack.c.l.s4 1985246804
        %v1529 = vunpack.c.0.s8 %v1528
        %v1530 = vlaneseq
        %v1531 = vshrl.u32 %v1530, 7
        %v1532 = vsub.s32 %v1529, %v1531
        %v1533 = vrot.slane %v1418, %v1532
        %v1535 = vunpack.c.l.s4 839922192
        %v1536 = vunpack.c.0.s8 %v1535
        %v1537 = vlaneseq
        %v1538 = vshrl.u32 %v1537, 7
        %v1539 = vsub.s32 %v1536, %v1538
        %v1540 = vrot.slane %v1419, %v1539
        %v1542 = vunpack.c.l.s4 1985246804
        %v1543 = vunpack.c.0.s8 %v1542
        %v1544 = vlaneseq
        %v1545 = vshrl.u32 %v1544, 7
        %v1546 = vsub.s32 %v1543, %v1545
        %v1547 = vrot.slane %v1419, %v1546
        %v1549 = vunpack.c.l.s4 839922192
        %v1550 = vunpack.c.0.s8 %v1549
        %v1551 = vlaneseq
        %v1552 = vshrl.u32 %v1551, 7
        %v1553 = vsub.s32 %v1550, %v1552
        %v1554 = vrot.slane %v1420, %v1553
        %v1556 = vunpack.c.l.s4 1985246804
        %v1557 = vunpack.c.0.s8 %v1556
        %v1558 = vlaneseq
        %v1559 = vshrl.u32 %v1558, 7
        %v1560 = vsub.s32 %v1557, %v1559
        %v1561 = vrot.slane %v1420, %v1560
        %v1563 = vunpack.c.l.s4 839922192
        %v1564 = vunpack.c.0.s8 %v1563
        %v1565 = vlaneseq
        %v1566 = vshrl.u32 %v1565, 7
        %v1567 = vsub.s32 %v1564, %v1566
        %v1568 = vrot.slane %v1421, %v1567
        %v1570 = vunpack.c.l.s4 1985246804
        %v1571 = vunpack.c.0.s8 %v1570
        %v1572 = vlaneseq
        %v1573 = vshrl.u32 %v1572, 7
        %v1574 = vsub.s32 %v1571, %v1573
        %v1575 = vrot.slane %v1421, %v1574
        %v1577 = vunpack.c.l.s4 839922192
        %v1578 = vunpack.c.0.s8 %v1577
        %v1579 = vlaneseq
        %v1580 = vshrl.u32 %v1579, 7
        %v1581 = vsub.s32 %v1578, %v1580
        %v1582 = vrot.slane %v1422, %v1581
        %v1584 = vunpack.c.l.s4 1985246804
        %v1585 = vunpack.c.0.s8 %v1584
        %v1586 = vlaneseq
        %v1587 = vshrl.u32 %v1586, 7
        %v1588 = vsub.s32 %v1585, %v1587
        %v1589 = vrot.slane %v1422, %v1588
        %v1591 = vunpack.c.l.s4 839922192
        %v1592 = vunpack.c.0.s8 %v1591
        %v1593 = vlaneseq
        %v1594 = vshrl.u32 %v1593, 7
        %v1595 = vsub.s32 %v1592, %v1594
        %v1596 = vrot.slane %v1423, %v1595
        %v1598 = vunpack.c.l.s4 1985246804
        %v1599 = vunpack.c.0.s8 %v1598
        %v1600 = vlaneseq
        %v1601 = vshrl.u32 %v1600, 7
        %v1602 = vsub.s32 %v1599, %v1601
        %v1603 = vrot.slane %v1423, %v1602
        %v1605 = vunpack.c.l.s4 839922192
        %v1606 = vunpack.c.0.s8 %v1605
        %v1607 = vlaneseq
        %v1608 = vshrl.u32 %v1607, 7
        %v1609 = vsub.s32 %v1606, %v1608
        %v1610 = vrot.slane %v1424, %v1609
        %v1612 = vunpack.c.l.s4 1985246804
        %v1613 = vunpack.c.0.s8 %v1612
        %v1614 = vlaneseq
        %v1615 = vshrl.u32 %v1614, 7
        %v1616 = vsub.s32 %v1613, %v1615
        %v1617 = vrot.slane %v1424, %v1616
        %vm1618 = vsmask.f32 3328
        %vm1619 = vsmask.f32 7440
        %vm1620 = vmor %vm1618, %vm1619
        %v1622 = vshll.u32 %v1512, 16
        %v1624 = vrot.slane %v1622, 5
        %v1625 = vshrl.u32 %v1512, 16
        %v1627 = vrot.slane %v1625, 4
        %v1628 = vor.u32 %v1627, %v1624
        %v1629 = vrot.slane %v1628, 4
        %v1631 = vshll.u32 %v1519, 16
        %v1633 = vrot.slane %v1631, 5
        %v1634 = vsel %vm1620, %v1629, %v1633
        %v1635 = vshrl.u32 %v1519, 16
        %v1637 = vrot.slane %v1635, 4
        %v1638 = vor.u32 %v1637, %v1633
        %v1639 = vrot.slane %v1638, 4
        %v1641 = vshll.u32 %v1526, 16
        %v1643 = vrot.slane %v1641, 5
        %v1644 = vsel %vm1620, %v1639, %v1643
        %v1645 = vshrl.u32 %v1526, 16
        %v1647 = vrot.slane %v1645, 4
        %v1648 = vor.u32 %v1647, %v1643
        %v1649 = vrot.slane %v1648, 4
        %v1651 = vshll.u32 %v1533, 16
        %v1653 = vrot.slane %v1651, 5
        %v1654 = vsel %vm1620, %v1649, %v1653
        %v1655 = vshrl.u32 %v1533, 16
        %v1657 = vrot.slane %v1655, 4
        %v1658 = vor.u32 %v1657, %v1653
        %v1659 = vrot.slane %v1658, 4
        %v1661 = vshll.u32 %v1540, 16
        %v1663 = vrot.slane %v1661, 5
        %v1664 = vsel %vm1620, %v1659, %v1663
        %v1665 = vshrl.u32 %v1540, 16
        %v1667 = vrot.slane %v1665, 4
        %v1668 = vor.u32 %v1667, %v1663
        %v1669 = vrot.slane %v1668, 4
        %v1671 = vshll.u32 %v1547, 16
        %v1673 = vrot.slane %v1671, 5
        %v1674 = vsel %vm1620, %v1669, %v1673
        %v1675 = vshrl.u32 %v1547, 16
        %v1677 = vrot.slane %v1675, 4
        %v1678 = vor.u32 %v1677, %v1673
        %v1679 = vrot.slane %v1678, 4
        %v1681 = vshll.u32 %v1554, 16
        %v1683 = vrot.slane %v1681, 5
        %v1684 = vsel %vm1620, %v1679, %v1683
        %v1685 = vshrl.u32 %v1554, 16
        %v1687 = vrot.slane %v1685, 4
        %v1688 = vor.u32 %v1687, %v1683
        %v1689 = vrot.slane %v1688, 4
        %v1691 = vshll.u32 %v1561, 16
        %v1693 = vrot.slane %v1691, 5
        %v1694 = vsel %vm1620, %v1689, %v1693
        %v1695 = vshrl.u32 %v1561, 16
        %v1697 = vrot.slane %v1695, 4
        %v1698 = vor.u32 %v1697, %v1693
        %v1699 = vrot.slane %v1698, 4
        %v1701 = vshll.u32 %v1568, 16
        %v1703 = vrot.slane %v1701, 5
        %v1704 = vsel %vm1620, %v1699, %v1703
        %v1705 = vshrl.u32 %v1568, 16
        %v1707 = vrot.slane %v1705, 4
        %v1708 = vor.u32 %v1707, %v1703
        %v1709 = vrot.slane %v1708, 4
        %v1711 = vshll.u32 %v1575, 16
        %v1713 = vrot.slane %v1711, 5
        %v1714 = vsel %vm1620, %v1709, %v1713
        %v1715 = vshrl.u32 %v1575, 16
        %v1717 = vrot.slane %v1715, 4
        %v1718 = vor.u32 %v1717, %v1713
        %v1719 = vrot.slane %v1718, 4
        %v1721 = vshll.u32 %v1582, 16
        %v1723 = vrot.slane %v1721, 5
        %v1724 = vsel %vm1620, %v1719, %v1723
        %v1725 = vshrl.u32 %v1582, 16
        %v1727 = vrot.slane %v1725, 4
        %v1728 = vor.u32 %v1727, %v1723
        %v1729 = vrot.slane %v1728, 4
        %v1731 = vshll.u32 %v1589, 16
        %v1733 = vrot.slane %v1731, 5
        %v1734 = vsel %vm1620, %v1729, %v1733
        %v1735 = vshrl.u32 %v1589, 16
        %v1737 = vrot.slane %v1735, 4
        %v1738 = vor.u32 %v1737, %v1733
        %v1739 = vrot.slane %v1738, 4
        %v1741 = vshll.u32 %v1596, 16
        %v1743 = vrot.slane %v1741, 5
        %v1744 = vsel %vm1620, %v1739, %v1743
        %v1745 = vshrl.u32 %v1596, 16
        %v1747 = vrot.slane %v1745, 4
        %v1748 = vor.u32 %v1747, %v1743
        %v1749 = vrot.slane %v1748, 4
        %v1751 = vshll.u32 %v1603, 16
        %v1753 = vrot.slane %v1751, 5
        %v1754 = vsel %vm1620, %v1749, %v1753
        %v1755 = vshrl.u32 %v1603, 16
        %v1757 = vrot.slane %v1755, 4
        %v1758 = vor.u32 %v1757, %v1753
        %v1759 = vrot.slane %v1758, 4
        %v1761 = vshll.u32 %v1610, 16
        %v1763 = vrot.slane %v1761, 5
        %v1764 = vsel %vm1620, %v1759, %v1763
        %v1765 = vshrl.u32 %v1610, 16
        %v1767 = vrot.slane %v1765, 4
        %v1768 = vor.u32 %v1767, %v1763
        %v1769 = vrot.slane %v1768, 4
        %v1771 = vshll.u32 %v1617, 16
        %v1773 = vrot.slane %v1771, 5
        %v1774 = vsel %vm1620, %v1769, %v1773
        %v1775 = vshrl.u32 %v1617, 16
        %v1777 = vrot.slane %v1775, 4
        %v1778 = vor.u32 %v1777, %v1773
        %v1779 = vrot.slane %v1778, 4
        %v1797 = vmul.bf16 %v1481, %v1624
        %v1798 = vmul.bf16 %v1482, %v1634
        %v1799 = vmul.bf16 %v1483, %v1644
        %v1800 = vmul.bf16 %v1484, %v1654
        %v1801 = vmul.bf16 %v1485, %v1664
        %v1802 = vmul.bf16 %v1486, %v1674
        %v1803 = vmul.bf16 %v1487, %v1684
        %v1804 = vmul.bf16 %v1488, %v1694
        %v1805 = vmul.bf16 %v1489, %v1704
        %v1806 = vmul.bf16 %v1490, %v1714
        %v1807 = vmul.bf16 %v1491, %v1724
        %v1808 = vmul.bf16 %v1492, %v1734
        %v1809 = vmul.bf16 %v1493, %v1744
        %v1810 = vmul.bf16 %v1494, %v1754
        %v1811 = vmul.bf16 %v1495, %v1764
        %v1812 = vmul.bf16 %v1496, %v1774
        %v1813 = vmul.bf16 %v1497, %v1779
        %v1814 = vld [vmem:[%s291] sm:$0xf]
        %v1815 = vld [vmem:[%s291 + $0x4] sm:$0xf]
        %v1816 = vld [vmem:[%s291 + $0x8] sm:$0xf]
        %v1817 = vld [vmem:[%s291 + $0xc] sm:$0xf]
        %v1818 = vld [vmem:[%s291 + $0x10] sm:$0xf]
        %v1819 = vld [vmem:[%s291 + $0x14] sm:$0xf]
        %v1820 = vld [vmem:[%s291 + $0x18] sm:$0xf]
        %v1821 = vld [vmem:[%s291 + $0x1c] sm:$0xf]
        %s1822 = scalar_lea.vmem %s291, 32
        %v1823 = vld [vmem:[%s1822] sm:$0xf]
        %v1824 = vld [vmem:[%s1822 + $0x4] sm:$0xf]
        %v1825 = vld [vmem:[%s1822 + $0x8] sm:$0xf]
        %v1826 = vld [vmem:[%s1822 + $0xc] sm:$0xf]
        %v1827 = vld [vmem:[%s1822 + $0x10] sm:$0xf]
        %v1828 = vld [vmem:[%s1822 + $0x14] sm:$0xf]
        %v1829 = vld [vmem:[%s1822 + $0x18] sm:$0xf]
        %v1830 = vld [vmem:[%s1822 + $0x1c] sm:$0xf]
        %v1847 = vunpack.c.l.b16 %v1482
        %v1848 = vunpack.c.l.b16 %v1483
        %v1849 = vunpack.c.l.b16 %v1484
        %v1850 = vunpack.c.l.b16 %v1485
        %v1851 = vunpack.c.l.b16 %v1486
        %v1852 = vunpack.c.l.b16 %v1487
        %v1853 = vunpack.c.l.b16 %v1488
        %v1854 = vunpack.c.l.b16 %v1489
        %v1855 = vunpack.c.l.b16 %v1490
        %v1856 = vunpack.c.l.b16 %v1491
        %v1857 = vunpack.c.l.b16 %v1492
        %v1858 = vunpack.c.l.b16 %v1493
        %v1859 = vunpack.c.l.b16 %v1494
        %v1860 = vunpack.c.l.b16 %v1495
        %v1861 = vunpack.c.l.b16 %v1496
        %v1862 = vunpack.c.l.b16 %v1497
        %v1863 = vpack.c.b16 %v1848, %v1847
        %v1864 = vpack.c.b16 %v1850, %v1849
        %v1865 = vpack.c.b16 %v1852, %v1851
        %v1866 = vpack.c.b16 %v1854, %v1853
        %v1867 = vpack.c.b16 %v1856, %v1855
        %v1868 = vpack.c.b16 %v1858, %v1857
        %v1869 = vpack.c.b16 %v1860, %v1859
        %v1870 = vpack.c.b16 %v1862, %v1861
        %v1879 = vunpack.c.l.b16 %v1823
        %v1880 = vunpack.c.l.b16 %v1824
        %v1881 = vunpack.c.l.b16 %v1825
        %v1882 = vunpack.c.l.b16 %v1826
        %v1883 = vunpack.c.l.b16 %v1827
        %v1884 = vunpack.c.l.b16 %v1828
        %v1885 = vunpack.c.l.b16 %v1829
        %v1886 = vunpack.c.l.b16 %v1830
        %v1887 = vpack.c.b16 %v1880, %v1879
        %v1888 = vpack.c.b16 %v1882, %v1881
        %v1889 = vpack.c.b16 %v1884, %v1883
        %v1890 = vpack.c.b16 %v1886, %v1885
        %v1896 = vsel %vm319, %v1863, 0
        %v1899 = vsel %vm319, %v1864, 0
        %v1902 = vsel %vm319, %v1865, 0
        %v1905 = vsel %vm319, %v1866, 0
        %v1908 = vsel %vm319, %v1867, 0
        %v1911 = vsel %vm319, %v1868, 0
        %v1914 = vsel %vm319, %v1869, 0
        %v1917 = vsel %vm319, %v1870, 0
        %1919 = vmatprep.subr.bf16.mxu0 0
        %1920 = vmatpush1.bf16.msra.mxu0 0
        %1921 = vmatprep.subr.bf16.mxu0 0
        %1922 = vmatpush1.bf16.msra.mxu0 0
        %1923 = vmatprep.subr.bf16.mxu0 0
        %1924 = vmatpush1.bf16.msra.mxu0 0
        %1925 = vmatprep.subr.bf16.mxu0 0
        %1926 = vmatpush1.bf16.msra.mxu0 0
        %1927 = vmatprep.subr.bf16.mxu0 0
        %1928 = vmatpush1.bf16.msra.mxu0 %v1890
        %1929 = vmatprep.subr.bf16.mxu0 0
        %1930 = vmatpush1.bf16.msra.mxu0 %v1889
        %1931 = vmatprep.subr.bf16.mxu0 0
        %1932 = vmatpush1.bf16.msra.mxu0 %v1888
        %1933 = vmatprep.subr.bf16.mxu0 0
        %1934 = vmatpush1.bf16.msra.mxu0 %v1887
        %1935 = vmatprep.subr.bf16.mxu0 0
        %1936 = vmatpush2.bf16.msra.mxu0 0
        %1937 = vmatprep.subr.bf16.mxu0 0
        %1938 = vmatpush2.bf16.msra.mxu0 0
        %1939 = vmatprep.subr.bf16.mxu0 0
        %1940 = vmatpush2.bf16.msra.mxu0 0
        %1941 = vmatprep.subr.bf16.mxu0 0
        %1942 = vmatpush2.bf16.msra.mxu0 0
        %1943 = vmatprep.subr.bf16.mxu0 0
        %1944 = vmatpush2.bf16.msra.mxu0 0
        %1945 = vmatprep.subr.bf16.mxu0 0
        %1946 = vmatpush2.bf16.msra.mxu0 0
        %1947 = vmatprep.subr.bf16.mxu0 0
        %1948 = vmatpush2.bf16.msra.mxu0 0
        %1949 = vmatprep.subr.bf16.mxu0 0
        %1950 = vmatpush2.bf16.msra.mxu0 0
        %1951 = vmatprep.mubr.bf16.mxu0 0
        %1952 = vmatmul.mubr.bf16.gmra.mxu0 %v1896
        %v1953 = vpop.f32.mrf.mxu0
        %v1954 = vadd.f32 0.0, %v1953
        %v1955 = vpop.f32.mrf.mxu0
        %v1956 = vpop.f32.mrf.mxu0
        %v1957 = vadd.f32 0.0, %v1956
        %v1958 = vpop.f32.mrf.mxu0
        %1959 = vmatprep.mubr.bf16.mxu0 0
        %1960 = vmatmul.mubr.bf16.gmra.mxu0 %v1899
        %v1961 = vpop.f32.mrf.mxu0
        %v1962 = vadd.f32 0.0, %v1961
        %v1963 = vpop.f32.mrf.mxu0
        %v1964 = vpop.f32.mrf.mxu0
        %v1965 = vadd.f32 0.0, %v1964
        %v1966 = vpop.f32.mrf.mxu0
        %1967 = vmatprep.mubr.bf16.mxu0 0
        %1968 = vmatmul.mubr.bf16.gmra.mxu0 %v1902
        %v1969 = vpop.f32.mrf.mxu0
        %v1970 = vadd.f32 0.0, %v1969
        %v1971 = vpop.f32.mrf.mxu0
        %v1972 = vpop.f32.mrf.mxu0
        %v1973 = vadd.f32 0.0, %v1972
        %v1974 = vpop.f32.mrf.mxu0
        %1975 = vmatprep.mubr.bf16.mxu0 0
        %1976 = vmatmul.mubr.bf16.gmra.mxu0 %v1905
        %v1977 = vpop.f32.mrf.mxu0
        %v1978 = vadd.f32 0.0, %v1977
        %v1979 = vpop.f32.mrf.mxu0
        %v1980 = vpop.f32.mrf.mxu0
        %v1981 = vadd.f32 0.0, %v1980
        %v1982 = vpop.f32.mrf.mxu0
        %1983 = vmatprep.mubr.bf16.mxu0 0
        %1984 = vmatmul.mubr.bf16.gmra.mxu0 %v1908
        %v1985 = vpop.f32.mrf.mxu0
        %v1986 = vadd.f32 0.0, %v1985
        %v1987 = vpop.f32.mrf.mxu0
        %v1988 = vpop.f32.mrf.mxu0
        %v1989 = vadd.f32 0.0, %v1988
        %v1990 = vpop.f32.mrf.mxu0
        %1991 = vmatprep.mubr.bf16.mxu0 0
        %1992 = vmatmul.mubr.bf16.gmra.mxu0 %v1911
        %v1993 = vpop.f32.mrf.mxu0
        %v1994 = vadd.f32 0.0, %v1993
        %v1995 = vpop.f32.mrf.mxu0
        %v1996 = vpop.f32.mrf.mxu0
        %v1997 = vadd.f32 0.0, %v1996
        %v1998 = vpop.f32.mrf.mxu0
        %1999 = vmatprep.mubr.bf16.mxu0 0
        %2000 = vmatmul.mubr.bf16.gmra.mxu0 %v1914
        %v2001 = vpop.f32.mrf.mxu0
        %v2002 = vadd.f32 0.0, %v2001
        %v2003 = vpop.f32.mrf.mxu0
        %v2004 = vpop.f32.mrf.mxu0
        %v2005 = vadd.f32 0.0, %v2004
        %v2006 = vpop.f32.mrf.mxu0
        %2007 = vmatprep.mubr.bf16.mxu0 0
        %2008 = vmatmul.mubr.bf16.gmra.mxu0 %v1917
        %v2009 = vpop.f32.mrf.mxu0
        %v2010 = vadd.f32 0.0, %v2009
        %v2011 = vpop.f32.mrf.mxu0
        %v2012 = vpop.f32.mrf.mxu0
        %v2013 = vadd.f32 0.0, %v2012
        %v2014 = vpop.f32.mrf.mxu0
        %2015 = vdwg.mxu0
        %v2033 = vunpack.c.l.b16 %v1797
        %v2034 = vunpack.c.l.b16 %v1798
        %v2035 = vunpack.c.l.b16 %v1799
        %v2036 = vunpack.c.l.b16 %v1800
        %v2037 = vunpack.c.l.b16 %v1801
        %v2038 = vunpack.c.l.b16 %v1802
        %v2039 = vunpack.c.l.b16 %v1803
        %v2040 = vunpack.c.l.b16 %v1804
        %v2041 = vunpack.c.l.b16 %v1805
        %v2042 = vunpack.c.l.b16 %v1806
        %v2043 = vunpack.c.l.b16 %v1807
        %v2044 = vunpack.c.l.b16 %v1808
        %v2045 = vunpack.c.l.b16 %v1809
        %v2046 = vunpack.c.l.b16 %v1810
        %v2047 = vunpack.c.l.b16 %v1811
        %v2048 = vunpack.c.l.b16 %v1812
        %v2049 = vunpack.c.l.b16 %v1813
        %v2050 = vpack.c.b16 %v2034, %v2033
        %v2051 = vpack.c.b16 %v2036, %v2035
        %v2052 = vpack.c.b16 %v2038, %v2037
        %v2053 = vpack.c.b16 %v2040, %v2039
        %v2054 = vpack.c.b16 %v2042, %v2041
        %v2055 = vpack.c.b16 %v2044, %v2043
        %v2056 = vpack.c.b16 %v2046, %v2045
        %v2057 = vpack.c.b16 %v2048, %v2047
        %v2058 = vpack.c.b16 %v2049, %v2049
        %vm2059 = vsmask.f32 4352
        %v2061 = vshrl.u32 %v2050, 16
        %v2063 = vrot.slane %v2061, 3
        %v2064 = vshll.u32 %v2050, 16
        %v2066 = vrot.slane %v2064, 4
        %v2067 = vor.u32 %v2063, %v2066
        %v2069 = vshrl.u32 %v2051, 16
        %v2071 = vrot.slane %v2069, 3
        %v2072 = vshll.u32 %v2051, 16
        %v2074 = vrot.slane %v2072, 4
        %v2075 = vor.u32 %v2071, %v2074
        %v2076 = vsel %vm2059, %v2067, %v2075
        %v2078 = vshrl.u32 %v2052, 16
        %v2080 = vrot.slane %v2078, 3
        %v2081 = vshll.u32 %v2052, 16
        %v2083 = vrot.slane %v2081, 4
        %v2084 = vor.u32 %v2080, %v2083
        %v2085 = vsel %vm2059, %v2075, %v2084
        %v2087 = vshrl.u32 %v2053, 16
        %v2089 = vrot.slane %v2087, 3
        %v2090 = vshll.u32 %v2053, 16
        %v2092 = vrot.slane %v2090, 4
        %v2093 = vor.u32 %v2089, %v2092
        %v2094 = vsel %vm2059, %v2084, %v2093
        %v2096 = vshrl.u32 %v2054, 16
        %v2098 = vrot.slane %v2096, 3
        %v2099 = vshll.u32 %v2054, 16
        %v2101 = vrot.slane %v2099, 4
        %v2102 = vor.u32 %v2098, %v2101
        %v2103 = vsel %vm2059, %v2093, %v2102
        %v2105 = vshrl.u32 %v2055, 16
        %v2107 = vrot.slane %v2105, 3
        %v2108 = vshll.u32 %v2055, 16
        %v2110 = vrot.slane %v2108, 4
        %v2111 = vor.u32 %v2107, %v2110
        %v2112 = vsel %vm2059, %v2102, %v2111
        %v2114 = vshrl.u32 %v2056, 16
        %v2116 = vrot.slane %v2114, 3
        %v2117 = vshll.u32 %v2056, 16
        %v2119 = vrot.slane %v2117, 4
        %v2120 = vor.u32 %v2116, %v2119
        %v2121 = vsel %vm2059, %v2111, %v2120
        %v2123 = vshrl.u32 %v2057, 16
        %v2125 = vrot.slane %v2123, 3
        %v2126 = vshll.u32 %v2057, 16
        %v2128 = vrot.slane %v2126, 4
        %v2129 = vor.u32 %v2125, %v2128
        %v2130 = vsel %vm2059, %v2120, %v2129
        %v2132 = vshrl.u32 %v2058, 16
        %v2134 = vrot.slane %v2132, 3
        %v2135 = vshll.u32 %v2058, 16
        %v2137 = vrot.slane %v2135, 4
        %v2138 = vor.u32 %v2134, %v2137
        %v2139 = vsel %vm2059, %v2129, %v2138
        %v2148 = vunpack.c.l.b16 %v1814
        %v2149 = vunpack.c.l.b16 %v1815
        %v2150 = vunpack.c.l.b16 %v1816
        %v2151 = vunpack.c.l.b16 %v1817
        %v2152 = vunpack.c.l.b16 %v1818
        %v2153 = vunpack.c.l.b16 %v1819
        %v2154 = vunpack.c.l.b16 %v1820
        %v2155 = vunpack.c.l.b16 %v1821
        %v2156 = vpack.c.b16 %v2149, %v2148
        %v2157 = vpack.c.b16 %v2151, %v2150
        %v2158 = vpack.c.b16 %v2153, %v2152
        %v2159 = vpack.c.b16 %v2155, %v2154
        %v2165 = vsel %vm319, %v2076, 0
        %v2168 = vsel %vm319, %v2085, 0
        %v2171 = vsel %vm319, %v2094, 0
        %v2174 = vsel %vm319, %v2103, 0
        %v2177 = vsel %vm319, %v2112, 0
        %v2180 = vsel %vm319, %v2121, 0
        %v2183 = vsel %vm319, %v2130, 0
        %v2186 = vsel %vm319, %v2139, 0
        %2188 = vmatprep.subr.bf16.mxu0 0
        %2189 = vmatpush1.bf16.msra.mxu0 0
        %2190 = vmatprep.subr.bf16.mxu0 0
        %2191 = vmatpush1.bf16.msra.mxu0 0
        %2192 = vmatprep.subr.bf16.mxu0 0
        %2193 = vmatpush1.bf16.msra.mxu0 0
        %2194 = vmatprep.subr.bf16.mxu0 0
        %2195 = vmatpush1.bf16.msra.mxu0 0
        %2196 = vmatprep.subr.bf16.mxu0 0
        %2197 = vmatpush1.bf16.msra.mxu0 %v2159
        %2198 = vmatprep.subr.bf16.mxu0 0
        %2199 = vmatpush1.bf16.msra.mxu0 %v2158
        %2200 = vmatprep.subr.bf16.mxu0 0
        %2201 = vmatpush1.bf16.msra.mxu0 %v2157
        %2202 = vmatprep.subr.bf16.mxu0 0
        %2203 = vmatpush1.bf16.msra.mxu0 %v2156
        %2204 = vmatprep.subr.bf16.mxu0 0
        %2205 = vmatpush2.bf16.msra.mxu0 0
        %2206 = vmatprep.subr.bf16.mxu0 0
        %2207 = vmatpush2.bf16.msra.mxu0 0
        %2208 = vmatprep.subr.bf16.mxu0 0
        %2209 = vmatpush2.bf16.msra.mxu0 0
        %2210 = vmatprep.subr.bf16.mxu0 0
        %2211 = vmatpush2.bf16.msra.mxu0 0
        %2212 = vmatprep.subr.bf16.mxu0 0
        %2213 = vmatpush2.bf16.msra.mxu0 0
        %2214 = vmatprep.subr.bf16.mxu0 0
        %2215 = vmatpush2.bf16.msra.mxu0 0
        %2216 = vmatprep.subr.bf16.mxu0 0
        %2217 = vmatpush2.bf16.msra.mxu0 0
        %2218 = vmatprep.subr.bf16.mxu0 0
        %2219 = vmatpush2.bf16.msra.mxu0 0
        %2220 = vmatprep.mubr.bf16.mxu0 0
        %2221 = vmatmul.mubr.bf16.gmra.mxu0 %v2165
        %v2222 = vpop.f32.mrf.mxu0
        %v2223 = vadd.f32 %v1954, %v2222
        %v2224 = vpop.f32.mrf.mxu0
        %v2225 = vpop.f32.mrf.mxu0
        %v2226 = vadd.f32 %v1957, %v2225
        %v2227 = vpop.f32.mrf.mxu0
        %2228 = vmatprep.mubr.bf16.mxu0 0
        %2229 = vmatmul.mubr.bf16.gmra.mxu0 %v2168
        %v2230 = vpop.f32.mrf.mxu0
        %v2231 = vadd.f32 %v1962, %v2230
        %v2232 = vpop.f32.mrf.mxu0
        %v2233 = vpop.f32.mrf.mxu0
        %v2234 = vadd.f32 %v1965, %v2233
        %v2235 = vpop.f32.mrf.mxu0
        %2236 = vmatprep.mubr.bf16.mxu0 0
        %2237 = vmatmul.mubr.bf16.gmra.mxu0 %v2171
        %v2238 = vpop.f32.mrf.mxu0
        %v2239 = vadd.f32 %v1970, %v2238
        %v2240 = vpop.f32.mrf.mxu0
        %v2241 = vpop.f32.mrf.mxu0
        %v2242 = vadd.f32 %v1973, %v2241
        %v2243 = vpop.f32.mrf.mxu0
        %2244 = vmatprep.mubr.bf16.mxu0 0
        %2245 = vmatmul.mubr.bf16.gmra.mxu0 %v2174
        %v2246 = vpop.f32.mrf.mxu0
        %v2247 = vadd.f32 %v1978, %v2246
        %v2248 = vpop.f32.mrf.mxu0
        %v2249 = vpop.f32.mrf.mxu0
        %v2250 = vadd.f32 %v1981, %v2249
        %v2251 = vpop.f32.mrf.mxu0
        %2252 = vmatprep.mubr.bf16.mxu0 0
        %2253 = vmatmul.mubr.bf16.gmra.mxu0 %v2177
        %v2254 = vpop.f32.mrf.mxu0
        %v2255 = vadd.f32 %v1986, %v2254
        %v2256 = vpop.f32.mrf.mxu0
        %v2257 = vpop.f32.mrf.mxu0
        %v2258 = vadd.f32 %v1989, %v2257
        %v2259 = vpop.f32.mrf.mxu0
        %2260 = vmatprep.mubr.bf16.mxu0 0
        %2261 = vmatmul.mubr.bf16.gmra.mxu0 %v2180
        %v2262 = vpop.f32.mrf.mxu0
        %v2263 = vadd.f32 %v1994, %v2262
        %v2264 = vpop.f32.mrf.mxu0
        %v2265 = vpop.f32.mrf.mxu0
        %v2266 = vadd.f32 %v1997, %v2265
        %v2267 = vpop.f32.mrf.mxu0
        %2268 = vmatprep.mubr.bf16.mxu0 0
        %2269 = vmatmul.mubr.bf16.gmra.mxu0 %v2183
        %v2270 = vpop.f32.mrf.mxu0
        %v2271 = vadd.f32 %v2002, %v2270
        %v2272 = vpop.f32.mrf.mxu0
        %v2273 = vpop.f32.mrf.mxu0
        %v2274 = vadd.f32 %v2005, %v2273
        %v2275 = vpop.f32.mrf.mxu0
        %2276 = vmatprep.mubr.bf16.mxu0 0
        %2277 = vmatmul.mubr.bf16.gmra.mxu0 %v2186
        %v2278 = vpop.f32.mrf.mxu0
        %v2279 = vadd.f32 %v2010, %v2278
        %v2280 = vpop.f32.mrf.mxu0
        %v2281 = vpop.f32.mrf.mxu0
        %v2282 = vadd.f32 %v2013, %v2281
        %v2283 = vpop.f32.mrf.mxu0
        %2284 = vdwg.mxu0
        %v2285 = vld [vmem:[#allocation2 + $0x4] sm:$0xf]
        %v2286 = vld [vmem:[#allocation2 + $0x8] sm:$0xf]
        %v2287 = vld [vmem:[#allocation2 + $0xc] sm:$0xf]
        %v2288 = vld [vmem:[#allocation2 + $0x10] sm:$0xf]
        %v2289 = vld [vmem:[#allocation2 + $0x14] sm:$0xf]
        %v2290 = vld [vmem:[#allocation2 + $0x18] sm:$0xf]
        %v2291 = vld [vmem:[#allocation2 + $0x1c] sm:$0xf]
        %v2292 = vld [vmem:[#allocation2 + $0x20] sm:$0xf]
        %v2293 = vld [vmem:[#allocation2 + $0x24] sm:$0xf]
        %v2294 = vld [vmem:[#allocation2 + $0x28] sm:$0xf]
        %v2295 = vld [vmem:[#allocation2 + $0x2c] sm:$0xf]
        %v2296 = vld [vmem:[#allocation2 + $0x30] sm:$0xf]
        %v2297 = vld [vmem:[#allocation2 + $0x34] sm:$0xf]
        %v2298 = vld [vmem:[#allocation2 + $0x38] sm:$0xf]
        %v2299 = vld [vmem:[#allocation2 + $0x3c] sm:$0xf]
        %v2300 = vld [vmem:[#allocation2 + $0x40] sm:$0xf]
        %v2301 = vld [vmem:[#allocation2 + $0x44] sm:$0x1]
        %v2311 = vunpack.c.l.s4 839922192
        %v2312 = vunpack.c.0.s8 %v2311
        %v2313 = vlaneseq
        %v2314 = vshrl.u32 %v2313, 7
        %v2315 = vsub.s32 %v2312, %v2314
        %v2316 = vrot.slane %v1473, %v2315
        %v2318 = vunpack.c.l.s4 1985246804
        %v2319 = vunpack.c.0.s8 %v2318
        %v2320 = vlaneseq
        %v2321 = vshrl.u32 %v2320, 7
        %v2322 = vsub.s32 %v2319, %v2321
        %v2323 = vrot.slane %v1473, %v2322
        %v2325 = vunpack.c.l.s4 839922192
        %v2326 = vunpack.c.0.s8 %v2325
        %v2327 = vlaneseq
        %v2328 = vshrl.u32 %v2327, 7
        %v2329 = vsub.s32 %v2326, %v2328
        %v2330 = vrot.slane %v1474, %v2329
        %v2332 = vunpack.c.l.s4 1985246804
        %v2333 = vunpack.c.0.s8 %v2332
        %v2334 = vlaneseq
        %v2335 = vshrl.u32 %v2334, 7
        %v2336 = vsub.s32 %v2333, %v2335
        %v2337 = vrot.slane %v1474, %v2336
        %v2339 = vunpack.c.l.s4 839922192
        %v2340 = vunpack.c.0.s8 %v2339
        %v2341 = vlaneseq
        %v2342 = vshrl.u32 %v2341, 7
        %v2343 = vsub.s32 %v2340, %v2342
        %v2344 = vrot.slane %v1475, %v2343
        %v2346 = vunpack.c.l.s4 1985246804
        %v2347 = vunpack.c.0.s8 %v2346
        %v2348 = vlaneseq
        %v2349 = vshrl.u32 %v2348, 7
        %v2350 = vsub.s32 %v2347, %v2349
        %v2351 = vrot.slane %v1475, %v2350
        %v2353 = vunpack.c.l.s4 839922192
        %v2354 = vunpack.c.0.s8 %v2353
        %v2355 = vlaneseq
        %v2356 = vshrl.u32 %v2355, 7
        %v2357 = vsub.s32 %v2354, %v2356
        %v2358 = vrot.slane %v1476, %v2357
        %v2360 = vunpack.c.l.s4 1985246804
        %v2361 = vunpack.c.0.s8 %v2360
        %v2362 = vlaneseq
        %v2363 = vshrl.u32 %v2362, 7
        %v2364 = vsub.s32 %v2361, %v2363
        %v2365 = vrot.slane %v1476, %v2364
        %v2367 = vunpack.c.l.s4 839922192
        %v2368 = vunpack.c.0.s8 %v2367
        %v2369 = vlaneseq
        %v2370 = vshrl.u32 %v2369, 7
        %v2371 = vsub.s32 %v2368, %v2370
        %v2372 = vrot.slane %v1477, %v2371
        %v2374 = vunpack.c.l.s4 1985246804
        %v2375 = vunpack.c.0.s8 %v2374
        %v2376 = vlaneseq
        %v2377 = vshrl.u32 %v2376, 7
        %v2378 = vsub.s32 %v2375, %v2377
        %v2379 = vrot.slane %v1477, %v2378
        %v2381 = vunpack.c.l.s4 839922192
        %v2382 = vunpack.c.0.s8 %v2381
        %v2383 = vlaneseq
        %v2384 = vshrl.u32 %v2383, 7
        %v2385 = vsub.s32 %v2382, %v2384
        %v2386 = vrot.slane %v1478, %v2385
        %v2388 = vunpack.c.l.s4 1985246804
        %v2389 = vunpack.c.0.s8 %v2388
        %v2390 = vlaneseq
        %v2391 = vshrl.u32 %v2390, 7
        %v2392 = vsub.s32 %v2389, %v2391
        %v2393 = vrot.slane %v1478, %v2392
        %v2395 = vunpack.c.l.s4 839922192
        %v2396 = vunpack.c.0.s8 %v2395
        %v2397 = vlaneseq
        %v2398 = vshrl.u32 %v2397, 7
        %v2399 = vsub.s32 %v2396, %v2398
        %v2400 = vrot.slane %v1479, %v2399
        %v2402 = vunpack.c.l.s4 1985246804
        %v2403 = vunpack.c.0.s8 %v2402
        %v2404 = vlaneseq
        %v2405 = vshrl.u32 %v2404, 7
        %v2406 = vsub.s32 %v2403, %v2405
        %v2407 = vrot.slane %v1479, %v2406
        %v2409 = vunpack.c.l.s4 839922192
        %v2410 = vunpack.c.0.s8 %v2409
        %v2411 = vlaneseq
        %v2412 = vshrl.u32 %v2411, 7
        %v2413 = vsub.s32 %v2410, %v2412
        %v2414 = vrot.slane %v1480, %v2413
        %v2416 = vunpack.c.l.s4 1985246804
        %v2417 = vunpack.c.0.s8 %v2416
        %v2418 = vlaneseq
        %v2419 = vshrl.u32 %v2418, 7
        %v2420 = vsub.s32 %v2417, %v2419
        %v2421 = vrot.slane %v1480, %v2420
        %vm2422 = vsmask.f32 256
        %vm2423 = vsmask.f32 4368
        %vm2424 = vmor %vm2422, %vm2423
        %v2426 = vshrl.u32 %v2316, 16
        %v2428 = vrot.slane %v2426, 7
        %v2429 = vshll.u32 %v2316, 16
        %v2431 = vor.u32 %v2428, %v2429
        %v2432 = vrot.slane %v2428, 4
        %v2434 = vshrl.u32 %v2323, 16
        %v2436 = vrot.slane %v2434, 7
        %v2437 = vshll.u32 %v2323, 16
        %v2439 = vor.u32 %v2436, %v2437
        %v2440 = vsel %vm2424, %v2432, %v2439
        %v2441 = vrot.slane %v2436, 4
        %v2443 = vshrl.u32 %v2330, 16
        %v2445 = vrot.slane %v2443, 7
        %v2446 = vshll.u32 %v2330, 16
        %v2448 = vor.u32 %v2445, %v2446
        %v2449 = vsel %vm2424, %v2441, %v2448
        %v2450 = vrot.slane %v2445, 4
        %v2452 = vshrl.u32 %v2337, 16
        %v2454 = vrot.slane %v2452, 7
        %v2455 = vshll.u32 %v2337, 16
        %v2457 = vor.u32 %v2454, %v2455
        %v2458 = vsel %vm2424, %v2450, %v2457
        %v2459 = vrot.slane %v2454, 4
        %v2461 = vshrl.u32 %v2344, 16
        %v2463 = vrot.slane %v2461, 7
        %v2464 = vshll.u32 %v2344, 16
        %v2466 = vor.u32 %v2463, %v2464
        %v2467 = vsel %vm2424, %v2459, %v2466
        %v2468 = vrot.slane %v2463, 4
        %v2470 = vshrl.u32 %v2351, 16
        %v2472 = vrot.slane %v2470, 7
        %v2473 = vshll.u32 %v2351, 16
        %v2475 = vor.u32 %v2472, %v2473
        %v2476 = vsel %vm2424, %v2468, %v2475
        %v2477 = vrot.slane %v2472, 4
        %v2479 = vshrl.u32 %v2358, 16
        %v2481 = vrot.slane %v2479, 7
        %v2482 = vshll.u32 %v2358, 16
        %v2484 = vor.u32 %v2481, %v2482
        %v2485 = vsel %vm2424, %v2477, %v2484
        %v2486 = vrot.slane %v2481, 4
        %v2488 = vshrl.u32 %v2365, 16
        %v2490 = vrot.slane %v2488, 7
        %v2491 = vshll.u32 %v2365, 16
        %v2493 = vor.u32 %v2490, %v2491
        %v2494 = vsel %vm2424, %v2486, %v2493
        %v2495 = vrot.slane %v2490, 4
        %v2497 = vshrl.u32 %v2372, 16
        %v2499 = vrot.slane %v2497, 7
        %v2500 = vshll.u32 %v2372, 16
        %v2502 = vor.u32 %v2499, %v2500
        %v2503 = vsel %vm2424, %v2495, %v2502
        %v2504 = vrot.slane %v2499, 4
        %v2506 = vshrl.u32 %v2379, 16
        %v2508 = vrot.slane %v2506, 7
        %v2509 = vshll.u32 %v2379, 16
        %v2511 = vor.u32 %v2508, %v2509
        %v2512 = vsel %vm2424, %v2504, %v2511
        %v2513 = vrot.slane %v2508, 4
        %v2515 = vshrl.u32 %v2386, 16
        %v2517 = vrot.slane %v2515, 7
        %v2518 = vshll.u32 %v2386, 16
        %v2520 = vor.u32 %v2517, %v2518
        %v2521 = vsel %vm2424, %v2513, %v2520
        %v2522 = vrot.slane %v2517, 4
        %v2524 = vshrl.u32 %v2393, 16
        %v2526 = vrot.slane %v2524, 7
        %v2527 = vshll.u32 %v2393, 16
        %v2529 = vor.u32 %v2526, %v2527
        %v2530 = vsel %vm2424, %v2522, %v2529
        %v2531 = vrot.slane %v2526, 4
        %v2533 = vshrl.u32 %v2400, 16
        %v2535 = vrot.slane %v2533, 7
        %v2536 = vshll.u32 %v2400, 16
        %v2538 = vor.u32 %v2535, %v2536
        %v2539 = vsel %vm2424, %v2531, %v2538
        %v2540 = vrot.slane %v2535, 4
        %v2542 = vshrl.u32 %v2407, 16
        %v2544 = vrot.slane %v2542, 7
        %v2545 = vshll.u32 %v2407, 16
        %v2547 = vor.u32 %v2544, %v2545
        %v2548 = vsel %vm2424, %v2540, %v2547
        %v2549 = vrot.slane %v2544, 4
        %v2551 = vshrl.u32 %v2414, 16
        %v2553 = vrot.slane %v2551, 7
        %v2554 = vshll.u32 %v2414, 16
        %v2556 = vor.u32 %v2553, %v2554
        %v2557 = vsel %vm2424, %v2549, %v2556
        %v2558 = vrot.slane %v2553, 4
        %v2560 = vshrl.u32 %v2421, 16
        %v2562 = vrot.slane %v2560, 7
        %v2563 = vshll.u32 %v2421, 16
        %v2565 = vor.u32 %v2562, %v2563
        %v2566 = vsel %vm2424, %v2558, %v2565
        %v2567 = vrot.slane %v2562, 4
        %v2585 = vmul.bf16 %v2285, %v2431
        %v2586 = vmul.bf16 %v2286, %v2440
        %v2587 = vmul.bf16 %v2287, %v2449
        %v2588 = vmul.bf16 %v2288, %v2458
        %v2589 = vmul.bf16 %v2289, %v2467
        %v2590 = vmul.bf16 %v2290, %v2476
        %v2591 = vmul.bf16 %v2291, %v2485
        %v2592 = vmul.bf16 %v2292, %v2494
        %v2593 = vmul.bf16 %v2293, %v2503
        %v2594 = vmul.bf16 %v2294, %v2512
        %v2595 = vmul.bf16 %v2295, %v2521
        %v2596 = vmul.bf16 %v2296, %v2530
        %v2597 = vmul.bf16 %v2297, %v2539
        %v2598 = vmul.bf16 %v2298, %v2548
        %v2599 = vmul.bf16 %v2299, %v2557
        %v2600 = vmul.bf16 %v2300, %v2566
        %v2601 = vmul.bf16 %v2301, %v2567
        %s2602 = scalar_lea.vmem %s291, 64
        %v2603 = vld [vmem:[%s2602] sm:$0xf]
        %v2604 = vld [vmem:[%s2602 + $0x4] sm:$0xf]
        %v2605 = vld [vmem:[%s2602 + $0x8] sm:$0xf]
        %v2606 = vld [vmem:[%s2602 + $0xc] sm:$0xf]
        %v2607 = vld [vmem:[%s2602 + $0x10] sm:$0xf]
        %v2608 = vld [vmem:[%s2602 + $0x14] sm:$0xf]
        %v2609 = vld [vmem:[%s2602 + $0x18] sm:$0xf]
        %v2610 = vld [vmem:[%s2602 + $0x1c] sm:$0xf]
        %v2628 = vunpack.c.l.b16 %v2585
        %v2629 = vunpack.c.l.b16 %v2586
        %v2630 = vunpack.c.l.b16 %v2587
        %v2631 = vunpack.c.l.b16 %v2588
        %v2632 = vunpack.c.l.b16 %v2589
        %v2633 = vunpack.c.l.b16 %v2590
        %v2634 = vunpack.c.l.b16 %v2591
        %v2635 = vunpack.c.l.b16 %v2592
        %v2636 = vunpack.c.l.b16 %v2593
        %v2637 = vunpack.c.l.b16 %v2594
        %v2638 = vunpack.c.l.b16 %v2595
        %v2639 = vunpack.c.l.b16 %v2596
        %v2640 = vunpack.c.l.b16 %v2597
        %v2641 = vunpack.c.l.b16 %v2598
        %v2642 = vunpack.c.l.b16 %v2599
        %v2643 = vunpack.c.l.b16 %v2600
        %v2644 = vunpack.c.l.b16 %v2601
        %v2645 = vpack.c.b16 %v2629, %v2628
        %v2646 = vpack.c.b16 %v2631, %v2630
        %v2647 = vpack.c.b16 %v2633, %v2632
        %v2648 = vpack.c.b16 %v2635, %v2634
        %v2649 = vpack.c.b16 %v2637, %v2636
        %v2650 = vpack.c.b16 %v2639, %v2638
        %v2651 = vpack.c.b16 %v2641, %v2640
        %v2652 = vpack.c.b16 %v2643, %v2642
        %v2653 = vpack.c.b16 %v2644, %v2644
        %vm2654 = vsmask.f32 7424
        %v2656 = vshrl.u32 %v2645, 16
        %v2658 = vshll.u32 %v2645, 16
        %v2660 = vrot.slane %v2658, 1
        %v2661 = vor.u32 %v2656, %v2660
        %v2663 = vshll.u32 %v2646, 16
        %v2665 = vrot.slane %v2663, 1
        %v2666 = vsel %vm2654, %v2661, %v2665
        %v2667 = vshrl.u32 %v2646, 16
        %v2669 = vor.u32 %v2667, %v2665
        %v2671 = vshll.u32 %v2647, 16
        %v2673 = vrot.slane %v2671, 1
        %v2674 = vsel %vm2654, %v2669, %v2673
        %v2675 = vshrl.u32 %v2647, 16
        %v2677 = vor.u32 %v2675, %v2673
        %v2679 = vshll.u32 %v2648, 16
        %v2681 = vrot.slane %v2679, 1
        %v2682 = vsel %vm2654, %v2677, %v2681
        %v2683 = vshrl.u32 %v2648, 16
        %v2685 = vor.u32 %v2683, %v2681
        %v2687 = vshll.u32 %v2649, 16
        %v2689 = vrot.slane %v2687, 1
        %v2690 = vsel %vm2654, %v2685, %v2689
        %v2691 = vshrl.u32 %v2649, 16
        %v2693 = vor.u32 %v2691, %v2689
        %v2695 = vshll.u32 %v2650, 16
        %v2697 = vrot.slane %v2695, 1
        %v2698 = vsel %vm2654, %v2693, %v2697
        %v2699 = vshrl.u32 %v2650, 16
        %v2701 = vor.u32 %v2699, %v2697
        %v2703 = vshll.u32 %v2651, 16
        %v2705 = vrot.slane %v2703, 1
        %v2706 = vsel %vm2654, %v2701, %v2705
        %v2707 = vshrl.u32 %v2651, 16
        %v2709 = vor.u32 %v2707, %v2705
        %v2711 = vshll.u32 %v2652, 16
        %v2713 = vrot.slane %v2711, 1
        %v2714 = vsel %vm2654, %v2709, %v2713
        %v2715 = vshrl.u32 %v2652, 16
        %v2717 = vor.u32 %v2715, %v2713
        %v2719 = vshll.u32 %v2653, 16
        %v2721 = vrot.slane %v2719, 1
        %v2722 = vsel %vm2654, %v2717, %v2721
        %v2731 = vunpack.c.l.b16 %v2603
        %v2732 = vunpack.c.l.b16 %v2604
        %v2733 = vunpack.c.l.b16 %v2605
        %v2734 = vunpack.c.l.b16 %v2606
        %v2735 = vunpack.c.l.b16 %v2607
        %v2736 = vunpack.c.l.b16 %v2608
        %v2737 = vunpack.c.l.b16 %v2609
        %v2738 = vunpack.c.l.b16 %v2610
        %v2739 = vpack.c.b16 %v2732, %v2731
        %v2740 = vpack.c.b16 %v2734, %v2733
        %v2741 = vpack.c.b16 %v2736, %v2735
        %v2742 = vpack.c.b16 %v2738, %v2737
        %v2748 = vsel %vm319, %v2666, 0
        %v2751 = vsel %vm319, %v2674, 0
        %v2754 = vsel %vm319, %v2682, 0
        %v2757 = vsel %vm319, %v2690, 0
        %v2760 = vsel %vm319, %v2698, 0
        %v2763 = vsel %vm319, %v2706, 0
        %v2766 = vsel %vm319, %v2714, 0
        %v2769 = vsel %vm319, %v2722, 0
        %2771 = vmatprep.subr.bf16.mxu0 0
        %2772 = vmatpush1.bf16.msra.mxu0 0
        %2773 = vmatprep.subr.bf16.mxu0 0
        %2774 = vmatpush1.bf16.msra.mxu0 0
        %2775 = vmatprep.subr.bf16.mxu0 0
        %2776 = vmatpush1.bf16.msra.mxu0 0
        %2777 = vmatprep.subr.bf16.mxu0 0
        %2778 = vmatpush1.bf16.msra.mxu0 0
        %2779 = vmatprep.subr.bf16.mxu0 0
        %2780 = vmatpush1.bf16.msra.mxu0 %v2742
        %2781 = vmatprep.subr.bf16.mxu0 0
        %2782 = vmatpush1.bf16.msra.mxu0 %v2741
        %2783 = vmatprep.subr.bf16.mxu0 0
        %2784 = vmatpush1.bf16.msra.mxu0 %v2740
        %2785 = vmatprep.subr.bf16.mxu0 0
        %2786 = vmatpush1.bf16.msra.mxu0 %v2739
        %2787 = vmatprep.subr.bf16.mxu0 0
        %2788 = vmatpush2.bf16.msra.mxu0 0
        %2789 = vmatprep.subr.bf16.mxu0 0
        %2790 = vmatpush2.bf16.msra.mxu0 0
        %2791 = vmatprep.subr.bf16.mxu0 0
        %2792 = vmatpush2.bf16.msra.mxu0 0
        %2793 = vmatprep.subr.bf16.mxu0 0
        %2794 = vmatpush2.bf16.msra.mxu0 0
        %2795 = vmatprep.subr.bf16.mxu0 0
        %2796 = vmatpush2.bf16.msra.mxu0 0
        %2797 = vmatprep.subr.bf16.mxu0 0
        %2798 = vmatpush2.bf16.msra.mxu0 0
        %2799 = vmatprep.subr.bf16.mxu0 0
        %2800 = vmatpush2.bf16.msra.mxu0 0
        %2801 = vmatprep.subr.bf16.mxu0 0
        %2802 = vmatpush2.bf16.msra.mxu0 0
        %2803 = vmatprep.mubr.bf16.mxu0 0
        %2804 = vmatmul.mubr.bf16.gmra.mxu0 %v2748
        %v2805 = vpop.f32.mrf.mxu0
        %v2806 = vadd.f32 0.0, %v2805
        %v2807 = vpop.f32.mrf.mxu0
        %v2808 = vpop.f32.mrf.mxu0
        %v2809 = vadd.f32 0.0, %v2808
        %v2810 = vpop.f32.mrf.mxu0
        %2811 = vmatprep.mubr.bf16.mxu0 0
        %2812 = vmatmul.mubr.bf16.gmra.mxu0 %v2751
        %v2813 = vpop.f32.mrf.mxu0
        %v2814 = vadd.f32 0.0, %v2813
        %v2815 = vpop.f32.mrf.mxu0
        %v2816 = vpop.f32.mrf.mxu0
        %v2817 = vadd.f32 0.0, %v2816
        %v2818 = vpop.f32.mrf.mxu0
        %2819 = vmatprep.mubr.bf16.mxu0 0
        %2820 = vmatmul.mubr.bf16.gmra.mxu0 %v2754
        %v2821 = vpop.f32.mrf.mxu0
        %v2822 = vadd.f32 0.0, %v2821
        %v2823 = vpop.f32.mrf.mxu0
        %v2824 = vpop.f32.mrf.mxu0
        %v2825 = vadd.f32 0.0, %v2824
        %v2826 = vpop.f32.mrf.mxu0
        %2827 = vmatprep.mubr.bf16.mxu0 0
        %2828 = vmatmul.mubr.bf16.gmra.mxu0 %v2757
        %v2829 = vpop.f32.mrf.mxu0
        %v2830 = vadd.f32 0.0, %v2829
        %v2831 = vpop.f32.mrf.mxu0
        %v2832 = vpop.f32.mrf.mxu0
        %v2833 = vadd.f32 0.0, %v2832
        %v2834 = vpop.f32.mrf.mxu0
        %2835 = vmatprep.mubr.bf16.mxu0 0
        %2836 = vmatmul.mubr.bf16.gmra.mxu0 %v2760
        %v2837 = vpop.f32.mrf.mxu0
        %v2838 = vadd.f32 0.0, %v2837
        %v2839 = vpop.f32.mrf.mxu0
        %v2840 = vpop.f32.mrf.mxu0
        %v2841 = vadd.f32 0.0, %v2840
        %v2842 = vpop.f32.mrf.mxu0
        %2843 = vmatprep.mubr.bf16.mxu0 0
        %2844 = vmatmul.mubr.bf16.gmra.mxu0 %v2763
        %v2845 = vpop.f32.mrf.mxu0
        %v2846 = vadd.f32 0.0, %v2845
        %v2847 = vpop.f32.mrf.mxu0
        %v2848 = vpop.f32.mrf.mxu0
        %v2849 = vadd.f32 0.0, %v2848
        %v2850 = vpop.f32.mrf.mxu0
        %2851 = vmatprep.mubr.bf16.mxu0 0
        %2852 = vmatmul.mubr.bf16.gmra.mxu0 %v2766
        %v2853 = vpop.f32.mrf.mxu0
        %v2854 = vadd.f32 0.0, %v2853
        %v2855 = vpop.f32.mrf.mxu0
        %v2856 = vpop.f32.mrf.mxu0
        %v2857 = vadd.f32 0.0, %v2856
        %v2858 = vpop.f32.mrf.mxu0
        %2859 = vmatprep.mubr.bf16.mxu0 0
        %2860 = vmatmul.mubr.bf16.gmra.mxu0 %v2769
        %v2861 = vpop.f32.mrf.mxu0
        %v2862 = vadd.f32 0.0, %v2861
        %v2863 = vpop.f32.mrf.mxu0
        %v2864 = vpop.f32.mrf.mxu0
        %v2865 = vadd.f32 0.0, %v2864
        %v2866 = vpop.f32.mrf.mxu0
        %2867 = vdwg.mxu0
        %v2868 = vadd.f32 %v2223, %v2806
        %v2869 = vadd.f32 %v2226, %v2809
        %v2870 = vadd.f32 %v2231, %v2814
        %v2871 = vadd.f32 %v2234, %v2817
        %v2872 = vadd.f32 %v2239, %v2822
        %v2873 = vadd.f32 %v2242, %v2825
        %v2874 = vadd.f32 %v2247, %v2830
        %v2875 = vadd.f32 %v2250, %v2833
        %v2876 = vadd.f32 %v2255, %v2838
        %v2877 = vadd.f32 %v2258, %v2841
        %v2878 = vadd.f32 %v2263, %v2846
        %v2879 = vadd.f32 %v2266, %v2849
        %v2880 = vadd.f32 %v2271, %v2854
        %v2881 = vadd.f32 %v2274, %v2857
        %v2882 = vadd.f32 %v2279, %v2862
        %v2883 = vadd.f32 %v2282, %v2865
        %v2884 = vld [vmem:[#allocation2 + $0x8] sm:$0x8]
        %v2885 = vld [vmem:[#allocation2 + $0xc] sm:$0xf]
        %v2886 = vld [vmem:[#allocation2 + $0x10] sm:$0xf]
        %v2887 = vld [vmem:[#allocation2 + $0x14] sm:$0xf]
        %v2888 = vld [vmem:[#allocation2 + $0x18] sm:$0xf]
        %v2889 = vld [vmem:[#allocation2 + $0x1c] sm:$0xf]
        %v2890 = vld [vmem:[#allocation2 + $0x20] sm:$0xf]
        %v2891 = vld [vmem:[#allocation2 + $0x24] sm:$0xf]
        %v2892 = vld [vmem:[#allocation2 + $0x28] sm:$0xf]
        %v2893 = vld [vmem:[#allocation2 + $0x2c] sm:$0xf]
        %v2894 = vld [vmem:[#allocation2 + $0x30] sm:$0xf]
        %v2895 = vld [vmem:[#allocation2 + $0x34] sm:$0xf]
        %v2896 = vld [vmem:[#allocation2 + $0x38] sm:$0xf]
        %v2897 = vld [vmem:[#allocation2 + $0x3c] sm:$0xf]
        %v2898 = vld [vmem:[#allocation2 + $0x40] sm:$0xf]
        %v2899 = vld [vmem:[#allocation2 + $0x44] sm:$0xf]
        %v2900 = vld [vmem:[#allocation2 + $0x48] sm:$0xf]
        %v2901 = vmul.bf16 %v2884, %v1624
        %v2902 = vmul.bf16 %v2885, %v1634
        %v2903 = vmul.bf16 %v2886, %v1644
        %v2904 = vmul.bf16 %v2887, %v1654
        %v2905 = vmul.bf16 %v2888, %v1664
        %v2906 = vmul.bf16 %v2889, %v1674
        %v2907 = vmul.bf16 %v2890, %v1684
        %v2908 = vmul.bf16 %v2891, %v1694
        %v2909 = vmul.bf16 %v2892, %v1704
        %v2910 = vmul.bf16 %v2893, %v1714
        %v2911 = vmul.bf16 %v2894, %v1724
        %v2912 = vmul.bf16 %v2895, %v1734
        %v2913 = vmul.bf16 %v2896, %v1744
        %v2914 = vmul.bf16 %v2897, %v1754
        %v2915 = vmul.bf16 %v2898, %v1764
        %v2916 = vmul.bf16 %v2899, %v1774
        %v2917 = vmul.bf16 %v2900, %v1779
        %s2918 = scalar_lea.vmem %s291, 96
        %v2919 = vld [vmem:[%s2918] sm:$0xf]
        %v2920 = vld [vmem:[%s2918 + $0x4] sm:$0xf]
        %v2921 = vld [vmem:[%s2918 + $0x8] sm:$0xf]
        %v2922 = vld [vmem:[%s2918 + $0xc] sm:$0xf]
        %v2923 = vld [vmem:[%s2918 + $0x10] sm:$0xf]
        %v2924 = vld [vmem:[%s2918 + $0x14] sm:$0xf]
        %v2925 = vld [vmem:[%s2918 + $0x18] sm:$0xf]
        %v2926 = vld [vmem:[%s2918 + $0x1c] sm:$0xf]
        %v2944 = vunpack.c.l.b16 %v2901
        %v2945 = vunpack.c.l.b16 %v2902
        %v2946 = vunpack.c.l.b16 %v2903
        %v2947 = vunpack.c.l.b16 %v2904
        %v2948 = vunpack.c.l.b16 %v2905
        %v2949 = vunpack.c.l.b16 %v2906
        %v2950 = vunpack.c.l.b16 %v2907
        %v2951 = vunpack.c.l.b16 %v2908
        %v2952 = vunpack.c.l.b16 %v2909
        %v2953 = vunpack.c.l.b16 %v2910
        %v2954 = vunpack.c.l.b16 %v2911
        %v2955 = vunpack.c.l.b16 %v2912
        %v2956 = vunpack.c.l.b16 %v2913
        %v2957 = vunpack.c.l.b16 %v2914
        %v2958 = vunpack.c.l.b16 %v2915
        %v2959 = vunpack.c.l.b16 %v2916
        %v2960 = vunpack.c.l.b16 %v2917
        %v2961 = vpack.c.b16 %v2945, %v2944
        %v2962 = vpack.c.b16 %v2947, %v2946
        %v2963 = vpack.c.b16 %v2949, %v2948
        %v2964 = vpack.c.b16 %v2951, %v2950
        %v2965 = vpack.c.b16 %v2953, %v2952
        %v2966 = vpack.c.b16 %v2955, %v2954
        %v2967 = vpack.c.b16 %v2957, %v2956
        %v2968 = vpack.c.b16 %v2959, %v2958
        %v2969 = vpack.c.b16 %v2960, %v2960
        %v2971 = vshrl.u32 %v2961, 16
        %v2973 = vrot.slane %v2971, 3
        %v2974 = vshll.u32 %v2961, 16
        %v2976 = vrot.slane %v2974, 4
        %v2977 = vor.u32 %v2973, %v2976
        %v2979 = vshrl.u32 %v2962, 16
        %v2981 = vrot.slane %v2979, 3
        %v2982 = vshll.u32 %v2962, 16
        %v2984 = vrot.slane %v2982, 4
        %v2985 = vor.u32 %v2981, %v2984
        %v2986 = vsel %vm2059, %v2977, %v2985
        %v2988 = vshrl.u32 %v2963, 16
        %v2990 = vrot.slane %v2988, 3
        %v2991 = vshll.u32 %v2963, 16
        %v2993 = vrot.slane %v2991, 4
        %v2994 = vor.u32 %v2990, %v2993
        %v2995 = vsel %vm2059, %v2985, %v2994
        %v2997 = vshrl.u32 %v2964, 16
        %v2999 = vrot.slane %v2997, 3
        %v3000 = vshll.u32 %v2964, 16
        %v3002 = vrot.slane %v3000, 4
        %v3003 = vor.u32 %v2999, %v3002
        %v3004 = vsel %vm2059, %v2994, %v3003
        %v3006 = vshrl.u32 %v2965, 16
        %v3008 = vrot.slane %v3006, 3
        %v3009 = vshll.u32 %v2965, 16
        %v3011 = vrot.slane %v3009, 4
        %v3012 = vor.u32 %v3008, %v3011
        %v3013 = vsel %vm2059, %v3003, %v3012
        %v3015 = vshrl.u32 %v2966, 16
        %v3017 = vrot.slane %v3015, 3
        %v3018 = vshll.u32 %v2966, 16
        %v3020 = vrot.slane %v3018, 4
        %v3021 = vor.u32 %v3017, %v3020
        %v3022 = vsel %vm2059, %v3012, %v3021
        %v3024 = vshrl.u32 %v2967, 16
        %v3026 = vrot.slane %v3024, 3
        %v3027 = vshll.u32 %v2967, 16
        %v3029 = vrot.slane %v3027, 4
        %v3030 = vor.u32 %v3026, %v3029
        %v3031 = vsel %vm2059, %v3021, %v3030
        %v3033 = vshrl.u32 %v2968, 16
        %v3035 = vrot.slane %v3033, 3
        %v3036 = vshll.u32 %v2968, 16
        %v3038 = vrot.slane %v3036, 4
        %v3039 = vor.u32 %v3035, %v3038
        %v3040 = vsel %vm2059, %v3030, %v3039
        %v3042 = vshrl.u32 %v2969, 16
        %v3044 = vrot.slane %v3042, 3
        %v3045 = vshll.u32 %v2969, 16
        %v3047 = vrot.slane %v3045, 4
        %v3048 = vor.u32 %v3044, %v3047
        %v3049 = vsel %vm2059, %v3039, %v3048
        %v3058 = vunpack.c.l.b16 %v2919
        %v3059 = vunpack.c.l.b16 %v2920
        %v3060 = vunpack.c.l.b16 %v2921
        %v3061 = vunpack.c.l.b16 %v2922
        %v3062 = vunpack.c.l.b16 %v2923
        %v3063 = vunpack.c.l.b16 %v2924
        %v3064 = vunpack.c.l.b16 %v2925
        %v3065 = vunpack.c.l.b16 %v2926
        %v3066 = vpack.c.b16 %v3059, %v3058
        %v3067 = vpack.c.b16 %v3061, %v3060
        %v3068 = vpack.c.b16 %v3063, %v3062
        %v3069 = vpack.c.b16 %v3065, %v3064
        %v3075 = vsel %vm319, %v2986, 0
        %v3078 = vsel %vm319, %v2995, 0
        %v3081 = vsel %vm319, %v3004, 0
        %v3084 = vsel %vm319, %v3013, 0
        %v3087 = vsel %vm319, %v3022, 0
        %v3090 = vsel %vm319, %v3031, 0
        %v3093 = vsel %vm319, %v3040, 0
        %v3096 = vsel %vm319, %v3049, 0
        %3098 = vmatprep.subr.bf16.mxu0 0
        %3099 = vmatpush1.bf16.msra.mxu0 0
        %3100 = vmatprep.subr.bf16.mxu0 0
        %3101 = vmatpush1.bf16.msra.mxu0 0
        %3102 = vmatprep.subr.bf16.mxu0 0
        %3103 = vmatpush1.bf16.msra.mxu0 0
        %3104 = vmatprep.subr.bf16.mxu0 0
        %3105 = vmatpush1.bf16.msra.mxu0 0
        %3106 = vmatprep.subr.bf16.mxu0 0
        %3107 = vmatpush1.bf16.msra.mxu0 %v3069
        %3108 = vmatprep.subr.bf16.mxu0 0
        %3109 = vmatpush1.bf16.msra.mxu0 %v3068
        %3110 = vmatprep.subr.bf16.mxu0 0
        %3111 = vmatpush1.bf16.msra.mxu0 %v3067
        %3112 = vmatprep.subr.bf16.mxu0 0
        %3113 = vmatpush1.bf16.msra.mxu0 %v3066
        %3114 = vmatprep.subr.bf16.mxu0 0
        %3115 = vmatpush2.bf16.msra.mxu0 0
        %3116 = vmatprep.subr.bf16.mxu0 0
        %3117 = vmatpush2.bf16.msra.mxu0 0
        %3118 = vmatprep.subr.bf16.mxu0 0
        %3119 = vmatpush2.bf16.msra.mxu0 0
        %3120 = vmatprep.subr.bf16.mxu0 0
        %3121 = vmatpush2.bf16.msra.mxu0 0
        %3122 = vmatprep.subr.bf16.mxu0 0
        %3123 = vmatpush2.bf16.msra.mxu0 0
        %3124 = vmatprep.subr.bf16.mxu0 0
        %3125 = vmatpush2.bf16.msra.mxu0 0
        %3126 = vmatprep.subr.bf16.mxu0 0
        %3127 = vmatpush2.bf16.msra.mxu0 0
        %3128 = vmatprep.subr.bf16.mxu0 0
        %3129 = vmatpush2.bf16.msra.mxu0 0
        %3130 = vmatprep.mubr.bf16.mxu0 0
        %3131 = vmatmul.mubr.bf16.gmra.mxu0 %v3075
        %v3132 = vpop.f32.mrf.mxu0
        %v3133 = vadd.f32 0.0, %v3132
        %v3134 = vpop.f32.mrf.mxu0
        %v3135 = vpop.f32.mrf.mxu0
        %v3136 = vadd.f32 0.0, %v3135
        %v3137 = vpop.f32.mrf.mxu0
        %3138 = vmatprep.mubr.bf16.mxu0 0
        %3139 = vmatmul.mubr.bf16.gmra.mxu0 %v3078
        %v3140 = vpop.f32.mrf.mxu0
        %v3141 = vadd.f32 0.0, %v3140
        %v3142 = vpop.f32.mrf.mxu0
        %v3143 = vpop.f32.mrf.mxu0
        %v3144 = vadd.f32 0.0, %v3143
        %v3145 = vpop.f32.mrf.mxu0
        %3146 = vmatprep.mubr.bf16.mxu0 0
        %3147 = vmatmul.mubr.bf16.gmra.mxu0 %v3081
        %v3148 = vpop.f32.mrf.mxu0
        %v3149 = vadd.f32 0.0, %v3148
        %v3150 = vpop.f32.mrf.mxu0
        %v3151 = vpop.f32.mrf.mxu0
        %v3152 = vadd.f32 0.0, %v3151
        %v3153 = vpop.f32.mrf.mxu0
        %3154 = vmatprep.mubr.bf16.mxu0 0
        %3155 = vmatmul.mubr.bf16.gmra.mxu0 %v3084
        %v3156 = vpop.f32.mrf.mxu0
        %v3157 = vadd.f32 0.0, %v3156
        %v3158 = vpop.f32.mrf.mxu0
        %v3159 = vpop.f32.mrf.mxu0
        %v3160 = vadd.f32 0.0, %v3159
        %v3161 = vpop.f32.mrf.mxu0
        %3162 = vmatprep.mubr.bf16.mxu0 0
        %3163 = vmatmul.mubr.bf16.gmra.mxu0 %v3087
        %v3164 = vpop.f32.mrf.mxu0
        %v3165 = vadd.f32 0.0, %v3164
        %v3166 = vpop.f32.mrf.mxu0
        %v3167 = vpop.f32.mrf.mxu0
        %v3168 = vadd.f32 0.0, %v3167
        %v3169 = vpop.f32.mrf.mxu0
        %3170 = vmatprep.mubr.bf16.mxu0 0
        %3171 = vmatmul.mubr.bf16.gmra.mxu0 %v3090
        %v3172 = vpop.f32.mrf.mxu0
        %v3173 = vadd.f32 0.0, %v3172
        %v3174 = vpop.f32.mrf.mxu0
        %v3175 = vpop.f32.mrf.mxu0
        %v3176 = vadd.f32 0.0, %v3175
        %v3177 = vpop.f32.mrf.mxu0
        %3178 = vmatprep.mubr.bf16.mxu0 0
        %3179 = vmatmul.mubr.bf16.gmra.mxu0 %v3093
        %v3180 = vpop.f32.mrf.mxu0
        %v3181 = vadd.f32 0.0, %v3180
        %v3182 = vpop.f32.mrf.mxu0
        %v3183 = vpop.f32.mrf.mxu0
        %v3184 = vadd.f32 0.0, %v3183
        %v3185 = vpop.f32.mrf.mxu0
        %3186 = vmatprep.mubr.bf16.mxu0 0
        %3187 = vmatmul.mubr.bf16.gmra.mxu0 %v3096
        %v3188 = vpop.f32.mrf.mxu0
        %v3189 = vadd.f32 0.0, %v3188
        %v3190 = vpop.f32.mrf.mxu0
        %v3191 = vpop.f32.mrf.mxu0
        %v3192 = vadd.f32 0.0, %v3191
        %v3193 = vpop.f32.mrf.mxu0
        %3194 = vdwg.mxu0
        %v3195 = vadd.f32 %v2868, %v3133
        %v3196 = vadd.f32 %v2869, %v3136
        %v3197 = vadd.f32 %v2870, %v3141
        %v3198 = vadd.f32 %v2871, %v3144
        %v3199 = vadd.f32 %v2872, %v3149
        %v3200 = vadd.f32 %v2873, %v3152
        %v3201 = vadd.f32 %v2874, %v3157
        %v3202 = vadd.f32 %v2875, %v3160
        %v3203 = vadd.f32 %v2876, %v3165
        %v3204 = vadd.f32 %v2877, %v3168
        %v3205 = vadd.f32 %v2878, %v3173
        %v3206 = vadd.f32 %v2879, %v3176
        %v3207 = vadd.f32 %v2880, %v3181
        %v3208 = vadd.f32 %v2881, %v3184
        %v3209 = vadd.f32 %v2882, %v3189
        %v3210 = vadd.f32 %v2883, %v3192
        %s3211 = scalar_lea.vmem %s291, 128
        %v3212 = vld [vmem:[%s3211] sm:$0xf]
        %v3213 = vld [vmem:[%s3211 + $0x4] sm:$0xf]
        %v3214 = vld [vmem:[%s3211 + $0x8] sm:$0xf]
        %v3215 = vld [vmem:[%s3211 + $0xc] sm:$0xf]
        %v3216 = vld [vmem:[%s3211 + $0x10] sm:$0xf]
        %v3217 = vld [vmem:[%s3211 + $0x14] sm:$0xf]
        %v3218 = vld [vmem:[%s3211 + $0x18] sm:$0xf]
        %v3219 = vld [vmem:[%s3211 + $0x1c] sm:$0xf]
        %v3236 = vunpack.c.l.b16 %v2885
        %v3237 = vunpack.c.l.b16 %v2886
        %v3238 = vunpack.c.l.b16 %v2887
        %v3239 = vunpack.c.l.b16 %v2888
        %v3240 = vunpack.c.l.b16 %v2889
        %v3241 = vunpack.c.l.b16 %v2890
        %v3242 = vunpack.c.l.b16 %v2891
        %v3243 = vunpack.c.l.b16 %v2892
        %v3244 = vunpack.c.l.b16 %v2893
        %v3245 = vunpack.c.l.b16 %v2894
        %v3246 = vunpack.c.l.b16 %v2895
        %v3247 = vunpack.c.l.b16 %v2896
        %v3248 = vunpack.c.l.b16 %v2897
        %v3249 = vunpack.c.l.b16 %v2898
        %v3250 = vunpack.c.l.b16 %v2899
        %v3251 = vunpack.c.l.b16 %v2900
        %v3252 = vpack.c.b16 %v3237, %v3236
        %v3253 = vpack.c.b16 %v3239, %v3238
        %v3254 = vpack.c.b16 %v3241, %v3240
        %v3255 = vpack.c.b16 %v3243, %v3242
        %v3256 = vpack.c.b16 %v3245, %v3244
        %v3257 = vpack.c.b16 %v3247, %v3246
        %v3258 = vpack.c.b16 %v3249, %v3248
        %v3259 = vpack.c.b16 %v3251, %v3250
        %v3268 = vunpack.c.l.b16 %v3212
        %v3269 = vunpack.c.l.b16 %v3213
        %v3270 = vunpack.c.l.b16 %v3214
        %v3271 = vunpack.c.l.b16 %v3215
        %v3272 = vunpack.c.l.b16 %v3216
        %v3273 = vunpack.c.l.b16 %v3217
        %v3274 = vunpack.c.l.b16 %v3218
        %v3275 = vunpack.c.l.b16 %v3219
        %v3276 = vpack.c.b16 %v3269, %v3268
        %v3277 = vpack.c.b16 %v3271, %v3270
        %v3278 = vpack.c.b16 %v3273, %v3272
        %v3279 = vpack.c.b16 %v3275, %v3274
        %v3285 = vsel %vm319, %v3252, 0
        %v3288 = vsel %vm319, %v3253, 0
        %v3291 = vsel %vm319, %v3254, 0
        %v3294 = vsel %vm319, %v3255, 0
        %v3297 = vsel %vm319, %v3256, 0
        %v3300 = vsel %vm319, %v3257, 0
        %v3303 = vsel %vm319, %v3258, 0
        %v3306 = vsel %vm319, %v3259, 0
        %3308 = vmatprep.subr.bf16.mxu0 0
        %3309 = vmatpush1.bf16.msra.mxu0 0
        %3310 = vmatprep.subr.bf16.mxu0 0
        %3311 = vmatpush1.bf16.msra.mxu0 0
        %3312 = vmatprep.subr.bf16.mxu0 0
        %3313 = vmatpush1.bf16.msra.mxu0 0
        %3314 = vmatprep.subr.bf16.mxu0 0
        %3315 = vmatpush1.bf16.msra.mxu0 0
        %3316 = vmatprep.subr.bf16.mxu0 0
        %3317 = vmatpush1.bf16.msra.mxu0 %v3279
        %3318 = vmatprep.subr.bf16.mxu0 0
        %3319 = vmatpush1.bf16.msra.mxu0 %v3278
        %3320 = vmatprep.subr.bf16.mxu0 0
        %3321 = vmatpush1.bf16.msra.mxu0 %v3277
        %3322 = vmatprep.subr.bf16.mxu0 0
        %3323 = vmatpush1.bf16.msra.mxu0 %v3276
        %3324 = vmatprep.subr.bf16.mxu0 0
        %3325 = vmatpush2.bf16.msra.mxu0 0
        %3326 = vmatprep.subr.bf16.mxu0 0
        %3327 = vmatpush2.bf16.msra.mxu0 0
        %3328 = vmatprep.subr.bf16.mxu0 0
        %3329 = vmatpush2.bf16.msra.mxu0 0
        %3330 = vmatprep.subr.bf16.mxu0 0
        %3331 = vmatpush2.bf16.msra.mxu0 0
        %3332 = vmatprep.subr.bf16.mxu0 0
        %3333 = vmatpush2.bf16.msra.mxu0 0
        %3334 = vmatprep.subr.bf16.mxu0 0
        %3335 = vmatpush2.bf16.msra.mxu0 0
        %3336 = vmatprep.subr.bf16.mxu0 0
        %3337 = vmatpush2.bf16.msra.mxu0 0
        %3338 = vmatprep.subr.bf16.mxu0 0
        %3339 = vmatpush2.bf16.msra.mxu0 0
        %3340 = vmatprep.mubr.bf16.mxu0 0
        %3341 = vmatmul.mubr.bf16.gmra.mxu0 %v3285
        %v3342 = vpop.f32.mrf.mxu0
        %v3343 = vadd.f32 0.0, %v3342
        %v3344 = vpop.f32.mrf.mxu0
        %v3345 = vpop.f32.mrf.mxu0
        %v3346 = vadd.f32 0.0, %v3345
        %v3347 = vpop.f32.mrf.mxu0
        %3348 = vmatprep.mubr.bf16.mxu0 0
        %3349 = vmatmul.mubr.bf16.gmra.mxu0 %v3288
        %v3350 = vpop.f32.mrf.mxu0
        %v3351 = vadd.f32 0.0, %v3350
        %v3352 = vpop.f32.mrf.mxu0
        %v3353 = vpop.f32.mrf.mxu0
        %v3354 = vadd.f32 0.0, %v3353
        %v3355 = vpop.f32.mrf.mxu0
        %3356 = vmatprep.mubr.bf16.mxu0 0
        %3357 = vmatmul.mubr.bf16.gmra.mxu0 %v3291
        %v3358 = vpop.f32.mrf.mxu0
        %v3359 = vadd.f32 0.0, %v3358
        %v3360 = vpop.f32.mrf.mxu0
        %v3361 = vpop.f32.mrf.mxu0
        %v3362 = vadd.f32 0.0, %v3361
        %v3363 = vpop.f32.mrf.mxu0
        %3364 = vmatprep.mubr.bf16.mxu0 0
        %3365 = vmatmul.mubr.bf16.gmra.mxu0 %v3294
        %v3366 = vpop.f32.mrf.mxu0
        %v3367 = vadd.f32 0.0, %v3366
        %v3368 = vpop.f32.mrf.mxu0
        %v3369 = vpop.f32.mrf.mxu0
        %v3370 = vadd.f32 0.0, %v3369
        %v3371 = vpop.f32.mrf.mxu0
        %3372 = vmatprep.mubr.bf16.mxu0 0
        %3373 = vmatmul.mubr.bf16.gmra.mxu0 %v3297
        %v3374 = vpop.f32.mrf.mxu0
        %v3375 = vadd.f32 0.0, %v3374
        %v3376 = vpop.f32.mrf.mxu0
        %v3377 = vpop.f32.mrf.mxu0
        %v3378 = vadd.f32 0.0, %v3377
        %v3379 = vpop.f32.mrf.mxu0
        %3380 = vmatprep.mubr.bf16.mxu0 0
        %3381 = vmatmul.mubr.bf16.gmra.mxu0 %v3300
        %v3382 = vpop.f32.mrf.mxu0
        %v3383 = vadd.f32 0.0, %v3382
        %v3384 = vpop.f32.mrf.mxu0
        %v3385 = vpop.f32.mrf.mxu0
        %v3386 = vadd.f32 0.0, %v3385
        %v3387 = vpop.f32.mrf.mxu0
        %3388 = vmatprep.mubr.bf16.mxu0 0
        %3389 = vmatmul.mubr.bf16.gmra.mxu0 %v3303
        %v3390 = vpop.f32.mrf.mxu0
        %v3391 = vadd.f32 0.0, %v3390
        %v3392 = vpop.f32.mrf.mxu0
        %v3393 = vpop.f32.mrf.mxu0
        %v3394 = vadd.f32 0.0, %v3393
        %v3395 = vpop.f32.mrf.mxu0
        %3396 = vmatprep.mubr.bf16.mxu0 0
        %3397 = vmatmul.mubr.bf16.gmra.mxu0 %v3306
        %v3398 = vpop.f32.mrf.mxu0
        %v3399 = vadd.f32 0.0, %v3398
        %v3400 = vpop.f32.mrf.mxu0
        %v3401 = vpop.f32.mrf.mxu0
        %v3402 = vadd.f32 0.0, %v3401
        %v3403 = vpop.f32.mrf.mxu0
        %3404 = vdwg.mxu0
        %v3405 = vadd.f32 %v3195, %v3343
        %v3406 = vadd.f32 %v3196, %v3346
        %v3407 = vadd.f32 %v3197, %v3351
        %v3408 = vadd.f32 %v3198, %v3354
        %v3409 = vadd.f32 %v3199, %v3359
        %v3410 = vadd.f32 %v3200, %v3362
        %v3411 = vadd.f32 %v3201, %v3367
        %v3412 = vadd.f32 %v3202, %v3370
        %v3413 = vadd.f32 %v3203, %v3375
        %v3414 = vadd.f32 %v3204, %v3378
        %v3415 = vadd.f32 %v3205, %v3383
        %v3416 = vadd.f32 %v3206, %v3386
        %v3417 = vadd.f32 %v3207, %v3391
        %v3418 = vadd.f32 %v3208, %v3394
        %v3419 = vadd.f32 %v3209, %v3399
        %v3420 = vadd.f32 %v3210, %v3402
        %v3421 = vld [vmem:[#allocation2 + $0xc] sm:$0xf]
        %v3422 = vld [vmem:[#allocation2 + $0x10] sm:$0xf]
        %v3423 = vld [vmem:[#allocation2 + $0x14] sm:$0xf]
        %v3424 = vld [vmem:[#allocation2 + $0x18] sm:$0xf]
        %v3425 = vld [vmem:[#allocation2 + $0x1c] sm:$0xf]
        %v3426 = vld [vmem:[#allocation2 + $0x20] sm:$0xf]
        %v3427 = vld [vmem:[#allocation2 + $0x24] sm:$0xf]
        %v3428 = vld [vmem:[#allocation2 + $0x28] sm:$0xf]
        %v3429 = vld [vmem:[#allocation2 + $0x2c] sm:$0xf]
        %v3430 = vld [vmem:[#allocation2 + $0x30] sm:$0xf]
        %v3431 = vld [vmem:[#allocation2 + $0x34] sm:$0xf]
        %v3432 = vld [vmem:[#allocation2 + $0x38] sm:$0xf]
        %v3433 = vld [vmem:[#allocation2 + $0x3c] sm:$0xf]
        %v3434 = vld [vmem:[#allocation2 + $0x40] sm:$0xf]
        %v3435 = vld [vmem:[#allocation2 + $0x44] sm:$0xf]
        %v3436 = vld [vmem:[#allocation2 + $0x48] sm:$0xf]
        %v3437 = vld [vmem:[#allocation2 + $0x4c] sm:$0x1]
        %v3438 = vmul.bf16 %v3421, %v2431
        %v3439 = vmul.bf16 %v3422, %v2440
        %v3440 = vmul.bf16 %v3423, %v2449
        %v3441 = vmul.bf16 %v3424, %v2458
        %v3442 = vmul.bf16 %v3425, %v2467
        %v3443 = vmul.bf16 %v3426, %v2476
        %v3444 = vmul.bf16 %v3427, %v2485
        %v3445 = vmul.bf16 %v3428, %v2494
        %v3446 = vmul.bf16 %v3429, %v2503
        %v3447 = vmul.bf16 %v3430, %v2512
        %v3448 = vmul.bf16 %v3431, %v2521
        %v3449 = vmul.bf16 %v3432, %v2530
        %v3450 = vmul.bf16 %v3433, %v2539
        %v3451 = vmul.bf16 %v3434, %v2548
        %v3452 = vmul.bf16 %v3435, %v2557
        %v3453 = vmul.bf16 %v3436, %v2566
        %v3454 = vmul.bf16 %v3437, %v2567
        %s3455 = scalar_lea.vmem %s291, 160
        %v3456 = vld [vmem:[%s3455] sm:$0xf]
        %v3457 = vld [vmem:[%s3455 + $0x4] sm:$0xf]
        %v3458 = vld [vmem:[%s3455 + $0x8] sm:$0xf]
        %v3459 = vld [vmem:[%s3455 + $0xc] sm:$0xf]
        %v3460 = vld [vmem:[%s3455 + $0x10] sm:$0xf]
        %v3461 = vld [vmem:[%s3455 + $0x14] sm:$0xf]
        %v3462 = vld [vmem:[%s3455 + $0x18] sm:$0xf]
        %v3463 = vld [vmem:[%s3455 + $0x1c] sm:$0xf]
        %v3481 = vunpack.c.l.b16 %v3438
        %v3482 = vunpack.c.l.b16 %v3439
        %v3483 = vunpack.c.l.b16 %v3440
        %v3484 = vunpack.c.l.b16 %v3441
        %v3485 = vunpack.c.l.b16 %v3442
        %v3486 = vunpack.c.l.b16 %v3443
        %v3487 = vunpack.c.l.b16 %v3444
        %v3488 = vunpack.c.l.b16 %v3445
        %v3489 = vunpack.c.l.b16 %v3446
        %v3490 = vunpack.c.l.b16 %v3447
        %v3491 = vunpack.c.l.b16 %v3448
        %v3492 = vunpack.c.l.b16 %v3449
        %v3493 = vunpack.c.l.b16 %v3450
        %v3494 = vunpack.c.l.b16 %v3451
        %v3495 = vunpack.c.l.b16 %v3452
        %v3496 = vunpack.c.l.b16 %v3453
        %v3497 = vunpack.c.l.b16 %v3454
        %v3498 = vpack.c.b16 %v3482, %v3481
        %v3499 = vpack.c.b16 %v3484, %v3483
        %v3500 = vpack.c.b16 %v3486, %v3485
        %v3501 = vpack.c.b16 %v3488, %v3487
        %v3502 = vpack.c.b16 %v3490, %v3489
        %v3503 = vpack.c.b16 %v3492, %v3491
        %v3504 = vpack.c.b16 %v3494, %v3493
        %v3505 = vpack.c.b16 %v3496, %v3495
        %v3506 = vpack.c.b16 %v3497, %v3497
        %v3508 = vshrl.u32 %v3498, 16
        %v3510 = vshll.u32 %v3498, 16
        %v3512 = vrot.slane %v3510, 1
        %v3513 = vor.u32 %v3508, %v3512
        %v3515 = vshll.u32 %v3499, 16
        %v3517 = vrot.slane %v3515, 1
        %v3518 = vsel %vm2654, %v3513, %v3517
        %v3519 = vshrl.u32 %v3499, 16
        %v3521 = vor.u32 %v3519, %v3517
        %v3523 = vshll.u32 %v3500, 16
        %v3525 = vrot.slane %v3523, 1
        %v3526 = vsel %vm2654, %v3521, %v3525
        %v3527 = vshrl.u32 %v3500, 16
        %v3529 = vor.u32 %v3527, %v3525
        %v3531 = vshll.u32 %v3501, 16
        %v3533 = vrot.slane %v3531, 1
        %v3534 = vsel %vm2654, %v3529, %v3533
        %v3535 = vshrl.u32 %v3501, 16
        %v3537 = vor.u32 %v3535, %v3533
        %v3539 = vshll.u32 %v3502, 16
        %v3541 = vrot.slane %v3539, 1
        %v3542 = vsel %vm2654, %v3537, %v3541
        %v3543 = vshrl.u32 %v3502, 16
        %v3545 = vor.u32 %v3543, %v3541
        %v3547 = vshll.u32 %v3503, 16
        %v3549 = vrot.slane %v3547, 1
        %v3550 = vsel %vm2654, %v3545, %v3549
        %v3551 = vshrl.u32 %v3503, 16
        %v3553 = vor.u32 %v3551, %v3549
        %v3555 = vshll.u32 %v3504, 16
        %v3557 = vrot.slane %v3555, 1
        %v3558 = vsel %vm2654, %v3553, %v3557
        %v3559 = vshrl.u32 %v3504, 16
        %v3561 = vor.u32 %v3559, %v3557
        %v3563 = vshll.u32 %v3505, 16
        %v3565 = vrot.slane %v3563, 1
        %v3566 = vsel %vm2654, %v3561, %v3565
        %v3567 = vshrl.u32 %v3505, 16
        %v3569 = vor.u32 %v3567, %v3565
        %v3571 = vshll.u32 %v3506, 16
        %v3573 = vrot.slane %v3571, 1
        %v3574 = vsel %vm2654, %v3569, %v3573
        %v3583 = vunpack.c.l.b16 %v3456
        %v3584 = vunpack.c.l.b16 %v3457
        %v3585 = vunpack.c.l.b16 %v3458
        %v3586 = vunpack.c.l.b16 %v3459
        %v3587 = vunpack.c.l.b16 %v3460
        %v3588 = vunpack.c.l.b16 %v3461
        %v3589 = vunpack.c.l.b16 %v3462
        %v3590 = vunpack.c.l.b16 %v3463
        %v3591 = vpack.c.b16 %v3584, %v3583
        %v3592 = vpack.c.b16 %v3586, %v3585
        %v3593 = vpack.c.b16 %v3588, %v3587
        %v3594 = vpack.c.b16 %v3590, %v3589
        %v3600 = vsel %vm319, %v3518, 0
        %v3603 = vsel %vm319, %v3526, 0
        %v3606 = vsel %vm319, %v3534, 0
        %v3609 = vsel %vm319, %v3542, 0
        %v3612 = vsel %vm319, %v3550, 0
        %v3615 = vsel %vm319, %v3558, 0
        %v3618 = vsel %vm319, %v3566, 0
        %v3621 = vsel %vm319, %v3574, 0
        %3623 = vmatprep.subr.bf16.mxu0 0
        %3624 = vmatpush1.bf16.msra.mxu0 0
        %3625 = vmatprep.subr.bf16.mxu0 0
        %3626 = vmatpush1.bf16.msra.mxu0 0
        %3627 = vmatprep.subr.bf16.mxu0 0
        %3628 = vmatpush1.bf16.msra.mxu0 0
        %3629 = vmatprep.subr.bf16.mxu0 0
        %3630 = vmatpush1.bf16.msra.mxu0 0
        %3631 = vmatprep.subr.bf16.mxu0 0
        %3632 = vmatpush1.bf16.msra.mxu0 %v3594
        %3633 = vmatprep.subr.bf16.mxu0 0
        %3634 = vmatpush1.bf16.msra.mxu0 %v3593
        %3635 = vmatprep.subr.bf16.mxu0 0
        %3636 = vmatpush1.bf16.msra.mxu0 %v3592
        %3637 = vmatprep.subr.bf16.mxu0 0
        %3638 = vmatpush1.bf16.msra.mxu0 %v3591
        %3639 = vmatprep.subr.bf16.mxu0 0
        %3640 = vmatpush2.bf16.msra.mxu0 0
        %3641 = vmatprep.subr.bf16.mxu0 0
        %3642 = vmatpush2.bf16.msra.mxu0 0
        %3643 = vmatprep.subr.bf16.mxu0 0
        %3644 = vmatpush2.bf16.msra.mxu0 0
        %3645 = vmatprep.subr.bf16.mxu0 0
        %3646 = vmatpush2.bf16.msra.mxu0 0
        %3647 = vmatprep.subr.bf16.mxu0 0
        %3648 = vmatpush2.bf16.msra.mxu0 0
        %3649 = vmatprep.subr.bf16.mxu0 0
        %3650 = vmatpush2.bf16.msra.mxu0 0
        %3651 = vmatprep.subr.bf16.mxu0 0
        %3652 = vmatpush2.bf16.msra.mxu0 0
        %3653 = vmatprep.subr.bf16.mxu0 0
        %3654 = vmatpush2.bf16.msra.mxu0 0
        %3655 = vmatprep.mubr.bf16.mxu0 0
        %3656 = vmatmul.mubr.bf16.gmra.mxu0 %v3600
        %v3657 = vpop.f32.mrf.mxu0
        %v3658 = vadd.f32 0.0, %v3657
        %v3659 = vpop.f32.mrf.mxu0
        %v3660 = vpop.f32.mrf.mxu0
        %v3661 = vadd.f32 0.0, %v3660
        %v3662 = vpop.f32.mrf.mxu0
        %3663 = vmatprep.mubr.bf16.mxu0 0
        %3664 = vmatmul.mubr.bf16.gmra.mxu0 %v3603
        %v3665 = vpop.f32.mrf.mxu0
        %v3666 = vadd.f32 0.0, %v3665
        %v3667 = vpop.f32.mrf.mxu0
        %v3668 = vpop.f32.mrf.mxu0
        %v3669 = vadd.f32 0.0, %v3668
        %v3670 = vpop.f32.mrf.mxu0
        %3671 = vmatprep.mubr.bf16.mxu0 0
        %3672 = vmatmul.mubr.bf16.gmra.mxu0 %v3606
        %v3673 = vpop.f32.mrf.mxu0
        %v3674 = vadd.f32 0.0, %v3673
        %v3675 = vpop.f32.mrf.mxu0
        %v3676 = vpop.f32.mrf.mxu0
        %v3677 = vadd.f32 0.0, %v3676
        %v3678 = vpop.f32.mrf.mxu0
        %3679 = vmatprep.mubr.bf16.mxu0 0
        %3680 = vmatmul.mubr.bf16.gmra.mxu0 %v3609
        %v3681 = vpop.f32.mrf.mxu0
        %v3682 = vadd.f32 0.0, %v3681
        %v3683 = vpop.f32.mrf.mxu0
        %v3684 = vpop.f32.mrf.mxu0
        %v3685 = vadd.f32 0.0, %v3684
        %v3686 = vpop.f32.mrf.mxu0
        %3687 = vmatprep.mubr.bf16.mxu0 0
        %3688 = vmatmul.mubr.bf16.gmra.mxu0 %v3612
        %v3689 = vpop.f32.mrf.mxu0
        %v3690 = vadd.f32 0.0, %v3689
        %v3691 = vpop.f32.mrf.mxu0
        %v3692 = vpop.f32.mrf.mxu0
        %v3693 = vadd.f32 0.0, %v3692
        %v3694 = vpop.f32.mrf.mxu0
        %3695 = vmatprep.mubr.bf16.mxu0 0
        %3696 = vmatmul.mubr.bf16.gmra.mxu0 %v3615
        %v3697 = vpop.f32.mrf.mxu0
        %v3698 = vadd.f32 0.0, %v3697
        %v3699 = vpop.f32.mrf.mxu0
        %v3700 = vpop.f32.mrf.mxu0
        %v3701 = vadd.f32 0.0, %v3700
        %v3702 = vpop.f32.mrf.mxu0
        %3703 = vmatprep.mubr.bf16.mxu0 0
        %3704 = vmatmul.mubr.bf16.gmra.mxu0 %v3618
        %v3705 = vpop.f32.mrf.mxu0
        %v3706 = vadd.f32 0.0, %v3705
        %v3707 = vpop.f32.mrf.mxu0
        %v3708 = vpop.f32.mrf.mxu0
        %v3709 = vadd.f32 0.0, %v3708
        %v3710 = vpop.f32.mrf.mxu0
        %3711 = vmatprep.mubr.bf16.mxu0 0
        %3712 = vmatmul.mubr.bf16.gmra.mxu0 %v3621
        %v3713 = vpop.f32.mrf.mxu0
        %v3714 = vadd.f32 0.0, %v3713
        %v3715 = vpop.f32.mrf.mxu0
        %v3716 = vpop.f32.mrf.mxu0
        %v3717 = vadd.f32 0.0, %v3716
        %v3718 = vpop.f32.mrf.mxu0
        %3719 = vdwg.mxu0
        %v3720 = vadd.f32 %v3405, %v3658
        %v3721 = vadd.f32 %v3406, %v3661
        %v3722 = vadd.f32 %v3407, %v3666
        %v3723 = vadd.f32 %v3408, %v3669
        %v3724 = vadd.f32 %v3409, %v3674
        %v3725 = vadd.f32 %v3410, %v3677
        %v3726 = vadd.f32 %v3411, %v3682
        %v3727 = vadd.f32 %v3412, %v3685
        %v3728 = vadd.f32 %v3413, %v3690
        %v3729 = vadd.f32 %v3414, %v3693
        %v3730 = vadd.f32 %v3415, %v3698
        %v3731 = vadd.f32 %v3416, %v3701
        %v3732 = vadd.f32 %v3417, %v3706
        %v3733 = vadd.f32 %v3418, %v3709
        %v3734 = vadd.f32 %v3419, %v3714
        %v3735 = vadd.f32 %v3420, %v3717
        %v3736 = vld [vmem:[#allocation2 + $0x10] sm:$0x8]
        %v3737 = vld [vmem:[#allocation2 + $0x14] sm:$0xf]
        %v3738 = vld [vmem:[#allocation2 + $0x18] sm:$0xf]
        %v3739 = vld [vmem:[#allocation2 + $0x1c] sm:$0xf]
        %v3740 = vld [vmem:[#allocation2 + $0x20] sm:$0xf]
        %v3741 = vld [vmem:[#allocation2 + $0x24] sm:$0xf]
        %v3742 = vld [vmem:[#allocation2 + $0x28] sm:$0xf]
        %v3743 = vld [vmem:[#allocation2 + $0x2c] sm:$0xf]
        %v3744 = vld [vmem:[#allocation2 + $0x30] sm:$0xf]
        %v3745 = vld [vmem:[#allocation2 + $0x34] sm:$0xf]
        %v3746 = vld [vmem:[#allocation2 + $0x38] sm:$0xf]
        %v3747 = vld [vmem:[#allocation2 + $0x3c] sm:$0xf]
        %v3748 = vld [vmem:[#allocation2 + $0x40] sm:$0xf]
        %v3749 = vld [vmem:[#allocation2 + $0x44] sm:$0xf]
        %v3750 = vld [vmem:[#allocation2 + $0x48] sm:$0xf]
        %v3751 = vld [vmem:[#allocation2 + $0x4c] sm:$0xf]
        %v3752 = vld [vmem:[#allocation2 + $0x50] sm:$0xf]
        %v3753 = vmul.bf16 %v3736, %v1624
        %v3754 = vmul.bf16 %v3737, %v1634
        %v3755 = vmul.bf16 %v3738, %v1644
        %v3756 = vmul.bf16 %v3739, %v1654
        %v3757 = vmul.bf16 %v3740, %v1664
        %v3758 = vmul.bf16 %v3741, %v1674
        %v3759 = vmul.bf16 %v3742, %v1684
        %v3760 = vmul.bf16 %v3743, %v1694
        %v3761 = vmul.bf16 %v3744, %v1704
        %v3762 = vmul.bf16 %v3745, %v1714
        %v3763 = vmul.bf16 %v3746, %v1724
        %v3764 = vmul.bf16 %v3747, %v1734
        %v3765 = vmul.bf16 %v3748, %v1744
        %v3766 = vmul.bf16 %v3749, %v1754
        %v3767 = vmul.bf16 %v3750, %v1764
        %v3768 = vmul.bf16 %v3751, %v1774
        %v3769 = vmul.bf16 %v3752, %v1779
        %s3770 = scalar_lea.vmem %s291, 192
        %v3771 = vld [vmem:[%s3770] sm:$0xf]
        %v3772 = vld [vmem:[%s3770 + $0x4] sm:$0xf]
        %v3773 = vld [vmem:[%s3770 + $0x8] sm:$0xf]
        %v3774 = vld [vmem:[%s3770 + $0xc] sm:$0xf]
        %v3775 = vld [vmem:[%s3770 + $0x10] sm:$0xf]
        %v3776 = vld [vmem:[%s3770 + $0x14] sm:$0xf]
        %v3777 = vld [vmem:[%s3770 + $0x18] sm:$0xf]
        %v3778 = vld [vmem:[%s3770 + $0x1c] sm:$0xf]
        %v3796 = vunpack.c.l.b16 %v3753
        %v3797 = vunpack.c.l.b16 %v3754
        %v3798 = vunpack.c.l.b16 %v3755
        %v3799 = vunpack.c.l.b16 %v3756
        %v3800 = vunpack.c.l.b16 %v3757
        %v3801 = vunpack.c.l.b16 %v3758
        %v3802 = vunpack.c.l.b16 %v3759
        %v3803 = vunpack.c.l.b16 %v3760
        %v3804 = vunpack.c.l.b16 %v3761
        %v3805 = vunpack.c.l.b16 %v3762
        %v3806 = vunpack.c.l.b16 %v3763
        %v3807 = vunpack.c.l.b16 %v3764
        %v3808 = vunpack.c.l.b16 %v3765
        %v3809 = vunpack.c.l.b16 %v3766
        %v3810 = vunpack.c.l.b16 %v3767
        %v3811 = vunpack.c.l.b16 %v3768
        %v3812 = vunpack.c.l.b16 %v3769
        %v3813 = vpack.c.b16 %v3797, %v3796
        %v3814 = vpack.c.b16 %v3799, %v3798
        %v3815 = vpack.c.b16 %v3801, %v3800
        %v3816 = vpack.c.b16 %v3803, %v3802
        %v3817 = vpack.c.b16 %v3805, %v3804
        %v3818 = vpack.c.b16 %v3807, %v3806
        %v3819 = vpack.c.b16 %v3809, %v3808
        %v3820 = vpack.c.b16 %v3811, %v3810
        %v3821 = vpack.c.b16 %v3812, %v3812
        %v3823 = vshrl.u32 %v3813, 16
        %v3825 = vrot.slane %v3823, 3
        %v3826 = vshll.u32 %v3813, 16
        %v3828 = vrot.slane %v3826, 4
        %v3829 = vor.u32 %v3825, %v3828
        %v3831 = vshrl.u32 %v3814, 16
        %v3833 = vrot.slane %v3831, 3
        %v3834 = vshll.u32 %v3814, 16
        %v3836 = vrot.slane %v3834, 4
        %v3837 = vor.u32 %v3833, %v3836
        %v3838 = vsel %vm2059, %v3829, %v3837
        %v3840 = vshrl.u32 %v3815, 16
        %v3842 = vrot.slane %v3840, 3
        %v3843 = vshll.u32 %v3815, 16
        %v3845 = vrot.slane %v3843, 4
        %v3846 = vor.u32 %v3842, %v3845
        %v3847 = vsel %vm2059, %v3837, %v3846
        %v3849 = vshrl.u32 %v3816, 16
        %v3851 = vrot.slane %v3849, 3
        %v3852 = vshll.u32 %v3816, 16
        %v3854 = vrot.slane %v3852, 4
        %v3855 = vor.u32 %v3851, %v3854
        %v3856 = vsel %vm2059, %v3846, %v3855
        %v3858 = vshrl.u32 %v3817, 16
        %v3860 = vrot.slane %v3858, 3
        %v3861 = vshll.u32 %v3817, 16
        %v3863 = vrot.slane %v3861, 4
        %v3864 = vor.u32 %v3860, %v3863
        %v3865 = vsel %vm2059, %v3855, %v3864
        %v3867 = vshrl.u32 %v3818, 16
        %v3869 = vrot.slane %v3867, 3
        %v3870 = vshll.u32 %v3818, 16
        %v3872 = vrot.slane %v3870, 4
        %v3873 = vor.u32 %v3869, %v3872
        %v3874 = vsel %vm2059, %v3864, %v3873
        %v3876 = vshrl.u32 %v3819, 16
        %v3878 = vrot.slane %v3876, 3
        %v3879 = vshll.u32 %v3819, 16
        %v3881 = vrot.slane %v3879, 4
        %v3882 = vor.u32 %v3878, %v3881
        %v3883 = vsel %vm2059, %v3873, %v3882
        %v3885 = vshrl.u32 %v3820, 16
        %v3887 = vrot.slane %v3885, 3
        %v3888 = vshll.u32 %v3820, 16
        %v3890 = vrot.slane %v3888, 4
        %v3891 = vor.u32 %v3887, %v3890
        %v3892 = vsel %vm2059, %v3882, %v3891
        %v3894 = vshrl.u32 %v3821, 16
        %v3896 = vrot.slane %v3894, 3
        %v3897 = vshll.u32 %v3821, 16
        %v3899 = vrot.slane %v3897, 4
        %v3900 = vor.u32 %v3896, %v3899
        %v3901 = vsel %vm2059, %v3891, %v3900
        %v3910 = vunpack.c.l.b16 %v3771
        %v3911 = vunpack.c.l.b16 %v3772
        %v3912 = vunpack.c.l.b16 %v3773
        %v3913 = vunpack.c.l.b16 %v3774
        %v3914 = vunpack.c.l.b16 %v3775
        %v3915 = vunpack.c.l.b16 %v3776
        %v3916 = vunpack.c.l.b16 %v3777
        %v3917 = vunpack.c.l.b16 %v3778
        %v3918 = vpack.c.b16 %v3911, %v3910
        %v3919 = vpack.c.b16 %v3913, %v3912
        %v3920 = vpack.c.b16 %v3915, %v3914
        %v3921 = vpack.c.b16 %v3917, %v3916
        %v3927 = vsel %vm319, %v3838, 0
        %v3930 = vsel %vm319, %v3847, 0
        %v3933 = vsel %vm319, %v3856, 0
        %v3936 = vsel %vm319, %v3865, 0
        %v3939 = vsel %vm319, %v3874, 0
        %v3942 = vsel %vm319, %v3883, 0
        %v3945 = vsel %vm319, %v3892, 0
        %v3948 = vsel %vm319, %v3901, 0
        %3950 = vmatprep.subr.bf16.mxu0 0
        %3951 = vmatpush1.bf16.msra.mxu0 0
        %3952 = vmatprep.subr.bf16.mxu0 0
        %3953 = vmatpush1.bf16.msra.mxu0 0
        %3954 = vmatprep.subr.bf16.mxu0 0
        %3955 = vmatpush1.bf16.msra.mxu0 0
        %3956 = vmatprep.subr.bf16.mxu0 0
        %3957 = vmatpush1.bf16.msra.mxu0 0
        %3958 = vmatprep.subr.bf16.mxu0 0
        %3959 = vmatpush1.bf16.msra.mxu0 %v3921
        %3960 = vmatprep.subr.bf16.mxu0 0
        %3961 = vmatpush1.bf16.msra.mxu0 %v3920
        %3962 = vmatprep.subr.bf16.mxu0 0
        %3963 = vmatpush1.bf16.msra.mxu0 %v3919
        %3964 = vmatprep.subr.bf16.mxu0 0
        %3965 = vmatpush1.bf16.msra.mxu0 %v3918
        %3966 = vmatprep.subr.bf16.mxu0 0
        %3967 = vmatpush2.bf16.msra.mxu0 0
        %3968 = vmatprep.subr.bf16.mxu0 0
        %3969 = vmatpush2.bf16.msra.mxu0 0
        %3970 = vmatprep.subr.bf16.mxu0 0
        %3971 = vmatpush2.bf16.msra.mxu0 0
        %3972 = vmatprep.subr.bf16.mxu0 0
        %3973 = vmatpush2.bf16.msra.mxu0 0
        %3974 = vmatprep.subr.bf16.mxu0 0
        %3975 = vmatpush2.bf16.msra.mxu0 0
        %3976 = vmatprep.subr.bf16.mxu0 0
        %3977 = vmatpush2.bf16.msra.mxu0 0
        %3978 = vmatprep.subr.bf16.mxu0 0
        %3979 = vmatpush2.bf16.msra.mxu0 0
        %3980 = vmatprep.subr.bf16.mxu0 0
        %3981 = vmatpush2.bf16.msra.mxu0 0
        %3982 = vmatprep.mubr.bf16.mxu0 0
        %3983 = vmatmul.mubr.bf16.gmra.mxu0 %v3927
        %v3984 = vpop.f32.mrf.mxu0
        %v3985 = vadd.f32 0.0, %v3984
        %v3986 = vpop.f32.mrf.mxu0
        %v3987 = vpop.f32.mrf.mxu0
        %v3988 = vadd.f32 0.0, %v3987
        %v3989 = vpop.f32.mrf.mxu0
        %3990 = vmatprep.mubr.bf16.mxu0 0
        %3991 = vmatmul.mubr.bf16.gmra.mxu0 %v3930
        %v3992 = vpop.f32.mrf.mxu0
        %v3993 = vadd.f32 0.0, %v3992
        %v3994 = vpop.f32.mrf.mxu0
        %v3995 = vpop.f32.mrf.mxu0
        %v3996 = vadd.f32 0.0, %v3995
        %v3997 = vpop.f32.mrf.mxu0
        %3998 = vmatprep.mubr.bf16.mxu0 0
        %3999 = vmatmul.mubr.bf16.gmra.mxu0 %v3933
        %v4000 = vpop.f32.mrf.mxu0
        %v4001 = vadd.f32 0.0, %v4000
        %v4002 = vpop.f32.mrf.mxu0
        %v4003 = vpop.f32.mrf.mxu0
        %v4004 = vadd.f32 0.0, %v4003
        %v4005 = vpop.f32.mrf.mxu0
        %4006 = vmatprep.mubr.bf16.mxu0 0
        %4007 = vmatmul.mubr.bf16.gmra.mxu0 %v3936
        %v4008 = vpop.f32.mrf.mxu0
        %v4009 = vadd.f32 0.0, %v4008
        %v4010 = vpop.f32.mrf.mxu0
        %v4011 = vpop.f32.mrf.mxu0
        %v4012 = vadd.f32 0.0, %v4011
        %v4013 = vpop.f32.mrf.mxu0
        %4014 = vmatprep.mubr.bf16.mxu0 0
        %4015 = vmatmul.mubr.bf16.gmra.mxu0 %v3939
        %v4016 = vpop.f32.mrf.mxu0
        %v4017 = vadd.f32 0.0, %v4016
        %v4018 = vpop.f32.mrf.mxu0
        %v4019 = vpop.f32.mrf.mxu0
        %v4020 = vadd.f32 0.0, %v4019
        %v4021 = vpop.f32.mrf.mxu0
        %4022 = vmatprep.mubr.bf16.mxu0 0
        %4023 = vmatmul.mubr.bf16.gmra.mxu0 %v3942
        %v4024 = vpop.f32.mrf.mxu0
        %v4025 = vadd.f32 0.0, %v4024
        %v4026 = vpop.f32.mrf.mxu0
        %v4027 = vpop.f32.mrf.mxu0
        %v4028 = vadd.f32 0.0, %v4027
        %v4029 = vpop.f32.mrf.mxu0
        %4030 = vmatprep.mubr.bf16.mxu0 0
        %4031 = vmatmul.mubr.bf16.gmra.mxu0 %v3945
        %v4032 = vpop.f32.mrf.mxu0
        %v4033 = vadd.f32 0.0, %v4032
        %v4034 = vpop.f32.mrf.mxu0
        %v4035 = vpop.f32.mrf.mxu0
        %v4036 = vadd.f32 0.0, %v4035
        %v4037 = vpop.f32.mrf.mxu0
        %4038 = vmatprep.mubr.bf16.mxu0 0
        %4039 = vmatmul.mubr.bf16.gmra.mxu0 %v3948
        %v4040 = vpop.f32.mrf.mxu0
        %v4041 = vadd.f32 0.0, %v4040
        %v4042 = vpop.f32.mrf.mxu0
        %v4043 = vpop.f32.mrf.mxu0
        %v4044 = vadd.f32 0.0, %v4043
        %v4045 = vpop.f32.mrf.mxu0
        %4046 = vdwg.mxu0
        %v4047 = vadd.f32 %v3720, %v3985
        %v4048 = vadd.f32 %v3721, %v3988
        %v4049 = vadd.f32 %v3722, %v3993
        %v4050 = vadd.f32 %v3723, %v3996
        %v4051 = vadd.f32 %v3724, %v4001
        %v4052 = vadd.f32 %v3725, %v4004
        %v4053 = vadd.f32 %v3726, %v4009
        %v4054 = vadd.f32 %v3727, %v4012
        %v4055 = vadd.f32 %v3728, %v4017
        %v4056 = vadd.f32 %v3729, %v4020
        %v4057 = vadd.f32 %v3730, %v4025
        %v4058 = vadd.f32 %v3731, %v4028
        %v4059 = vadd.f32 %v3732, %v4033
        %v4060 = vadd.f32 %v3733, %v4036
        %v4061 = vadd.f32 %v3734, %v4041
        %v4062 = vadd.f32 %v3735, %v4044
        %s4063 = scalar_lea.vmem %s291, 224
        %v4064 = vld [vmem:[%s4063] sm:$0xf]
        %v4065 = vld [vmem:[%s4063 + $0x4] sm:$0xf]
        %v4066 = vld [vmem:[%s4063 + $0x8] sm:$0xf]
        %v4067 = vld [vmem:[%s4063 + $0xc] sm:$0xf]
        %v4068 = vld [vmem:[%s4063 + $0x10] sm:$0xf]
        %v4069 = vld [vmem:[%s4063 + $0x14] sm:$0xf]
        %v4070 = vld [vmem:[%s4063 + $0x18] sm:$0xf]
        %v4071 = vld [vmem:[%s4063 + $0x1c] sm:$0xf]
        %v4088 = vunpack.c.l.b16 %v3737
        %v4089 = vunpack.c.l.b16 %v3738
        %v4090 = vunpack.c.l.b16 %v3739
        %v4091 = vunpack.c.l.b16 %v3740
        %v4092 = vunpack.c.l.b16 %v3741
        %v4093 = vunpack.c.l.b16 %v3742
        %v4094 = vunpack.c.l.b16 %v3743
        %v4095 = vunpack.c.l.b16 %v3744
        %v4096 = vunpack.c.l.b16 %v3745
        %v4097 = vunpack.c.l.b16 %v3746
        %v4098 = vunpack.c.l.b16 %v3747
        %v4099 = vunpack.c.l.b16 %v3748
        %v4100 = vunpack.c.l.b16 %v3749
        %v4101 = vunpack.c.l.b16 %v3750
        %v4102 = vunpack.c.l.b16 %v3751
        %v4103 = vunpack.c.l.b16 %v3752
        %v4104 = vpack.c.b16 %v4089, %v4088
        %v4105 = vpack.c.b16 %v4091, %v4090
        %v4106 = vpack.c.b16 %v4093, %v4092
        %v4107 = vpack.c.b16 %v4095, %v4094
        %v4108 = vpack.c.b16 %v4097, %v4096
        %v4109 = vpack.c.b16 %v4099, %v4098
        %v4110 = vpack.c.b16 %v4101, %v4100
        %v4111 = vpack.c.b16 %v4103, %v4102
        %v4120 = vunpack.c.l.b16 %v4064
        %v4121 = vunpack.c.l.b16 %v4065
        %v4122 = vunpack.c.l.b16 %v4066
        %v4123 = vunpack.c.l.b16 %v4067
        %v4124 = vunpack.c.l.b16 %v4068
        %v4125 = vunpack.c.l.b16 %v4069
        %v4126 = vunpack.c.l.b16 %v4070
        %v4127 = vunpack.c.l.b16 %v4071
        %v4128 = vpack.c.b16 %v4121, %v4120
        %v4129 = vpack.c.b16 %v4123, %v4122
        %v4130 = vpack.c.b16 %v4125, %v4124
        %v4131 = vpack.c.b16 %v4127, %v4126
        %v4137 = vsel %vm319, %v4104, 0
        %v4140 = vsel %vm319, %v4105, 0
        %v4143 = vsel %vm319, %v4106, 0
        %v4146 = vsel %vm319, %v4107, 0
        %v4149 = vsel %vm319, %v4108, 0
        %v4152 = vsel %vm319, %v4109, 0
        %v4155 = vsel %vm319, %v4110, 0
        %v4158 = vsel %vm319, %v4111, 0
        %4160 = vmatprep.subr.bf16.mxu0 0
        %4161 = vmatpush1.bf16.msra.mxu0 0
        %4162 = vmatprep.subr.bf16.mxu0 0
        %4163 = vmatpush1.bf16.msra.mxu0 0
        %4164 = vmatprep.subr.bf16.mxu0 0
        %4165 = vmatpush1.bf16.msra.mxu0 0
        %4166 = vmatprep.subr.bf16.mxu0 0
        %4167 = vmatpush1.bf16.msra.mxu0 0
        %4168 = vmatprep.subr.bf16.mxu0 0
        %4169 = vmatpush1.bf16.msra.mxu0 %v4131
        %4170 = vmatprep.subr.bf16.mxu0 0
        %4171 = vmatpush1.bf16.msra.mxu0 %v4130
        %4172 = vmatprep.subr.bf16.mxu0 0
        %4173 = vmatpush1.bf16.msra.mxu0 %v4129
        %4174 = vmatprep.subr.bf16.mxu0 0
        %4175 = vmatpush1.bf16.msra.mxu0 %v4128
        %4176 = vmatprep.subr.bf16.mxu0 0
        %4177 = vmatpush2.bf16.msra.mxu0 0
        %4178 = vmatprep.subr.bf16.mxu0 0
        %4179 = vmatpush2.bf16.msra.mxu0 0
        %4180 = vmatprep.subr.bf16.mxu0 0
        %4181 = vmatpush2.bf16.msra.mxu0 0
        %4182 = vmatprep.subr.bf16.mxu0 0
        %4183 = vmatpush2.bf16.msra.mxu0 0
        %4184 = vmatprep.subr.bf16.mxu0 0
        %4185 = vmatpush2.bf16.msra.mxu0 0
        %4186 = vmatprep.subr.bf16.mxu0 0
        %4187 = vmatpush2.bf16.msra.mxu0 0
        %4188 = vmatprep.subr.bf16.mxu0 0
        %4189 = vmatpush2.bf16.msra.mxu0 0
        %4190 = vmatprep.subr.bf16.mxu0 0
        %4191 = vmatpush2.bf16.msra.mxu0 0
        %4192 = vmatprep.mubr.bf16.mxu0 0
        %4193 = vmatmul.mubr.bf16.gmra.mxu0 %v4137
        %v4194 = vpop.f32.mrf.mxu0
        %v4195 = vadd.f32 0.0, %v4194
        %v4196 = vpop.f32.mrf.mxu0
        %v4197 = vpop.f32.mrf.mxu0
        %v4198 = vadd.f32 0.0, %v4197
        %v4199 = vpop.f32.mrf.mxu0
        %4200 = vmatprep.mubr.bf16.mxu0 0
        %4201 = vmatmul.mubr.bf16.gmra.mxu0 %v4140
        %v4202 = vpop.f32.mrf.mxu0
        %v4203 = vadd.f32 0.0, %v4202
        %v4204 = vpop.f32.mrf.mxu0
        %v4205 = vpop.f32.mrf.mxu0
        %v4206 = vadd.f32 0.0, %v4205
        %v4207 = vpop.f32.mrf.mxu0
        %4208 = vmatprep.mubr.bf16.mxu0 0
        %4209 = vmatmul.mubr.bf16.gmra.mxu0 %v4143
        %v4210 = vpop.f32.mrf.mxu0
        %v4211 = vadd.f32 0.0, %v4210
        %v4212 = vpop.f32.mrf.mxu0
        %v4213 = vpop.f32.mrf.mxu0
        %v4214 = vadd.f32 0.0, %v4213
        %v4215 = vpop.f32.mrf.mxu0
        %4216 = vmatprep.mubr.bf16.mxu0 0
        %4217 = vmatmul.mubr.bf16.gmra.mxu0 %v4146
        %v4218 = vpop.f32.mrf.mxu0
        %v4219 = vadd.f32 0.0, %v4218
        %v4220 = vpop.f32.mrf.mxu0
        %v4221 = vpop.f32.mrf.mxu0
        %v4222 = vadd.f32 0.0, %v4221
        %v4223 = vpop.f32.mrf.mxu0
        %4224 = vmatprep.mubr.bf16.mxu0 0
        %4225 = vmatmul.mubr.bf16.gmra.mxu0 %v4149
        %v4226 = vpop.f32.mrf.mxu0
        %v4227 = vadd.f32 0.0, %v4226
        %v4228 = vpop.f32.mrf.mxu0
        %v4229 = vpop.f32.mrf.mxu0
        %v4230 = vadd.f32 0.0, %v4229
        %v4231 = vpop.f32.mrf.mxu0
        %4232 = vmatprep.mubr.bf16.mxu0 0
        %4233 = vmatmul.mubr.bf16.gmra.mxu0 %v4152
        %v4234 = vpop.f32.mrf.mxu0
        %v4235 = vadd.f32 0.0, %v4234
        %v4236 = vpop.f32.mrf.mxu0
        %v4237 = vpop.f32.mrf.mxu0
        %v4238 = vadd.f32 0.0, %v4237
        %v4239 = vpop.f32.mrf.mxu0
        %4240 = vmatprep.mubr.bf16.mxu0 0
        %4241 = vmatmul.mubr.bf16.gmra.mxu0 %v4155
        %v4242 = vpop.f32.mrf.mxu0
        %v4243 = vadd.f32 0.0, %v4242
        %v4244 = vpop.f32.mrf.mxu0
        %v4245 = vpop.f32.mrf.mxu0
        %v4246 = vadd.f32 0.0, %v4245
        %v4247 = vpop.f32.mrf.mxu0
        %4248 = vmatprep.mubr.bf16.mxu0 0
        %4249 = vmatmul.mubr.bf16.gmra.mxu0 %v4158
        %v4250 = vpop.f32.mrf.mxu0
        %v4251 = vadd.f32 0.0, %v4250
        %v4252 = vpop.f32.mrf.mxu0
        %v4253 = vpop.f32.mrf.mxu0
        %v4254 = vadd.f32 0.0, %v4253
        %v4255 = vpop.f32.mrf.mxu0
        %4256 = vdwg.mxu0
        %v4257 = vadd.f32 %v4047, %v4195
        %v4258 = vadd.f32 %v4048, %v4198
        %v4259 = vadd.f32 %v4049, %v4203
        %v4260 = vadd.f32 %v4050, %v4206
        %v4261 = vadd.f32 %v4051, %v4211
        %v4262 = vadd.f32 %v4052, %v4214
        %v4263 = vadd.f32 %v4053, %v4219
        %v4264 = vadd.f32 %v4054, %v4222
        %v4265 = vadd.f32 %v4055, %v4227
        %v4266 = vadd.f32 %v4056, %v4230
        %v4267 = vadd.f32 %v4057, %v4235
        %v4268 = vadd.f32 %v4058, %v4238
        %v4269 = vadd.f32 %v4059, %v4243
        %v4270 = vadd.f32 %v4060, %v4246
        %v4271 = vadd.f32 %v4061, %v4251
        %v4272 = vadd.f32 %v4062, %v4254
        %v4273 = vld [vmem:[#allocation2 + $0x14] sm:$0xf]
        %v4274 = vld [vmem:[#allocation2 + $0x18] sm:$0xf]
        %v4275 = vld [vmem:[#allocation2 + $0x1c] sm:$0xf]
        %v4276 = vld [vmem:[#allocation2 + $0x20] sm:$0xf]
        %v4277 = vld [vmem:[#allocation2 + $0x24] sm:$0xf]
        %v4278 = vld [vmem:[#allocation2 + $0x28] sm:$0xf]
        %v4279 = vld [vmem:[#allocation2 + $0x2c] sm:$0xf]
        %v4280 = vld [vmem:[#allocation2 + $0x30] sm:$0xf]
        %v4281 = vld [vmem:[#allocation2 + $0x34] sm:$0xf]
        %v4282 = vld [vmem:[#allocation2 + $0x38] sm:$0xf]
        %v4283 = vld [vmem:[#allocation2 + $0x3c] sm:$0xf]
        %v4284 = vld [vmem:[#allocation2 + $0x40] sm:$0xf]
        %v4285 = vld [vmem:[#allocation2 + $0x44] sm:$0xf]
        %v4286 = vld [vmem:[#allocation2 + $0x48] sm:$0xf]
        %v4287 = vld [vmem:[#allocation2 + $0x4c] sm:$0xf]
        %v4288 = vld [vmem:[#allocation2 + $0x50] sm:$0xf]
        %v4289 = vld [vmem:[#allocation2 + $0x54] sm:$0x1]
        %v4290 = vmul.bf16 %v4273, %v2431
        %v4291 = vmul.bf16 %v4274, %v2440
        %v4292 = vmul.bf16 %v4275, %v2449
        %v4293 = vmul.bf16 %v4276, %v2458
        %v4294 = vmul.bf16 %v4277, %v2467
        %v4295 = vmul.bf16 %v4278, %v2476
        %v4296 = vmul.bf16 %v4279, %v2485
        %v4297 = vmul.bf16 %v4280, %v2494
        %v4298 = vmul.bf16 %v4281, %v2503
        %v4299 = vmul.bf16 %v4282, %v2512
        %v4300 = vmul.bf16 %v4283, %v2521
        %v4301 = vmul.bf16 %v4284, %v2530
        %v4302 = vmul.bf16 %v4285, %v2539
        %v4303 = vmul.bf16 %v4286, %v2548
        %v4304 = vmul.bf16 %v4287, %v2557
        %v4305 = vmul.bf16 %v4288, %v2566
        %v4306 = vmul.bf16 %v4289, %v2567
        %s4307 = scalar_lea.vmem %s291, 256
        %v4308 = vld [vmem:[%s4307] sm:$0xf]
        %v4309 = vld [vmem:[%s4307 + $0x4] sm:$0xf]
        %v4310 = vld [vmem:[%s4307 + $0x8] sm:$0xf]
        %v4311 = vld [vmem:[%s4307 + $0xc] sm:$0xf]
        %v4312 = vld [vmem:[%s4307 + $0x10] sm:$0xf]
        %v4313 = vld [vmem:[%s4307 + $0x14] sm:$0xf]
        %v4314 = vld [vmem:[%s4307 + $0x18] sm:$0xf]
        %v4315 = vld [vmem:[%s4307 + $0x1c] sm:$0xf]
        %v4333 = vunpack.c.l.b16 %v4290
        %v4334 = vunpack.c.l.b16 %v4291
        %v4335 = vunpack.c.l.b16 %v4292
        %v4336 = vunpack.c.l.b16 %v4293
        %v4337 = vunpack.c.l.b16 %v4294
        %v4338 = vunpack.c.l.b16 %v4295
        %v4339 = vunpack.c.l.b16 %v4296
        %v4340 = vunpack.c.l.b16 %v4297
        %v4341 = vunpack.c.l.b16 %v4298
        %v4342 = vunpack.c.l.b16 %v4299
        %v4343 = vunpack.c.l.b16 %v4300
        %v4344 = vunpack.c.l.b16 %v4301
        %v4345 = vunpack.c.l.b16 %v4302
        %v4346 = vunpack.c.l.b16 %v4303
        %v4347 = vunpack.c.l.b16 %v4304
        %v4348 = vunpack.c.l.b16 %v4305
        %v4349 = vunpack.c.l.b16 %v4306
        %v4350 = vpack.c.b16 %v4334, %v4333
        %v4351 = vpack.c.b16 %v4336, %v4335
        %v4352 = vpack.c.b16 %v4338, %v4337
        %v4353 = vpack.c.b16 %v4340, %v4339
        %v4354 = vpack.c.b16 %v4342, %v4341
        %v4355 = vpack.c.b16 %v4344, %v4343
        %v4356 = vpack.c.b16 %v4346, %v4345
        %v4357 = vpack.c.b16 %v4348, %v4347
        %v4358 = vpack.c.b16 %v4349, %v4349
        %v4360 = vshrl.u32 %v4350, 16
        %v4362 = vshll.u32 %v4350, 16
        %v4364 = vrot.slane %v4362, 1
        %v4365 = vor.u32 %v4360, %v4364
        %v4367 = vshll.u32 %v4351, 16
        %v4369 = vrot.slane %v4367, 1
        %v4370 = vsel %vm2654, %v4365, %v4369
        %v4371 = vshrl.u32 %v4351, 16
        %v4373 = vor.u32 %v4371, %v4369
        %v4375 = vshll.u32 %v4352, 16
        %v4377 = vrot.slane %v4375, 1
        %v4378 = vsel %vm2654, %v4373, %v4377
        %v4379 = vshrl.u32 %v4352, 16
        %v4381 = vor.u32 %v4379, %v4377
        %v4383 = vshll.u32 %v4353, 16
        %v4385 = vrot.slane %v4383, 1
        %v4386 = vsel %vm2654, %v4381, %v4385
        %v4387 = vshrl.u32 %v4353, 16
        %v4389 = vor.u32 %v4387, %v4385
        %v4391 = vshll.u32 %v4354, 16
        %v4393 = vrot.slane %v4391, 1
        %v4394 = vsel %vm2654, %v4389, %v4393
        %v4395 = vshrl.u32 %v4354, 16
        %v4397 = vor.u32 %v4395, %v4393
        %v4399 = vshll.u32 %v4355, 16
        %v4401 = vrot.slane %v4399, 1
        %v4402 = vsel %vm2654, %v4397, %v4401
        %v4403 = vshrl.u32 %v4355, 16
        %v4405 = vor.u32 %v4403, %v4401
        %v4407 = vshll.u32 %v4356, 16
        %v4409 = vrot.slane %v4407, 1
        %v4410 = vsel %vm2654, %v4405, %v4409
        %v4411 = vshrl.u32 %v4356, 16
        %v4413 = vor.u32 %v4411, %v4409
        %v4415 = vshll.u32 %v4357, 16
        %v4417 = vrot.slane %v4415, 1
        %v4418 = vsel %vm2654, %v4413, %v4417
        %v4419 = vshrl.u32 %v4357, 16
        %v4421 = vor.u32 %v4419, %v4417
        %v4423 = vshll.u32 %v4358, 16
        %v4425 = vrot.slane %v4423, 1
        %v4426 = vsel %vm2654, %v4421, %v4425
        %v4435 = vunpack.c.l.b16 %v4308
        %v4436 = vunpack.c.l.b16 %v4309
        %v4437 = vunpack.c.l.b16 %v4310
        %v4438 = vunpack.c.l.b16 %v4311
        %v4439 = vunpack.c.l.b16 %v4312
        %v4440 = vunpack.c.l.b16 %v4313
        %v4441 = vunpack.c.l.b16 %v4314
        %v4442 = vunpack.c.l.b16 %v4315
        %v4443 = vpack.c.b16 %v4436, %v4435
        %v4444 = vpack.c.b16 %v4438, %v4437
        %v4445 = vpack.c.b16 %v4440, %v4439
        %v4446 = vpack.c.b16 %v4442, %v4441
        %v4452 = vsel %vm319, %v4370, 0
        %v4455 = vsel %vm319, %v4378, 0
        %v4458 = vsel %vm319, %v4386, 0
        %v4461 = vsel %vm319, %v4394, 0
        %v4464 = vsel %vm319, %v4402, 0
        %v4467 = vsel %vm319, %v4410, 0
        %v4470 = vsel %vm319, %v4418, 0
        %v4473 = vsel %vm319, %v4426, 0
        %4475 = vmatprep.subr.bf16.mxu0 0
        %4476 = vmatpush1.bf16.msra.mxu0 0
        %4477 = vmatprep.subr.bf16.mxu0 0
        %4478 = vmatpush1.bf16.msra.mxu0 0
        %4479 = vmatprep.subr.bf16.mxu0 0
        %4480 = vmatpush1.bf16.msra.mxu0 0
        %4481 = vmatprep.subr.bf16.mxu0 0
        %4482 = vmatpush1.bf16.msra.mxu0 0
        %4483 = vmatprep.subr.bf16.mxu0 0
        %4484 = vmatpush1.bf16.msra.mxu0 %v4446
        %4485 = vmatprep.subr.bf16.mxu0 0
        %4486 = vmatpush1.bf16.msra.mxu0 %v4445
        %4487 = vmatprep.subr.bf16.mxu0 0
        %4488 = vmatpush1.bf16.msra.mxu0 %v4444
        %4489 = vmatprep.subr.bf16.mxu0 0
        %4490 = vmatpush1.bf16.msra.mxu0 %v4443
        %4491 = vmatprep.subr.bf16.mxu0 0
        %4492 = vmatpush2.bf16.msra.mxu0 0
        %4493 = vmatprep.subr.bf16.mxu0 0
        %4494 = vmatpush2.bf16.msra.mxu0 0
        %4495 = vmatprep.subr.bf16.mxu0 0
        %4496 = vmatpush2.bf16.msra.mxu0 0
        %4497 = vmatprep.subr.bf16.mxu0 0
        %4498 = vmatpush2.bf16.msra.mxu0 0
        %4499 = vmatprep.subr.bf16.mxu0 0
        %4500 = vmatpush2.bf16.msra.mxu0 0
        %4501 = vmatprep.subr.bf16.mxu0 0
        %4502 = vmatpush2.bf16.msra.mxu0 0
        %4503 = vmatprep.subr.bf16.mxu0 0
        %4504 = vmatpush2.bf16.msra.mxu0 0
        %4505 = vmatprep.subr.bf16.mxu0 0
        %4506 = vmatpush2.bf16.msra.mxu0 0
        %4507 = vmatprep.mubr.bf16.mxu0 0
        %4508 = vmatmul.mubr.bf16.gmra.mxu0 %v4452
        %v4509 = vpop.f32.mrf.mxu0
        %v4510 = vadd.f32 0.0, %v4509
        %v4511 = vpop.f32.mrf.mxu0
        %v4512 = vpop.f32.mrf.mxu0
        %v4513 = vadd.f32 0.0, %v4512
        %v4514 = vpop.f32.mrf.mxu0
        %4515 = vmatprep.mubr.bf16.mxu0 0
        %4516 = vmatmul.mubr.bf16.gmra.mxu0 %v4455
        %v4517 = vpop.f32.mrf.mxu0
        %v4518 = vadd.f32 0.0, %v4517
        %v4519 = vpop.f32.mrf.mxu0
        %v4520 = vpop.f32.mrf.mxu0
        %v4521 = vadd.f32 0.0, %v4520
        %v4522 = vpop.f32.mrf.mxu0
        %4523 = vmatprep.mubr.bf16.mxu0 0
        %4524 = vmatmul.mubr.bf16.gmra.mxu0 %v4458
        %v4525 = vpop.f32.mrf.mxu0
        %v4526 = vadd.f32 0.0, %v4525
        %v4527 = vpop.f32.mrf.mxu0
        %v4528 = vpop.f32.mrf.mxu0
        %v4529 = vadd.f32 0.0, %v4528
        %v4530 = vpop.f32.mrf.mxu0
        %4531 = vmatprep.mubr.bf16.mxu0 0
        %4532 = vmatmul.mubr.bf16.gmra.mxu0 %v4461
        %v4533 = vpop.f32.mrf.mxu0
        %v4534 = vadd.f32 0.0, %v4533
        %v4535 = vpop.f32.mrf.mxu0
        %v4536 = vpop.f32.mrf.mxu0
        %v4537 = vadd.f32 0.0, %v4536
        %v4538 = vpop.f32.mrf.mxu0
        %4539 = vmatprep.mubr.bf16.mxu0 0
        %4540 = vmatmul.mubr.bf16.gmra.mxu0 %v4464
        %v4541 = vpop.f32.mrf.mxu0
        %v4542 = vadd.f32 0.0, %v4541
        %v4543 = vpop.f32.mrf.mxu0
        %v4544 = vpop.f32.mrf.mxu0
        %v4545 = vadd.f32 0.0, %v4544
        %v4546 = vpop.f32.mrf.mxu0
        %4547 = vmatprep.mubr.bf16.mxu0 0
        %4548 = vmatmul.mubr.bf16.gmra.mxu0 %v4467
        %v4549 = vpop.f32.mrf.mxu0
        %v4550 = vadd.f32 0.0, %v4549
        %v4551 = vpop.f32.mrf.mxu0
        %v4552 = vpop.f32.mrf.mxu0
        %v4553 = vadd.f32 0.0, %v4552
        %v4554 = vpop.f32.mrf.mxu0
        %4555 = vmatprep.mubr.bf16.mxu0 0
        %4556 = vmatmul.mubr.bf16.gmra.mxu0 %v4470
        %v4557 = vpop.f32.mrf.mxu0
        %v4558 = vadd.f32 0.0, %v4557
        %v4559 = vpop.f32.mrf.mxu0
        %v4560 = vpop.f32.mrf.mxu0
        %v4561 = vadd.f32 0.0, %v4560
        %v4562 = vpop.f32.mrf.mxu0
        %4563 = vmatprep.mubr.bf16.mxu0 0
        %4564 = vmatmul.mubr.bf16.gmra.mxu0 %v4473
        %v4565 = vpop.f32.mrf.mxu0
        %v4566 = vadd.f32 0.0, %v4565
        %v4567 = vpop.f32.mrf.mxu0
        %v4568 = vpop.f32.mrf.mxu0
        %v4569 = vadd.f32 0.0, %v4568
        %v4570 = vpop.f32.mrf.mxu0
        %4571 = vdwg.mxu0
        %v4572 = vadd.f32 %v4257, %v4510
        %v4573 = vadd.f32 %v4258, %v4513
        %v4574 = vadd.f32 %v4259, %v4518
        %v4575 = vadd.f32 %v4260, %v4521
        %v4576 = vadd.f32 %v4261, %v4526
        %v4577 = vadd.f32 %v4262, %v4529
        %v4578 = vadd.f32 %v4263, %v4534
        %v4579 = vadd.f32 %v4264, %v4537
        %v4580 = vadd.f32 %v4265, %v4542
        %v4581 = vadd.f32 %v4266, %v4545
        %v4582 = vadd.f32 %v4267, %v4550
        %v4583 = vadd.f32 %v4268, %v4553
        %v4584 = vadd.f32 %v4269, %v4558
        %v4585 = vadd.f32 %v4270, %v4561
        %v4586 = vadd.f32 %v4271, %v4566
        %v4587 = vadd.f32 %v4272, %v4569
        %v4588 = vld [vmem:[%s294] sm:$0x1]
        %v4590 = vlaneseq
        %v4591 = vshrl.u32 %v4590, 7
        %v4592 = vsub.s32 0, %v4591
        %v4593 = vrot.slane %v4588, %v4592
        %v4595 = vadd.f32 %v4572, %v4593
        %v4596 = vadd.f32 %v4573, %v4593
        %v4597 = vadd.f32 %v4574, %v4593
        %v4598 = vadd.f32 %v4575, %v4593
        %v4599 = vadd.f32 %v4576, %v4593
        %v4600 = vadd.f32 %v4577, %v4593
        %v4601 = vadd.f32 %v4578, %v4593
        %v4602 = vadd.f32 %v4579, %v4593
        %v4603 = vadd.f32 %v4580, %v4593
        %v4604 = vadd.f32 %v4581, %v4593
        %v4605 = vadd.f32 %v4582, %v4593
        %v4606 = vadd.f32 %v4583, %v4593
        %v4607 = vadd.f32 %v4584, %v4593
        %v4608 = vadd.f32 %v4585, %v4593
        %v4609 = vadd.f32 %v4586, %v4593
        %v4610 = vadd.f32 %v4587, %v4593
        %v4611 = vpack.c.bf16 %v4596, %v4595
        %v4612 = vpack.c.bf16 %v4598, %v4597
        %v4613 = vpack.c.bf16 %v4600, %v4599
        %v4614 = vpack.c.bf16 %v4602, %v4601
        %v4615 = vpack.c.bf16 %v4604, %v4603
        %v4616 = vpack.c.bf16 %v4606, %v4605
        %v4617 = vpack.c.bf16 %v4608, %v4607
        %v4618 = vpack.c.bf16 %v4610, %v4609
        %v4627 = vunpack.c.l.b16 %v4611
        %v4628 = vunpack.c.h.b16 %v4611
        %v4629 = vunpack.c.l.b16 %v4612
        %v4630 = vunpack.c.h.b16 %v4612
        %v4631 = vunpack.c.l.b16 %v4613
        %v4632 = vunpack.c.h.b16 %v4613
        %v4633 = vunpack.c.l.b16 %v4614
        %v4634 = vunpack.c.h.b16 %v4614
        %v4635 = vunpack.c.l.b16 %v4615
        %v4636 = vunpack.c.h.b16 %v4615
        %v4637 = vunpack.c.l.b16 %v4616
        %v4638 = vunpack.c.h.b16 %v4616
        %v4639 = vunpack.c.l.b16 %v4617
        %v4640 = vunpack.c.h.b16 %v4617
        %v4641 = vunpack.c.l.b16 %v4618
        %v4642 = vunpack.c.h.b16 %v4618
        %v4643 = vpack.c.b16 %v4627, %v4627
        %v4644 = vpack.c.b16 %v4628, %v4628
        %v4645 = vpack.c.b16 %v4629, %v4629
        %v4646 = vpack.c.b16 %v4630, %v4630
        %v4647 = vpack.c.b16 %v4631, %v4631
        %v4648 = vpack.c.b16 %v4632, %v4632
        %v4649 = vpack.c.b16 %v4633, %v4633
        %v4650 = vpack.c.b16 %v4634, %v4634
        %v4651 = vpack.c.b16 %v4635, %v4635
        %v4652 = vpack.c.b16 %v4636, %v4636
        %v4653 = vpack.c.b16 %v4637, %v4637
        %v4654 = vpack.c.b16 %v4638, %v4638
        %v4655 = vpack.c.b16 %v4639, %v4639
        %v4656 = vpack.c.b16 %v4640, %v4640
        %v4657 = vpack.c.b16 %v4641, %v4641
        %v4658 = vpack.c.b16 %v4642, %v4642
        %4675 = vst [vmem:[%s282] sm:$0xf] %v4643
        %4676 = vst [vmem:[%s282 + $0x4] sm:$0xf] %v4644
        %4677 = vst [vmem:[%s282 + $0x8] sm:$0xf] %v4645
        %4678 = vst [vmem:[%s282 + $0xc] sm:$0xf] %v4646
        %4679 = vst [vmem:[%s282 + $0x10] sm:$0xf] %v4647
        %4680 = vst [vmem:[%s282 + $0x14] sm:$0xf] %v4648
        %4681 = vst [vmem:[%s282 + $0x18] sm:$0xf] %v4649
        %4682 = vst [vmem:[%s282 + $0x1c] sm:$0xf] %v4650
        %4683 = vst [vmem:[%s282 + $0x20] sm:$0xf] %v4651
        %4684 = vst [vmem:[%s282 + $0x24] sm:$0xf] %v4652
        %4685 = vst [vmem:[%s282 + $0x28] sm:$0xf] %v4653
        %4686 = vst [vmem:[%s282 + $0x2c] sm:$0xf] %v4654
        %4687 = vst [vmem:[%s282 + $0x30] sm:$0xf] %v4655
        %4688 = vst [vmem:[%s282 + $0x34] sm:$0xf] %v4656
        %4689 = vst [vmem:[%s282 + $0x38] sm:$0xf] %v4657
        %4690 = vst [vmem:[%s282 + $0x3c] sm:$0xf] %v4658
        %v4691 = vld [vmem:[#allocation2 + $0x40] sm:$0x8]
        %v4692 = vld [vmem:[#allocation2 + $0x44] sm:$0xf]
        %v4693 = vld [vmem:[#allocation2 + $0x48] sm:$0xf]
        %v4694 = vld [vmem:[#allocation2 + $0x4c] sm:$0xf]
        %v4695 = vld [vmem:[#allocation2 + $0x50] sm:$0xf]
        %v4696 = vld [vmem:[#allocation2 + $0x54] sm:$0xf]
        %v4697 = vld [vmem:[#allocation2 + $0x58] sm:$0xf]
        %v4698 = vld [vmem:[#allocation2 + $0x5c] sm:$0xf]
        %v4699 = vld [vmem:[#allocation2 + $0x60] sm:$0xf]
        %v4700 = vld [vmem:[#allocation2 + $0x64] sm:$0xf]
        %v4701 = vld [vmem:[#allocation2 + $0x68] sm:$0xf]
        %v4702 = vld [vmem:[#allocation2 + $0x6c] sm:$0xf]
        %v4703 = vld [vmem:[#allocation2 + $0x70] sm:$0xf]
        %v4704 = vld [vmem:[#allocation2 + $0x74] sm:$0xf]
        %v4705 = vld [vmem:[#allocation2 + $0x78] sm:$0xf]
        %v4706 = vld [vmem:[#allocation2 + $0x7c] sm:$0xf]
        %v4707 = vld [vmem:[#allocation2 + $0x80] sm:$0xf]
        %v4708 = vmul.bf16 %v4691, %v1624
        %v4709 = vmul.bf16 %v4692, %v1634
        %v4710 = vmul.bf16 %v4693, %v1644
        %v4711 = vmul.bf16 %v4694, %v1654
        %v4712 = vmul.bf16 %v4695, %v1664
        %v4713 = vmul.bf16 %v4696, %v1674
        %v4714 = vmul.bf16 %v4697, %v1684
        %v4715 = vmul.bf16 %v4698, %v1694
        %v4716 = vmul.bf16 %v4699, %v1704
        %v4717 = vmul.bf16 %v4700, %v1714
        %v4718 = vmul.bf16 %v4701, %v1724
        %v4719 = vmul.bf16 %v4702, %v1734
        %v4720 = vmul.bf16 %v4703, %v1744
        %v4721 = vmul.bf16 %v4704, %v1754
        %v4722 = vmul.bf16 %v4705, %v1764
        %v4723 = vmul.bf16 %v4706, %v1774
        %v4724 = vmul.bf16 %v4707, %v1779
        %v4725 = vld [vmem:[%s291] sm:$0xf]
        %v4726 = vld [vmem:[%s291 + $0x4] sm:$0xf]
        %v4727 = vld [vmem:[%s291 + $0x8] sm:$0xf]
        %v4728 = vld [vmem:[%s291 + $0xc] sm:$0xf]
        %v4729 = vld [vmem:[%s291 + $0x10] sm:$0xf]
        %v4730 = vld [vmem:[%s291 + $0x14] sm:$0xf]
        %v4731 = vld [vmem:[%s291 + $0x18] sm:$0xf]
        %v4732 = vld [vmem:[%s291 + $0x1c] sm:$0xf]
        %v4733 = vld [vmem:[%s1822] sm:$0xf]
        %v4734 = vld [vmem:[%s1822 + $0x4] sm:$0xf]
        %v4735 = vld [vmem:[%s1822 + $0x8] sm:$0xf]
        %v4736 = vld [vmem:[%s1822 + $0xc] sm:$0xf]
        %v4737 = vld [vmem:[%s1822 + $0x10] sm:$0xf]
        %v4738 = vld [vmem:[%s1822 + $0x14] sm:$0xf]
        %v4739 = vld [vmem:[%s1822 + $0x18] sm:$0xf]
        %v4740 = vld [vmem:[%s1822 + $0x1c] sm:$0xf]
        %v4757 = vunpack.c.l.b16 %v4692
        %v4758 = vunpack.c.l.b16 %v4693
        %v4759 = vunpack.c.l.b16 %v4694
        %v4760 = vunpack.c.l.b16 %v4695
        %v4761 = vunpack.c.l.b16 %v4696
        %v4762 = vunpack.c.l.b16 %v4697
        %v4763 = vunpack.c.l.b16 %v4698
        %v4764 = vunpack.c.l.b16 %v4699
        %v4765 = vunpack.c.l.b16 %v4700
        %v4766 = vunpack.c.l.b16 %v4701
        %v4767 = vunpack.c.l.b16 %v4702
        %v4768 = vunpack.c.l.b16 %v4703
        %v4769 = vunpack.c.l.b16 %v4704
        %v4770 = vunpack.c.l.b16 %v4705
        %v4771 = vunpack.c.l.b16 %v4706
        %v4772 = vunpack.c.l.b16 %v4707
        %v4773 = vpack.c.b16 %v4758, %v4757
        %v4774 = vpack.c.b16 %v4760, %v4759
        %v4775 = vpack.c.b16 %v4762, %v4761
        %v4776 = vpack.c.b16 %v4764, %v4763
        %v4777 = vpack.c.b16 %v4766, %v4765
        %v4778 = vpack.c.b16 %v4768, %v4767
        %v4779 = vpack.c.b16 %v4770, %v4769
        %v4780 = vpack.c.b16 %v4772, %v4771
        %v4789 = vunpack.c.l.b16 %v4733
        %v4790 = vunpack.c.l.b16 %v4734
        %v4791 = vunpack.c.l.b16 %v4735
        %v4792 = vunpack.c.l.b16 %v4736
        %v4793 = vunpack.c.l.b16 %v4737
        %v4794 = vunpack.c.l.b16 %v4738
        %v4795 = vunpack.c.l.b16 %v4739
        %v4796 = vunpack.c.l.b16 %v4740
        %v4797 = vpack.c.b16 %v4790, %v4789
        %v4798 = vpack.c.b16 %v4792, %v4791
        %v4799 = vpack.c.b16 %v4794, %v4793
        %v4800 = vpack.c.b16 %v4796, %v4795
        %v4806 = vsel %vm319, %v4773, 0
        %v4809 = vsel %vm319, %v4774, 0
        %v4812 = vsel %vm319, %v4775, 0
        %v4815 = vsel %vm319, %v4776, 0
        %v4818 = vsel %vm319, %v4777, 0
        %v4821 = vsel %vm319, %v4778, 0
        %v4824 = vsel %vm319, %v4779, 0
        %v4827 = vsel %vm319, %v4780, 0
        %4829 = vmatprep.subr.bf16.mxu0 0
        %4830 = vmatpush1.bf16.msra.mxu0 0
        %4831 = vmatprep.subr.bf16.mxu0 0
        %4832 = vmatpush1.bf16.msra.mxu0 0
        %4833 = vmatprep.subr.bf16.mxu0 0
        %4834 = vmatpush1.bf16.msra.mxu0 0
        %4835 = vmatprep.subr.bf16.mxu0 0
        %4836 = vmatpush1.bf16.msra.mxu0 0
        %4837 = vmatprep.subr.bf16.mxu0 0
        %4838 = vmatpush1.bf16.msra.mxu0 %v4800
        %4839 = vmatprep.subr.bf16.mxu0 0
        %4840 = vmatpush1.bf16.msra.mxu0 %v4799
        %4841 = vmatprep.subr.bf16.mxu0 0
        %4842 = vmatpush1.bf16.msra.mxu0 %v4798
        %4843 = vmatprep.subr.bf16.mxu0 0
        %4844 = vmatpush1.bf16.msra.mxu0 %v4797
        %4845 = vmatprep.subr.bf16.mxu0 0
        %4846 = vmatpush2.bf16.msra.mxu0 0
        %4847 = vmatprep.subr.bf16.mxu0 0
        %4848 = vmatpush2.bf16.msra.mxu0 0
        %4849 = vmatprep.subr.bf16.mxu0 0
        %4850 = vmatpush2.bf16.msra.mxu0 0
        %4851 = vmatprep.subr.bf16.mxu0 0
        %4852 = vmatpush2.bf16.msra.mxu0 0
        %4853 = vmatprep.subr.bf16.mxu0 0
        %4854 = vmatpush2.bf16.msra.mxu0 0
        %4855 = vmatprep.subr.bf16.mxu0 0
        %4856 = vmatpush2.bf16.msra.mxu0 0
        %4857 = vmatprep.subr.bf16.mxu0 0
        %4858 = vmatpush2.bf16.msra.mxu0 0
        %4859 = vmatprep.subr.bf16.mxu0 0
        %4860 = vmatpush2.bf16.msra.mxu0 0
        %4861 = vmatprep.mubr.bf16.mxu0 0
        %4862 = vmatmul.mubr.bf16.gmra.mxu0 %v4806
        %v4863 = vpop.f32.mrf.mxu0
        %v4864 = vadd.f32 0.0, %v4863
        %v4865 = vpop.f32.mrf.mxu0
        %v4866 = vpop.f32.mrf.mxu0
        %v4867 = vadd.f32 0.0, %v4866
        %v4868 = vpop.f32.mrf.mxu0
        %4869 = vmatprep.mubr.bf16.mxu0 0
        %4870 = vmatmul.mubr.bf16.gmra.mxu0 %v4809
        %v4871 = vpop.f32.mrf.mxu0
        %v4872 = vadd.f32 0.0, %v4871
        %v4873 = vpop.f32.mrf.mxu0
        %v4874 = vpop.f32.mrf.mxu0
        %v4875 = vadd.f32 0.0, %v4874
        %v4876 = vpop.f32.mrf.mxu0
        %4877 = vmatprep.mubr.bf16.mxu0 0
        %4878 = vmatmul.mubr.bf16.gmra.mxu0 %v4812
        %v4879 = vpop.f32.mrf.mxu0
        %v4880 = vadd.f32 0.0, %v4879
        %v4881 = vpop.f32.mrf.mxu0
        %v4882 = vpop.f32.mrf.mxu0
        %v4883 = vadd.f32 0.0, %v4882
        %v4884 = vpop.f32.mrf.mxu0
        %4885 = vmatprep.mubr.bf16.mxu0 0
        %4886 = vmatmul.mubr.bf16.gmra.mxu0 %v4815
        %v4887 = vpop.f32.mrf.mxu0
        %v4888 = vadd.f32 0.0, %v4887
        %v4889 = vpop.f32.mrf.mxu0
        %v4890 = vpop.f32.mrf.mxu0
        %v4891 = vadd.f32 0.0, %v4890
        %v4892 = vpop.f32.mrf.mxu0
        %4893 = vmatprep.mubr.bf16.mxu0 0
        %4894 = vmatmul.mubr.bf16.gmra.mxu0 %v4818
        %v4895 = vpop.f32.mrf.mxu0
        %v4896 = vadd.f32 0.0, %v4895
        %v4897 = vpop.f32.mrf.mxu0
        %v4898 = vpop.f32.mrf.mxu0
        %v4899 = vadd.f32 0.0, %v4898
        %v4900 = vpop.f32.mrf.mxu0
        %4901 = vmatprep.mubr.bf16.mxu0 0
        %4902 = vmatmul.mubr.bf16.gmra.mxu0 %v4821
        %v4903 = vpop.f32.mrf.mxu0
        %v4904 = vadd.f32 0.0, %v4903
        %v4905 = vpop.f32.mrf.mxu0
        %v4906 = vpop.f32.mrf.mxu0
        %v4907 = vadd.f32 0.0, %v4906
        %v4908 = vpop.f32.mrf.mxu0
        %4909 = vmatprep.mubr.bf16.mxu0 0
        %4910 = vmatmul.mubr.bf16.gmra.mxu0 %v4824
        %v4911 = vpop.f32.mrf.mxu0
        %v4912 = vadd.f32 0.0, %v4911
        %v4913 = vpop.f32.mrf.mxu0
        %v4914 = vpop.f32.mrf.mxu0
        %v4915 = vadd.f32 0.0, %v4914
        %v4916 = vpop.f32.mrf.mxu0
        %4917 = vmatprep.mubr.bf16.mxu0 0
        %4918 = vmatmul.mubr.bf16.gmra.mxu0 %v4827
        %v4919 = vpop.f32.mrf.mxu0
        %v4920 = vadd.f32 0.0, %v4919
        %v4921 = vpop.f32.mrf.mxu0
        %v4922 = vpop.f32.mrf.mxu0
        %v4923 = vadd.f32 0.0, %v4922
        %v4924 = vpop.f32.mrf.mxu0
        %4925 = vdwg.mxu0
        %v4943 = vunpack.c.l.b16 %v4708
        %v4944 = vunpack.c.l.b16 %v4709
        %v4945 = vunpack.c.l.b16 %v4710
        %v4946 = vunpack.c.l.b16 %v4711
        %v4947 = vunpack.c.l.b16 %v4712
        %v4948 = vunpack.c.l.b16 %v4713
        %v4949 = vunpack.c.l.b16 %v4714
        %v4950 = vunpack.c.l.b16 %v4715
        %v4951 = vunpack.c.l.b16 %v4716
        %v4952 = vunpack.c.l.b16 %v4717
        %v4953 = vunpack.c.l.b16 %v4718
        %v4954 = vunpack.c.l.b16 %v4719
        %v4955 = vunpack.c.l.b16 %v4720
        %v4956 = vunpack.c.l.b16 %v4721
        %v4957 = vunpack.c.l.b16 %v4722
        %v4958 = vunpack.c.l.b16 %v4723
        %v4959 = vunpack.c.l.b16 %v4724
        %v4960 = vpack.c.b16 %v4944, %v4943
        %v4961 = vpack.c.b16 %v4946, %v4945
        %v4962 = vpack.c.b16 %v4948, %v4947
        %v4963 = vpack.c.b16 %v4950, %v4949
        %v4964 = vpack.c.b16 %v4952, %v4951
        %v4965 = vpack.c.b16 %v4954, %v4953
        %v4966 = vpack.c.b16 %v4956, %v4955
        %v4967 = vpack.c.b16 %v4958, %v4957
        %v4968 = vpack.c.b16 %v4959, %v4959
        %v4970 = vshrl.u32 %v4960, 16
        %v4972 = vrot.slane %v4970, 3
        %v4973 = vshll.u32 %v4960, 16
        %v4975 = vrot.slane %v4973, 4
        %v4976 = vor.u32 %v4972, %v4975
        %v4978 = vshrl.u32 %v4961, 16
        %v4980 = vrot.slane %v4978, 3
        %v4981 = vshll.u32 %v4961, 16
        %v4983 = vrot.slane %v4981, 4
        %v4984 = vor.u32 %v4980, %v4983
        %v4985 = vsel %vm2059, %v4976, %v4984
        %v4987 = vshrl.u32 %v4962, 16
        %v4989 = vrot.slane %v4987, 3
        %v4990 = vshll.u32 %v4962, 16
        %v4992 = vrot.slane %v4990, 4
        %v4993 = vor.u32 %v4989, %v4992
        %v4994 = vsel %vm2059, %v4984, %v4993
        %v4996 = vshrl.u32 %v4963, 16
        %v4998 = vrot.slane %v4996, 3
        %v4999 = vshll.u32 %v4963, 16
        %v5001 = vrot.slane %v4999, 4
        %v5002 = vor.u32 %v4998, %v5001
        %v5003 = vsel %vm2059, %v4993, %v5002
        %v5005 = vshrl.u32 %v4964, 16
        %v5007 = vrot.slane %v5005, 3
        %v5008 = vshll.u32 %v4964, 16
        %v5010 = vrot.slane %v5008, 4
        %v5011 = vor.u32 %v5007, %v5010
        %v5012 = vsel %vm2059, %v5002, %v5011
        %v5014 = vshrl.u32 %v4965, 16
        %v5016 = vrot.slane %v5014, 3
        %v5017 = vshll.u32 %v4965, 16
        %v5019 = vrot.slane %v5017, 4
        %v5020 = vor.u32 %v5016, %v5019
        %v5021 = vsel %vm2059, %v5011, %v5020
        %v5023 = vshrl.u32 %v4966, 16
        %v5025 = vrot.slane %v5023, 3
        %v5026 = vshll.u32 %v4966, 16
        %v5028 = vrot.slane %v5026, 4
        %v5029 = vor.u32 %v5025, %v5028
        %v5030 = vsel %vm2059, %v5020, %v5029
        %v5032 = vshrl.u32 %v4967, 16
        %v5034 = vrot.slane %v5032, 3
        %v5035 = vshll.u32 %v4967, 16
        %v5037 = vrot.slane %v5035, 4
        %v5038 = vor.u32 %v5034, %v5037
        %v5039 = vsel %vm2059, %v5029, %v5038
        %v5041 = vshrl.u32 %v4968, 16
        %v5043 = vrot.slane %v5041, 3
        %v5044 = vshll.u32 %v4968, 16
        %v5046 = vrot.slane %v5044, 4
        %v5047 = vor.u32 %v5043, %v5046
        %v5048 = vsel %vm2059, %v5038, %v5047
        %v5057 = vunpack.c.l.b16 %v4725
        %v5058 = vunpack.c.l.b16 %v4726
        %v5059 = vunpack.c.l.b16 %v4727
        %v5060 = vunpack.c.l.b16 %v4728
        %v5061 = vunpack.c.l.b16 %v4729
        %v5062 = vunpack.c.l.b16 %v4730
        %v5063 = vunpack.c.l.b16 %v4731
        %v5064 = vunpack.c.l.b16 %v4732
        %v5065 = vpack.c.b16 %v5058, %v5057
        %v5066 = vpack.c.b16 %v5060, %v5059
        %v5067 = vpack.c.b16 %v5062, %v5061
        %v5068 = vpack.c.b16 %v5064, %v5063
        %v5074 = vsel %vm319, %v4985, 0
        %v5077 = vsel %vm319, %v4994, 0
        %v5080 = vsel %vm319, %v5003, 0
        %v5083 = vsel %vm319, %v5012, 0
        %v5086 = vsel %vm319, %v5021, 0
        %v5089 = vsel %vm319, %v5030, 0
        %v5092 = vsel %vm319, %v5039, 0
        %v5095 = vsel %vm319, %v5048, 0
        %5097 = vmatprep.subr.bf16.mxu0 0
        %5098 = vmatpush1.bf16.msra.mxu0 0
        %5099 = vmatprep.subr.bf16.mxu0 0
        %5100 = vmatpush1.bf16.msra.mxu0 0
        %5101 = vmatprep.subr.bf16.mxu0 0
        %5102 = vmatpush1.bf16.msra.mxu0 0
        %5103 = vmatprep.subr.bf16.mxu0 0
        %5104 = vmatpush1.bf16.msra.mxu0 0
        %5105 = vmatprep.subr.bf16.mxu0 0
        %5106 = vmatpush1.bf16.msra.mxu0 %v5068
        %5107 = vmatprep.subr.bf16.mxu0 0
        %5108 = vmatpush1.bf16.msra.mxu0 %v5067
        %5109 = vmatprep.subr.bf16.mxu0 0
        %5110 = vmatpush1.bf16.msra.mxu0 %v5066
        %5111 = vmatprep.subr.bf16.mxu0 0
        %5112 = vmatpush1.bf16.msra.mxu0 %v5065
        %5113 = vmatprep.subr.bf16.mxu0 0
        %5114 = vmatpush2.bf16.msra.mxu0 0
        %5115 = vmatprep.subr.bf16.mxu0 0
        %5116 = vmatpush2.bf16.msra.mxu0 0
        %5117 = vmatprep.subr.bf16.mxu0 0
        %5118 = vmatpush2.bf16.msra.mxu0 0
        %5119 = vmatprep.subr.bf16.mxu0 0
        %5120 = vmatpush2.bf16.msra.mxu0 0
        %5121 = vmatprep.subr.bf16.mxu0 0
        %5122 = vmatpush2.bf16.msra.mxu0 0
        %5123 = vmatprep.subr.bf16.mxu0 0
        %5124 = vmatpush2.bf16.msra.mxu0 0
        %5125 = vmatprep.subr.bf16.mxu0 0
        %5126 = vmatpush2.bf16.msra.mxu0 0
        %5127 = vmatprep.subr.bf16.mxu0 0
        %5128 = vmatpush2.bf16.msra.mxu0 0
        %5129 = vmatprep.mubr.bf16.mxu0 0
        %5130 = vmatmul.mubr.bf16.gmra.mxu0 %v5074
        %v5131 = vpop.f32.mrf.mxu0
        %v5132 = vadd.f32 %v4864, %v5131
        %v5133 = vpop.f32.mrf.mxu0
        %v5134 = vpop.f32.mrf.mxu0
        %v5135 = vadd.f32 %v4867, %v5134
        %v5136 = vpop.f32.mrf.mxu0
        %5137 = vmatprep.mubr.bf16.mxu0 0
        %5138 = vmatmul.mubr.bf16.gmra.mxu0 %v5077
        %v5139 = vpop.f32.mrf.mxu0
        %v5140 = vadd.f32 %v4872, %v5139
        %v5141 = vpop.f32.mrf.mxu0
        %v5142 = vpop.f32.mrf.mxu0
        %v5143 = vadd.f32 %v4875, %v5142
        %v5144 = vpop.f32.mrf.mxu0
        %5145 = vmatprep.mubr.bf16.mxu0 0
        %5146 = vmatmul.mubr.bf16.gmra.mxu0 %v5080
        %v5147 = vpop.f32.mrf.mxu0
        %v5148 = vadd.f32 %v4880, %v5147
        %v5149 = vpop.f32.mrf.mxu0
        %v5150 = vpop.f32.mrf.mxu0
        %v5151 = vadd.f32 %v4883, %v5150
        %v5152 = vpop.f32.mrf.mxu0
        %5153 = vmatprep.mubr.bf16.mxu0 0
        %5154 = vmatmul.mubr.bf16.gmra.mxu0 %v5083
        %v5155 = vpop.f32.mrf.mxu0
        %v5156 = vadd.f32 %v4888, %v5155
        %v5157 = vpop.f32.mrf.mxu0
        %v5158 = vpop.f32.mrf.mxu0
        %v5159 = vadd.f32 %v4891, %v5158
        %v5160 = vpop.f32.mrf.mxu0
        %5161 = vmatprep.mubr.bf16.mxu0 0
        %5162 = vmatmul.mubr.bf16.gmra.mxu0 %v5086
        %v5163 = vpop.f32.mrf.mxu0
        %v5164 = vadd.f32 %v4896, %v5163
        %v5165 = vpop.f32.mrf.mxu0
        %v5166 = vpop.f32.mrf.mxu0
        %v5167 = vadd.f32 %v4899, %v5166
        %v5168 = vpop.f32.mrf.mxu0
        %5169 = vmatprep.mubr.bf16.mxu0 0
        %5170 = vmatmul.mubr.bf16.gmra.mxu0 %v5089
        %v5171 = vpop.f32.mrf.mxu0
        %v5172 = vadd.f32 %v4904, %v5171
        %v5173 = vpop.f32.mrf.mxu0
        %v5174 = vpop.f32.mrf.mxu0
        %v5175 = vadd.f32 %v4907, %v5174
        %v5176 = vpop.f32.mrf.mxu0
        %5177 = vmatprep.mubr.bf16.mxu0 0
        %5178 = vmatmul.mubr.bf16.gmra.mxu0 %v5092
        %v5179 = vpop.f32.mrf.mxu0
        %v5180 = vadd.f32 %v4912, %v5179
        %v5181 = vpop.f32.mrf.mxu0
        %v5182 = vpop.f32.mrf.mxu0
        %v5183 = vadd.f32 %v4915, %v5182
        %v5184 = vpop.f32.mrf.mxu0
        %5185 = vmatprep.mubr.bf16.mxu0 0
        %5186 = vmatmul.mubr.bf16.gmra.mxu0 %v5095
        %v5187 = vpop.f32.mrf.mxu0
        %v5188 = vadd.f32 %v4920, %v5187
        %v5189 = vpop.f32.mrf.mxu0
        %v5190 = vpop.f32.mrf.mxu0
        %v5191 = vadd.f32 %v4923, %v5190
        %v5192 = vpop.f32.mrf.mxu0
        %5193 = vdwg.mxu0
        %v5194 = vld [vmem:[#allocation2 + $0x44] sm:$0xf]
        %v5195 = vld [vmem:[#allocation2 + $0x48] sm:$0xf]
        %v5196 = vld [vmem:[#allocation2 + $0x4c] sm:$0xf]
        %v5197 = vld [vmem:[#allocation2 + $0x50] sm:$0xf]
        %v5198 = vld [vmem:[#allocation2 + $0x54] sm:$0xf]
        %v5199 = vld [vmem:[#allocation2 + $0x58] sm:$0xf]
        %v5200 = vld [vmem:[#allocation2 + $0x5c] sm:$0xf]
        %v5201 = vld [vmem:[#allocation2 + $0x60] sm:$0xf]
        %v5202 = vld [vmem:[#allocation2 + $0x64] sm:$0xf]
        %v5203 = vld [vmem:[#allocation2 + $0x68] sm:$0xf]
        %v5204 = vld [vmem:[#allocation2 + $0x6c] sm:$0xf]
        %v5205 = vld [vmem:[#allocation2 + $0x70] sm:$0xf]
        %v5206 = vld [vmem:[#allocation2 + $0x74] sm:$0xf]
        %v5207 = vld [vmem:[#allocation2 + $0x78] sm:$0xf]
        %v5208 = vld [vmem:[#allocation2 + $0x7c] sm:$0xf]
        %v5209 = vld [vmem:[#allocation2 + $0x80] sm:$0xf]
        %v5210 = vld [vmem:[#allocation2 + $0x84] sm:$0x1]
        %v5211 = vmul.bf16 %v5194, %v2431
        %v5212 = vmul.bf16 %v5195, %v2440
        %v5213 = vmul.bf16 %v5196, %v2449
        %v5214 = vmul.bf16 %v5197, %v2458
        %v5215 = vmul.bf16 %v5198, %v2467
        %v5216 = vmul.bf16 %v5199, %v2476
        %v5217 = vmul.bf16 %v5200, %v2485
        %v5218 = vmul.bf16 %v5201, %v2494
        %v5219 = vmul.bf16 %v5202, %v2503
        %v5220 = vmul.bf16 %v5203, %v2512
        %v5221 = vmul.bf16 %v5204, %v2521
        %v5222 = vmul.bf16 %v5205, %v2530
        %v5223 = vmul.bf16 %v5206, %v2539
        %v5224 = vmul.bf16 %v5207, %v2548
        %v5225 = vmul.bf16 %v5208, %v2557
        %v5226 = vmul.bf16 %v5209, %v2566
        %v5227 = vmul.bf16 %v5210, %v2567
        %v5228 = vld [vmem:[%s2602] sm:$0xf]
        %v5229 = vld [vmem:[%s2602 + $0x4] sm:$0xf]
        %v5230 = vld [vmem:[%s2602 + $0x8] sm:$0xf]
        %v5231 = vld [vmem:[%s2602 + $0xc] sm:$0xf]
        %v5232 = vld [vmem:[%s2602 + $0x10] sm:$0xf]
        %v5233 = vld [vmem:[%s2602 + $0x14] sm:$0xf]
        %v5234 = vld [vmem:[%s2602 + $0x18] sm:$0xf]
        %v5235 = vld [vmem:[%s2602 + $0x1c] sm:$0xf]
        %v5253 = vunpack.c.l.b16 %v5211
        %v5254 = vunpack.c.l.b16 %v5212
        %v5255 = vunpack.c.l.b16 %v5213
        %v5256 = vunpack.c.l.b16 %v5214
        %v5257 = vunpack.c.l.b16 %v5215
        %v5258 = vunpack.c.l.b16 %v5216
        %v5259 = vunpack.c.l.b16 %v5217
        %v5260 = vunpack.c.l.b16 %v5218
        %v5261 = vunpack.c.l.b16 %v5219
        %v5262 = vunpack.c.l.b16 %v5220
        %v5263 = vunpack.c.l.b16 %v5221
        %v5264 = vunpack.c.l.b16 %v5222
        %v5265 = vunpack.c.l.b16 %v5223
        %v5266 = vunpack.c.l.b16 %v5224
        %v5267 = vunpack.c.l.b16 %v5225
        %v5268 = vunpack.c.l.b16 %v5226
        %v5269 = vunpack.c.l.b16 %v5227
        %v5270 = vpack.c.b16 %v5254, %v5253
        %v5271 = vpack.c.b16 %v5256, %v5255
        %v5272 = vpack.c.b16 %v5258, %v5257
        %v5273 = vpack.c.b16 %v5260, %v5259
        %v5274 = vpack.c.b16 %v5262, %v5261
        %v5275 = vpack.c.b16 %v5264, %v5263
        %v5276 = vpack.c.b16 %v5266, %v5265
        %v5277 = vpack.c.b16 %v5268, %v5267
        %v5278 = vpack.c.b16 %v5269, %v5269
        %v5280 = vshrl.u32 %v5270, 16
        %v5282 = vshll.u32 %v5270, 16
        %v5284 = vrot.slane %v5282, 1
        %v5285 = vor.u32 %v5280, %v5284
        %v5287 = vshll.u32 %v5271, 16
        %v5289 = vrot.slane %v5287, 1
        %v5290 = vsel %vm2654, %v5285, %v5289
        %v5291 = vshrl.u32 %v5271, 16
        %v5293 = vor.u32 %v5291, %v5289
        %v5295 = vshll.u32 %v5272, 16
        %v5297 = vrot.slane %v5295, 1
        %v5298 = vsel %vm2654, %v5293, %v5297
        %v5299 = vshrl.u32 %v5272, 16
        %v5301 = vor.u32 %v5299, %v5297
        %v5303 = vshll.u32 %v5273, 16
        %v5305 = vrot.slane %v5303, 1
        %v5306 = vsel %vm2654, %v5301, %v5305
        %v5307 = vshrl.u32 %v5273, 16
        %v5309 = vor.u32 %v5307, %v5305
        %v5311 = vshll.u32 %v5274, 16
        %v5313 = vrot.slane %v5311, 1
        %v5314 = vsel %vm2654, %v5309, %v5313
        %v5315 = vshrl.u32 %v5274, 16
        %v5317 = vor.u32 %v5315, %v5313
        %v5319 = vshll.u32 %v5275, 16
        %v5321 = vrot.slane %v5319, 1
        %v5322 = vsel %vm2654, %v5317, %v5321
        %v5323 = vshrl.u32 %v5275, 16
        %v5325 = vor.u32 %v5323, %v5321
        %v5327 = vshll.u32 %v5276, 16
        %v5329 = vrot.slane %v5327, 1
        %v5330 = vsel %vm2654, %v5325, %v5329
        %v5331 = vshrl.u32 %v5276, 16
        %v5333 = vor.u32 %v5331, %v5329
        %v5335 = vshll.u32 %v5277, 16
        %v5337 = vrot.slane %v5335, 1
        %v5338 = vsel %vm2654, %v5333, %v5337
        %v5339 = vshrl.u32 %v5277, 16
        %v5341 = vor.u32 %v5339, %v5337
        %v5343 = vshll.u32 %v5278, 16
        %v5345 = vrot.slane %v5343, 1
        %v5346 = vsel %vm2654, %v5341, %v5345
        %v5355 = vunpack.c.l.b16 %v5228
        %v5356 = vunpack.c.l.b16 %v5229
        %v5357 = vunpack.c.l.b16 %v5230
        %v5358 = vunpack.c.l.b16 %v5231
        %v5359 = vunpack.c.l.b16 %v5232
        %v5360 = vunpack.c.l.b16 %v5233
        %v5361 = vunpack.c.l.b16 %v5234
        %v5362 = vunpack.c.l.b16 %v5235
        %v5363 = vpack.c.b16 %v5356, %v5355
        %v5364 = vpack.c.b16 %v5358, %v5357
        %v5365 = vpack.c.b16 %v5360, %v5359
        %v5366 = vpack.c.b16 %v5362, %v5361
        %v5372 = vsel %vm319, %v5290, 0
        %v5375 = vsel %vm319, %v5298, 0
        %v5378 = vsel %vm319, %v5306, 0
        %v5381 = vsel %vm319, %v5314, 0
        %v5384 = vsel %vm319, %v5322, 0
        %v5387 = vsel %vm319, %v5330, 0
        %v5390 = vsel %vm319, %v5338, 0
        %v5393 = vsel %vm319, %v5346, 0
        %5395 = vmatprep.subr.bf16.mxu0 0
        %5396 = vmatpush1.bf16.msra.mxu0 0
        %5397 = vmatprep.subr.bf16.mxu0 0
        %5398 = vmatpush1.bf16.msra.mxu0 0
        %5399 = vmatprep.subr.bf16.mxu0 0
        %5400 = vmatpush1.bf16.msra.mxu0 0
        %5401 = vmatprep.subr.bf16.mxu0 0
        %5402 = vmatpush1.bf16.msra.mxu0 0
        %5403 = vmatprep.subr.bf16.mxu0 0
        %5404 = vmatpush1.bf16.msra.mxu0 %v5366
        %5405 = vmatprep.subr.bf16.mxu0 0
        %5406 = vmatpush1.bf16.msra.mxu0 %v5365
        %5407 = vmatprep.subr.bf16.mxu0 0
        %5408 = vmatpush1.bf16.msra.mxu0 %v5364
        %5409 = vmatprep.subr.bf16.mxu0 0
        %5410 = vmatpush1.bf16.msra.mxu0 %v5363
        %5411 = vmatprep.subr.bf16.mxu0 0
        %5412 = vmatpush2.bf16.msra.mxu0 0
        %5413 = vmatprep.subr.bf16.mxu0 0
        %5414 = vmatpush2.bf16.msra.mxu0 0
        %5415 = vmatprep.subr.bf16.mxu0 0
        %5416 = vmatpush2.bf16.msra.mxu0 0
        %5417 = vmatprep.subr.bf16.mxu0 0
        %5418 = vmatpush2.bf16.msra.mxu0 0
        %5419 = vmatprep.subr.bf16.mxu0 0
        %5420 = vmatpush2.bf16.msra.mxu0 0
        %5421 = vmatprep.subr.bf16.mxu0 0
        %5422 = vmatpush2.bf16.msra.mxu0 0
        %5423 = vmatprep.subr.bf16.mxu0 0
        %5424 = vmatpush2.bf16.msra.mxu0 0
        %5425 = vmatprep.subr.bf16.mxu0 0
        %5426 = vmatpush2.bf16.msra.mxu0 0
        %5427 = vmatprep.mubr.bf16.mxu0 0
        %5428 = vmatmul.mubr.bf16.gmra.mxu0 %v5372
        %v5429 = vpop.f32.mrf.mxu0
        %v5430 = vadd.f32 0.0, %v5429
        %v5431 = vpop.f32.mrf.mxu0
        %v5432 = vpop.f32.mrf.mxu0
        %v5433 = vadd.f32 0.0, %v5432
        %v5434 = vpop.f32.mrf.mxu0
        %5435 = vmatprep.mubr.bf16.mxu0 0
        %5436 = vmatmul.mubr.bf16.gmra.mxu0 %v5375
        %v5437 = vpop.f32.mrf.mxu0
        %v5438 = vadd.f32 0.0, %v5437
        %v5439 = vpop.f32.mrf.mxu0
        %v5440 = vpop.f32.mrf.mxu0
        %v5441 = vadd.f32 0.0, %v5440
        %v5442 = vpop.f32.mrf.mxu0
        %5443 = vmatprep.mubr.bf16.mxu0 0
        %5444 = vmatmul.mubr.bf16.gmra.mxu0 %v5378
        %v5445 = vpop.f32.mrf.mxu0
        %v5446 = vadd.f32 0.0, %v5445
        %v5447 = vpop.f32.mrf.mxu0
        %v5448 = vpop.f32.mrf.mxu0
        %v5449 = vadd.f32 0.0, %v5448
        %v5450 = vpop.f32.mrf.mxu0
        %5451 = vmatprep.mubr.bf16.mxu0 0
        %5452 = vmatmul.mubr.bf16.gmra.mxu0 %v5381
        %v5453 = vpop.f32.mrf.mxu0
        %v5454 = vadd.f32 0.0, %v5453
        %v5455 = vpop.f32.mrf.mxu0
        %v5456 = vpop.f32.mrf.mxu0
        %v5457 = vadd.f32 0.0, %v5456
        %v5458 = vpop.f32.mrf.mxu0
        %5459 = vmatprep.mubr.bf16.mxu0 0
        %5460 = vmatmul.mubr.bf16.gmra.mxu0 %v5384
        %v5461 = vpop.f32.mrf.mxu0
        %v5462 = vadd.f32 0.0, %v5461
        %v5463 = vpop.f32.mrf.mxu0
        %v5464 = vpop.f32.mrf.mxu0
        %v5465 = vadd.f32 0.0, %v5464
        %v5466 = vpop.f32.mrf.mxu0
        %5467 = vmatprep.mubr.bf16.mxu0 0
        %5468 = vmatmul.mubr.bf16.gmra.mxu0 %v5387
        %v5469 = vpop.f32.mrf.mxu0
        %v5470 = vadd.f32 0.0, %v5469
        %v5471 = vpop.f32.mrf.mxu0
        %v5472 = vpop.f32.mrf.mxu0
        %v5473 = vadd.f32 0.0, %v5472
        %v5474 = vpop.f32.mrf.mxu0
        %5475 = vmatprep.mubr.bf16.mxu0 0
        %5476 = vmatmul.mubr.bf16.gmra.mxu0 %v5390
        %v5477 = vpop.f32.mrf.mxu0
        %v5478 = vadd.f32 0.0, %v5477
        %v5479 = vpop.f32.mrf.mxu0
        %v5480 = vpop.f32.mrf.mxu0
        %v5481 = vadd.f32 0.0, %v5480
        %v5482 = vpop.f32.mrf.mxu0
        %5483 = vmatprep.mubr.bf16.mxu0 0
        %5484 = vmatmul.mubr.bf16.gmra.mxu0 %v5393
        %v5485 = vpop.f32.mrf.mxu0
        %v5486 = vadd.f32 0.0, %v5485
        %v5487 = vpop.f32.mrf.mxu0
        %v5488 = vpop.f32.mrf.mxu0
        %v5489 = vadd.f32 0.0, %v5488
        %v5490 = vpop.f32.mrf.mxu0
        %5491 = vdwg.mxu0
        %v5492 = vadd.f32 %v5132, %v5430
        %v5493 = vadd.f32 %v5135, %v5433
        %v5494 = vadd.f32 %v5140, %v5438
        %v5495 = vadd.f32 %v5143, %v5441
        %v5496 = vadd.f32 %v5148, %v5446
        %v5497 = vadd.f32 %v5151, %v5449
        %v5498 = vadd.f32 %v5156, %v5454
        %v5499 = vadd.f32 %v5159, %v5457
        %v5500 = vadd.f32 %v5164, %v5462
        %v5501 = vadd.f32 %v5167, %v5465
        %v5502 = vadd.f32 %v5172, %v5470
        %v5503 = vadd.f32 %v5175, %v5473
        %v5504 = vadd.f32 %v5180, %v5478
        %v5505 = vadd.f32 %v5183, %v5481
        %v5506 = vadd.f32 %v5188, %v5486
        %v5507 = vadd.f32 %v5191, %v5489
        %v5508 = vld [vmem:[#allocation2 + $0x48] sm:$0x8]
        %v5509 = vld [vmem:[#allocation2 + $0x4c] sm:$0xf]
        %v5510 = vld [vmem:[#allocation2 + $0x50] sm:$0xf]
        %v5511 = vld [vmem:[#allocation2 + $0x54] sm:$0xf]
        %v5512 = vld [vmem:[#allocation2 + $0x58] sm:$0xf]
        %v5513 = vld [vmem:[#allocation2 + $0x5c] sm:$0xf]
        %v5514 = vld [vmem:[#allocation2 + $0x60] sm:$0xf]
        %v5515 = vld [vmem:[#allocation2 + $0x64] sm:$0xf]
        %v5516 = vld [vmem:[#allocation2 + $0x68] sm:$0xf]
        %v5517 = vld [vmem:[#allocation2 + $0x6c] sm:$0xf]
        %v5518 = vld [vmem:[#allocation2 + $0x70] sm:$0xf]
        %v5519 = vld [vmem:[#allocation2 + $0x74] sm:$0xf]
        %v5520 = vld [vmem:[#allocation2 + $0x78] sm:$0xf]
        %v5521 = vld [vmem:[#allocation2 + $0x7c] sm:$0xf]
        %v5522 = vld [vmem:[#allocation2 + $0x80] sm:$0xf]
        %v5523 = vld [vmem:[#allocation2 + $0x84] sm:$0xf]
        %v5524 = vld [vmem:[#allocation2 + $0x88] sm:$0xf]
        %v5525 = vmul.bf16 %v5508, %v1624
        %v5526 = vmul.bf16 %v5509, %v1634
        %v5527 = vmul.bf16 %v5510, %v1644
        %v5528 = vmul.bf16 %v5511, %v1654
        %v5529 = vmul.bf16 %v5512, %v1664
        %v5530 = vmul.bf16 %v5513, %v1674
        %v5531 = vmul.bf16 %v5514, %v1684
        %v5532 = vmul.bf16 %v5515, %v1694
        %v5533 = vmul.bf16 %v5516, %v1704
        %v5534 = vmul.bf16 %v5517, %v1714
        %v5535 = vmul.bf16 %v5518, %v1724
        %v5536 = vmul.bf16 %v5519, %v1734
        %v5537 = vmul.bf16 %v5520, %v1744
        %v5538 = vmul.bf16 %v5521, %v1754
        %v5539 = vmul.bf16 %v5522, %v1764
        %v5540 = vmul.bf16 %v5523, %v1774
        %v5541 = vmul.bf16 %v5524, %v1779
        %v5542 = vld [vmem:[%s2918] sm:$0xf]
        %v5543 = vld [vmem:[%s2918 + $0x4] sm:$0xf]
        %v5544 = vld [vmem:[%s2918 + $0x8] sm:$0xf]
        %v5545 = vld [vmem:[%s2918 + $0xc] sm:$0xf]
        %v5546 = vld [vmem:[%s2918 + $0x10] sm:$0xf]
        %v5547 = vld [vmem:[%s2918 + $0x14] sm:$0xf]
        %v5548 = vld [vmem:[%s2918 + $0x18] sm:$0xf]
        %v5549 = vld [vmem:[%s2918 + $0x1c] sm:$0xf]
        %v5567 = vunpack.c.l.b16 %v5525
        %v5568 = vunpack.c.l.b16 %v5526
        %v5569 = vunpack.c.l.b16 %v5527
        %v5570 = vunpack.c.l.b16 %v5528
        %v5571 = vunpack.c.l.b16 %v5529
        %v5572 = vunpack.c.l.b16 %v5530
        %v5573 = vunpack.c.l.b16 %v5531
        %v5574 = vunpack.c.l.b16 %v5532
        %v5575 = vunpack.c.l.b16 %v5533
        %v5576 = vunpack.c.l.b16 %v5534
        %v5577 = vunpack.c.l.b16 %v5535
        %v5578 = vunpack.c.l.b16 %v5536
        %v5579 = vunpack.c.l.b16 %v5537
        %v5580 = vunpack.c.l.b16 %v5538
        %v5581 = vunpack.c.l.b16 %v5539
        %v5582 = vunpack.c.l.b16 %v5540
        %v5583 = vunpack.c.l.b16 %v5541
        %v5584 = vpack.c.b16 %v5568, %v5567
        %v5585 = vpack.c.b16 %v5570, %v5569
        %v5586 = vpack.c.b16 %v5572, %v5571
        %v5587 = vpack.c.b16 %v5574, %v5573
        %v5588 = vpack.c.b16 %v5576, %v5575
        %v5589 = vpack.c.b16 %v5578, %v5577
        %v5590 = vpack.c.b16 %v5580, %v5579
        %v5591 = vpack.c.b16 %v5582, %v5581
        %v5592 = vpack.c.b16 %v5583, %v5583
        %v5594 = vshrl.u32 %v5584, 16
        %v5596 = vrot.slane %v5594, 3
        %v5597 = vshll.u32 %v5584, 16
        %v5599 = vrot.slane %v5597, 4
        %v5600 = vor.u32 %v5596, %v5599
        %v5602 = vshrl.u32 %v5585, 16
        %v5604 = vrot.slane %v5602, 3
        %v5605 = vshll.u32 %v5585, 16
        %v5607 = vrot.slane %v5605, 4
        %v5608 = vor.u32 %v5604, %v5607
        %v5609 = vsel %vm2059, %v5600, %v5608
        %v5611 = vshrl.u32 %v5586, 16
        %v5613 = vrot.slane %v5611, 3
        %v5614 = vshll.u32 %v5586, 16
        %v5616 = vrot.slane %v5614, 4
        %v5617 = vor.u32 %v5613, %v5616
        %v5618 = vsel %vm2059, %v5608, %v5617
        %v5620 = vshrl.u32 %v5587, 16
        %v5622 = vrot.slane %v5620, 3
        %v5623 = vshll.u32 %v5587, 16
        %v5625 = vrot.slane %v5623, 4
        %v5626 = vor.u32 %v5622, %v5625
        %v5627 = vsel %vm2059, %v5617, %v5626
        %v5629 = vshrl.u32 %v5588, 16
        %v5631 = vrot.slane %v5629, 3
        %v5632 = vshll.u32 %v5588, 16
        %v5634 = vrot.slane %v5632, 4
        %v5635 = vor.u32 %v5631, %v5634
        %v5636 = vsel %vm2059, %v5626, %v5635
        %v5638 = vshrl.u32 %v5589, 16
        %v5640 = vrot.slane %v5638, 3
        %v5641 = vshll.u32 %v5589, 16
        %v5643 = vrot.slane %v5641, 4
        %v5644 = vor.u32 %v5640, %v5643
        %v5645 = vsel %vm2059, %v5635, %v5644
        %v5647 = vshrl.u32 %v5590, 16
        %v5649 = vrot.slane %v5647, 3
        %v5650 = vshll.u32 %v5590, 16
        %v5652 = vrot.slane %v5650, 4
        %v5653 = vor.u32 %v5649, %v5652
        %v5654 = vsel %vm2059, %v5644, %v5653
        %v5656 = vshrl.u32 %v5591, 16
        %v5658 = vrot.slane %v5656, 3
        %v5659 = vshll.u32 %v5591, 16
        %v5661 = vrot.slane %v5659, 4
        %v5662 = vor.u32 %v5658, %v5661
        %v5663 = vsel %vm2059, %v5653, %v5662
        %v5665 = vshrl.u32 %v5592, 16
        %v5667 = vrot.slane %v5665, 3
        %v5668 = vshll.u32 %v5592, 16
        %v5670 = vrot.slane %v5668, 4
        %v5671 = vor.u32 %v5667, %v5670
        %v5672 = vsel %vm2059, %v5662, %v5671
        %v5681 = vunpack.c.l.b16 %v5542
        %v5682 = vunpack.c.l.b16 %v5543
        %v5683 = vunpack.c.l.b16 %v5544
        %v5684 = vunpack.c.l.b16 %v5545
        %v5685 = vunpack.c.l.b16 %v5546
        %v5686 = vunpack.c.l.b16 %v5547
        %v5687 = vunpack.c.l.b16 %v5548
        %v5688 = vunpack.c.l.b16 %v5549
        %v5689 = vpack.c.b16 %v5682, %v5681
        %v5690 = vpack.c.b16 %v5684, %v5683
        %v5691 = vpack.c.b16 %v5686, %v5685
        %v5692 = vpack.c.b16 %v5688, %v5687
        %v5698 = vsel %vm319, %v5609, 0
        %v5701 = vsel %vm319, %v5618, 0
        %v5704 = vsel %vm319, %v5627, 0
        %v5707 = vsel %vm319, %v5636, 0
        %v5710 = vsel %vm319, %v5645, 0
        %v5713 = vsel %vm319, %v5654, 0
        %v5716 = vsel %vm319, %v5663, 0
        %v5719 = vsel %vm319, %v5672, 0
        %5721 = vmatprep.subr.bf16.mxu0 0
        %5722 = vmatpush1.bf16.msra.mxu0 0
        %5723 = vmatprep.subr.bf16.mxu0 0
        %5724 = vmatpush1.bf16.msra.mxu0 0
        %5725 = vmatprep.subr.bf16.mxu0 0
        %5726 = vmatpush1.bf16.msra.mxu0 0
        %5727 = vmatprep.subr.bf16.mxu0 0
        %5728 = vmatpush1.bf16.msra.mxu0 0
        %5729 = vmatprep.subr.bf16.mxu0 0
        %5730 = vmatpush1.bf16.msra.mxu0 %v5692
        %5731 = vmatprep.subr.bf16.mxu0 0
        %5732 = vmatpush1.bf16.msra.mxu0 %v5691
        %5733 = vmatprep.subr.bf16.mxu0 0
        %5734 = vmatpush1.bf16.msra.mxu0 %v5690
        %5735 = vmatprep.subr.bf16.mxu0 0
        %5736 = vmatpush1.bf16.msra.mxu0 %v5689
        %5737 = vmatprep.subr.bf16.mxu0 0
        %5738 = vmatpush2.bf16.msra.mxu0 0
        %5739 = vmatprep.subr.bf16.mxu0 0
        %5740 = vmatpush2.bf16.msra.mxu0 0
        %5741 = vmatprep.subr.bf16.mxu0 0
        %5742 = vmatpush2.bf16.msra.mxu0 0
        %5743 = vmatprep.subr.bf16.mxu0 0
        %5744 = vmatpush2.bf16.msra.mxu0 0
        %5745 = vmatprep.subr.bf16.mxu0 0
        %5746 = vmatpush2.bf16.msra.mxu0 0
        %5747 = vmatprep.subr.bf16.mxu0 0
        %5748 = vmatpush2.bf16.msra.mxu0 0
        %5749 = vmatprep.subr.bf16.mxu0 0
        %5750 = vmatpush2.bf16.msra.mxu0 0
        %5751 = vmatprep.subr.bf16.mxu0 0
        %5752 = vmatpush2.bf16.msra.mxu0 0
        %5753 = vmatprep.mubr.bf16.mxu0 0
        %5754 = vmatmul.mubr.bf16.gmra.mxu0 %v5698
        %v5755 = vpop.f32.mrf.mxu0
        %v5756 = vadd.f32 0.0, %v5755
        %v5757 = vpop.f32.mrf.mxu0
        %v5758 = vpop.f32.mrf.mxu0
        %v5759 = vadd.f32 0.0, %v5758
        %v5760 = vpop.f32.mrf.mxu0
        %5761 = vmatprep.mubr.bf16.mxu0 0
        %5762 = vmatmul.mubr.bf16.gmra.mxu0 %v5701
        %v5763 = vpop.f32.mrf.mxu0
        %v5764 = vadd.f32 0.0, %v5763
        %v5765 = vpop.f32.mrf.mxu0
        %v5766 = vpop.f32.mrf.mxu0
        %v5767 = vadd.f32 0.0, %v5766
        %v5768 = vpop.f32.mrf.mxu0
        %5769 = vmatprep.mubr.bf16.mxu0 0
        %5770 = vmatmul.mubr.bf16.gmra.mxu0 %v5704
        %v5771 = vpop.f32.mrf.mxu0
        %v5772 = vadd.f32 0.0, %v5771
        %v5773 = vpop.f32.mrf.mxu0
        %v5774 = vpop.f32.mrf.mxu0
        %v5775 = vadd.f32 0.0, %v5774
        %v5776 = vpop.f32.mrf.mxu0
        %5777 = vmatprep.mubr.bf16.mxu0 0
        %5778 = vmatmul.mubr.bf16.gmra.mxu0 %v5707
        %v5779 = vpop.f32.mrf.mxu0
        %v5780 = vadd.f32 0.0, %v5779
        %v5781 = vpop.f32.mrf.mxu0
        %v5782 = vpop.f32.mrf.mxu0
        %v5783 = vadd.f32 0.0, %v5782
        %v5784 = vpop.f32.mrf.mxu0
        %5785 = vmatprep.mubr.bf16.mxu0 0
        %5786 = vmatmul.mubr.bf16.gmra.mxu0 %v5710
        %v5787 = vpop.f32.mrf.mxu0
        %v5788 = vadd.f32 0.0, %v5787
        %v5789 = vpop.f32.mrf.mxu0
        %v5790 = vpop.f32.mrf.mxu0
        %v5791 = vadd.f32 0.0, %v5790
        %v5792 = vpop.f32.mrf.mxu0
        %5793 = vmatprep.mubr.bf16.mxu0 0
        %5794 = vmatmul.mubr.bf16.gmra.mxu0 %v5713
        %v5795 = vpop.f32.mrf.mxu0
        %v5796 = vadd.f32 0.0, %v5795
        %v5797 = vpop.f32.mrf.mxu0
        %v5798 = vpop.f32.mrf.mxu0
        %v5799 = vadd.f32 0.0, %v5798
        %v5800 = vpop.f32.mrf.mxu0
        %5801 = vmatprep.mubr.bf16.mxu0 0
        %5802 = vmatmul.mubr.bf16.gmra.mxu0 %v5716
        %v5803 = vpop.f32.mrf.mxu0
        %v5804 = vadd.f32 0.0, %v5803
        %v5805 = vpop.f32.mrf.mxu0
        %v5806 = vpop.f32.mrf.mxu0
        %v5807 = vadd.f32 0.0, %v5806
        %v5808 = vpop.f32.mrf.mxu0
        %5809 = vmatprep.mubr.bf16.mxu0 0
        %5810 = vmatmul.mubr.bf16.gmra.mxu0 %v5719
        %v5811 = vpop.f32.mrf.mxu0
        %v5812 = vadd.f32 0.0, %v5811
        %v5813 = vpop.f32.mrf.mxu0
        %v5814 = vpop.f32.mrf.mxu0
        %v5815 = vadd.f32 0.0, %v5814
        %v5816 = vpop.f32.mrf.mxu0
        %5817 = vdwg.mxu0
        %v5818 = vadd.f32 %v5492, %v5756
        %v5819 = vadd.f32 %v5493, %v5759
        %v5820 = vadd.f32 %v5494, %v5764
        %v5821 = vadd.f32 %v5495, %v5767
        %v5822 = vadd.f32 %v5496, %v5772
        %v5823 = vadd.f32 %v5497, %v5775
        %v5824 = vadd.f32 %v5498, %v5780
        %v5825 = vadd.f32 %v5499, %v5783
        %v5826 = vadd.f32 %v5500, %v5788
        %v5827 = vadd.f32 %v5501, %v5791
        %v5828 = vadd.f32 %v5502, %v5796
        %v5829 = vadd.f32 %v5503, %v5799
        %v5830 = vadd.f32 %v5504, %v5804
        %v5831 = vadd.f32 %v5505, %v5807
        %v5832 = vadd.f32 %v5506, %v5812
        %v5833 = vadd.f32 %v5507, %v5815
        %v5834 = vld [vmem:[%s3211] sm:$0xf]
        %v5835 = vld [vmem:[%s3211 + $0x4] sm:$0xf]
        %v5836 = vld [vmem:[%s3211 + $0x8] sm:$0xf]
        %v5837 = vld [vmem:[%s3211 + $0xc] sm:$0xf]
        %v5838 = vld [vmem:[%s3211 + $0x10] sm:$0xf]
        %v5839 = vld [vmem:[%s3211 + $0x14] sm:$0xf]
        %v5840 = vld [vmem:[%s3211 + $0x18] sm:$0xf]
        %v5841 = vld [vmem:[%s3211 + $0x1c] sm:$0xf]
        %v5858 = vunpack.c.l.b16 %v5509
        %v5859 = vunpack.c.l.b16 %v5510
        %v5860 = vunpack.c.l.b16 %v5511
        %v5861 = vunpack.c.l.b16 %v5512
        %v5862 = vunpack.c.l.b16 %v5513
        %v5863 = vunpack.c.l.b16 %v5514
        %v5864 = vunpack.c.l.b16 %v5515
        %v5865 = vunpack.c.l.b16 %v5516
        %v5866 = vunpack.c.l.b16 %v5517
        %v5867 = vunpack.c.l.b16 %v5518
        %v5868 = vunpack.c.l.b16 %v5519
        %v5869 = vunpack.c.l.b16 %v5520
        %v5870 = vunpack.c.l.b16 %v5521
        %v5871 = vunpack.c.l.b16 %v5522
        %v5872 = vunpack.c.l.b16 %v5523
        %v5873 = vunpack.c.l.b16 %v5524
        %v5874 = vpack.c.b16 %v5859, %v5858
        %v5875 = vpack.c.b16 %v5861, %v5860
        %v5876 = vpack.c.b16 %v5863, %v5862
        %v5877 = vpack.c.b16 %v5865, %v5864
        %v5878 = vpack.c.b16 %v5867, %v5866
        %v5879 = vpack.c.b16 %v5869, %v5868
        %v5880 = vpack.c.b16 %v5871, %v5870
        %v5881 = vpack.c.b16 %v5873, %v5872
        %v5890 = vunpack.c.l.b16 %v5834
        %v5891 = vunpack.c.l.b16 %v5835
        %v5892 = vunpack.c.l.b16 %v5836
        %v5893 = vunpack.c.l.b16 %v5837
        %v5894 = vunpack.c.l.b16 %v5838
        %v5895 = vunpack.c.l.b16 %v5839
        %v5896 = vunpack.c.l.b16 %v5840
        %v5897 = vunpack.c.l.b16 %v5841
        %v5898 = vpack.c.b16 %v5891, %v5890
        %v5899 = vpack.c.b16 %v5893, %v5892
        %v5900 = vpack.c.b16 %v5895, %v5894
        %v5901 = vpack.c.b16 %v5897, %v5896
        %v5907 = vsel %vm319, %v5874, 0
        %v5910 = vsel %vm319, %v5875, 0
        %v5913 = vsel %vm319, %v5876, 0
        %v5916 = vsel %vm319, %v5877, 0
        %v5919 = vsel %vm319, %v5878, 0
        %v5922 = vsel %vm319, %v5879, 0
        %v5925 = vsel %vm319, %v5880, 0
        %v5928 = vsel %vm319, %v5881, 0
        %5930 = vmatprep.subr.bf16.mxu0 0
        %5931 = vmatpush1.bf16.msra.mxu0 0
        %5932 = vmatprep.subr.bf16.mxu0 0
        %5933 = vmatpush1.bf16.msra.mxu0 0
        %5934 = vmatprep.subr.bf16.mxu0 0
        %5935 = vmatpush1.bf16.msra.mxu0 0
        %5936 = vmatprep.subr.bf16.mxu0 0
        %5937 = vmatpush1.bf16.msra.mxu0 0
        %5938 = vmatprep.subr.bf16.mxu0 0
        %5939 = vmatpush1.bf16.msra.mxu0 %v5901
        %5940 = vmatprep.subr.bf16.mxu0 0
        %5941 = vmatpush1.bf16.msra.mxu0 %v5900
        %5942 = vmatprep.subr.bf16.mxu0 0
        %5943 = vmatpush1.bf16.msra.mxu0 %v5899
        %5944 = vmatprep.subr.bf16.mxu0 0
        %5945 = vmatpush1.bf16.msra.mxu0 %v5898
        %5946 = vmatprep.subr.bf16.mxu0 0
        %5947 = vmatpush2.bf16.msra.mxu0 0
        %5948 = vmatprep.subr.bf16.mxu0 0
        %5949 = vmatpush2.bf16.msra.mxu0 0
        %5950 = vmatprep.subr.bf16.mxu0 0
        %5951 = vmatpush2.bf16.msra.mxu0 0
        %5952 = vmatprep.subr.bf16.mxu0 0
        %5953 = vmatpush2.bf16.msra.mxu0 0
        %5954 = vmatprep.subr.bf16.mxu0 0
        %5955 = vmatpush2.bf16.msra.mxu0 0
        %5956 = vmatprep.subr.bf16.mxu0 0
        %5957 = vmatpush2.bf16.msra.mxu0 0
        %5958 = vmatprep.subr.bf16.mxu0 0
        %5959 = vmatpush2.bf16.msra.mxu0 0
        %5960 = vmatprep.subr.bf16.mxu0 0
        %5961 = vmatpush2.bf16.msra.mxu0 0
        %5962 = vmatprep.mubr.bf16.mxu0 0
        %5963 = vmatmul.mubr.bf16.gmra.mxu0 %v5907
        %v5964 = vpop.f32.mrf.mxu0
        %v5965 = vadd.f32 0.0, %v5964
        %v5966 = vpop.f32.mrf.mxu0
        %v5967 = vpop.f32.mrf.mxu0
        %v5968 = vadd.f32 0.0, %v5967
        %v5969 = vpop.f32.mrf.mxu0
        %5970 = vmatprep.mubr.bf16.mxu0 0
        %5971 = vmatmul.mubr.bf16.gmra.mxu0 %v5910
        %v5972 = vpop.f32.mrf.mxu0
        %v5973 = vadd.f32 0.0, %v5972
        %v5974 = vpop.f32.mrf.mxu0
        %v5975 = vpop.f32.mrf.mxu0
        %v5976 = vadd.f32 0.0, %v5975
        %v5977 = vpop.f32.mrf.mxu0
        %5978 = vmatprep.mubr.bf16.mxu0 0
        %5979 = vmatmul.mubr.bf16.gmra.mxu0 %v5913
        %v5980 = vpop.f32.mrf.mxu0
        %v5981 = vadd.f32 0.0, %v5980
        %v5982 = vpop.f32.mrf.mxu0
        %v5983 = vpop.f32.mrf.mxu0
        %v5984 = vadd.f32 0.0, %v5983
        %v5985 = vpop.f32.mrf.mxu0
        %5986 = vmatprep.mubr.bf16.mxu0 0
        %5987 = vmatmul.mubr.bf16.gmra.mxu0 %v5916
        %v5988 = vpop.f32.mrf.mxu0
        %v5989 = vadd.f32 0.0, %v5988
        %v5990 = vpop.f32.mrf.mxu0
        %v5991 = vpop.f32.mrf.mxu0
        %v5992 = vadd.f32 0.0, %v5991
        %v5993 = vpop.f32.mrf.mxu0
        %5994 = vmatprep.mubr.bf16.mxu0 0
        %5995 = vmatmul.mubr.bf16.gmra.mxu0 %v5919
        %v5996 = vpop.f32.mrf.mxu0
        %v5997 = vadd.f32 0.0, %v5996
        %v5998 = vpop.f32.mrf.mxu0
        %v5999 = vpop.f32.mrf.mxu0
        %v6000 = vadd.f32 0.0, %v5999
        %v6001 = vpop.f32.mrf.mxu0
        %6002 = vmatprep.mubr.bf16.mxu0 0
        %6003 = vmatmul.mubr.bf16.gmra.mxu0 %v5922
        %v6004 = vpop.f32.mrf.mxu0
        %v6005 = vadd.f32 0.0, %v6004
        %v6006 = vpop.f32.mrf.mxu0
        %v6007 = vpop.f32.mrf.mxu0
        %v6008 = vadd.f32 0.0, %v6007
        %v6009 = vpop.f32.mrf.mxu0
        %6010 = vmatprep.mubr.bf16.mxu0 0
        %6011 = vmatmul.mubr.bf16.gmra.mxu0 %v5925
        %v6012 = vpop.f32.mrf.mxu0
        %v6013 = vadd.f32 0.0, %v6012
        %v6014 = vpop.f32.mrf.mxu0
        %v6015 = vpop.f32.mrf.mxu0
        %v6016 = vadd.f32 0.0, %v6015
        %v6017 = vpop.f32.mrf.mxu0
        %6018 = vmatprep.mubr.bf16.mxu0 0
        %6019 = vmatmul.mubr.bf16.gmra.mxu0 %v5928
        %v6020 = vpop.f32.mrf.mxu0
        %v6021 = vadd.f32 0.0, %v6020
        %v6022 = vpop.f32.mrf.mxu0
        %v6023 = vpop.f32.mrf.mxu0
        %v6024 = vadd.f32 0.0, %v6023
        %v6025 = vpop.f32.mrf.mxu0
        %6026 = vdwg.mxu0
        %v6027 = vadd.f32 %v5818, %v5965
        %v6028 = vadd.f32 %v5819, %v5968
        %v6029 = vadd.f32 %v5820, %v5973
        %v6030 = vadd.f32 %v5821, %v5976
        %v6031 = vadd.f32 %v5822, %v5981
        %v6032 = vadd.f32 %v5823, %v5984
        %v6033 = vadd.f32 %v5824, %v5989
        %v6034 = vadd.f32 %v5825, %v5992
        %v6035 = vadd.f32 %v5826, %v5997
        %v6036 = vadd.f32 %v5827, %v6000
        %v6037 = vadd.f32 %v5828, %v6005
        %v6038 = vadd.f32 %v5829, %v6008
        %v6039 = vadd.f32 %v5830, %v6013
        %v6040 = vadd.f32 %v5831, %v6016
        %v6041 = vadd.f32 %v5832, %v6021
        %v6042 = vadd.f32 %v5833, %v6024
        %v6043 = vld [vmem:[#allocation2 + $0x4c] sm:$0xf]
        %v6044 = vld [vmem:[#allocation2 + $0x50] sm:$0xf]
        %v6045 = vld [vmem:[#allocation2 + $0x54] sm:$0xf]
        %v6046 = vld [vmem:[#allocation2 + $0x58] sm:$0xf]
        %v6047 = vld [vmem:[#allocation2 + $0x5c] sm:$0xf]
        %v6048 = vld [vmem:[#allocation2 + $0x60] sm:$0xf]
        %v6049 = vld [vmem:[#allocation2 + $0x64] sm:$0xf]
        %v6050 = vld [vmem:[#allocation2 + $0x68] sm:$0xf]
        %v6051 = vld [vmem:[#allocation2 + $0x6c] sm:$0xf]
        %v6052 = vld [vmem:[#allocation2 + $0x70] sm:$0xf]
        %v6053 = vld [vmem:[#allocation2 + $0x74] sm:$0xf]
        %v6054 = vld [vmem:[#allocation2 + $0x78] sm:$0xf]
        %v6055 = vld [vmem:[#allocation2 + $0x7c] sm:$0xf]
        %v6056 = vld [vmem:[#allocation2 + $0x80] sm:$0xf]
        %v6057 = vld [vmem:[#allocation2 + $0x84] sm:$0xf]
        %v6058 = vld [vmem:[#allocation2 + $0x88] sm:$0xf]
        %v6059 = vld [vmem:[#allocation2 + $0x8c] sm:$0x1]
        %v6060 = vmul.bf16 %v6043, %v2431
        %v6061 = vmul.bf16 %v6044, %v2440
        %v6062 = vmul.bf16 %v6045, %v2449
        %v6063 = vmul.bf16 %v6046, %v2458
        %v6064 = vmul.bf16 %v6047, %v2467
        %v6065 = vmul.bf16 %v6048, %v2476
        %v6066 = vmul.bf16 %v6049, %v2485
        %v6067 = vmul.bf16 %v6050, %v2494
        %v6068 = vmul.bf16 %v6051, %v2503
        %v6069 = vmul.bf16 %v6052, %v2512
        %v6070 = vmul.bf16 %v6053, %v2521
        %v6071 = vmul.bf16 %v6054, %v2530
        %v6072 = vmul.bf16 %v6055, %v2539
        %v6073 = vmul.bf16 %v6056, %v2548
        %v6074 = vmul.bf16 %v6057, %v2557
        %v6075 = vmul.bf16 %v6058, %v2566
        %v6076 = vmul.bf16 %v6059, %v2567
        %v6077 = vld [vmem:[%s3455] sm:$0xf]
        %v6078 = vld [vmem:[%s3455 + $0x4] sm:$0xf]
        %v6079 = vld [vmem:[%s3455 + $0x8] sm:$0xf]
        %v6080 = vld [vmem:[%s3455 + $0xc] sm:$0xf]
        %v6081 = vld [vmem:[%s3455 + $0x10] sm:$0xf]
        %v6082 = vld [vmem:[%s3455 + $0x14] sm:$0xf]
        %v6083 = vld [vmem:[%s3455 + $0x18] sm:$0xf]
        %v6084 = vld [vmem:[%s3455 + $0x1c] sm:$0xf]
        %v6102 = vunpack.c.l.b16 %v6060
        %v6103 = vunpack.c.l.b16 %v6061
        %v6104 = vunpack.c.l.b16 %v6062
        %v6105 = vunpack.c.l.b16 %v6063
        %v6106 = vunpack.c.l.b16 %v6064
        %v6107 = vunpack.c.l.b16 %v6065
        %v6108 = vunpack.c.l.b16 %v6066
        %v6109 = vunpack.c.l.b16 %v6067
        %v6110 = vunpack.c.l.b16 %v6068
        %v6111 = vunpack.c.l.b16 %v6069
        %v6112 = vunpack.c.l.b16 %v6070
        %v6113 = vunpack.c.l.b16 %v6071
        %v6114 = vunpack.c.l.b16 %v6072
        %v6115 = vunpack.c.l.b16 %v6073
        %v6116 = vunpack.c.l.b16 %v6074
        %v6117 = vunpack.c.l.b16 %v6075
        %v6118 = vunpack.c.l.b16 %v6076
        %v6119 = vpack.c.b16 %v6103, %v6102
        %v6120 = vpack.c.b16 %v6105, %v6104
        %v6121 = vpack.c.b16 %v6107, %v6106
        %v6122 = vpack.c.b16 %v6109, %v6108
        %v6123 = vpack.c.b16 %v6111, %v6110
        %v6124 = vpack.c.b16 %v6113, %v6112
        %v6125 = vpack.c.b16 %v6115, %v6114
        %v6126 = vpack.c.b16 %v6117, %v6116
        %v6127 = vpack.c.b16 %v6118, %v6118
        %v6129 = vshrl.u32 %v6119, 16
        %v6131 = vshll.u32 %v6119, 16
        %v6133 = vrot.slane %v6131, 1
        %v6134 = vor.u32 %v6129, %v6133
        %v6136 = vshll.u32 %v6120, 16
        %v6138 = vrot.slane %v6136, 1
        %v6139 = vsel %vm2654, %v6134, %v6138
        %v6140 = vshrl.u32 %v6120, 16
        %v6142 = vor.u32 %v6140, %v6138
        %v6144 = vshll.u32 %v6121, 16
        %v6146 = vrot.slane %v6144, 1
        %v6147 = vsel %vm2654, %v6142, %v6146
        %v6148 = vshrl.u32 %v6121, 16
        %v6150 = vor.u32 %v6148, %v6146
        %v6152 = vshll.u32 %v6122, 16
        %v6154 = vrot.slane %v6152, 1
        %v6155 = vsel %vm2654, %v6150, %v6154
        %v6156 = vshrl.u32 %v6122, 16
        %v6158 = vor.u32 %v6156, %v6154
        %v6160 = vshll.u32 %v6123, 16
        %v6162 = vrot.slane %v6160, 1
        %v6163 = vsel %vm2654, %v6158, %v6162
        %v6164 = vshrl.u32 %v6123, 16
        %v6166 = vor.u32 %v6164, %v6162
        %v6168 = vshll.u32 %v6124, 16
        %v6170 = vrot.slane %v6168, 1
        %v6171 = vsel %vm2654, %v6166, %v6170
        %v6172 = vshrl.u32 %v6124, 16
        %v6174 = vor.u32 %v6172, %v6170
        %v6176 = vshll.u32 %v6125, 16
        %v6178 = vrot.slane %v6176, 1
        %v6179 = vsel %vm2654, %v6174, %v6178
        %v6180 = vshrl.u32 %v6125, 16
        %v6182 = vor.u32 %v6180, %v6178
        %v6184 = vshll.u32 %v6126, 16
        %v6186 = vrot.slane %v6184, 1
        %v6187 = vsel %vm2654, %v6182, %v6186
        %v6188 = vshrl.u32 %v6126, 16
        %v6190 = vor.u32 %v6188, %v6186
        %v6192 = vshll.u32 %v6127, 16
        %v6194 = vrot.slane %v6192, 1
        %v6195 = vsel %vm2654, %v6190, %v6194
        %v6204 = vunpack.c.l.b16 %v6077
        %v6205 = vunpack.c.l.b16 %v6078
        %v6206 = vunpack.c.l.b16 %v6079
        %v6207 = vunpack.c.l.b16 %v6080
        %v6208 = vunpack.c.l.b16 %v6081
        %v6209 = vunpack.c.l.b16 %v6082
        %v6210 = vunpack.c.l.b16 %v6083
        %v6211 = vunpack.c.l.b16 %v6084
        %v6212 = vpack.c.b16 %v6205, %v6204
        %v6213 = vpack.c.b16 %v6207, %v6206
        %v6214 = vpack.c.b16 %v6209, %v6208
        %v6215 = vpack.c.b16 %v6211, %v6210
        %v6221 = vsel %vm319, %v6139, 0
        %v6224 = vsel %vm319, %v6147, 0
        %v6227 = vsel %vm319, %v6155, 0
        %v6230 = vsel %vm319, %v6163, 0
        %v6233 = vsel %vm319, %v6171, 0
        %v6236 = vsel %vm319, %v6179, 0
        %v6239 = vsel %vm319, %v6187, 0
        %v6242 = vsel %vm319, %v6195, 0
        %6244 = vmatprep.subr.bf16.mxu0 0
        %6245 = vmatpush1.bf16.msra.mxu0 0
        %6246 = vmatprep.subr.bf16.mxu0 0
        %6247 = vmatpush1.bf16.msra.mxu0 0
        %6248 = vmatprep.subr.bf16.mxu0 0
        %6249 = vmatpush1.bf16.msra.mxu0 0
        %6250 = vmatprep.subr.bf16.mxu0 0
        %6251 = vmatpush1.bf16.msra.mxu0 0
        %6252 = vmatprep.subr.bf16.mxu0 0
        %6253 = vmatpush1.bf16.msra.mxu0 %v6215
        %6254 = vmatprep.subr.bf16.mxu0 0
        %6255 = vmatpush1.bf16.msra.mxu0 %v6214
        %6256 = vmatprep.subr.bf16.mxu0 0
        %6257 = vmatpush1.bf16.msra.mxu0 %v6213
        %6258 = vmatprep.subr.bf16.mxu0 0
        %6259 = vmatpush1.bf16.msra.mxu0 %v6212
        %6260 = vmatprep.subr.bf16.mxu0 0
        %6261 = vmatpush2.bf16.msra.mxu0 0
        %6262 = vmatprep.subr.bf16.mxu0 0
        %6263 = vmatpush2.bf16.msra.mxu0 0
        %6264 = vmatprep.subr.bf16.mxu0 0
        %6265 = vmatpush2.bf16.msra.mxu0 0
        %6266 = vmatprep.subr.bf16.mxu0 0
        %6267 = vmatpush2.bf16.msra.mxu0 0
        %6268 = vmatprep.subr.bf16.mxu0 0
        %6269 = vmatpush2.bf16.msra.mxu0 0
        %6270 = vmatprep.subr.bf16.mxu0 0
        %6271 = vmatpush2.bf16.msra.mxu0 0
        %6272 = vmatprep.subr.bf16.mxu0 0
        %6273 = vmatpush2.bf16.msra.mxu0 0
        %6274 = vmatprep.subr.bf16.mxu0 0
        %6275 = vmatpush2.bf16.msra.mxu0 0
        %6276 = vmatprep.mubr.bf16.mxu0 0
        %6277 = vmatmul.mubr.bf16.gmra.mxu0 %v6221
        %v6278 = vpop.f32.mrf.mxu0
        %v6279 = vadd.f32 0.0, %v6278
        %v6280 = vpop.f32.mrf.mxu0
        %v6281 = vpop.f32.mrf.mxu0
        %v6282 = vadd.f32 0.0, %v6281
        %v6283 = vpop.f32.mrf.mxu0
        %6284 = vmatprep.mubr.bf16.mxu0 0
        %6285 = vmatmul.mubr.bf16.gmra.mxu0 %v6224
        %v6286 = vpop.f32.mrf.mxu0
        %v6287 = vadd.f32 0.0, %v6286
        %v6288 = vpop.f32.mrf.mxu0
        %v6289 = vpop.f32.mrf.mxu0
        %v6290 = vadd.f32 0.0, %v6289
        %v6291 = vpop.f32.mrf.mxu0
        %6292 = vmatprep.mubr.bf16.mxu0 0
        %6293 = vmatmul.mubr.bf16.gmra.mxu0 %v6227
        %v6294 = vpop.f32.mrf.mxu0
        %v6295 = vadd.f32 0.0, %v6294
        %v6296 = vpop.f32.mrf.mxu0
        %v6297 = vpop.f32.mrf.mxu0
        %v6298 = vadd.f32 0.0, %v6297
        %v6299 = vpop.f32.mrf.mxu0
        %6300 = vmatprep.mubr.bf16.mxu0 0
        %6301 = vmatmul.mubr.bf16.gmra.mxu0 %v6230
        %v6302 = vpop.f32.mrf.mxu0
        %v6303 = vadd.f32 0.0, %v6302
        %v6304 = vpop.f32.mrf.mxu0
        %v6305 = vpop.f32.mrf.mxu0
        %v6306 = vadd.f32 0.0, %v6305
        %v6307 = vpop.f32.mrf.mxu0
        %6308 = vmatprep.mubr.bf16.mxu0 0
        %6309 = vmatmul.mubr.bf16.gmra.mxu0 %v6233
        %v6310 = vpop.f32.mrf.mxu0
        %v6311 = vadd.f32 0.0, %v6310
        %v6312 = vpop.f32.mrf.mxu0
        %v6313 = vpop.f32.mrf.mxu0
        %v6314 = vadd.f32 0.0, %v6313
        %v6315 = vpop.f32.mrf.mxu0
        %6316 = vmatprep.mubr.bf16.mxu0 0
        %6317 = vmatmul.mubr.bf16.gmra.mxu0 %v6236
        %v6318 = vpop.f32.mrf.mxu0
        %v6319 = vadd.f32 0.0, %v6318
        %v6320 = vpop.f32.mrf.mxu0
        %v6321 = vpop.f32.mrf.mxu0
        %v6322 = vadd.f32 0.0, %v6321
        %v6323 = vpop.f32.mrf.mxu0
        %6324 = vmatprep.mubr.bf16.mxu0 0
        %6325 = vmatmul.mubr.bf16.gmra.mxu0 %v6239
        %v6326 = vpop.f32.mrf.mxu0
        %v6327 = vadd.f32 0.0, %v6326
        %v6328 = vpop.f32.mrf.mxu0
        %v6329 = vpop.f32.mrf.mxu0
        %v6330 = vadd.f32 0.0, %v6329
        %v6331 = vpop.f32.mrf.mxu0
        %6332 = vmatprep.mubr.bf16.mxu0 0
        %6333 = vmatmul.mubr.bf16.gmra.mxu0 %v6242
        %v6334 = vpop.f32.mrf.mxu0
        %v6335 = vadd.f32 0.0, %v6334
        %v6336 = vpop.f32.mrf.mxu0
        %v6337 = vpop.f32.mrf.mxu0
        %v6338 = vadd.f32 0.0, %v6337
        %v6339 = vpop.f32.mrf.mxu0
        %6340 = vdwg.mxu0
        %v6341 = vadd.f32 %v6027, %v6279
        %v6342 = vadd.f32 %v6028, %v6282
        %v6343 = vadd.f32 %v6029, %v6287
        %v6344 = vadd.f32 %v6030, %v6290
        %v6345 = vadd.f32 %v6031, %v6295
        %v6346 = vadd.f32 %v6032, %v6298
        %v6347 = vadd.f32 %v6033, %v6303
        %v6348 = vadd.f32 %v6034, %v6306
        %v6349 = vadd.f32 %v6035, %v6311
        %v6350 = vadd.f32 %v6036, %v6314
        %v6351 = vadd.f32 %v6037, %v6319
        %v6352 = vadd.f32 %v6038, %v6322
        %v6353 = vadd.f32 %v6039, %v6327
        %v6354 = vadd.f32 %v6040, %v6330
        %v6355 = vadd.f32 %v6041, %v6335
        %v6356 = vadd.f32 %v6042, %v6338
        %v6357 = vld [vmem:[#allocation2 + $0x50] sm:$0x8]
        %v6358 = vld [vmem:[#allocation2 + $0x54] sm:$0xf]
        %v6359 = vld [vmem:[#allocation2 + $0x58] sm:$0xf]
        %v6360 = vld [vmem:[#allocation2 + $0x5c] sm:$0xf]
        %v6361 = vld [vmem:[#allocation2 + $0x60] sm:$0xf]
        %v6362 = vld [vmem:[#allocation2 + $0x64] sm:$0xf]
        %v6363 = vld [vmem:[#allocation2 + $0x68] sm:$0xf]
        %v6364 = vld [vmem:[#allocation2 + $0x6c] sm:$0xf]
        %v6365 = vld [vmem:[#allocation2 + $0x70] sm:$0xf]
        %v6366 = vld [vmem:[#allocation2 + $0x74] sm:$0xf]
        %v6367 = vld [vmem:[#allocation2 + $0x78] sm:$0xf]
        %v6368 = vld [vmem:[#allocation2 + $0x7c] sm:$0xf]
        %v6369 = vld [vmem:[#allocation2 + $0x80] sm:$0xf]
        %v6370 = vld [vmem:[#allocation2 + $0x84] sm:$0xf]
        %v6371 = vld [vmem:[#allocation2 + $0x88] sm:$0xf]
        %v6372 = vld [vmem:[#allocation2 + $0x8c] sm:$0xf]
        %v6373 = vld [vmem:[#allocation2 + $0x90] sm:$0xf]
        %v6374 = vmul.bf16 %v6357, %v1624
        %v6375 = vmul.bf16 %v6358, %v1634
        %v6376 = vmul.bf16 %v6359, %v1644
        %v6377 = vmul.bf16 %v6360, %v1654
        %v6378 = vmul.bf16 %v6361, %v1664
        %v6379 = vmul.bf16 %v6362, %v1674
        %v6380 = vmul.bf16 %v6363, %v1684
        %v6381 = vmul.bf16 %v6364, %v1694
        %v6382 = vmul.bf16 %v6365, %v1704
        %v6383 = vmul.bf16 %v6366, %v1714
        %v6384 = vmul.bf16 %v6367, %v1724
        %v6385 = vmul.bf16 %v6368, %v1734
        %v6386 = vmul.bf16 %v6369, %v1744
        %v6387 = vmul.bf16 %v6370, %v1754
        %v6388 = vmul.bf16 %v6371, %v1764
        %v6389 = vmul.bf16 %v6372, %v1774
        %v6390 = vmul.bf16 %v6373, %v1779
        %v6391 = vld [vmem:[%s3770] sm:$0xf]
        %v6392 = vld [vmem:[%s3770 + $0x4] sm:$0xf]
        %v6393 = vld [vmem:[%s3770 + $0x8] sm:$0xf]
        %v6394 = vld [vmem:[%s3770 + $0xc] sm:$0xf]
        %v6395 = vld [vmem:[%s3770 + $0x10] sm:$0xf]
        %v6396 = vld [vmem:[%s3770 + $0x14] sm:$0xf]
        %v6397 = vld [vmem:[%s3770 + $0x18] sm:$0xf]
        %v6398 = vld [vmem:[%s3770 + $0x1c] sm:$0xf]
        %v6416 = vunpack.c.l.b16 %v6374
        %v6417 = vunpack.c.l.b16 %v6375
        %v6418 = vunpack.c.l.b16 %v6376
        %v6419 = vunpack.c.l.b16 %v6377
        %v6420 = vunpack.c.l.b16 %v6378
        %v6421 = vunpack.c.l.b16 %v6379
        %v6422 = vunpack.c.l.b16 %v6380
        %v6423 = vunpack.c.l.b16 %v6381
        %v6424 = vunpack.c.l.b16 %v6382
        %v6425 = vunpack.c.l.b16 %v6383
        %v6426 = vunpack.c.l.b16 %v6384
        %v6427 = vunpack.c.l.b16 %v6385
        %v6428 = vunpack.c.l.b16 %v6386
        %v6429 = vunpack.c.l.b16 %v6387
        %v6430 = vunpack.c.l.b16 %v6388
        %v6431 = vunpack.c.l.b16 %v6389
        %v6432 = vunpack.c.l.b16 %v6390
        %v6433 = vpack.c.b16 %v6417, %v6416
        %v6434 = vpack.c.b16 %v6419, %v6418
        %v6435 = vpack.c.b16 %v6421, %v6420
        %v6436 = vpack.c.b16 %v6423, %v6422
        %v6437 = vpack.c.b16 %v6425, %v6424
        %v6438 = vpack.c.b16 %v6427, %v6426
        %v6439 = vpack.c.b16 %v6429, %v6428
        %v6440 = vpack.c.b16 %v6431, %v6430
        %v6441 = vpack.c.b16 %v6432, %v6432
        %v6443 = vshrl.u32 %v6433, 16
        %v6445 = vrot.slane %v6443, 3
        %v6446 = vshll.u32 %v6433, 16
        %v6448 = vrot.slane %v6446, 4
        %v6449 = vor.u32 %v6445, %v6448
        %v6451 = vshrl.u32 %v6434, 16
        %v6453 = vrot.slane %v6451, 3
        %v6454 = vshll.u32 %v6434, 16
        %v6456 = vrot.slane %v6454, 4
        %v6457 = vor.u32 %v6453, %v6456
        %v6458 = vsel %vm2059, %v6449, %v6457
        %v6460 = vshrl.u32 %v6435, 16
        %v6462 = vrot.slane %v6460, 3
        %v6463 = vshll.u32 %v6435, 16
        %v6465 = vrot.slane %v6463, 4
        %v6466 = vor.u32 %v6462, %v6465
        %v6467 = vsel %vm2059, %v6457, %v6466
        %v6469 = vshrl.u32 %v6436, 16
        %v6471 = vrot.slane %v6469, 3
        %v6472 = vshll.u32 %v6436, 16
        %v6474 = vrot.slane %v6472, 4
        %v6475 = vor.u32 %v6471, %v6474
        %v6476 = vsel %vm2059, %v6466, %v6475
        %v6478 = vshrl.u32 %v6437, 16
        %v6480 = vrot.slane %v6478, 3
        %v6481 = vshll.u32 %v6437, 16
        %v6483 = vrot.slane %v6481, 4
        %v6484 = vor.u32 %v6480, %v6483
        %v6485 = vsel %vm2059, %v6475, %v6484
        %v6487 = vshrl.u32 %v6438, 16
        %v6489 = vrot.slane %v6487, 3
        %v6490 = vshll.u32 %v6438, 16
        %v6492 = vrot.slane %v6490, 4
        %v6493 = vor.u32 %v6489, %v6492
        %v6494 = vsel %vm2059, %v6484, %v6493
        %v6496 = vshrl.u32 %v6439, 16
        %v6498 = vrot.slane %v6496, 3
        %v6499 = vshll.u32 %v6439, 16
        %v6501 = vrot.slane %v6499, 4
        %v6502 = vor.u32 %v6498, %v6501
        %v6503 = vsel %vm2059, %v6493, %v6502
        %v6505 = vshrl.u32 %v6440, 16
        %v6507 = vrot.slane %v6505, 3
        %v6508 = vshll.u32 %v6440, 16
        %v6510 = vrot.slane %v6508, 4
        %v6511 = vor.u32 %v6507, %v6510
        %v6512 = vsel %vm2059, %v6502, %v6511
        %v6514 = vshrl.u32 %v6441, 16
        %v6516 = vrot.slane %v6514, 3
        %v6517 = vshll.u32 %v6441, 16
        %v6519 = vrot.slane %v6517, 4
        %v6520 = vor.u32 %v6516, %v6519
        %v6521 = vsel %vm2059, %v6511, %v6520
        %v6530 = vunpack.c.l.b16 %v6391
        %v6531 = vunpack.c.l.b16 %v6392
        %v6532 = vunpack.c.l.b16 %v6393
        %v6533 = vunpack.c.l.b16 %v6394
        %v6534 = vunpack.c.l.b16 %v6395
        %v6535 = vunpack.c.l.b16 %v6396
        %v6536 = vunpack.c.l.b16 %v6397
        %v6537 = vunpack.c.l.b16 %v6398
        %v6538 = vpack.c.b16 %v6531, %v6530
        %v6539 = vpack.c.b16 %v6533, %v6532
        %v6540 = vpack.c.b16 %v6535, %v6534
        %v6541 = vpack.c.b16 %v6537, %v6536
        %v6547 = vsel %vm319, %v6458, 0
        %v6550 = vsel %vm319, %v6467, 0
        %v6553 = vsel %vm319, %v6476, 0
        %v6556 = vsel %vm319, %v6485, 0
        %v6559 = vsel %vm319, %v6494, 0
        %v6562 = vsel %vm319, %v6503, 0
        %v6565 = vsel %vm319, %v6512, 0
        %v6568 = vsel %vm319, %v6521, 0
        %6570 = vmatprep.subr.bf16.mxu0 0
        %6571 = vmatpush1.bf16.msra.mxu0 0
        %6572 = vmatprep.subr.bf16.mxu0 0
        %6573 = vmatpush1.bf16.msra.mxu0 0
        %6574 = vmatprep.subr.bf16.mxu0 0
        %6575 = vmatpush1.bf16.msra.mxu0 0
        %6576 = vmatprep.subr.bf16.mxu0 0
        %6577 = vmatpush1.bf16.msra.mxu0 0
        %6578 = vmatprep.subr.bf16.mxu0 0
        %6579 = vmatpush1.bf16.msra.mxu0 %v6541
        %6580 = vmatprep.subr.bf16.mxu0 0
        %6581 = vmatpush1.bf16.msra.mxu0 %v6540
        %6582 = vmatprep.subr.bf16.mxu0 0
        %6583 = vmatpush1.bf16.msra.mxu0 %v6539
        %6584 = vmatprep.subr.bf16.mxu0 0
        %6585 = vmatpush1.bf16.msra.mxu0 %v6538
        %6586 = vmatprep.subr.bf16.mxu0 0
        %6587 = vmatpush2.bf16.msra.mxu0 0
        %6588 = vmatprep.subr.bf16.mxu0 0
        %6589 = vmatpush2.bf16.msra.mxu0 0
        %6590 = vmatprep.subr.bf16.mxu0 0
        %6591 = vmatpush2.bf16.msra.mxu0 0
        %6592 = vmatprep.subr.bf16.mxu0 0
        %6593 = vmatpush2.bf16.msra.mxu0 0
        %6594 = vmatprep.subr.bf16.mxu0 0
        %6595 = vmatpush2.bf16.msra.mxu0 0
        %6596 = vmatprep.subr.bf16.mxu0 0
        %6597 = vmatpush2.bf16.msra.mxu0 0
        %6598 = vmatprep.subr.bf16.mxu0 0
        %6599 = vmatpush2.bf16.msra.mxu0 0
        %6600 = vmatprep.subr.bf16.mxu0 0
        %6601 = vmatpush2.bf16.msra.mxu0 0
        %6602 = vmatprep.mubr.bf16.mxu0 0
        %6603 = vmatmul.mubr.bf16.gmra.mxu0 %v6547
        %v6604 = vpop.f32.mrf.mxu0
        %v6605 = vadd.f32 0.0, %v6604
        %v6606 = vpop.f32.mrf.mxu0
        %v6607 = vpop.f32.mrf.mxu0
        %v6608 = vadd.f32 0.0, %v6607
        %v6609 = vpop.f32.mrf.mxu0
        %6610 = vmatprep.mubr.bf16.mxu0 0
        %6611 = vmatmul.mubr.bf16.gmra.mxu0 %v6550
        %v6612 = vpop.f32.mrf.mxu0
        %v6613 = vadd.f32 0.0, %v6612
        %v6614 = vpop.f32.mrf.mxu0
        %v6615 = vpop.f32.mrf.mxu0
        %v6616 = vadd.f32 0.0, %v6615
        %v6617 = vpop.f32.mrf.mxu0
        %6618 = vmatprep.mubr.bf16.mxu0 0
        %6619 = vmatmul.mubr.bf16.gmra.mxu0 %v6553
        %v6620 = vpop.f32.mrf.mxu0
        %v6621 = vadd.f32 0.0, %v6620
        %v6622 = vpop.f32.mrf.mxu0
        %v6623 = vpop.f32.mrf.mxu0
        %v6624 = vadd.f32 0.0, %v6623
        %v6625 = vpop.f32.mrf.mxu0
        %6626 = vmatprep.mubr.bf16.mxu0 0
        %6627 = vmatmul.mubr.bf16.gmra.mxu0 %v6556
        %v6628 = vpop.f32.mrf.mxu0
        %v6629 = vadd.f32 0.0, %v6628
        %v6630 = vpop.f32.mrf.mxu0
        %v6631 = vpop.f32.mrf.mxu0
        %v6632 = vadd.f32 0.0, %v6631
        %v6633 = vpop.f32.mrf.mxu0
        %6634 = vmatprep.mubr.bf16.mxu0 0
        %6635 = vmatmul.mubr.bf16.gmra.mxu0 %v6559
        %v6636 = vpop.f32.mrf.mxu0
        %v6637 = vadd.f32 0.0, %v6636
        %v6638 = vpop.f32.mrf.mxu0
        %v6639 = vpop.f32.mrf.mxu0
        %v6640 = vadd.f32 0.0, %v6639
        %v6641 = vpop.f32.mrf.mxu0
        %6642 = vmatprep.mubr.bf16.mxu0 0
        %6643 = vmatmul.mubr.bf16.gmra.mxu0 %v6562
        %v6644 = vpop.f32.mrf.mxu0
        %v6645 = vadd.f32 0.0, %v6644
        %v6646 = vpop.f32.mrf.mxu0
        %v6647 = vpop.f32.mrf.mxu0
        %v6648 = vadd.f32 0.0, %v6647
        %v6649 = vpop.f32.mrf.mxu0
        %6650 = vmatprep.mubr.bf16.mxu0 0
        %6651 = vmatmul.mubr.bf16.gmra.mxu0 %v6565
        %v6652 = vpop.f32.mrf.mxu0
        %v6653 = vadd.f32 0.0, %v6652
        %v6654 = vpop.f32.mrf.mxu0
        %v6655 = vpop.f32.mrf.mxu0
        %v6656 = vadd.f32 0.0, %v6655
        %v6657 = vpop.f32.mrf.mxu0
        %6658 = vmatprep.mubr.bf16.mxu0 0
        %6659 = vmatmul.mubr.bf16.gmra.mxu0 %v6568
        %v6660 = vpop.f32.mrf.mxu0
        %v6661 = vadd.f32 0.0, %v6660
        %v6662 = vpop.f32.mrf.mxu0
        %v6663 = vpop.f32.mrf.mxu0
        %v6664 = vadd.f32 0.0, %v6663
        %v6665 = vpop.f32.mrf.mxu0
        %6666 = vdwg.mxu0
        %v6667 = vadd.f32 %v6341, %v6605
        %v6668 = vadd.f32 %v6342, %v6608
        %v6669 = vadd.f32 %v6343, %v6613
        %v6670 = vadd.f32 %v6344, %v6616
        %v6671 = vadd.f32 %v6345, %v6621
        %v6672 = vadd.f32 %v6346, %v6624
        %v6673 = vadd.f32 %v6347, %v6629
        %v6674 = vadd.f32 %v6348, %v6632
        %v6675 = vadd.f32 %v6349, %v6637
        %v6676 = vadd.f32 %v6350, %v6640
        %v6677 = vadd.f32 %v6351, %v6645
        %v6678 = vadd.f32 %v6352, %v6648
        %v6679 = vadd.f32 %v6353, %v6653
        %v6680 = vadd.f32 %v6354, %v6656
        %v6681 = vadd.f32 %v6355, %v6661
        %v6682 = vadd.f32 %v6356, %v6664
        %v6683 = vld [vmem:[%s4063] sm:$0xf]
        %v6684 = vld [vmem:[%s4063 + $0x4] sm:$0xf]
        %v6685 = vld [vmem:[%s4063 + $0x8] sm:$0xf]
        %v6686 = vld [vmem:[%s4063 + $0xc] sm:$0xf]
        %v6687 = vld [vmem:[%s4063 + $0x10] sm:$0xf]
        %v6688 = vld [vmem:[%s4063 + $0x14] sm:$0xf]
        %v6689 = vld [vmem:[%s4063 + $0x18] sm:$0xf]
        %v6690 = vld [vmem:[%s4063 + $0x1c] sm:$0xf]
        %v6707 = vunpack.c.l.b16 %v6358
        %v6708 = vunpack.c.l.b16 %v6359
        %v6709 = vunpack.c.l.b16 %v6360
        %v6710 = vunpack.c.l.b16 %v6361
        %v6711 = vunpack.c.l.b16 %v6362
        %v6712 = vunpack.c.l.b16 %v6363
        %v6713 = vunpack.c.l.b16 %v6364
        %v6714 = vunpack.c.l.b16 %v6365
        %v6715 = vunpack.c.l.b16 %v6366
        %v6716 = vunpack.c.l.b16 %v6367
        %v6717 = vunpack.c.l.b16 %v6368
        %v6718 = vunpack.c.l.b16 %v6369
        %v6719 = vunpack.c.l.b16 %v6370
        %v6720 = vunpack.c.l.b16 %v6371
        %v6721 = vunpack.c.l.b16 %v6372
        %v6722 = vunpack.c.l.b16 %v6373
        %v6723 = vpack.c.b16 %v6708, %v6707
        %v6724 = vpack.c.b16 %v6710, %v6709
        %v6725 = vpack.c.b16 %v6712, %v6711
        %v6726 = vpack.c.b16 %v6714, %v6713
        %v6727 = vpack.c.b16 %v6716, %v6715
        %v6728 = vpack.c.b16 %v6718, %v6717
        %v6729 = vpack.c.b16 %v6720, %v6719
        %v6730 = vpack.c.b16 %v6722, %v6721
        %v6739 = vunpack.c.l.b16 %v6683
        %v6740 = vunpack.c.l.b16 %v6684
        %v6741 = vunpack.c.l.b16 %v6685
        %v6742 = vunpack.c.l.b16 %v6686
        %v6743 = vunpack.c.l.b16 %v6687
        %v6744 = vunpack.c.l.b16 %v6688
        %v6745 = vunpack.c.l.b16 %v6689
        %v6746 = vunpack.c.l.b16 %v6690
        %v6747 = vpack.c.b16 %v6740, %v6739
        %v6748 = vpack.c.b16 %v6742, %v6741
        %v6749 = vpack.c.b16 %v6744, %v6743
        %v6750 = vpack.c.b16 %v6746, %v6745
        %v6756 = vsel %vm319, %v6723, 0
        %v6759 = vsel %vm319, %v6724, 0
        %v6762 = vsel %vm319, %v6725, 0
        %v6765 = vsel %vm319, %v6726, 0
        %v6768 = vsel %vm319, %v6727, 0
        %v6771 = vsel %vm319, %v6728, 0
        %v6774 = vsel %vm319, %v6729, 0
        %v6777 = vsel %vm319, %v6730, 0
        %6779 = vmatprep.subr.bf16.mxu0 0
        %6780 = vmatpush1.bf16.msra.mxu0 0
        %6781 = vmatprep.subr.bf16.mxu0 0
        %6782 = vmatpush1.bf16.msra.mxu0 0
        %6783 = vmatprep.subr.bf16.mxu0 0
        %6784 = vmatpush1.bf16.msra.mxu0 0
        %6785 = vmatprep.subr.bf16.mxu0 0
        %6786 = vmatpush1.bf16.msra.mxu0 0
        %6787 = vmatprep.subr.bf16.mxu0 0
        %6788 = vmatpush1.bf16.msra.mxu0 %v6750
        %6789 = vmatprep.subr.bf16.mxu0 0
        %6790 = vmatpush1.bf16.msra.mxu0 %v6749
        %6791 = vmatprep.subr.bf16.mxu0 0
        %6792 = vmatpush1.bf16.msra.mxu0 %v6748
        %6793 = vmatprep.subr.bf16.mxu0 0
        %6794 = vmatpush1.bf16.msra.mxu0 %v6747
        %6795 = vmatprep.subr.bf16.mxu0 0
        %6796 = vmatpush2.bf16.msra.mxu0 0
        %6797 = vmatprep.subr.bf16.mxu0 0
        %6798 = vmatpush2.bf16.msra.mxu0 0
        %6799 = vmatprep.subr.bf16.mxu0 0
        %6800 = vmatpush2.bf16.msra.mxu0 0
        %6801 = vmatprep.subr.bf16.mxu0 0
        %6802 = vmatpush2.bf16.msra.mxu0 0
        %6803 = vmatprep.subr.bf16.mxu0 0
        %6804 = vmatpush2.bf16.msra.mxu0 0
        %6805 = vmatprep.subr.bf16.mxu0 0
        %6806 = vmatpush2.bf16.msra.mxu0 0
        %6807 = vmatprep.subr.bf16.mxu0 0
        %6808 = vmatpush2.bf16.msra.mxu0 0
        %6809 = vmatprep.subr.bf16.mxu0 0
        %6810 = vmatpush2.bf16.msra.mxu0 0
        %6811 = vmatprep.mubr.bf16.mxu0 0
        %6812 = vmatmul.mubr.bf16.gmra.mxu0 %v6756
        %v6813 = vpop.f32.mrf.mxu0
        %v6814 = vadd.f32 0.0, %v6813
        %v6815 = vpop.f32.mrf.mxu0
        %v6816 = vpop.f32.mrf.mxu0
        %v6817 = vadd.f32 0.0, %v6816
        %v6818 = vpop.f32.mrf.mxu0
        %6819 = vmatprep.mubr.bf16.mxu0 0
        %6820 = vmatmul.mubr.bf16.gmra.mxu0 %v6759
        %v6821 = vpop.f32.mrf.mxu0
        %v6822 = vadd.f32 0.0, %v6821
        %v6823 = vpop.f32.mrf.mxu0
        %v6824 = vpop.f32.mrf.mxu0
        %v6825 = vadd.f32 0.0, %v6824
        %v6826 = vpop.f32.mrf.mxu0
        %6827 = vmatprep.mubr.bf16.mxu0 0
        %6828 = vmatmul.mubr.bf16.gmra.mxu0 %v6762
        %v6829 = vpop.f32.mrf.mxu0
        %v6830 = vadd.f32 0.0, %v6829
        %v6831 = vpop.f32.mrf.mxu0
        %v6832 = vpop.f32.mrf.mxu0
        %v6833 = vadd.f32 0.0, %v6832
        %v6834 = vpop.f32.mrf.mxu0
        %6835 = vmatprep.mubr.bf16.mxu0 0
        %6836 = vmatmul.mubr.bf16.gmra.mxu0 %v6765
        %v6837 = vpop.f32.mrf.mxu0
        %v6838 = vadd.f32 0.0, %v6837
        %v6839 = vpop.f32.mrf.mxu0
        %v6840 = vpop.f32.mrf.mxu0
        %v6841 = vadd.f32 0.0, %v6840
        %v6842 = vpop.f32.mrf.mxu0
        %6843 = vmatprep.mubr.bf16.mxu0 0
        %6844 = vmatmul.mubr.bf16.gmra.mxu0 %v6768
        %v6845 = vpop.f32.mrf.mxu0
        %v6846 = vadd.f32 0.0, %v6845
        %v6847 = vpop.f32.mrf.mxu0
        %v6848 = vpop.f32.mrf.mxu0
        %v6849 = vadd.f32 0.0, %v6848
        %v6850 = vpop.f32.mrf.mxu0
        %6851 = vmatprep.mubr.bf16.mxu0 0
        %6852 = vmatmul.mubr.bf16.gmra.mxu0 %v6771
        %v6853 = vpop.f32.mrf.mxu0
        %v6854 = vadd.f32 0.0, %v6853
        %v6855 = vpop.f32.mrf.mxu0
        %v6856 = vpop.f32.mrf.mxu0
        %v6857 = vadd.f32 0.0, %v6856
        %v6858 = vpop.f32.mrf.mxu0
        %6859 = vmatprep.mubr.bf16.mxu0 0
        %6860 = vmatmul.mubr.bf16.gmra.mxu0 %v6774
        %v6861 = vpop.f32.mrf.mxu0
        %v6862 = vadd.f32 0.0, %v6861
        %v6863 = vpop.f32.mrf.mxu0
        %v6864 = vpop.f32.mrf.mxu0
        %v6865 = vadd.f32 0.0, %v6864
        %v6866 = vpop.f32.mrf.mxu0
        %6867 = vmatprep.mubr.bf16.mxu0 0
        %6868 = vmatmul.mubr.bf16.gmra.mxu0 %v6777
        %v6869 = vpop.f32.mrf.mxu0
        %v6870 = vadd.f32 0.0, %v6869
        %v6871 = vpop.f32.mrf.mxu0
        %v6872 = vpop.f32.mrf.mxu0
        %v6873 = vadd.f32 0.0, %v6872
        %v6874 = vpop.f32.mrf.mxu0
        %6875 = vdwg.mxu0
        %v6876 = vadd.f32 %v6667, %v6814
        %v6877 = vadd.f32 %v6668, %v6817
        %v6878 = vadd.f32 %v6669, %v6822
        %v6879 = vadd.f32 %v6670, %v6825
        %v6880 = vadd.f32 %v6671, %v6830
        %v6881 = vadd.f32 %v6672, %v6833
        %v6882 = vadd.f32 %v6673, %v6838
        %v6883 = vadd.f32 %v6674, %v6841
        %v6884 = vadd.f32 %v6675, %v6846
        %v6885 = vadd.f32 %v6676, %v6849
        %v6886 = vadd.f32 %v6677, %v6854
        %v6887 = vadd.f32 %v6678, %v6857
        %v6888 = vadd.f32 %v6679, %v6862
        %v6889 = vadd.f32 %v6680, %v6865
        %v6890 = vadd.f32 %v6681, %v6870
        %v6891 = vadd.f32 %v6682, %v6873
        %v6892 = vld [vmem:[#allocation2 + $0x54] sm:$0xf]
        %v6893 = vld [vmem:[#allocation2 + $0x58] sm:$0xf]
        %v6894 = vld [vmem:[#allocation2 + $0x5c] sm:$0xf]
        %v6895 = vld [vmem:[#allocation2 + $0x60] sm:$0xf]
        %v6896 = vld [vmem:[#allocation2 + $0x64] sm:$0xf]
        %v6897 = vld [vmem:[#allocation2 + $0x68] sm:$0xf]
        %v6898 = vld [vmem:[#allocation2 + $0x6c] sm:$0xf]
        %v6899 = vld [vmem:[#allocation2 + $0x70] sm:$0xf]
        %v6900 = vld [vmem:[#allocation2 + $0x74] sm:$0xf]
        %v6901 = vld [vmem:[#allocation2 + $0x78] sm:$0xf]
        %v6902 = vld [vmem:[#allocation2 + $0x7c] sm:$0xf]
        %v6903 = vld [vmem:[#allocation2 + $0x80] sm:$0xf]
        %v6904 = vld [vmem:[#allocation2 + $0x84] sm:$0xf]
        %v6905 = vld [vmem:[#allocation2 + $0x88] sm:$0xf]
        %v6906 = vld [vmem:[#allocation2 + $0x8c] sm:$0xf]
        %v6907 = vld [vmem:[#allocation2 + $0x90] sm:$0xf]
        %v6908 = vld [vmem:[#allocation2 + $0x94] sm:$0x1]
        %v6909 = vmul.bf16 %v6892, %v2431
        %v6910 = vmul.bf16 %v6893, %v2440
        %v6911 = vmul.bf16 %v6894, %v2449
        %v6912 = vmul.bf16 %v6895, %v2458
        %v6913 = vmul.bf16 %v6896, %v2467
        %v6914 = vmul.bf16 %v6897, %v2476
        %v6915 = vmul.bf16 %v6898, %v2485
        %v6916 = vmul.bf16 %v6899, %v2494
        %v6917 = vmul.bf16 %v6900, %v2503
        %v6918 = vmul.bf16 %v6901, %v2512
        %v6919 = vmul.bf16 %v6902, %v2521
        %v6920 = vmul.bf16 %v6903, %v2530
        %v6921 = vmul.bf16 %v6904, %v2539
        %v6922 = vmul.bf16 %v6905, %v2548
        %v6923 = vmul.bf16 %v6906, %v2557
        %v6924 = vmul.bf16 %v6907, %v2566
        %v6925 = vmul.bf16 %v6908, %v2567
        %v6926 = vld [vmem:[%s4307] sm:$0xf]
        %v6927 = vld [vmem:[%s4307 + $0x4] sm:$0xf]
        %v6928 = vld [vmem:[%s4307 + $0x8] sm:$0xf]
        %v6929 = vld [vmem:[%s4307 + $0xc] sm:$0xf]
        %v6930 = vld [vmem:[%s4307 + $0x10] sm:$0xf]
        %v6931 = vld [vmem:[%s4307 + $0x14] sm:$0xf]
        %v6932 = vld [vmem:[%s4307 + $0x18] sm:$0xf]
        %v6933 = vld [vmem:[%s4307 + $0x1c] sm:$0xf]
        %v6951 = vunpack.c.l.b16 %v6909
        %v6952 = vunpack.c.l.b16 %v6910
        %v6953 = vunpack.c.l.b16 %v6911
        %v6954 = vunpack.c.l.b16 %v6912
        %v6955 = vunpack.c.l.b16 %v6913
        %v6956 = vunpack.c.l.b16 %v6914
        %v6957 = vunpack.c.l.b16 %v6915
        %v6958 = vunpack.c.l.b16 %v6916
        %v6959 = vunpack.c.l.b16 %v6917
        %v6960 = vunpack.c.l.b16 %v6918
        %v6961 = vunpack.c.l.b16 %v6919
        %v6962 = vunpack.c.l.b16 %v6920
        %v6963 = vunpack.c.l.b16 %v6921
        %v6964 = vunpack.c.l.b16 %v6922
        %v6965 = vunpack.c.l.b16 %v6923
        %v6966 = vunpack.c.l.b16 %v6924
        %v6967 = vunpack.c.l.b16 %v6925
        %v6968 = vpack.c.b16 %v6952, %v6951
        %v6969 = vpack.c.b16 %v6954, %v6953
        %v6970 = vpack.c.b16 %v6956, %v6955
        %v6971 = vpack.c.b16 %v6958, %v6957
        %v6972 = vpack.c.b16 %v6960, %v6959
        %v6973 = vpack.c.b16 %v6962, %v6961
        %v6974 = vpack.c.b16 %v6964, %v6963
        %v6975 = vpack.c.b16 %v6966, %v6965
        %v6976 = vpack.c.b16 %v6967, %v6967
        %v6978 = vshrl.u32 %v6968, 16
        %v6980 = vshll.u32 %v6968, 16
        %v6982 = vrot.slane %v6980, 1
        %v6983 = vor.u32 %v6978, %v6982
        %v6985 = vshll.u32 %v6969, 16
        %v6987 = vrot.slane %v6985, 1
        %v6988 = vsel %vm2654, %v6983, %v6987
        %v6989 = vshrl.u32 %v6969, 16
        %v6991 = vor.u32 %v6989, %v6987
        %v6993 = vshll.u32 %v6970, 16
        %v6995 = vrot.slane %v6993, 1
        %v6996 = vsel %vm2654, %v6991, %v6995
        %v6997 = vshrl.u32 %v6970, 16
        %v6999 = vor.u32 %v6997, %v6995
        %v7001 = vshll.u32 %v6971, 16
        %v7003 = vrot.slane %v7001, 1
        %v7004 = vsel %vm2654, %v6999, %v7003
        %v7005 = vshrl.u32 %v6971, 16
        %v7007 = vor.u32 %v7005, %v7003
        %v7009 = vshll.u32 %v6972, 16
        %v7011 = vrot.slane %v7009, 1
        %v7012 = vsel %vm2654, %v7007, %v7011
        %v7013 = vshrl.u32 %v6972, 16
        %v7015 = vor.u32 %v7013, %v7011
        %v7017 = vshll.u32 %v6973, 16
        %v7019 = vrot.slane %v7017, 1
        %v7020 = vsel %vm2654, %v7015, %v7019
        %v7021 = vshrl.u32 %v6973, 16
        %v7023 = vor.u32 %v7021, %v7019
        %v7025 = vshll.u32 %v6974, 16
        %v7027 = vrot.slane %v7025, 1
        %v7028 = vsel %vm2654, %v7023, %v7027
        %v7029 = vshrl.u32 %v6974, 16
        %v7031 = vor.u32 %v7029, %v7027
        %v7033 = vshll.u32 %v6975, 16
        %v7035 = vrot.slane %v7033, 1
        %v7036 = vsel %vm2654, %v7031, %v7035
        %v7037 = vshrl.u32 %v6975, 16
        %v7039 = vor.u32 %v7037, %v7035
        %v7041 = vshll.u32 %v6976, 16
        %v7043 = vrot.slane %v7041, 1
        %v7044 = vsel %vm2654, %v7039, %v7043
        %v7053 = vunpack.c.l.b16 %v6926
        %v7054 = vunpack.c.l.b16 %v6927
        %v7055 = vunpack.c.l.b16 %v6928
        %v7056 = vunpack.c.l.b16 %v6929
        %v7057 = vunpack.c.l.b16 %v6930
        %v7058 = vunpack.c.l.b16 %v6931
        %v7059 = vunpack.c.l.b16 %v6932
        %v7060 = vunpack.c.l.b16 %v6933
        %v7061 = vpack.c.b16 %v7054, %v7053
        %v7062 = vpack.c.b16 %v7056, %v7055
        %v7063 = vpack.c.b16 %v7058, %v7057
        %v7064 = vpack.c.b16 %v7060, %v7059
        %v7070 = vsel %vm319, %v6988, 0
        %v7073 = vsel %vm319, %v6996, 0
        %v7076 = vsel %vm319, %v7004, 0
        %v7079 = vsel %vm319, %v7012, 0
        %v7082 = vsel %vm319, %v7020, 0
        %v7085 = vsel %vm319, %v7028, 0
        %v7088 = vsel %vm319, %v7036, 0
        %v7091 = vsel %vm319, %v7044, 0
        %7093 = vmatprep.subr.bf16.mxu0 0
        %7094 = vmatpush1.bf16.msra.mxu0 0
        %7095 = vmatprep.subr.bf16.mxu0 0
        %7096 = vmatpush1.bf16.msra.mxu0 0
        %7097 = vmatprep.subr.bf16.mxu0 0
        %7098 = vmatpush1.bf16.msra.mxu0 0
        %7099 = vmatprep.subr.bf16.mxu0 0
        %7100 = vmatpush1.bf16.msra.mxu0 0
        %7101 = vmatprep.subr.bf16.mxu0 0
        %7102 = vmatpush1.bf16.msra.mxu0 %v7064
        %7103 = vmatprep.subr.bf16.mxu0 0
        %7104 = vmatpush1.bf16.msra.mxu0 %v7063
        %7105 = vmatprep.subr.bf16.mxu0 0
        %7106 = vmatpush1.bf16.msra.mxu0 %v7062
        %7107 = vmatprep.subr.bf16.mxu0 0
        %7108 = vmatpush1.bf16.msra.mxu0 %v7061
        %7109 = vmatprep.subr.bf16.mxu0 0
        %7110 = vmatpush2.bf16.msra.mxu0 0
        %7111 = vmatprep.subr.bf16.mxu0 0
        %7112 = vmatpush2.bf16.msra.mxu0 0
        %7113 = vmatprep.subr.bf16.mxu0 0
        %7114 = vmatpush2.bf16.msra.mxu0 0
        %7115 = vmatprep.subr.bf16.mxu0 0
        %7116 = vmatpush2.bf16.msra.mxu0 0
        %7117 = vmatprep.subr.bf16.mxu0 0
        %7118 = vmatpush2.bf16.msra.mxu0 0
        %7119 = vmatprep.subr.bf16.mxu0 0
        %7120 = vmatpush2.bf16.msra.mxu0 0
        %7121 = vmatprep.subr.bf16.mxu0 0
        %7122 = vmatpush2.bf16.msra.mxu0 0
        %7123 = vmatprep.subr.bf16.mxu0 0
        %7124 = vmatpush2.bf16.msra.mxu0 0
        %7125 = vmatprep.mubr.bf16.mxu0 0
        %7126 = vmatmul.mubr.bf16.gmra.mxu0 %v7070
        %v7127 = vpop.f32.mrf.mxu0
        %v7128 = vadd.f32 0.0, %v7127
        %v7129 = vpop.f32.mrf.mxu0
        %v7130 = vpop.f32.mrf.mxu0
        %v7131 = vadd.f32 0.0, %v7130
        %v7132 = vpop.f32.mrf.mxu0
        %7133 = vmatprep.mubr.bf16.mxu0 0
        %7134 = vmatmul.mubr.bf16.gmra.mxu0 %v7073
        %v7135 = vpop.f32.mrf.mxu0
        %v7136 = vadd.f32 0.0, %v7135
        %v7137 = vpop.f32.mrf.mxu0
        %v7138 = vpop.f32.mrf.mxu0
        %v7139 = vadd.f32 0.0, %v7138
        %v7140 = vpop.f32.mrf.mxu0
        %7141 = vmatprep.mubr.bf16.mxu0 0
        %7142 = vmatmul.mubr.bf16.gmra.mxu0 %v7076
        %v7143 = vpop.f32.mrf.mxu0
        %v7144 = vadd.f32 0.0, %v7143
        %v7145 = vpop.f32.mrf.mxu0
        %v7146 = vpop.f32.mrf.mxu0
        %v7147 = vadd.f32 0.0, %v7146
        %v7148 = vpop.f32.mrf.mxu0
        %7149 = vmatprep.mubr.bf16.mxu0 0
        %7150 = vmatmul.mubr.bf16.gmra.mxu0 %v7079
        %v7151 = vpop.f32.mrf.mxu0
        %v7152 = vadd.f32 0.0, %v7151
        %v7153 = vpop.f32.mrf.mxu0
        %v7154 = vpop.f32.mrf.mxu0
        %v7155 = vadd.f32 0.0, %v7154
        %v7156 = vpop.f32.mrf.mxu0
        %7157 = vmatprep.mubr.bf16.mxu0 0
        %7158 = vmatmul.mubr.bf16.gmra.mxu0 %v7082
        %v7159 = vpop.f32.mrf.mxu0
        %v7160 = vadd.f32 0.0, %v7159
        %v7161 = vpop.f32.mrf.mxu0
        %v7162 = vpop.f32.mrf.mxu0
        %v7163 = vadd.f32 0.0, %v7162
        %v7164 = vpop.f32.mrf.mxu0
        %7165 = vmatprep.mubr.bf16.mxu0 0
        %7166 = vmatmul.mubr.bf16.gmra.mxu0 %v7085
        %v7167 = vpop.f32.mrf.mxu0
        %v7168 = vadd.f32 0.0, %v7167
        %v7169 = vpop.f32.mrf.mxu0
        %v7170 = vpop.f32.mrf.mxu0
        %v7171 = vadd.f32 0.0, %v7170
        %v7172 = vpop.f32.mrf.mxu0
        %7173 = vmatprep.mubr.bf16.mxu0 0
        %7174 = vmatmul.mubr.bf16.gmra.mxu0 %v7088
        %v7175 = vpop.f32.mrf.mxu0
        %v7176 = vadd.f32 0.0, %v7175
        %v7177 = vpop.f32.mrf.mxu0
        %v7178 = vpop.f32.mrf.mxu0
        %v7179 = vadd.f32 0.0, %v7178
        %v7180 = vpop.f32.mrf.mxu0
        %7181 = vmatprep.mubr.bf16.mxu0 0
        %7182 = vmatmul.mubr.bf16.gmra.mxu0 %v7091
        %v7183 = vpop.f32.mrf.mxu0
        %v7184 = vadd.f32 0.0, %v7183
        %v7185 = vpop.f32.mrf.mxu0
        %v7186 = vpop.f32.mrf.mxu0
        %v7187 = vadd.f32 0.0, %v7186
        %v7188 = vpop.f32.mrf.mxu0
        %7189 = vdwg.mxu0
        %v7190 = vadd.f32 %v6876, %v7128
        %v7191 = vadd.f32 %v6877, %v7131
        %v7192 = vadd.f32 %v6878, %v7136
        %v7193 = vadd.f32 %v6879, %v7139
        %v7194 = vadd.f32 %v6880, %v7144
        %v7195 = vadd.f32 %v6881, %v7147
        %v7196 = vadd.f32 %v6882, %v7152
        %v7197 = vadd.f32 %v6883, %v7155
        %v7198 = vadd.f32 %v6884, %v7160
        %v7199 = vadd.f32 %v6885, %v7163
        %v7200 = vadd.f32 %v6886, %v7168
        %v7201 = vadd.f32 %v6887, %v7171
        %v7202 = vadd.f32 %v6888, %v7176
        %v7203 = vadd.f32 %v6889, %v7179
        %v7204 = vadd.f32 %v6890, %v7184
        %v7205 = vadd.f32 %v6891, %v7187
        %v7206 = vld [vmem:[%s294] sm:$0x1]
        %v7208 = vlaneseq
        %v7209 = vshrl.u32 %v7208, 7
        %v7210 = vsub.s32 0, %v7209
        %v7211 = vrot.slane %v7206, %v7210
        %v7213 = vadd.f32 %v7190, %v7211
        %v7214 = vadd.f32 %v7191, %v7211
        %v7215 = vadd.f32 %v7192, %v7211
        %v7216 = vadd.f32 %v7193, %v7211
        %v7217 = vadd.f32 %v7194, %v7211
        %v7218 = vadd.f32 %v7195, %v7211
        %v7219 = vadd.f32 %v7196, %v7211
        %v7220 = vadd.f32 %v7197, %v7211
        %v7221 = vadd.f32 %v7198, %v7211
        %v7222 = vadd.f32 %v7199, %v7211
        %v7223 = vadd.f32 %v7200, %v7211
        %v7224 = vadd.f32 %v7201, %v7211
        %v7225 = vadd.f32 %v7202, %v7211
        %v7226 = vadd.f32 %v7203, %v7211
        %v7227 = vadd.f32 %v7204, %v7211
        %v7228 = vadd.f32 %v7205, %v7211
        %v7229 = vpack.c.bf16 %v7214, %v7213
        %v7230 = vpack.c.bf16 %v7216, %v7215
        %v7231 = vpack.c.bf16 %v7218, %v7217
        %v7232 = vpack.c.bf16 %v7220, %v7219
        %v7233 = vpack.c.bf16 %v7222, %v7221
        %v7234 = vpack.c.bf16 %v7224, %v7223
        %v7235 = vpack.c.bf16 %v7226, %v7225
        %v7236 = vpack.c.bf16 %v7228, %v7227
        %v7245 = vunpack.c.l.b16 %v7229
        %v7246 = vunpack.c.h.b16 %v7229
        %v7247 = vunpack.c.l.b16 %v7230
        %v7248 = vunpack.c.h.b16 %v7230
        %v7249 = vunpack.c.l.b16 %v7231
        %v7250 = vunpack.c.h.b16 %v7231
        %v7251 = vunpack.c.l.b16 %v7232
        %v7252 = vunpack.c.h.b16 %v7232
        %v7253 = vunpack.c.l.b16 %v7233
        %v7254 = vunpack.c.h.b16 %v7233
        %v7255 = vunpack.c.l.b16 %v7234
        %v7256 = vunpack.c.h.b16 %v7234
        %v7257 = vunpack.c.l.b16 %v7235
        %v7258 = vunpack.c.h.b16 %v7235
        %v7259 = vunpack.c.l.b16 %v7236
        %v7260 = vunpack.c.h.b16 %v7236
        %v7261 = vpack.c.b16 %v7245, %v7245
        %v7262 = vpack.c.b16 %v7246, %v7246
        %v7263 = vpack.c.b16 %v7247, %v7247
        %v7264 = vpack.c.b16 %v7248, %v7248
        %v7265 = vpack.c.b16 %v7249, %v7249
        %v7266 = vpack.c.b16 %v7250, %v7250
        %v7267 = vpack.c.b16 %v7251, %v7251
        %v7268 = vpack.c.b16 %v7252, %v7252
        %v7269 = vpack.c.b16 %v7253, %v7253
        %v7270 = vpack.c.b16 %v7254, %v7254
        %v7271 = vpack.c.b16 %v7255, %v7255
        %v7272 = vpack.c.b16 %v7256, %v7256
        %v7273 = vpack.c.b16 %v7257, %v7257
        %v7274 = vpack.c.b16 %v7258, %v7258
        %v7275 = vpack.c.b16 %v7259, %v7259
        %v7276 = vpack.c.b16 %v7260, %v7260
        %7293 = vst [vmem:[%s282 + $0x40] sm:$0xf] %v7261
        %7294 = vst [vmem:[%s282 + $0x44] sm:$0xf] %v7262
        %7295 = vst [vmem:[%s282 + $0x48] sm:$0xf] %v7263
        %7296 = vst [vmem:[%s282 + $0x4c] sm:$0xf] %v7264
        %7297 = vst [vmem:[%s282 + $0x50] sm:$0xf] %v7265
        %7298 = vst [vmem:[%s282 + $0x54] sm:$0xf] %v7266
        %7299 = vst [vmem:[%s282 + $0x58] sm:$0xf] %v7267
        %7300 = vst [vmem:[%s282 + $0x5c] sm:$0xf] %v7268
        %7301 = vst [vmem:[%s282 + $0x60] sm:$0xf] %v7269
        %7302 = vst [vmem:[%s282 + $0x64] sm:$0xf] %v7270
        %7303 = vst [vmem:[%s282 + $0x68] sm:$0xf] %v7271
        %7304 = vst [vmem:[%s282 + $0x6c] sm:$0xf] %v7272
        %7305 = vst [vmem:[%s282 + $0x70] sm:$0xf] %v7273
        %7306 = vst [vmem:[%s282 + $0x74] sm:$0xf] %v7274
        %7307 = vst [vmem:[%s282 + $0x78] sm:$0xf] %v7275
        %7308 = vst [vmem:[%s282 + $0x7c] sm:$0xf] %v7276
        %s7309 = sand.u32 %s183, 1
        %s7310 = scalar_lea.sflag [#allocation4], %s7309
        %s7311 = sand.u32 %s183, 1
        %s7312 = smul.addr %s7311, 128
        %s7313 = scalar_lea.vmem [#allocation3], %s7312
        // Predicated region
        $region45: #{tpu_custom_call.1} parent=43 // pred_check
          %p7314 = pneg %p193
        $region46: #{tpu_custom_call.1} parent=43 // pred_check_branch
          %7316 = sbr.rel (%p7314) target = $region48
        $region47: #{tpu_custom_call.1} parent=43 // pred_region
          %s7318 = ssub.s32 2048, 2048
          %7319 = vsyncadd %s7310, %s7318
          %s7320 = smul.addr %s24, 32
          %s7321 = sadd.s32 %s25, %s7320
          %s7322 = smul.addr %s7321, 64
          %s7323 = scalar_lea.hbm %s6, %s7322
          %s7324 = sshll.u32 %s7313, 4
          %s7325 = int_to_ptr.vmem [resolvable:$true] %s7324
          %7330 = dma.vmem_to_hbm [thread:$0]  %s7325, 2048, %s7323, %s7310, 64, 64, 4
        $region48: #{tpu_custom_call.1} parent=43 // pred_fallthru
          _
      $region44: #{tpu_custom_call.1} parent=5 // pred_fallthru
        _
      %p7331 = scmp.le.s32.totalorder 2, %s15
      // Predicated region
      $region49: #{tpu_custom_call.1} parent=5 // pred_check
        %p7332 = pneg %p7331
      $region50: #{tpu_custom_call.1} parent=5 // pred_check_branch
        %7334 = sbr.rel (%p7332) target = $region52
      $region51: #{tpu_custom_call.1} parent=5 // pred_region
        %s7335 = ssub.s32 %s15, 2
        // Predicated region
        $region53: #{tpu_custom_call.1} parent=51 // pred_check
          %p7336 = pneg %p199
        $region54: #{tpu_custom_call.1} parent=51 // pred_check_branch
          %7338 = sbr.rel (%p7336) target = $region56
        $region55: #{tpu_custom_call.1} parent=51 // pred_region
          %s7339 = sand.u32 %s184, 1
          %s7340 = scalar_lea.sflag [#allocation4], %s7339
          %s7341 = sand.u32 %s184, 1
          %s7342 = smul.addr %s7341, 128
          %s7343 = scalar_lea.vmem [#allocation3], %s7342
          %7344 = dma.done %s7340, 2048
        $region56: #{tpu_custom_call.1} parent=51 // pred_fallthru
          _
      $region52: #{tpu_custom_call.1} parent=5 // pred_fallthru
        _
    $region6: #{tpu_custom_call.1} parent=1 // loop_footer
      %s19 = sadd.s32 1, %s15
    $region7: #{tpu_custom_call.1} parent=1 // loop_footer_branch
      %14 = sbr.rel target = $region3
    $region8: #{tpu_custom_call.1} parent=1 // loop_exit
      _
    %7345 = vsyncpa [#allocation4], 1
    %s7346 = scalar_lea.sflag [#allocation4], 1
    %7347 = vsyncpa %s7346, 1

</llo_original>
